<compile_context>
chip_gen: v5e
topology: v5e:2x2
jax: 0.10.0
libtpu: 0.0.40
codegen_flags: <defaults>
</compile_context>

<pallas_src>
import jax
import jax.numpy as jnp
from jax.experimental import pallas as pl
from jax.experimental.pallas import tpu as pltpu


def _prompt_kernel(emb_ref, w_ref, out_ref):
    # grid = (N // tn  [parallel],  T // tt  [arbitrary / reduction, last])
    t = pl.program_id(1)
    tt = emb_ref.shape[0]

    @pl.when(t == 0)
    def _():
        out_ref[...] = jnp.zeros_like(out_ref)

    w = w_ref[...]
    acc = out_ref[...]
    # Consume the templates of this block one [tn,D]@[D,E] dot at a time and
    # fold each normalized result straight into a local f32 accumulator.
    for i in range(tt):  # tt is small & static -> fully unrolled
        feat = jnp.dot(emb_ref[i], w, preferred_element_type=jnp.float32)
        # per-(template, noun) L2 normalize: feats / feats.norm(dim=-1)
        inv = jax.lax.rsqrt(jnp.sum(feat * feat, axis=-1, keepdims=True))
        acc = acc + feat * inv
    out_ref[...] = acc  # single store per grid step

    @pl.when(t == pl.num_programs(1) - 1)
    def _():
        # mean/||mean|| == sum/||sum|| (scale-invariant) -> skip divide by T.
        s = out_ref[...]
        inv = jax.lax.rsqrt(jnp.sum(s * s, axis=-1, keepdims=True))
        out_ref[...] = s * inv


def _vmem_capacity_bytes():
    try:
        return int(pltpu.get_tpu_info().vmem_capacity_bytes)
    except Exception:
        return 64 << 20  # conservative: v7x per-TensorCore VMEM


def prompt_extractor(emb, w_proj, *, tn=128, tt=8):
    """emb: [T, N, D] per-template noun embeddings (bf16/f32);
    w_proj: [D, E] CLIP text projection.
    Returns ensembled, L2-normalized text features [N, E] in float32."""
    T, N, D = emb.shape
    D2, E = w_proj.shape
    assert D == D2
    tn = min(tn, N)
    tt = min(tt, T)
    # Keep the parallel axis >= 2 blocks so both v7x TensorCores get work
    # (perf-neutral on single-TC v5e/v6e).
    while N // tn < 2 and tn % 16 == 0 and N % (tn // 2) == 0:
        tn //= 2
    assert N % tn == 0, "noun count must be divisible by the noun tile"
    assert T % tt == 0, "template count must be divisible by the template tile"
    assert E % 128 == 0, "embed dim should be lane-dense (multiple of 128)"
    # TODO(synk): no masking for ragged N/T; zero-padded rows renormalize to
    # NaN (matches torch feats/feats.norm semantics for all-zero rows).

    ebytes = jnp.dtype(emb.dtype).itemsize
    wbytes = jnp.dtype(w_proj.dtype).itemsize
    need = (2 * tt * tn * D * ebytes      # double-buffered emb tiles
            + D * E * wbytes              # W, single-buffered
            + 2 * tn * E * 4              # f32 output accumulator tile
            + 2 * tn * E * 4)             # live f32 feat + acc intermediates
    cap = _vmem_capacity_bytes()
    ceiling = (48 << 20) if cap <= (64 << 20) else (100 << 20)
    vmem_limit = int(min(max(2 * need, 16 << 20), ceiling))

    def _call(w_spec):
        return pl.pallas_call(
            _prompt_kernel,
            out_shape=jax.ShapeDtypeStruct((N, E), jnp.float32),
            grid_spec=pltpu.PrefetchScalarGridSpec(
                num_scalar_prefetch=0,
                grid=(N // tn, T // tt),
                in_specs=[
                    # per-step block of tt templates x tn nouns
                    pl.BlockSpec((tt, tn, D), lambda n, t: (t, n, 0)),
                    w_spec,
                ],
                # constant index over t -> VMEM-resident reduction accumulator
                out_specs=pl.BlockSpec((tn, E), lambda n, t: (n, 0)),
            ),
            compiler_params=pltpu.CompilerParams(
                dimension_semantics=("parallel", "arbitrary"),
                vmem_limit_bytes=vmem_limit),
        )(emb, w_proj)

    try:
        # W's index_map is constant -> one buffer is enough (saves D*E bytes).
        return _call(pl.BlockSpec((D, E), lambda n, t: (0, 0),
                                  pipeline_mode=pl.Buffered(1)))
    except Exception:
        # Stricter/older Pallas: fall back to default double-buffered W.
        return _call(pl.BlockSpec((D, E), lambda n, t: (0, 0)))


def _reference(emb, w_proj):
    feat = jnp.einsum("tnd,de->tne", emb.astype(jnp.float32),
                      w_proj.astype(jnp.float32))
    feat = feat / jnp.linalg.norm(feat, axis=-1, keepdims=True)
    mean = feat.mean(axis=0)
    return mean / jnp.linalg.norm(mean, axis=-1, keepdims=True)


if __name__ == "__main__":
    key = jax.random.PRNGKey(0)
    k1, k2 = jax.random.split(key)

    T = 8     # prompt templates (real CLIP ensembles use ~80)
    N = 256   # nouns / class names
    D = 128   # CLIP text width  (lane-dense)
    E = 128   # CLIP embed dim   (lane-dense, multiple of 128)

    emb_f32 = jax.random.normal(k1, (T, N, D), dtype=jnp.float32)
    w_f32 = jax.random.normal(k2, (D, E), dtype=jnp.float32) * 0.1

    # Stream inputs as bf16 (halves DMA bytes on the HBM-bound emb stream);
    # all accumulation / normalization math is f32 inside the kernel.
    emb = emb_f32.astype(jnp.bfloat16)
    w_proj = w_f32.astype(jnp.bfloat16)

    out = prompt_extractor(emb, w_proj, tn=128, tt=8)
    out = jax.block_until_ready(out)

    ref = _reference(emb, w_proj)   # f32 reference on the same bf16 inputs
    assert out.shape == (N, E)
    assert jnp.allclose(out, ref, atol=2e-3, rtol=2e-3), "mismatch vs reference"
    print("KERNEL_OK")
</pallas_src>

<mosaic_0001>
module attributes {stable_mosaic.version = 11 : i64} {
  func.func @_prompt_kernel(%arg0: i32, %arg1: i32, %arg2: memref<8x128x128xbf16, #tpu.memory_space<vmem>>, %arg3: memref<128x128xbf16, #tpu.memory_space<vmem>>, %arg4: memref<128x128xf32, #tpu.memory_space<vmem>>) attributes {dimension_semantics = [#tpu.dimension_semantics<parallel>, #tpu.dimension_semantics<arbitrary>], iteration_bounds = array<i64: 2, 1>, scalar_prefetch = 0 : i64, scratch_operands = 0 : i64, tpu.core_type = #tpu.core_type<tc>, window_params = [{transform_indices = @transform_0, window_bounds = array<i64: 8, 128, 128>}, {pipeline_mode = #tpu.pipeline_mode<synchronous>, transform_indices = @transform_1, window_bounds = array<i64: 128, 128>}, {transform_indices = @transform_2, window_bounds = array<i64: 128, 128>}]} {
    %c0_i32 = arith.constant 0 : i32
    %0 = arith.cmpi eq, %arg1, %c0_i32 : i32
    %1 = arith.extui %0 : i1 to i32
    %c0_i32_0 = arith.constant 0 : i32
    %2 = arith.cmpi ne, %1, %c0_i32_0 : i32
    scf.if %2 {
      %cst_40 = arith.constant 0.000000e+00 : f32
      %89 = vector.broadcast %cst_40 : f32 to vector<128x128xf32>
      %c0_41 = arith.constant 0 : index
      %c0_42 = arith.constant 0 : index
      %90 = vector.load %arg4[%c0_41, %c0_42] : memref<128x128xf32, #tpu.memory_space<vmem>>, vector<128x128xf32>
      tpu.vector_store %arg4[%c0_41, %c0_42], %89 {strides = array<i32>} : memref<128x128xf32, #tpu.memory_space<vmem>>, vector<128x128xf32>,
    } else {
    }
    %c0 = arith.constant 0 : index
    %c0_1 = arith.constant 0 : index
    %3 = vector.load %arg3[%c0, %c0_1] : memref<128x128xbf16, #tpu.memory_space<vmem>>, vector<128x128xbf16>
    %c0_2 = arith.constant 0 : index
    %c0_3 = arith.constant 0 : index
    %4 = vector.load %arg4[%c0_2, %c0_3] : memref<128x128xf32, #tpu.memory_space<vmem>>, vector<128x128xf32>
    %c0_4 = arith.constant 0 : index
    %c0_5 = arith.constant 0 : index
    %c0_6 = arith.constant 0 : index
    %5 = vector.load %arg2[%c0_4, %c0_5, %c0_6] : memref<8x128x128xbf16, #tpu.memory_space<vmem>>, vector<1x128x128xbf16>
    %6 = vector.shape_cast %5 : vector<1x128x128xbf16> to vector<128x128xbf16>
    %cst = arith.constant dense<0.000000e+00> : vector<128x128xf32>
    %7 = tpu.matmul %6, %3, %cst {dimension_numbers = #tpu.dot_dimension_numbers<[1], [0], [0], [1], [0, 0, 1, 1], [], []>} : vector<128x128xbf16>, vector<128x128xbf16>, vector<128x128xf32> -> vector<128x128xf32>
    %8 = arith.mulf %7, %7 : vector<128x128xf32>
    %cst_7 = arith.constant dense<0.000000e+00> : vector<128xf32>
    %9 = vector.multi_reduction <add>, %8, %cst_7 [1] : vector<128x128xf32> to vector<128xf32>
    %10 = vector.shape_cast %9 : vector<128xf32> to vector<128x1xf32>
    %11 = math.rsqrt %10 : vector<128x1xf32>
    %12 = vector.broadcast %11 : vector<128x1xf32> to vector<128x128xf32>
    %13 = arith.mulf %7, %12 : vector<128x128xf32>
    %14 = arith.addf %4, %13 : vector<128x128xf32>
    %c1 = arith.constant 1 : index
    %c0_8 = arith.constant 0 : index
    %c0_9 = arith.constant 0 : index
    %15 = vector.load %arg2[%c1, %c0_8, %c0_9] : memref<8x128x128xbf16, #tpu.memory_space<vmem>>, vector<1x128x128xbf16>
    %16 = vector.shape_cast %15 : vector<1x128x128xbf16> to vector<128x128xbf16>
    %cst_10 = arith.constant dense<0.000000e+00> : vector<128x128xf32>
    %17 = tpu.matmul %16, %3, %cst_10 {dimension_numbers = #tpu.dot_dimension_numbers<[1], [0], [0], [1], [0, 0, 1, 1], [], []>} : vector<128x128xbf16>, vector<128x128xbf16>, vector<128x128xf32> -> vector<128x128xf32>
    %18 = arith.mulf %17, %17 : vector<128x128xf32>
    %cst_11 = arith.constant dense<0.000000e+00> : vector<128xf32>
    %19 = vector.multi_reduction <add>, %18, %cst_11 [1] : vector<128x128xf32> to vector<128xf32>
    %20 = vector.shape_cast %19 : vector<128xf32> to vector<128x1xf32>
    %21 = math.rsqrt %20 : vector<128x1xf32>
    %22 = vector.broadcast %21 : vector<128x1xf32> to vector<128x128xf32>
    %23 = arith.mulf %17, %22 : vector<128x128xf32>
    %24 = arith.addf %14, %23 : vector<128x128xf32>
    %c2 = arith.constant 2 : index
    %c0_12 = arith.constant 0 : index
    %c0_13 = arith.constant 0 : index
    %25 = vector.load %arg2[%c2, %c0_12, %c0_13] : memref<8x128x128xbf16, #tpu.memory_space<vmem>>, vector<1x128x128xbf16>
    %26 = vector.shape_cast %25 : vector<1x128x128xbf16> to vector<128x128xbf16>
    %cst_14 = arith.constant dense<0.000000e+00> : vector<128x128xf32>
    %27 = tpu.matmul %26, %3, %cst_14 {dimension_numbers = #tpu.dot_dimension_numbers<[1], [0], [0], [1], [0, 0, 1, 1], [], []>} : vector<128x128xbf16>, vector<128x128xbf16>, vector<128x128xf32> -> vector<128x128xf32>
    %28 = arith.mulf %27, %27 : vector<128x128xf32>
    %cst_15 = arith.constant dense<0.000000e+00> : vector<128xf32>
    %29 = vector.multi_reduction <add>, %28, %cst_15 [1] : vector<128x128xf32> to vector<128xf32>
    %30 = vector.shape_cast %29 : vector<128xf32> to vector<128x1xf32>
    %31 = math.rsqrt %30 : vector<128x1xf32>
    %32 = vector.broadcast %31 : vector<128x1xf32> to vector<128x128xf32>
    %33 = arith.mulf %27, %32 : vector<128x128xf32>
    %34 = arith.addf %24, %33 : vector<128x128xf32>
    %c3 = arith.constant 3 : index
    %c0_16 = arith.constant 0 : index
    %c0_17 = arith.constant 0 : index
    %35 = vector.load %arg2[%c3, %c0_16, %c0_17] : memref<8x128x128xbf16, #tpu.memory_space<vmem>>, vector<1x128x128xbf16>
    %36 = vector.shape_cast %35 : vector<1x128x128xbf16> to vector<128x128xbf16>
    %cst_18 = arith.constant dense<0.000000e+00> : vector<128x128xf32>
    %37 = tpu.matmul %36, %3, %cst_18 {dimension_numbers = #tpu.dot_dimension_numbers<[1], [0], [0], [1], [0, 0, 1, 1], [], []>} : vector<128x128xbf16>, vector<128x128xbf16>, vector<128x128xf32> -> vector<128x128xf32>
    %38 = arith.mulf %37, %37 : vector<128x128xf32>
    %cst_19 = arith.constant dense<0.000000e+00> : vector<128xf32>
    %39 = vector.multi_reduction <add>, %38, %cst_19 [1] : vector<128x128xf32> to vector<128xf32>
    %40 = vector.shape_cast %39 : vector<128xf32> to vector<128x1xf32>
    %41 = math.rsqrt %40 : vector<128x1xf32>
    %42 = vector.broadcast %41 : vector<128x1xf32> to vector<128x128xf32>
    %43 = arith.mulf %37, %42 : vector<128x128xf32>
    %44 = arith.addf %34, %43 : vector<128x128xf32>
    %c4 = arith.constant 4 : index
    %c0_20 = arith.constant 0 : index
    %c0_21 = arith.constant 0 : index
    %45 = vector.load %arg2[%c4, %c0_20, %c0_21] : memref<8x128x128xbf16, #tpu.memory_space<vmem>>, vector<1x128x128xbf16>
    %46 = vector.shape_cast %45 : vector<1x128x128xbf16> to vector<128x128xbf16>
    %cst_22 = arith.constant dense<0.000000e+00> : vector<128x128xf32>
    %47 = tpu.matmul %46, %3, %cst_22 {dimension_numbers = #tpu.dot_dimension_numbers<[1], [0], [0], [1], [0, 0, 1, 1], [], []>} : vector<128x128xbf16>, vector<128x128xbf16>, vector<128x128xf32> -> vector<128x128xf32>
    %48 = arith.mulf %47, %47 : vector<128x128xf32>
    %cst_23 = arith.constant dense<0.000000e+00> : vector<128xf32>
    %49 = vector.multi_reduction <add>, %48, %cst_23 [1] : vector<128x128xf32> to vector<128xf32>
    %50 = vector.shape_cast %49 : vector<128xf32> to vector<128x1xf32>
    %51 = math.rsqrt %50 : vector<128x1xf32>
    %52 = vector.broadcast %51 : vector<128x1xf32> to vector<128x128xf32>
    %53 = arith.mulf %47, %52 : vector<128x128xf32>
    %54 = arith.addf %44, %53 : vector<128x128xf32>
    %c5 = arith.constant 5 : index
    %c0_24 = arith.constant 0 : index
    %c0_25 = arith.constant 0 : index
    %55 = vector.load %arg2[%c5, %c0_24, %c0_25] : memref<8x128x128xbf16, #tpu.memory_space<vmem>>, vector<1x128x128xbf16>
    %56 = vector.shape_cast %55 : vector<1x128x128xbf16> to vector<128x128xbf16>
    %cst_26 = arith.constant dense<0.000000e+00> : vector<128x128xf32>
    %57 = tpu.matmul %56, %3, %cst_26 {dimension_numbers = #tpu.dot_dimension_numbers<[1], [0], [0], [1], [0, 0, 1, 1], [], []>} : vector<128x128xbf16>, vector<128x128xbf16>, vector<128x128xf32> -> vector<128x128xf32>
    %58 = arith.mulf %57, %57 : vector<128x128xf32>
    %cst_27 = arith.constant dense<0.000000e+00> : vector<128xf32>
    %59 = vector.multi_reduction <add>, %58, %cst_27 [1] : vector<128x128xf32> to vector<128xf32>
    %60 = vector.shape_cast %59 : vector<128xf32> to vector<128x1xf32>
    %61 = math.rsqrt %60 : vector<128x1xf32>
    %62 = vector.broadcast %61 : vector<128x1xf32> to vector<128x128xf32>
    %63 = arith.mulf %57, %62 : vector<128x128xf32>
    %64 = arith.addf %54, %63 : vector<128x128xf32>
    %c6 = arith.constant 6 : index
    %c0_28 = arith.constant 0 : index
    %c0_29 = arith.constant 0 : index
    %65 = vector.load %arg2[%c6, %c0_28, %c0_29] : memref<8x128x128xbf16, #tpu.memory_space<vmem>>, vector<1x128x128xbf16>
    %66 = vector.shape_cast %65 : vector<1x128x128xbf16> to vector<128x128xbf16>
    %cst_30 = arith.constant dense<0.000000e+00> : vector<128x128xf32>
    %67 = tpu.matmul %66, %3, %cst_30 {dimension_numbers = #tpu.dot_dimension_numbers<[1], [0], [0], [1], [0, 0, 1, 1], [], []>} : vector<128x128xbf16>, vector<128x128xbf16>, vector<128x128xf32> -> vector<128x128xf32>
    %68 = arith.mulf %67, %67 : vector<128x128xf32>
    %cst_31 = arith.constant dense<0.000000e+00> : vector<128xf32>
    %69 = vector.multi_reduction <add>, %68, %cst_31 [1] : vector<128x128xf32> to vector<128xf32>
    %70 = vector.shape_cast %69 : vector<128xf32> to vector<128x1xf32>
    %71 = math.rsqrt %70 : vector<128x1xf32>
    %72 = vector.broadcast %71 : vector<128x1xf32> to vector<128x128xf32>
    %73 = arith.mulf %67, %72 : vector<128x128xf32>
    %74 = arith.addf %64, %73 : vector<128x128xf32>
    %c7 = arith.constant 7 : index
    %c0_32 = arith.constant 0 : index
    %c0_33 = arith.constant 0 : index
    %75 = vector.load %arg2[%c7, %c0_32, %c0_33] : memref<8x128x128xbf16, #tpu.memory_space<vmem>>, vector<1x128x128xbf16>
    %76 = vector.shape_cast %75 : vector<1x128x128xbf16> to vector<128x128xbf16>
    %cst_34 = arith.constant dense<0.000000e+00> : vector<128x128xf32>
    %77 = tpu.matmul %76, %3, %cst_34 {dimension_numbers = #tpu.dot_dimension_numbers<[1], [0], [0], [1], [0, 0, 1, 1], [], []>} : vector<128x128xbf16>, vector<128x128xbf16>, vector<128x128xf32> -> vector<128x128xf32>
    %78 = arith.mulf %77, %77 : vector<128x128xf32>
    %cst_35 = arith.constant dense<0.000000e+00> : vector<128xf32>
    %79 = vector.multi_reduction <add>, %78, %cst_35 [1] : vector<128x128xf32> to vector<128xf32>
    %80 = vector.shape_cast %79 : vector<128xf32> to vector<128x1xf32>
    %81 = math.rsqrt %80 : vector<128x1xf32>
    %82 = vector.broadcast %81 : vector<128x1xf32> to vector<128x128xf32>
    %83 = arith.mulf %77, %82 : vector<128x128xf32>
    %84 = arith.addf %74, %83 : vector<128x128xf32>
    %c0_36 = arith.constant 0 : index
    %c0_37 = arith.constant 0 : index
    %85 = vector.load %arg4[%c0_36, %c0_37] : memref<128x128xf32, #tpu.memory_space<vmem>>, vector<128x128xf32>
    tpu.vector_store %arg4[%c0_36, %c0_37], %84 {strides = array<i32>} : memref<128x128xf32, #tpu.memory_space<vmem>>, vector<128x128xf32>,
    %c0_i32_38 = arith.constant 0 : i32
    %86 = arith.cmpi eq, %arg1, %c0_i32_38 : i32
    %87 = arith.extui %86 : i1 to i32
    %c0_i32_39 = arith.constant 0 : i32
    %88 = arith.cmpi ne, %87, %c0_i32_39 : i32
    scf.if %88 {
      %c0_40 = arith.constant 0 : index
      %c0_41 = arith.constant 0 : index
      %89 = vector.load %arg4[%c0_40, %c0_41] : memref<128x128xf32, #tpu.memory_space<vmem>>, vector<128x128xf32>
      %90 = arith.mulf %89, %89 : vector<128x128xf32>
      %cst_42 = arith.constant dense<0.000000e+00> : vector<128xf32>
      %91 = vector.multi_reduction <add>, %90, %cst_42 [1] : vector<128x128xf32> to vector<128xf32>
      %92 = vector.shape_cast %91 : vector<128xf32> to vector<128x1xf32>
      %93 = math.rsqrt %92 : vector<128x1xf32>
      %94 = vector.broadcast %93 : vector<128x1xf32> to vector<128x128xf32>
      %95 = arith.mulf %89, %94 : vector<128x128xf32>
      %c0_43 = arith.constant 0 : index
      %c0_44 = arith.constant 0 : index
      %96 = vector.load %arg4[%c0_43, %c0_44] : memref<128x128xf32, #tpu.memory_space<vmem>>, vector<128x128xf32>
      tpu.vector_store %arg4[%c0_43, %c0_44], %95 {strides = array<i32>} : memref<128x128xf32, #tpu.memory_space<vmem>>, vector<128x128xf32>,
    } else {
    }
    return
  }
  func.func @transform_0(%arg0: i32, %arg1: i32) -> (i32, i32, i32) {
    %c0_i32 = arith.constant 0 : i32
    %c0_i32_0 = arith.constant 0 : i32
    return %arg1, %arg0, %c0_i32 : i32, i32, i32
  }
  func.func @transform_1(%arg0: i32, %arg1: i32) -> (i32, i32) {
    %c0_i32 = arith.constant 0 : i32
    %c0_i32_0 = arith.constant 0 : i32
    %c0_i32_1 = arith.constant 0 : i32
    return %c0_i32, %c0_i32_0 : i32, i32
  }
  func.func @transform_2(%arg0: i32, %arg1: i32) -> (i32, i32) {
    %c0_i32 = arith.constant 0 : i32
    %c0_i32_0 = arith.constant 0 : i32
    return %arg0, %c0_i32 : i32, i32
  }
}

module attributes {stable_mosaic.version = 11 : i64} {
  func.func @_prompt_kernel(%arg0: i32, %arg1: i32, %arg2: memref<8x128x128xbf16, #tpu.memory_space<vmem>>, %arg3: memref<128x128xbf16, #tpu.memory_space<vmem>>, %arg4: memref<128x128xf32, #tpu.memory_space<vmem>>) attributes {dimension_semantics = [#tpu.dimension_semantics<parallel>, #tpu.dimension_semantics<arbitrary>], iteration_bounds = array<i64: 2, 1>, scalar_prefetch = 0 : i64, scratch_operands = 0 : i64, tpu.core_type = #tpu.core_type<tc>, window_params = [{transform_indices = @transform_0, window_bounds = array<i64: 8, 128, 128>}, {pipeline_mode = #tpu.pipeline_mode<synchronous>, transform_indices = @transform_1, window_bounds = array<i64: 128, 128>}, {transform_indices = @transform_2, window_bounds = array<i64: 128, 128>}]} {
    %c0_i32 = arith.constant 0 : i32
    %0 = arith.cmpi eq, %arg1, %c0_i32 : i32
    %1 = arith.extui %0 : i1 to i32
    %c0_i32_0 = arith.constant 0 : i32
    %2 = arith.cmpi ne, %1, %c0_i32_0 : i32
    scf.if %2 {
      %cst_40 = arith.constant 0.000000e+00 : f32
      %89 = vector.broadcast %cst_40 : f32 to vector<128x128xf32>
      %c0_41 = arith.constant 0 : index
      %c0_42 = arith.constant 0 : index
      %90 = vector.load %arg4[%c0_41, %c0_42] : memref<128x128xf32, #tpu.memory_space<vmem>>, vector<128x128xf32>
      tpu.vector_store %arg4[%c0_41, %c0_42], %89 {strides = array<i32>} : memref<128x128xf32, #tpu.memory_space<vmem>>, vector<128x128xf32>,
    } else {
    }
    %c0 = arith.constant 0 : index
    %c0_1 = arith.constant 0 : index
    %3 = vector.load %arg3[%c0, %c0_1] : memref<128x128xbf16, #tpu.memory_space<vmem>>, vector<128x128xbf16>
    %c0_2 = arith.constant 0 : index
    %c0_3 = arith.constant 0 : index
    %4 = vector.load %arg4[%c0_2, %c0_3] : memref<128x128xf32, #tpu.memory_space<vmem>>, vector<128x128xf32>
    %c0_4 = arith.constant 0 : index
    %c0_5 = arith.constant 0 : index
    %c0_6 = arith.constant 0 : index
    %5 = vector.load %arg2[%c0_4, %c0_5, %c0_6] : memref<8x128x128xbf16, #tpu.memory_space<vmem>>, vector<1x128x128xbf16>
    %6 = vector.shape_cast %5 : vector<1x128x128xbf16> to vector<128x128xbf16>
    %cst = arith.constant dense<0.000000e+00> : vector<128x128xf32>
    %7 = tpu.matmul %6, %3, %cst {dimension_numbers = #tpu.dot_dimension_numbers<[1], [0], [0], [1], [0, 0, 1, 1], [], []>} : vector<128x128xbf16>, vector<128x128xbf16>, vector<128x128xf32> -> vector<128x128xf32>
    %8 = arith.mulf %7, %7 : vector<128x128xf32>
    %cst_7 = arith.constant dense<0.000000e+00> : vector<128xf32>
    %9 = vector.multi_reduction <add>, %8, %cst_7 [1] : vector<128x128xf32> to vector<128xf32>
    %10 = vector.shape_cast %9 : vector<128xf32> to vector<128x1xf32>
    %11 = math.rsqrt %10 : vector<128x1xf32>
    %12 = vector.broadcast %11 : vector<128x1xf32> to vector<128x128xf32>
    %13 = arith.mulf %7, %12 : vector<128x128xf32>
    %14 = arith.addf %4, %13 : vector<128x128xf32>
    %c1 = arith.constant 1 : index
    %c0_8 = arith.constant 0 : index
    %c0_9 = arith.constant 0 : index
    %15 = vector.load %arg2[%c1, %c0_8, %c0_9] : memref<8x128x128xbf16, #tpu.memory_space<vmem>>, vector<1x128x128xbf16>
    %16 = vector.shape_cast %15 : vector<1x128x128xbf16> to vector<128x128xbf16>
    %cst_10 = arith.constant dense<0.000000e+00> : vector<128x128xf32>
    %17 = tpu.matmul %16, %3, %cst_10 {dimension_numbers = #tpu.dot_dimension_numbers<[1], [0], [0], [1], [0, 0, 1, 1], [], []>} : vector<128x128xbf16>, vector<128x128xbf16>, vector<128x128xf32> -> vector<128x128xf32>
    %18 = arith.mulf %17, %17 : vector<128x128xf32>
    %cst_11 = arith.constant dense<0.000000e+00> : vector<128xf32>
    %19 = vector.multi_reduction <add>, %18, %cst_11 [1] : vector<128x128xf32> to vector<128xf32>
    %20 = vector.shape_cast %19 : vector<128xf32> to vector<128x1xf32>
    %21 = math.rsqrt %20 : vector<128x1xf32>
    %22 = vector.broadcast %21 : vector<128x1xf32> to vector<128x128xf32>
    %23 = arith.mulf %17, %22 : vector<128x128xf32>
    %24 = arith.addf %14, %23 : vector<128x128xf32>
    %c2 = arith.constant 2 : index
    %c0_12 = arith.constant 0 : index
    %c0_13 = arith.constant 0 : index
    %25 = vector.load %arg2[%c2, %c0_12, %c0_13] : memref<8x128x128xbf16, #tpu.memory_space<vmem>>, vector<1x128x128xbf16>
    %26 = vector.shape_cast %25 : vector<1x128x128xbf16> to vector<128x128xbf16>
    %cst_14 = arith.constant dense<0.000000e+00> : vector<128x128xf32>
    %27 = tpu.matmul %26, %3, %cst_14 {dimension_numbers = #tpu.dot_dimension_numbers<[1], [0], [0], [1], [0, 0, 1, 1], [], []>} : vector<128x128xbf16>, vector<128x128xbf16>, vector<128x128xf32> -> vector<128x128xf32>
    %28 = arith.mulf %27, %27 : vector<128x128xf32>
    %cst_15 = arith.constant dense<0.000000e+00> : vector<128xf32>
    %29 = vector.multi_reduction <add>, %28, %cst_15 [1] : vector<128x128xf32> to vector<128xf32>
    %30 = vector.shape_cast %29 : vector<128xf32> to vector<128x1xf32>
    %31 = math.rsqrt %30 : vector<128x1xf32>
    %32 = vector.broadcast %31 : vector<128x1xf32> to vector<128x128xf32>
    %33 = arith.mulf %27, %32 : vector<128x128xf32>
    %34 = arith.addf %24, %33 : vector<128x128xf32>
    %c3 = arith.constant 3 : index
    %c0_16 = arith.constant 0 : index
    %c0_17 = arith.constant 0 : index
    %35 = vector.load %arg2[%c3, %c0_16, %c0_17] : memref<8x128x128xbf16, #tpu.memory_space<vmem>>, vector<1x128x128xbf16>
    %36 = vector.shape_cast %35 : vector<1x128x128xbf16> to vector<128x128xbf16>
    %cst_18 = arith.constant dense<0.000000e+00> : vector<128x128xf32>
    %37 = tpu.matmul %36, %3, %cst_18 {dimension_numbers = #tpu.dot_dimension_numbers<[1], [0], [0], [1], [0, 0, 1, 1], [], []>} : vector<128x128xbf16>, vector<128x128xbf16>, vector<128x128xf32> -> vector<128x128xf32>
    %38 = arith.mulf %37, %37 : vector<128x128xf32>
    %cst_19 = arith.constant dense<0.000000e+00> : vector<128xf32>
    %39 = vector.multi_reduction <add>, %38, %cst_19 [1] : vector<128x128xf32> to vector<128xf32>
    %40 = vector.shape_cast %39 : vector<128xf32> to vector<128x1xf32>
    %41 = math.rsqrt %40 : vector<128x1xf32>
    %42 = vector.broadcast %41 : vector<128x1xf32> to vector<128x128xf32>
    %43 = arith.mulf %37, %42 : vector<128x128xf32>
    %44 = arith.addf %34, %43 : vector<128x128xf32>
    %c4 = arith.constant 4 : index
    %c0_20 = arith.constant 0 : index
    %c0_21 = arith.constant 0 : index
    %45 = vector.load %arg2[%c4, %c0_20, %c0_21] : memref<8x128x128xbf16, #tpu.memory_space<vmem>>, vector<1x128x128xbf16>
    %46 = vector.shape_cast %45 : vector<1x128x128xbf16> to vector<128x128xbf16>
    %cst_22 = arith.constant dense<0.000000e+00> : vector<128x128xf32>
    %47 = tpu.matmul %46, %3, %cst_22 {dimension_numbers = #tpu.dot_dimension_numbers<[1], [0], [0], [1], [0, 0, 1, 1], [], []>} : vector<128x128xbf16>, vector<128x128xbf16>, vector<128x128xf32> -> vector<128x128xf32>
    %48 = arith.mulf %47, %47 : vector<128x128xf32>
    %cst_23 = arith.constant dense<0.000000e+00> : vector<128xf32>
    %49 = vector.multi_reduction <add>, %48, %cst_23 [1] : vector<128x128xf32> to vector<128xf32>
    %50 = vector.shape_cast %49 : vector<128xf32> to vector<128x1xf32>
    %51 = math.rsqrt %50 : vector<128x1xf32>
    %52 = vector.broadcast %51 : vector<128x1xf32> to vector<128x128xf32>
    %53 = arith.mulf %47, %52 : vector<128x128xf32>
    %54 = arith.addf %44, %53 : vector<128x128xf32>
    %c5 = arith.constant 5 : index
    %c0_24 = arith.constant 0 : index
    %c0_25 = arith.constant 0 : index
    %55 = vector.load %arg2[%c5, %c0_24, %c0_25] : memref<8x128x128xbf16, #tpu.memory_space<vmem>>, vector<1x128x128xbf16>
    %56 = vector.shape_cast %55 : vector<1x128x128xbf16> to vector<128x128xbf16>
    %cst_26 = arith.constant dense<0.000000e+00> : vector<128x128xf32>
    %57 = tpu.matmul %56, %3, %cst_26 {dimension_numbers = #tpu.dot_dimension_numbers<[1], [0], [0], [1], [0, 0, 1, 1], [], []>} : vector<128x128xbf16>, vector<128x128xbf16>, vector<128x128xf32> -> vector<128x128xf32>
    %58 = arith.mulf %57, %57 : vector<128x128xf32>
    %cst_27 = arith.constant dense<0.000000e+00> : vector<128xf32>
    %59 = vector.multi_reduction <add>, %58, %cst_27 [1] : vector<128x128xf32> to vector<128xf32>
    %60 = vector.shape_cast %59 : vector<128xf32> to vector<128x1xf32>
    %61 = math.rsqrt %60 : vector<128x1xf32>
    %62 = vector.broadcast %61 : vector<128x1xf32> to vector<128x128xf32>
    %63 = arith.mulf %57, %62 : vector<128x128xf32>
    %64 = arith.addf %54, %63 : vector<128x128xf32>
    %c6 = arith.constant 6 : index
    %c0_28 = arith.constant 0 : index
    %c0_29 = arith.constant 0 : index
    %65 = vector.load %arg2[%c6, %c0_28, %c0_29] : memref<8x128x128xbf16, #tpu.memory_space<vmem>>, vector<1x128x128xbf16>
    %66 = vector.shape_cast %65 : vector<1x128x128xbf16> to vector<128x128xbf16>
    %cst_30 = arith.constant dense<0.000000e+00> : vector<128x128xf32>
    %67 = tpu.matmul %66, %3, %cst_30 {dimension_numbers = #tpu.dot_dimension_numbers<[1], [0], [0], [1], [0, 0, 1, 1], [], []>} : vector<128x128xbf16>, vector<128x128xbf16>, vector<128x128xf32> -> vector<128x128xf32>
    %68 = arith.mulf %67, %67 : vector<128x128xf32>
    %cst_31 = arith.constant dense<0.000000e+00> : vector<128xf32>
    %69 = vector.multi_reduction <add>, %68, %cst_31 [1] : vector<128x128xf32> to vector<128xf32>
    %70 = vector.shape_cast %69 : vector<128xf32> to vector<128x1xf32>
    %71 = math.rsqrt %70 : vector<128x1xf32>
    %72 = vector.broadcast %71 : vector<128x1xf32> to vector<128x128xf32>
    %73 = arith.mulf %67, %72 : vector<128x128xf32>
    %74 = arith.addf %64, %73 : vector<128x128xf32>
    %c7 = arith.constant 7 : index
    %c0_32 = arith.constant 0 : index
    %c0_33 = arith.constant 0 : index
    %75 = vector.load %arg2[%c7, %c0_32, %c0_33] : memref<8x128x128xbf16, #tpu.memory_space<vmem>>, vector<1x128x128xbf16>
    %76 = vector.shape_cast %75 : vector<1x128x128xbf16> to vector<128x128xbf16>
    %cst_34 = arith.constant dense<0.000000e+00> : vector<128x128xf32>
    %77 = tpu.matmul %76, %3, %cst_34 {dimension_numbers = #tpu.dot_dimension_numbers<[1], [0], [0], [1], [0, 0, 1, 1], [], []>} : vector<128x128xbf16>, vector<128x128xbf16>, vector<128x128xf32> -> vector<128x128xf32>
    %78 = arith.mulf %77, %77 : vector<128x128xf32>
    %cst_35 = arith.constant dense<0.000000e+00> : vector<128xf32>
    %79 = vector.multi_reduction <add>, %78, %cst_35 [1] : vector<128x128xf32> to vector<128xf32>
    %80 = vector.shape_cast %79 : vector<128xf32> to vector<128x1xf32>
    %81 = math.rsqrt %80 : vector<128x1xf32>
    %82 = vector.broadcast %81 : vector<128x1xf32> to vector<128x128xf32>
    %83 = arith.mulf %77, %82 : vector<128x128xf32>
    %84 = arith.addf %74, %83 : vector<128x128xf32>
    %c0_36 = arith.constant 0 : index
    %c0_37 = arith.constant 0 : index
    %85 = vector.load %arg4[%c0_36, %c0_37] : memref<128x128xf32, #tpu.memory_space<vmem>>, vector<128x128xf32>
    tpu.vector_store %arg4[%c0_36, %c0_37], %84 {strides = array<i32>} : memref<128x128xf32, #tpu.memory_space<vmem>>, vector<128x128xf32>,
    %c0_i32_38 = arith.constant 0 : i32
    %86 = arith.cmpi eq, %arg1, %c0_i32_38 : i32
    %87 = arith.extui %86 : i1 to i32
    %c0_i32_39 = arith.constant 0 : i32
    %88 = arith.cmpi ne, %87, %c0_i32_39 : i32
    scf.if %88 {
      %c0_40 = arith.constant 0 : index
      %c0_41 = arith.constant 0 : index
      %89 = vector.load %arg4[%c0_40, %c0_41] : memref<128x128xf32, #tpu.memory_space<vmem>>, vector<128x128xf32>
      %90 = arith.mulf %89, %89 : vector<128x128xf32>
      %cst_42 = arith.constant dense<0.000000e+00> : vector<128xf32>
      %91 = vector.multi_reduction <add>, %90, %cst_42 [1] : vector<128x128xf32> to vector<128xf32>
      %92 = vector.shape_cast %91 : vector<128xf32> to vector<128x1xf32>
      %93 = math.rsqrt %92 : vector<128x1xf32>
      %94 = vector.broadcast %93 : vector<128x1xf32> to vector<128x128xf32>
      %95 = arith.mulf %89, %94 : vector<128x128xf32>
      %c0_43 = arith.constant 0 : index
      %c0_44 = arith.constant 0 : index
      %96 = vector.load %arg4[%c0_43, %c0_44] : memref<128x128xf32, #tpu.memory_space<vmem>>, vector<128x128xf32>
      tpu.vector_store %arg4[%c0_43, %c0_44], %95 {strides = array<i32>} : memref<128x128xf32, #tpu.memory_space<vmem>>, vector<128x128xf32>,
    } else {
    }
    return
  }
  func.func @transform_0(%arg0: i32, %arg1: i32) -> (i32, i32, i32) {
    %c0_i32 = arith.constant 0 : i32
    %c0_i32_0 = arith.constant 0 : i32
    return %arg1, %arg0, %c0_i32 : i32, i32, i32
  }
  func.func @transform_1(%arg0: i32, %arg1: i32) -> (i32, i32) {
    %c0_i32 = arith.constant 0 : i32
    %c0_i32_0 = arith.constant 0 : i32
    %c0_i32_1 = arith.constant 0 : i32
    return %c0_i32, %c0_i32_0 : i32, i32
  }
  func.func @transform_2(%arg0: i32, %arg1: i32) -> (i32, i32) {
    %c0_i32 = arith.constant 0 : i32
    %c0_i32_0 = arith.constant 0 : i32
    return %arg0, %c0_i32 : i32, i32
  }
}

</mosaic_0001>

<llo_original>
// kernel: tpu_custom_call.1
$region0: #{tpu_custom_call.1}
  #allocation0 [shape = 'u32[]', space=smem, size = 0x4, offset = 0x4, fixed_abs, tag = 'smem constant byte address 0x4 - core index']
  #allocation1 [shape = 'u32[72,128]{1,0:T(1,128)}', space=vmem, size = 0x9000, scoped, tag = 'internal scratch']
  #allocation8 [shape = 's32[]', space=sflag, size = 0x4, offset = 0, fixed_abs, tag = 'sflag constant byte address 0x0 - dummy sync flag']
  %s0 = inlined_call_operand.hbm [shape: bf16[8,256,128], index: 0, kind: input, shape index: {}]
  %s1 = inlined_call_operand.hbm [shape: bf16[128,128], index: 1, kind: input, shape index: {}]
  %s2 = inlined_call_operand.hbm [shape: f32[256,128], index: 2, kind: output, shape index: {}]
  %s3 = sld [smem:[#allocation0]]
  $region57: #{tpu_custom_call.1} parent=0
    _
  %s5 = ssub.s32 1, %s3
  %s6 = scalar_select 0, %s5, %s3
  $region1: #{tpu_custom_call.1} parent=0
    #allocation2 [shape = 'u8[524288]{0}', space=vmem, size = 0x80000, scoped, tag = 'input window, operand 0']
    #allocation3 [shape = 's32[2]{0}', space=sflag, size = 0x8, scoped, tag = 'scoped memory for tpu_custom_call.1']
    #allocation4 [shape = 's32[2]{0}', space=sflag, size = 0x8, scoped, tag = 'scoped memory for tpu_custom_call.1']
    #allocation5 [shape = 'u8[32768]{0}', space=vmem, size = 0x8000, scoped, tag = 'input window, operand 1, single buffered']
    #allocation6 [shape = 's32[1]{0}', space=sflag, size = 0x4, scoped, tag = 'scoped memory for tpu_custom_call.1']
    #allocation7 [shape = 'u8[131072]{0}', space=vmem, size = 0x20000, scoped, tag = 'output window, operand 0']
    %7 = vsyncpa [#allocation3], 0
    %s8 = scalar_lea.sflag [#allocation3], 1
    %9 = vsyncpa %s8, 0
    %10 = vsyncpa [#allocation6], 0
    %11 = vsyncpa [#allocation4], 0
    %s12 = scalar_lea.sflag [#allocation4], 1
    %13 = vsyncpa %s12, 0
    loop: start=0, step=1, limit=4
    $region2: #{tpu_custom_call.1} parent=1 // loop_pre_header
      _
    $region3: #{tpu_custom_call.1} parent=1 // loop_header
      %s15 = sphi 0, %s19
      %p16 = scmp.ge.s32.totalorder %s15, 4
      %s22 = sphi 0, %s34
      %s23 = sphi 0, %s30
      %s24 = sphi 0, %s22
      %s25 = sphi 0, %s23
      %s26 = sphi 0, %s24
      %s27 = sphi 0, %s25
      %s39 = sphi 0, %s41
      %s42 = sphi 0, %s39
      %s43 = sphi 0, %s42
      %s59 = sphi 0, %s43
      %s63 = sphi 0, %s63
      %s65 = sphi 0, %s63
      %s66 = sphi 0, %s65
      %s80 = sphi 0, %s66
      %s86 = sphi 0, %s88
      %s89 = sphi 0, %s86
      %s90 = sphi 0, %s89
      %s106 = sphi 0, %s90
    $region4: #{tpu_custom_call.1} parent=1 // loop_header_branch
      %18 = sbr.rel (%p16) target = $region8
    $region5: #{tpu_custom_call.1} parent=1 // loop_body
      %s20 = ssub.s32 %s15, 1
      %s21 = ssub.s32 %s15, 2
      %s28 = sadd.s32 1, %s23
      %p29 = scmp.ge.s32.totalorder %s28, 1
      %s30 = scalar_select %p29, 0, %s28
      %s31 = sadd.s32 1, %s22
      %s32 = scalar_select %p29, %s31, %s22
      %p33 = scmp.ge.s32.totalorder %s32, 2
      %s34 = scalar_select %p33, 0, %s32
      %s35 = ssub.s32 %s23, %s30
      %s36 = ssub.s32 %s22, %s34
      %s37 = sor.u32 %s35, %s36
      %p38 = scmp.eq.s32.totalorder %s37, 0
      %s40 = sadd.s32 %s39, 1
      %s41 = scalar_select %p38, %s39, %s40
      %p44 = pneg %p38
      %p45 = scmp.eq.s32.totalorder %s15, 1
      %p46 = por %p44, %p45
      %p47 = scmp.ne.s32.totalorder %s39, %s42
      %p48 = scmp.eq.s32.totalorder %s15, 0
      %p49 = por %p47, %p48
      %p50 = scmp.ne.s32.totalorder %s39, %s42
      %p51 = scmp.eq.s32.totalorder %s20, 1
      %p52 = por %p50, %p51
      %p53 = scmp.ne.s32.totalorder %s42, %s43
      %p54 = scmp.eq.s32.totalorder %s20, 0
      %p55 = por %p53, %p54
      %p56 = scmp.ne.s32.totalorder %s42, %s43
      %p57 = scmp.eq.s32.totalorder %s21, 1
      %p58 = por %p56, %p57
      %p60 = scmp.ne.s32.totalorder %s43, %s59
      %p61 = scmp.eq.s32.totalorder %s21, 0
      %p62 = por %p60, %p61
      %s64 = sadd.s32 %s63, 1
      %p67 = scmp.eq.s32.totalorder %s15, 1
      %p68 = scmp.ne.s32.totalorder %s63, %s65
      %p69 = scmp.eq.s32.totalorder %s15, 0
      %p70 = por %p68, %p69
      %p71 = scmp.ne.s32.totalorder %s63, %s65
      %p72 = scmp.eq.s32.totalorder %s20, 1
      %p73 = por %p71, %p72
      %p74 = scmp.ne.s32.totalorder %s65, %s66
      %p75 = scmp.eq.s32.totalorder %s20, 0
      %p76 = por %p74, %p75
      %p77 = scmp.ne.s32.totalorder %s65, %s66
      %p78 = scmp.eq.s32.totalorder %s21, 1
      %p79 = por %p77, %p78
      %p81 = scmp.ne.s32.totalorder %s66, %s80
      %p82 = scmp.eq.s32.totalorder %s21, 0
      %p83 = por %p81, %p82
      %s84 = ssub.s32 %s22, %s34
      %p85 = scmp.eq.s32.totalorder %s84, 0
      %s87 = sadd.s32 %s86, 1
      %s88 = scalar_select %p85, %s86, %s87
      %p91 = pneg %p85
      %p92 = scmp.eq.s32.totalorder %s15, 1
      %p93 = por %p91, %p92
      %p94 = scmp.ne.s32.totalorder %s86, %s89
      %p95 = scmp.eq.s32.totalorder %s15, 0
      %p96 = por %p94, %p95
      %p97 = scmp.ne.s32.totalorder %s86, %s89
      %p98 = scmp.eq.s32.totalorder %s20, 1
      %p99 = por %p97, %p98
      %p100 = scmp.ne.s32.totalorder %s89, %s90
      %p101 = scmp.eq.s32.totalorder %s20, 0
      %p102 = por %p100, %p101
      %p103 = scmp.ne.s32.totalorder %s89, %s90
      %p104 = scmp.eq.s32.totalorder %s21, 1
      %p105 = por %p103, %p104
      %p107 = scmp.ne.s32.totalorder %s90, %s106
      %p108 = scmp.eq.s32.totalorder %s21, 0
      %p109 = por %p107, %p108
      %p110 = scmp.le.s32.totalorder 1, %s15
      %p111 = scmp.lt.s32.totalorder %s15, 3
      %p112 = pnand %p110, %p111
      %p113 = pneg %p112
      // Predicated region
      $region9: #{tpu_custom_call.1} parent=5 // pred_check
        _
      $region10: #{tpu_custom_call.1} parent=5 // pred_check_branch
        %115 = sbr.rel (%p112) target = $region12
      $region11: #{tpu_custom_call.1} parent=5 // pred_region
        %s116 = ssub.s32 %s15, 1
        // Predicated region
        $region13: #{tpu_custom_call.1} parent=11 // pred_check
          %p117 = pneg %p76
        $region14: #{tpu_custom_call.1} parent=11 // pred_check_branch
          %119 = sbr.rel (%p117) target = $region16
        $region15: #{tpu_custom_call.1} parent=11 // pred_region
          %121 = vsyncadd [#allocation6], 0
          %s122 = sshll.u32 %s1, 4
          %s123 = int_to_ptr.hbm [resolvable:$true] %s122
          %s124 = sshll.u32 [#allocation5], 4
          %s125 = int_to_ptr.vmem [resolvable:$true] %s124
          %130 = dma.hbm_to_vmem [thread:$0]  %s123, 1024, %s125, [#allocation6], 64, 64, 4
        $region16: #{tpu_custom_call.1} parent=11 // pred_fallthru
          _
      $region12: #{tpu_custom_call.1} parent=5 // pred_fallthru
        _
      %p131 = scmp.lt.s32.totalorder %s15, 2
      // Predicated region
      $region17: #{tpu_custom_call.1} parent=5 // pred_check
        %p132 = pneg %p131
      $region18: #{tpu_custom_call.1} parent=5 // pred_check_branch
        %134 = sbr.rel (%p132) target = $region20
      $region19: #{tpu_custom_call.1} parent=5 // pred_region
        // Predicated region
        $region21: #{tpu_custom_call.1} parent=19 // pred_check
          %p135 = pneg %p49
        $region22: #{tpu_custom_call.1} parent=19 // pred_check_branch
          %137 = sbr.rel (%p135) target = $region24
        $region23: #{tpu_custom_call.1} parent=19 // pred_region
          #allocation9 [shape = 'u32[6]{0}', space=smem, size = 0x18, scoped, tag = 'DMA stride descriptor']
          %s138 = sand.u32 %s39, 1
          %s139 = scalar_lea.sflag [#allocation3], %s138
          %s140 = sand.u32 %s39, 1
          %s141 = smul.addr %s140, 512
          %s142 = scalar_lea.vmem [#allocation2], %s141
          %s143 = smul.u32 8, %s23
          %s144 = smul.u32 16, %s22
          %146 = vsyncadd %s139, 0
          %s147 = smul.addr %s143, 32
          %s148 = sadd.s32 %s144, %s147
          %s149 = smul.addr %s148, 4
          %s150 = scalar_lea.hbm %s0, %s149
          %s152 = sshll.u32 1, 14
          %s153 = sxor.u32 4294967295, %s152
          %s155 = sld [smem:[#allocation0]]
          %s156 = sadd.s32 2, %s155
          %s158 = sshll.u32 7, 26
          %s159 = sxor.u32 4294967295, %s158
          %s160 = sand.u32 0, %s159
          %s161 = sshll.u32 %s156, 26
          %s162 = sor.u32 %s160, %s161
          %s163 = sshll.u32 %s150, 4
          %s164 = int_to_ptr.hbm [resolvable:$true] %s163
          %s165 = sshll.u32 %s142, 4
          %s166 = int_to_ptr.vmem [resolvable:$true] %s165
          %172 = sst [smem:[#allocation9]] 2048
          %s173 = scalar_lea.smem [#allocation9], 1
          %174 = sst [smem:[%s173]] 1024
          %s175 = scalar_lea.smem [#allocation9], 2
          %176 = sst [smem:[%s175]] 16
          %s177 = scalar_lea.smem [#allocation9], 3
          %178 = sst [smem:[%s177]] 64
          %s179 = scalar_lea.smem [#allocation9], 4
          %180 = sst [smem:[%s179]] 64
          %s181 = scalar_lea.smem [#allocation9], 5
          %182 = sst [smem:[%s181]] 4
          %184 = dma.general %s164, 8192, %s166, %s139, [#allocation8], [#allocation9], %s162, 0
        $region24: #{tpu_custom_call.1} parent=19 // pred_fallthru
          _
      $region20: #{tpu_custom_call.1} parent=5 // pred_fallthru
        _
      %p185 = scmp.le.s32.totalorder 1, %s15
      %p186 = scmp.lt.s32.totalorder %s15, 3
      %p187 = pnand %p185, %p186
      %p188 = pneg %p187
      // Predicated region
      $region25: #{tpu_custom_call.1} parent=5 // pred_check
        _
      $region26: #{tpu_custom_call.1} parent=5 // pred_check_branch
        %190 = sbr.rel (%p187) target = $region28
      $region27: #{tpu_custom_call.1} parent=5 // pred_region
        %s191 = ssub.s32 %s15, 1
        %s192 = sand.u32 %s42, 1
        %s193 = scalar_lea.sflag [#allocation3], %s192
        %s194 = sand.u32 %s42, 1
        %s195 = smul.addr %s194, 512
        %s196 = scalar_lea.vmem [#allocation2], %s195
        // Predicated region
        $region29: #{tpu_custom_call.1} parent=27 // pred_check
          %p197 = pneg %p55
        $region30: #{tpu_custom_call.1} parent=27 // pred_check_branch
          %199 = sbr.rel (%p197) target = $region32
        $region31: #{tpu_custom_call.1} parent=27 // pred_region
          %201 = dma.done %s193, 8192
        $region32: #{tpu_custom_call.1} parent=27 // pred_fallthru
          _
        // Predicated region
        $region33: #{tpu_custom_call.1} parent=27 // pred_check
          %p202 = pneg %p76
        $region34: #{tpu_custom_call.1} parent=27 // pred_check_branch
          %204 = sbr.rel (%p202) target = $region36
        $region35: #{tpu_custom_call.1} parent=27 // pred_region
          %206 = dma.done [#allocation6], 1024
        $region36: #{tpu_custom_call.1} parent=27 // pred_fallthru
          _
        %s207 = sand.u32 %s42, 1
        %s208 = scalar_lea.sflag [#allocation3], %s207
        %s209 = sand.u32 %s42, 1
        %s210 = smul.addr %s209, 512
        %s211 = scalar_lea.vmem [#allocation2], %s210
        %p212 = pneg %p55
        %p213 = pneg %p52
        %p214 = pneg %p76
        %p215 = pneg %p73
        %p216 = pneg %p102
        %p217 = pneg %p99
        %s218 = sand.u32 %s89, 1
        %s219 = scalar_lea.sflag [#allocation4], %s218
        %s220 = sand.u32 %s89, 1
        %s221 = smul.addr %s220, 128
        %s222 = scalar_lea.vmem [#allocation7], %s221
        %s223 = smul.u32 8, %s25
        %s224 = smul.u32 16, %s24
        %s225 = smul.u32 16, %s24
        %p226 = scmp.eq.s32.totalorder %s25, 0
        // Predicated region
        $region37: #{tpu_custom_call.1} parent=27 // pred_check
          %p227 = pneg %p226
        $region38: #{tpu_custom_call.1} parent=27 // pred_check_branch
          %229 = sbr.rel (%p227) target = $region40
        $region39: #{tpu_custom_call.1} parent=27 // pred_region
          %230 = vst [vmem:[%s222] sm:$0xff] 0.0
          %231 = vst [vmem:[%s222 + $0x8] sm:$0xff] 0.0
          %232 = vst [vmem:[%s222 + $0x10] sm:$0xff] 0.0
          %233 = vst [vmem:[%s222 + $0x18] sm:$0xff] 0.0
          %234 = vst [vmem:[%s222 + $0x20] sm:$0xff] 0.0
          %235 = vst [vmem:[%s222 + $0x28] sm:$0xff] 0.0
          %236 = vst [vmem:[%s222 + $0x30] sm:$0xff] 0.0
          %237 = vst [vmem:[%s222 + $0x38] sm:$0xff] 0.0
          %238 = vst [vmem:[%s222 + $0x40] sm:$0xff] 0.0
          %239 = vst [vmem:[%s222 + $0x48] sm:$0xff] 0.0
          %240 = vst [vmem:[%s222 + $0x50] sm:$0xff] 0.0
          %241 = vst [vmem:[%s222 + $0x58] sm:$0xff] 0.0
          %242 = vst [vmem:[%s222 + $0x60] sm:$0xff] 0.0
          %243 = vst [vmem:[%s222 + $0x68] sm:$0xff] 0.0
          %244 = vst [vmem:[%s222 + $0x70] sm:$0xff] 0.0
          %245 = vst [vmem:[%s222 + $0x78] sm:$0xff] 0.0
        $region40: #{tpu_custom_call.1} parent=27 // pred_fallthru
          _
        %v246 = vld [vmem:[#allocation5] sm:$0xf]
        %v247 = vld [vmem:[#allocation5 + $0x4] sm:$0xf]
        %v248 = vld [vmem:[#allocation5 + $0x8] sm:$0xf]
        %v249 = vld [vmem:[#allocation5 + $0xc] sm:$0xf]
        %v250 = vld [vmem:[#allocation5 + $0x10] sm:$0xf]
        %v251 = vld [vmem:[#allocation5 + $0x14] sm:$0xf]
        %v252 = vld [vmem:[#allocation5 + $0x18] sm:$0xf]
        %v253 = vld [vmem:[#allocation5 + $0x1c] sm:$0xf]
        %v254 = vld [vmem:[#allocation5 + $0x20] sm:$0xf]
        %v255 = vld [vmem:[#allocation5 + $0x24] sm:$0xf]
        %v256 = vld [vmem:[#allocation5 + $0x28] sm:$0xf]
        %v257 = vld [vmem:[#allocation5 + $0x2c] sm:$0xf]
        %v258 = vld [vmem:[#allocation5 + $0x30] sm:$0xf]
        %v259 = vld [vmem:[#allocation5 + $0x34] sm:$0xf]
        %v260 = vld [vmem:[#allocation5 + $0x38] sm:$0xf]
        %v261 = vld [vmem:[#allocation5 + $0x3c] sm:$0xf]
        %v262 = vld [vmem:[%s222] sm:$0xff]
        %v263 = vld [vmem:[%s222 + $0x8] sm:$0xff]
        %v264 = vld [vmem:[%s222 + $0x10] sm:$0xff]
        %v265 = vld [vmem:[%s222 + $0x18] sm:$0xff]
        %v266 = vld [vmem:[%s222 + $0x20] sm:$0xff]
        %v267 = vld [vmem:[%s222 + $0x28] sm:$0xff]
        %v268 = vld [vmem:[%s222 + $0x30] sm:$0xff]
        %v269 = vld [vmem:[%s222 + $0x38] sm:$0xff]
        %v270 = vld [vmem:[%s222 + $0x40] sm:$0xff]
        %v271 = vld [vmem:[%s222 + $0x48] sm:$0xff]
        %v272 = vld [vmem:[%s222 + $0x50] sm:$0xff]
        %v273 = vld [vmem:[%s222 + $0x58] sm:$0xff]
        %v274 = vld [vmem:[%s222 + $0x60] sm:$0xff]
        %v275 = vld [vmem:[%s222 + $0x68] sm:$0xff]
        %v276 = vld [vmem:[%s222 + $0x70] sm:$0xff]
        %v277 = vld [vmem:[%s222 + $0x78] sm:$0xff]
        %v278 = vld [vmem:[%s196] sm:$0xf]
        %v279 = vld [vmem:[%s196 + $0x4] sm:$0xf]
        %v280 = vld [vmem:[%s196 + $0x8] sm:$0xf]
        %v281 = vld [vmem:[%s196 + $0xc] sm:$0xf]
        %v282 = vld [vmem:[%s196 + $0x10] sm:$0xf]
        %v283 = vld [vmem:[%s196 + $0x14] sm:$0xf]
        %v284 = vld [vmem:[%s196 + $0x18] sm:$0xf]
        %v285 = vld [vmem:[%s196 + $0x1c] sm:$0xf]
        %v286 = vld [vmem:[%s196 + $0x20] sm:$0xf]
        %v287 = vld [vmem:[%s196 + $0x24] sm:$0xf]
        %v288 = vld [vmem:[%s196 + $0x28] sm:$0xf]
        %v289 = vld [vmem:[%s196 + $0x2c] sm:$0xf]
        %v290 = vld [vmem:[%s196 + $0x30] sm:$0xf]
        %v291 = vld [vmem:[%s196 + $0x34] sm:$0xf]
        %v292 = vld [vmem:[%s196 + $0x38] sm:$0xf]
        %v293 = vld [vmem:[%s196 + $0x3c] sm:$0xf]
        %v310 = vunpack.c.l.b16 %v278
        %v311 = vunpack.c.l.b16 %v279
        %v312 = vunpack.c.l.b16 %v280
        %v313 = vunpack.c.l.b16 %v281
        %v314 = vunpack.c.l.b16 %v282
        %v315 = vunpack.c.l.b16 %v283
        %v316 = vunpack.c.l.b16 %v284
        %v317 = vunpack.c.l.b16 %v285
        %v318 = vunpack.c.l.b16 %v286
        %v319 = vunpack.c.l.b16 %v287
        %v320 = vunpack.c.l.b16 %v288
        %v321 = vunpack.c.l.b16 %v289
        %v322 = vunpack.c.l.b16 %v290
        %v323 = vunpack.c.l.b16 %v291
        %v324 = vunpack.c.l.b16 %v292
        %v325 = vunpack.c.l.b16 %v293
        %v326 = vpack.c.b16 %v311, %v310
        %v327 = vpack.c.b16 %v313, %v312
        %v328 = vpack.c.b16 %v315, %v314
        %v329 = vpack.c.b16 %v317, %v316
        %v330 = vpack.c.b16 %v319, %v318
        %v331 = vpack.c.b16 %v321, %v320
        %v332 = vpack.c.b16 %v323, %v322
        %v333 = vpack.c.b16 %v325, %v324
        %v358 = vunpack.c.l.b16 %v246
        %v359 = vunpack.c.l.b16 %v247
        %v360 = vunpack.c.l.b16 %v248
        %v361 = vunpack.c.l.b16 %v249
        %v362 = vunpack.c.l.b16 %v250
        %v363 = vunpack.c.l.b16 %v251
        %v364 = vunpack.c.l.b16 %v252
        %v365 = vunpack.c.l.b16 %v253
        %v366 = vunpack.c.l.b16 %v254
        %v367 = vunpack.c.l.b16 %v255
        %v368 = vunpack.c.l.b16 %v256
        %v369 = vunpack.c.l.b16 %v257
        %v370 = vunpack.c.l.b16 %v258
        %v371 = vunpack.c.l.b16 %v259
        %v372 = vunpack.c.l.b16 %v260
        %v373 = vunpack.c.l.b16 %v261
        %v374 = vpack.c.b16 %v359, %v358
        %v375 = vpack.c.b16 %v361, %v360
        %v376 = vpack.c.b16 %v363, %v362
        %v377 = vpack.c.b16 %v365, %v364
        %v378 = vpack.c.b16 %v367, %v366
        %v379 = vpack.c.b16 %v369, %v368
        %v380 = vpack.c.b16 %v371, %v370
        %v381 = vpack.c.b16 %v373, %v372
        %390 = vmatpush.bf16.msra.mxu0 %v381
        %391 = vmatpush.bf16.msra.mxu0 %v380
        %392 = vmatpush.bf16.msra.mxu0 %v379
        %393 = vmatpush.bf16.msra.mxu0 %v378
        %394 = vmatpush.bf16.msra.mxu0 %v377
        %395 = vmatpush.bf16.msra.mxu0 %v376
        %396 = vmatpush.bf16.msra.mxu0 %v375
        %397 = vmatpush.bf16.msra.mxu0 %v374
        %398 = vmatmul.bf16.gmra.mxu0 %v326
        %v399 = vpop.f32.mrf.mxu0
        %v400 = vadd.f32 0.0, %v399
        %v401 = vpop.f32.mrf.mxu0
        %v402 = vadd.f32 0.0, %v401
        %403 = vmatmul.bf16.gmra.mxu0 %v327
        %v404 = vpop.f32.mrf.mxu0
        %v405 = vadd.f32 0.0, %v404
        %v406 = vpop.f32.mrf.mxu0
        %v407 = vadd.f32 0.0, %v406
        %408 = vmatmul.bf16.gmra.mxu0 %v328
        %v409 = vpop.f32.mrf.mxu0
        %v410 = vadd.f32 0.0, %v409
        %v411 = vpop.f32.mrf.mxu0
        %v412 = vadd.f32 0.0, %v411
        %413 = vmatmul.bf16.gmra.mxu0 %v329
        %v414 = vpop.f32.mrf.mxu0
        %v415 = vadd.f32 0.0, %v414
        %v416 = vpop.f32.mrf.mxu0
        %v417 = vadd.f32 0.0, %v416
        %418 = vmatmul.bf16.gmra.mxu0 %v330
        %v419 = vpop.f32.mrf.mxu0
        %v420 = vadd.f32 0.0, %v419
        %v421 = vpop.f32.mrf.mxu0
        %v422 = vadd.f32 0.0, %v421
        %423 = vmatmul.bf16.gmra.mxu0 %v331
        %v424 = vpop.f32.mrf.mxu0
        %v425 = vadd.f32 0.0, %v424
        %v426 = vpop.f32.mrf.mxu0
        %v427 = vadd.f32 0.0, %v426
        %428 = vmatmul.bf16.gmra.mxu0 %v332
        %v429 = vpop.f32.mrf.mxu0
        %v430 = vadd.f32 0.0, %v429
        %v431 = vpop.f32.mrf.mxu0
        %v432 = vadd.f32 0.0, %v431
        %433 = vmatmul.bf16.gmra.mxu0 %v333
        %v434 = vpop.f32.mrf.mxu0
        %v435 = vadd.f32 0.0, %v434
        %v436 = vpop.f32.mrf.mxu0
        %v437 = vadd.f32 0.0, %v436
        %438 = vdwg.mxu0
        %v439 = vmul.f32 %v400, %v400
        %v440 = vmul.f32 %v402, %v402
        %v441 = vmul.f32 %v405, %v405
        %v442 = vmul.f32 %v407, %v407
        %v443 = vmul.f32 %v410, %v410
        %v444 = vmul.f32 %v412, %v412
        %v445 = vmul.f32 %v415, %v415
        %v446 = vmul.f32 %v417, %v417
        %v447 = vmul.f32 %v420, %v420
        %v448 = vmul.f32 %v422, %v422
        %v449 = vmul.f32 %v425, %v425
        %v450 = vmul.f32 %v427, %v427
        %v451 = vmul.f32 %v430, %v430
        %v452 = vmul.f32 %v432, %v432
        %v453 = vmul.f32 %v435, %v435
        %v454 = vmul.f32 %v437, %v437
        %455 = vadd.xlane.f32.xlu0 %v439
        %v456 = vpop.xlane.xlu0 %455
        %457 = vadd.xlane.f32.xlu0 %v440
        %v458 = vpop.xlane.xlu0 %457
        %459 = vadd.xlane.f32.xlu0 %v441
        %v460 = vpop.xlane.xlu0 %459
        %461 = vadd.xlane.f32.xlu0 %v442
        %v462 = vpop.xlane.xlu0 %461
        %463 = vadd.xlane.f32.xlu0 %v443
        %v464 = vpop.xlane.xlu0 %463
        %465 = vadd.xlane.f32.xlu0 %v444
        %v466 = vpop.xlane.xlu0 %465
        %467 = vadd.xlane.f32.xlu0 %v445
        %v468 = vpop.xlane.xlu0 %467
        %469 = vadd.xlane.f32.xlu0 %v446
        %v470 = vpop.xlane.xlu0 %469
        %471 = vadd.xlane.f32.xlu0 %v447
        %v472 = vpop.xlane.xlu0 %471
        %473 = vadd.xlane.f32.xlu0 %v448
        %v474 = vpop.xlane.xlu0 %473
        %475 = vadd.xlane.f32.xlu0 %v449
        %v476 = vpop.xlane.xlu0 %475
        %477 = vadd.xlane.f32.xlu0 %v450
        %v478 = vpop.xlane.xlu0 %477
        %479 = vadd.xlane.f32.xlu0 %v451
        %v480 = vpop.xlane.xlu0 %479
        %481 = vadd.xlane.f32.xlu0 %v452
        %v482 = vpop.xlane.xlu0 %481
        %483 = vadd.xlane.f32.xlu0 %v453
        %v484 = vpop.xlane.xlu0 %483
        %485 = vadd.xlane.f32.xlu0 %v454
        %v486 = vpop.xlane.xlu0 %485
        %v487 = vrsqrt.pop %v456
        %v488 = vmul.f32 %v487, %v456
        %v489 = vmul.f32 %v488, %v487
        %v490 = vmul.f32 0.5, %v489
        %v491 = vsub.f32 1.5, %v490
        %v492 = vmul.f32 %v487, %v491
        %vm493 = vweird.f32 %v456
        %vm494 = vweird.f32 %v487
        %vm495 = vmor %vm493, %vm494
        %v496 = vsel %vm495, %v487, %v492
        %v497 = vrsqrt.pop %v458
        %v498 = vmul.f32 %v497, %v458
        %v499 = vmul.f32 %v498, %v497
        %v500 = vmul.f32 0.5, %v499
        %v501 = vsub.f32 1.5, %v500
        %v502 = vmul.f32 %v497, %v501
        %vm503 = vweird.f32 %v458
        %vm504 = vweird.f32 %v497
        %vm505 = vmor %vm503, %vm504
        %v506 = vsel %vm505, %v497, %v502
        %v507 = vrsqrt.pop %v460
        %v508 = vmul.f32 %v507, %v460
        %v509 = vmul.f32 %v508, %v507
        %v510 = vmul.f32 0.5, %v509
        %v511 = vsub.f32 1.5, %v510
        %v512 = vmul.f32 %v507, %v511
        %vm513 = vweird.f32 %v460
        %vm514 = vweird.f32 %v507
        %vm515 = vmor %vm513, %vm514
        %v516 = vsel %vm515, %v507, %v512
        %v517 = vrsqrt.pop %v462
        %v518 = vmul.f32 %v517, %v462
        %v519 = vmul.f32 %v518, %v517
        %v520 = vmul.f32 0.5, %v519
        %v521 = vsub.f32 1.5, %v520
        %v522 = vmul.f32 %v517, %v521
        %vm523 = vweird.f32 %v462
        %vm524 = vweird.f32 %v517
        %vm525 = vmor %vm523, %vm524
        %v526 = vsel %vm525, %v517, %v522
        %v527 = vrsqrt.pop %v464
        %v528 = vmul.f32 %v527, %v464
        %v529 = vmul.f32 %v528, %v527
        %v530 = vmul.f32 0.5, %v529
        %v531 = vsub.f32 1.5, %v530
        %v532 = vmul.f32 %v527, %v531
        %vm533 = vweird.f32 %v464
        %vm534 = vweird.f32 %v527
        %vm535 = vmor %vm533, %vm534
        %v536 = vsel %vm535, %v527, %v532
        %v537 = vrsqrt.pop %v466
        %v538 = vmul.f32 %v537, %v466
        %v539 = vmul.f32 %v538, %v537
        %v540 = vmul.f32 0.5, %v539
        %v541 = vsub.f32 1.5, %v540
        %v542 = vmul.f32 %v537, %v541
        %vm543 = vweird.f32 %v466
        %vm544 = vweird.f32 %v537
        %vm545 = vmor %vm543, %vm544
        %v546 = vsel %vm545, %v537, %v542
        %v547 = vrsqrt.pop %v468
        %v548 = vmul.f32 %v547, %v468
        %v549 = vmul.f32 %v548, %v547
        %v550 = vmul.f32 0.5, %v549
        %v551 = vsub.f32 1.5, %v550
        %v552 = vmul.f32 %v547, %v551
        %vm553 = vweird.f32 %v468
        %vm554 = vweird.f32 %v547
        %vm555 = vmor %vm553, %vm554
        %v556 = vsel %vm555, %v547, %v552
        %v557 = vrsqrt.pop %v470
        %v558 = vmul.f32 %v557, %v470
        %v559 = vmul.f32 %v558, %v557
        %v560 = vmul.f32 0.5, %v559
        %v561 = vsub.f32 1.5, %v560
        %v562 = vmul.f32 %v557, %v561
        %vm563 = vweird.f32 %v470
        %vm564 = vweird.f32 %v557
        %vm565 = vmor %vm563, %vm564
        %v566 = vsel %vm565, %v557, %v562
        %v567 = vrsqrt.pop %v472
        %v568 = vmul.f32 %v567, %v472
        %v569 = vmul.f32 %v568, %v567
        %v570 = vmul.f32 0.5, %v569
        %v571 = vsub.f32 1.5, %v570
        %v572 = vmul.f32 %v567, %v571
        %vm573 = vweird.f32 %v472
        %vm574 = vweird.f32 %v567
        %vm575 = vmor %vm573, %vm574
        %v576 = vsel %vm575, %v567, %v572
        %v577 = vrsqrt.pop %v474
        %v578 = vmul.f32 %v577, %v474
        %v579 = vmul.f32 %v578, %v577
        %v580 = vmul.f32 0.5, %v579
        %v581 = vsub.f32 1.5, %v580
        %v582 = vmul.f32 %v577, %v581
        %vm583 = vweird.f32 %v474
        %vm584 = vweird.f32 %v577
        %vm585 = vmor %vm583, %vm584
        %v586 = vsel %vm585, %v577, %v582
        %v587 = vrsqrt.pop %v476
        %v588 = vmul.f32 %v587, %v476
        %v589 = vmul.f32 %v588, %v587
        %v590 = vmul.f32 0.5, %v589
        %v591 = vsub.f32 1.5, %v590
        %v592 = vmul.f32 %v587, %v591
        %vm593 = vweird.f32 %v476
        %vm594 = vweird.f32 %v587
        %vm595 = vmor %vm593, %vm594
        %v596 = vsel %vm595, %v587, %v592
        %v597 = vrsqrt.pop %v478
        %v598 = vmul.f32 %v597, %v478
        %v599 = vmul.f32 %v598, %v597
        %v600 = vmul.f32 0.5, %v599
        %v601 = vsub.f32 1.5, %v600
        %v602 = vmul.f32 %v597, %v601
        %vm603 = vweird.f32 %v478
        %vm604 = vweird.f32 %v597
        %vm605 = vmor %vm603, %vm604
        %v606 = vsel %vm605, %v597, %v602
        %v607 = vrsqrt.pop %v480
        %v608 = vmul.f32 %v607, %v480
        %v609 = vmul.f32 %v608, %v607
        %v610 = vmul.f32 0.5, %v609
        %v611 = vsub.f32 1.5, %v610
        %v612 = vmul.f32 %v607, %v611
        %vm613 = vweird.f32 %v480
        %vm614 = vweird.f32 %v607
        %vm615 = vmor %vm613, %vm614
        %v616 = vsel %vm615, %v607, %v612
        %v617 = vrsqrt.pop %v482
        %v618 = vmul.f32 %v617, %v482
        %v619 = vmul.f32 %v618, %v617
        %v620 = vmul.f32 0.5, %v619
        %v621 = vsub.f32 1.5, %v620
        %v622 = vmul.f32 %v617, %v621
        %vm623 = vweird.f32 %v482
        %vm624 = vweird.f32 %v617
        %vm625 = vmor %vm623, %vm624
        %v626 = vsel %vm625, %v617, %v622
        %v627 = vrsqrt.pop %v484
        %v628 = vmul.f32 %v627, %v484
        %v629 = vmul.f32 %v628, %v627
        %v630 = vmul.f32 0.5, %v629
        %v631 = vsub.f32 1.5, %v630
        %v632 = vmul.f32 %v627, %v631
        %vm633 = vweird.f32 %v484
        %vm634 = vweird.f32 %v627
        %vm635 = vmor %vm633, %vm634
        %v636 = vsel %vm635, %v627, %v632
        %v637 = vrsqrt.pop %v486
        %v638 = vmul.f32 %v637, %v486
        %v639 = vmul.f32 %v638, %v637
        %v640 = vmul.f32 0.5, %v639
        %v641 = vsub.f32 1.5, %v640
        %v642 = vmul.f32 %v637, %v641
        %vm643 = vweird.f32 %v486
        %vm644 = vweird.f32 %v637
        %vm645 = vmor %vm643, %vm644
        %v646 = vsel %vm645, %v637, %v642
        %v647 = vmul.f32 %v400, %v496
        %v648 = vmul.f32 %v402, %v506
        %v649 = vmul.f32 %v405, %v516
        %v650 = vmul.f32 %v407, %v526
        %v651 = vmul.f32 %v410, %v536
        %v652 = vmul.f32 %v412, %v546
        %v653 = vmul.f32 %v415, %v556
        %v654 = vmul.f32 %v417, %v566
        %v655 = vmul.f32 %v420, %v576
        %v656 = vmul.f32 %v422, %v586
        %v657 = vmul.f32 %v425, %v596
        %v658 = vmul.f32 %v427, %v606
        %v659 = vmul.f32 %v430, %v616
        %v660 = vmul.f32 %v432, %v626
        %v661 = vmul.f32 %v435, %v636
        %v662 = vmul.f32 %v437, %v646
        %v663 = vadd.f32 %v262, %v647
        %v664 = vadd.f32 %v263, %v648
        %v665 = vadd.f32 %v264, %v649
        %v666 = vadd.f32 %v265, %v650
        %v667 = vadd.f32 %v266, %v651
        %v668 = vadd.f32 %v267, %v652
        %v669 = vadd.f32 %v268, %v653
        %v670 = vadd.f32 %v269, %v654
        %v671 = vadd.f32 %v270, %v655
        %v672 = vadd.f32 %v271, %v656
        %v673 = vadd.f32 %v272, %v657
        %v674 = vadd.f32 %v273, %v658
        %v675 = vadd.f32 %v274, %v659
        %v676 = vadd.f32 %v275, %v660
        %v677 = vadd.f32 %v276, %v661
        %v678 = vadd.f32 %v277, %v662
        %s679 = scalar_lea.vmem %s196, 64 [#allocation2]
        %v680 = vld [vmem:[%s679] sm:$0xf]
        %v681 = vld [vmem:[%s679 + $0x4] sm:$0xf]
        %v682 = vld [vmem:[%s679 + $0x8] sm:$0xf]
        %v683 = vld [vmem:[%s679 + $0xc] sm:$0xf]
        %v684 = vld [vmem:[%s679 + $0x10] sm:$0xf]
        %v685 = vld [vmem:[%s679 + $0x14] sm:$0xf]
        %v686 = vld [vmem:[%s679 + $0x18] sm:$0xf]
        %v687 = vld [vmem:[%s679 + $0x1c] sm:$0xf]
        %v688 = vld [vmem:[%s679 + $0x20] sm:$0xf]
        %v689 = vld [vmem:[%s679 + $0x24] sm:$0xf]
        %v690 = vld [vmem:[%s679 + $0x28] sm:$0xf]
        %v691 = vld [vmem:[%s679 + $0x2c] sm:$0xf]
        %v692 = vld [vmem:[%s679 + $0x30] sm:$0xf]
        %v693 = vld [vmem:[%s679 + $0x34] sm:$0xf]
        %v694 = vld [vmem:[%s679 + $0x38] sm:$0xf]
        %v695 = vld [vmem:[%s679 + $0x3c] sm:$0xf]
        %v712 = vunpack.c.l.b16 %v680
        %v713 = vunpack.c.l.b16 %v681
        %v714 = vunpack.c.l.b16 %v682
        %v715 = vunpack.c.l.b16 %v683
        %v716 = vunpack.c.l.b16 %v684
        %v717 = vunpack.c.l.b16 %v685
        %v718 = vunpack.c.l.b16 %v686
        %v719 = vunpack.c.l.b16 %v687
        %v720 = vunpack.c.l.b16 %v688
        %v721 = vunpack.c.l.b16 %v689
        %v722 = vunpack.c.l.b16 %v690
        %v723 = vunpack.c.l.b16 %v691
        %v724 = vunpack.c.l.b16 %v692
        %v725 = vunpack.c.l.b16 %v693
        %v726 = vunpack.c.l.b16 %v694
        %v727 = vunpack.c.l.b16 %v695
        %v728 = vpack.c.b16 %v713, %v712
        %v729 = vpack.c.b16 %v715, %v714
        %v730 = vpack.c.b16 %v717, %v716
        %v731 = vpack.c.b16 %v719, %v718
        %v732 = vpack.c.b16 %v721, %v720
        %v733 = vpack.c.b16 %v723, %v722
        %v734 = vpack.c.b16 %v725, %v724
        %v735 = vpack.c.b16 %v727, %v726
        %744 = vmatpush.bf16.msra.mxu0 %v381
        %745 = vmatpush.bf16.msra.mxu0 %v380
        %746 = vmatpush.bf16.msra.mxu0 %v379
        %747 = vmatpush.bf16.msra.mxu0 %v378
        %748 = vmatpush.bf16.msra.mxu0 %v377
        %749 = vmatpush.bf16.msra.mxu0 %v376
        %750 = vmatpush.bf16.msra.mxu0 %v375
        %751 = vmatpush.bf16.msra.mxu0 %v374
        %752 = vmatmul.bf16.gmra.mxu0 %v728
        %v753 = vpop.f32.mrf.mxu0
        %v754 = vadd.f32 0.0, %v753
        %v755 = vpop.f32.mrf.mxu0
        %v756 = vadd.f32 0.0, %v755
        %757 = vmatmul.bf16.gmra.mxu0 %v729
        %v758 = vpop.f32.mrf.mxu0
        %v759 = vadd.f32 0.0, %v758
        %v760 = vpop.f32.mrf.mxu0
        %v761 = vadd.f32 0.0, %v760
        %762 = vmatmul.bf16.gmra.mxu0 %v730
        %v763 = vpop.f32.mrf.mxu0
        %v764 = vadd.f32 0.0, %v763
        %v765 = vpop.f32.mrf.mxu0
        %v766 = vadd.f32 0.0, %v765
        %767 = vmatmul.bf16.gmra.mxu0 %v731
        %v768 = vpop.f32.mrf.mxu0
        %v769 = vadd.f32 0.0, %v768
        %v770 = vpop.f32.mrf.mxu0
        %v771 = vadd.f32 0.0, %v770
        %772 = vmatmul.bf16.gmra.mxu0 %v732
        %v773 = vpop.f32.mrf.mxu0
        %v774 = vadd.f32 0.0, %v773
        %v775 = vpop.f32.mrf.mxu0
        %v776 = vadd.f32 0.0, %v775
        %777 = vmatmul.bf16.gmra.mxu0 %v733
        %v778 = vpop.f32.mrf.mxu0
        %v779 = vadd.f32 0.0, %v778
        %v780 = vpop.f32.mrf.mxu0
        %v781 = vadd.f32 0.0, %v780
        %782 = vmatmul.bf16.gmra.mxu0 %v734
        %v783 = vpop.f32.mrf.mxu0
        %v784 = vadd.f32 0.0, %v783
        %v785 = vpop.f32.mrf.mxu0
        %v786 = vadd.f32 0.0, %v785
        %787 = vmatmul.bf16.gmra.mxu0 %v735
        %v788 = vpop.f32.mrf.mxu0
        %v789 = vadd.f32 0.0, %v788
        %v790 = vpop.f32.mrf.mxu0
        %v791 = vadd.f32 0.0, %v790
        %792 = vdwg.mxu0
        %v793 = vmul.f32 %v754, %v754
        %v794 = vmul.f32 %v756, %v756
        %v795 = vmul.f32 %v759, %v759
        %v796 = vmul.f32 %v761, %v761
        %v797 = vmul.f32 %v764, %v764
        %v798 = vmul.f32 %v766, %v766
        %v799 = vmul.f32 %v769, %v769
        %v800 = vmul.f32 %v771, %v771
        %v801 = vmul.f32 %v774, %v774
        %v802 = vmul.f32 %v776, %v776
        %v803 = vmul.f32 %v779, %v779
        %v804 = vmul.f32 %v781, %v781
        %v805 = vmul.f32 %v784, %v784
        %v806 = vmul.f32 %v786, %v786
        %v807 = vmul.f32 %v789, %v789
        %v808 = vmul.f32 %v791, %v791
        %809 = vadd.xlane.f32.xlu0 %v793
        %v810 = vpop.xlane.xlu0 %809
        %811 = vadd.xlane.f32.xlu0 %v794
        %v812 = vpop.xlane.xlu0 %811
        %813 = vadd.xlane.f32.xlu0 %v795
        %v814 = vpop.xlane.xlu0 %813
        %815 = vadd.xlane.f32.xlu0 %v796
        %v816 = vpop.xlane.xlu0 %815
        %817 = vadd.xlane.f32.xlu0 %v797
        %v818 = vpop.xlane.xlu0 %817
        %819 = vadd.xlane.f32.xlu0 %v798
        %v820 = vpop.xlane.xlu0 %819
        %821 = vadd.xlane.f32.xlu0 %v799
        %v822 = vpop.xlane.xlu0 %821
        %823 = vadd.xlane.f32.xlu0 %v800
        %v824 = vpop.xlane.xlu0 %823
        %825 = vadd.xlane.f32.xlu0 %v801
        %v826 = vpop.xlane.xlu0 %825
        %827 = vadd.xlane.f32.xlu0 %v802
        %v828 = vpop.xlane.xlu0 %827
        %829 = vadd.xlane.f32.xlu0 %v803
        %v830 = vpop.xlane.xlu0 %829
        %831 = vadd.xlane.f32.xlu0 %v804
        %v832 = vpop.xlane.xlu0 %831
        %833 = vadd.xlane.f32.xlu0 %v805
        %v834 = vpop.xlane.xlu0 %833
        %835 = vadd.xlane.f32.xlu0 %v806
        %v836 = vpop.xlane.xlu0 %835
        %837 = vadd.xlane.f32.xlu0 %v807
        %v838 = vpop.xlane.xlu0 %837
        %839 = vadd.xlane.f32.xlu0 %v808
        %v840 = vpop.xlane.xlu0 %839
        %v841 = vrsqrt.pop %v810
        %v842 = vmul.f32 %v841, %v810
        %v843 = vmul.f32 %v842, %v841
        %v844 = vmul.f32 0.5, %v843
        %v845 = vsub.f32 1.5, %v844
        %v846 = vmul.f32 %v841, %v845
        %vm847 = vweird.f32 %v810
        %vm848 = vweird.f32 %v841
        %vm849 = vmor %vm847, %vm848
        %v850 = vsel %vm849, %v841, %v846
        %v851 = vrsqrt.pop %v812
        %v852 = vmul.f32 %v851, %v812
        %v853 = vmul.f32 %v852, %v851
        %v854 = vmul.f32 0.5, %v853
        %v855 = vsub.f32 1.5, %v854
        %v856 = vmul.f32 %v851, %v855
        %vm857 = vweird.f32 %v812
        %vm858 = vweird.f32 %v851
        %vm859 = vmor %vm857, %vm858
        %v860 = vsel %vm859, %v851, %v856
        %v861 = vrsqrt.pop %v814
        %v862 = vmul.f32 %v861, %v814
        %v863 = vmul.f32 %v862, %v861
        %v864 = vmul.f32 0.5, %v863
        %v865 = vsub.f32 1.5, %v864
        %v866 = vmul.f32 %v861, %v865
        %vm867 = vweird.f32 %v814
        %vm868 = vweird.f32 %v861
        %vm869 = vmor %vm867, %vm868
        %v870 = vsel %vm869, %v861, %v866
        %v871 = vrsqrt.pop %v816
        %v872 = vmul.f32 %v871, %v816
        %v873 = vmul.f32 %v872, %v871
        %v874 = vmul.f32 0.5, %v873
        %v875 = vsub.f32 1.5, %v874
        %v876 = vmul.f32 %v871, %v875
        %vm877 = vweird.f32 %v816
        %vm878 = vweird.f32 %v871
        %vm879 = vmor %vm877, %vm878
        %v880 = vsel %vm879, %v871, %v876
        %v881 = vrsqrt.pop %v818
        %v882 = vmul.f32 %v881, %v818
        %v883 = vmul.f32 %v882, %v881
        %v884 = vmul.f32 0.5, %v883
        %v885 = vsub.f32 1.5, %v884
        %v886 = vmul.f32 %v881, %v885
        %vm887 = vweird.f32 %v818
        %vm888 = vweird.f32 %v881
        %vm889 = vmor %vm887, %vm888
        %v890 = vsel %vm889, %v881, %v886
        %v891 = vrsqrt.pop %v820
        %v892 = vmul.f32 %v891, %v820
        %v893 = vmul.f32 %v892, %v891
        %v894 = vmul.f32 0.5, %v893
        %v895 = vsub.f32 1.5, %v894
        %v896 = vmul.f32 %v891, %v895
        %vm897 = vweird.f32 %v820
        %vm898 = vweird.f32 %v891
        %vm899 = vmor %vm897, %vm898
        %v900 = vsel %vm899, %v891, %v896
        %v901 = vrsqrt.pop %v822
        %v902 = vmul.f32 %v901, %v822
        %v903 = vmul.f32 %v902, %v901
        %v904 = vmul.f32 0.5, %v903
        %v905 = vsub.f32 1.5, %v904
        %v906 = vmul.f32 %v901, %v905
        %vm907 = vweird.f32 %v822
        %vm908 = vweird.f32 %v901
        %vm909 = vmor %vm907, %vm908
        %v910 = vsel %vm909, %v901, %v906
        %v911 = vrsqrt.pop %v824
        %v912 = vmul.f32 %v911, %v824
        %v913 = vmul.f32 %v912, %v911
        %v914 = vmul.f32 0.5, %v913
        %v915 = vsub.f32 1.5, %v914
        %v916 = vmul.f32 %v911, %v915
        %vm917 = vweird.f32 %v824
        %vm918 = vweird.f32 %v911
        %vm919 = vmor %vm917, %vm918
        %v920 = vsel %vm919, %v911, %v916
        %v921 = vrsqrt.pop %v826
        %v922 = vmul.f32 %v921, %v826
        %v923 = vmul.f32 %v922, %v921
        %v924 = vmul.f32 0.5, %v923
        %v925 = vsub.f32 1.5, %v924
        %v926 = vmul.f32 %v921, %v925
        %vm927 = vweird.f32 %v826
        %vm928 = vweird.f32 %v921
        %vm929 = vmor %vm927, %vm928
        %v930 = vsel %vm929, %v921, %v926
        %v931 = vrsqrt.pop %v828
        %v932 = vmul.f32 %v931, %v828
        %v933 = vmul.f32 %v932, %v931
        %v934 = vmul.f32 0.5, %v933
        %v935 = vsub.f32 1.5, %v934
        %v936 = vmul.f32 %v931, %v935
        %vm937 = vweird.f32 %v828
        %vm938 = vweird.f32 %v931
        %vm939 = vmor %vm937, %vm938
        %v940 = vsel %vm939, %v931, %v936
        %v941 = vrsqrt.pop %v830
        %v942 = vmul.f32 %v941, %v830
        %v943 = vmul.f32 %v942, %v941
        %v944 = vmul.f32 0.5, %v943
        %v945 = vsub.f32 1.5, %v944
        %v946 = vmul.f32 %v941, %v945
        %vm947 = vweird.f32 %v830
        %vm948 = vweird.f32 %v941
        %vm949 = vmor %vm947, %vm948
        %v950 = vsel %vm949, %v941, %v946
        %v951 = vrsqrt.pop %v832
        %v952 = vmul.f32 %v951, %v832
        %v953 = vmul.f32 %v952, %v951
        %v954 = vmul.f32 0.5, %v953
        %v955 = vsub.f32 1.5, %v954
        %v956 = vmul.f32 %v951, %v955
        %vm957 = vweird.f32 %v832
        %vm958 = vweird.f32 %v951
        %vm959 = vmor %vm957, %vm958
        %v960 = vsel %vm959, %v951, %v956
        %v961 = vrsqrt.pop %v834
        %v962 = vmul.f32 %v961, %v834
        %v963 = vmul.f32 %v962, %v961
        %v964 = vmul.f32 0.5, %v963
        %v965 = vsub.f32 1.5, %v964
        %v966 = vmul.f32 %v961, %v965
        %vm967 = vweird.f32 %v834
        %vm968 = vweird.f32 %v961
        %vm969 = vmor %vm967, %vm968
        %v970 = vsel %vm969, %v961, %v966
        %v971 = vrsqrt.pop %v836
        %v972 = vmul.f32 %v971, %v836
        %v973 = vmul.f32 %v972, %v971
        %v974 = vmul.f32 0.5, %v973
        %v975 = vsub.f32 1.5, %v974
        %v976 = vmul.f32 %v971, %v975
        %vm977 = vweird.f32 %v836
        %vm978 = vweird.f32 %v971
        %vm979 = vmor %vm977, %vm978
        %v980 = vsel %vm979, %v971, %v976
        %v981 = vrsqrt.pop %v838
        %v982 = vmul.f32 %v981, %v838
        %v983 = vmul.f32 %v982, %v981
        %v984 = vmul.f32 0.5, %v983
        %v985 = vsub.f32 1.5, %v984
        %v986 = vmul.f32 %v981, %v985
        %vm987 = vweird.f32 %v838
        %vm988 = vweird.f32 %v981
        %vm989 = vmor %vm987, %vm988
        %v990 = vsel %vm989, %v981, %v986
        %v991 = vrsqrt.pop %v840
        %v992 = vmul.f32 %v991, %v840
        %v993 = vmul.f32 %v992, %v991
        %v994 = vmul.f32 0.5, %v993
        %v995 = vsub.f32 1.5, %v994
        %v996 = vmul.f32 %v991, %v995
        %vm997 = vweird.f32 %v840
        %vm998 = vweird.f32 %v991
        %vm999 = vmor %vm997, %vm998
        %v1000 = vsel %vm999, %v991, %v996
        %v1001 = vmul.f32 %v754, %v850
        %v1002 = vmul.f32 %v756, %v860
        %v1003 = vmul.f32 %v759, %v870
        %v1004 = vmul.f32 %v761, %v880
        %v1005 = vmul.f32 %v764, %v890
        %v1006 = vmul.f32 %v766, %v900
        %v1007 = vmul.f32 %v769, %v910
        %v1008 = vmul.f32 %v771, %v920
        %v1009 = vmul.f32 %v774, %v930
        %v1010 = vmul.f32 %v776, %v940
        %v1011 = vmul.f32 %v779, %v950
        %v1012 = vmul.f32 %v781, %v960
        %v1013 = vmul.f32 %v784, %v970
        %v1014 = vmul.f32 %v786, %v980
        %v1015 = vmul.f32 %v789, %v990
        %v1016 = vmul.f32 %v791, %v1000
        %v1017 = vadd.f32 %v663, %v1001
        %v1018 = vadd.f32 %v664, %v1002
        %v1019 = vadd.f32 %v665, %v1003
        %v1020 = vadd.f32 %v666, %v1004
        %v1021 = vadd.f32 %v667, %v1005
        %v1022 = vadd.f32 %v668, %v1006
        %v1023 = vadd.f32 %v669, %v1007
        %v1024 = vadd.f32 %v670, %v1008
        %v1025 = vadd.f32 %v671, %v1009
        %v1026 = vadd.f32 %v672, %v1010
        %v1027 = vadd.f32 %v673, %v1011
        %v1028 = vadd.f32 %v674, %v1012
        %v1029 = vadd.f32 %v675, %v1013
        %v1030 = vadd.f32 %v676, %v1014
        %v1031 = vadd.f32 %v677, %v1015
        %v1032 = vadd.f32 %v678, %v1016
        %s1033 = scalar_lea.vmem %s196, 128 [#allocation2]
        %v1034 = vld [vmem:[%s1033] sm:$0xf]
        %v1035 = vld [vmem:[%s1033 + $0x4] sm:$0xf]
        %v1036 = vld [vmem:[%s1033 + $0x8] sm:$0xf]
        %v1037 = vld [vmem:[%s1033 + $0xc] sm:$0xf]
        %v1038 = vld [vmem:[%s1033 + $0x10] sm:$0xf]
        %v1039 = vld [vmem:[%s1033 + $0x14] sm:$0xf]
        %v1040 = vld [vmem:[%s1033 + $0x18] sm:$0xf]
        %v1041 = vld [vmem:[%s1033 + $0x1c] sm:$0xf]
        %v1042 = vld [vmem:[%s1033 + $0x20] sm:$0xf]
        %v1043 = vld [vmem:[%s1033 + $0x24] sm:$0xf]
        %v1044 = vld [vmem:[%s1033 + $0x28] sm:$0xf]
        %v1045 = vld [vmem:[%s1033 + $0x2c] sm:$0xf]
        %v1046 = vld [vmem:[%s1033 + $0x30] sm:$0xf]
        %v1047 = vld [vmem:[%s1033 + $0x34] sm:$0xf]
        %v1048 = vld [vmem:[%s1033 + $0x38] sm:$0xf]
        %v1049 = vld [vmem:[%s1033 + $0x3c] sm:$0xf]
        %v1066 = vunpack.c.l.b16 %v1034
        %v1067 = vunpack.c.l.b16 %v1035
        %v1068 = vunpack.c.l.b16 %v1036
        %v1069 = vunpack.c.l.b16 %v1037
        %v1070 = vunpack.c.l.b16 %v1038
        %v1071 = vunpack.c.l.b16 %v1039
        %v1072 = vunpack.c.l.b16 %v1040
        %v1073 = vunpack.c.l.b16 %v1041
        %v1074 = vunpack.c.l.b16 %v1042
        %v1075 = vunpack.c.l.b16 %v1043
        %v1076 = vunpack.c.l.b16 %v1044
        %v1077 = vunpack.c.l.b16 %v1045
        %v1078 = vunpack.c.l.b16 %v1046
        %v1079 = vunpack.c.l.b16 %v1047
        %v1080 = vunpack.c.l.b16 %v1048
        %v1081 = vunpack.c.l.b16 %v1049
        %v1082 = vpack.c.b16 %v1067, %v1066
        %v1083 = vpack.c.b16 %v1069, %v1068
        %v1084 = vpack.c.b16 %v1071, %v1070
        %v1085 = vpack.c.b16 %v1073, %v1072
        %v1086 = vpack.c.b16 %v1075, %v1074
        %v1087 = vpack.c.b16 %v1077, %v1076
        %v1088 = vpack.c.b16 %v1079, %v1078
        %v1089 = vpack.c.b16 %v1081, %v1080
        %1098 = vmatpush.bf16.msra.mxu0 %v381
        %1099 = vmatpush.bf16.msra.mxu0 %v380
        %1100 = vmatpush.bf16.msra.mxu0 %v379
        %1101 = vmatpush.bf16.msra.mxu0 %v378
        %1102 = vmatpush.bf16.msra.mxu0 %v377
        %1103 = vmatpush.bf16.msra.mxu0 %v376
        %1104 = vmatpush.bf16.msra.mxu0 %v375
        %1105 = vmatpush.bf16.msra.mxu0 %v374
        %1106 = vmatmul.bf16.gmra.mxu0 %v1082
        %v1107 = vpop.f32.mrf.mxu0
        %v1108 = vadd.f32 0.0, %v1107
        %v1109 = vpop.f32.mrf.mxu0
        %v1110 = vadd.f32 0.0, %v1109
        %1111 = vmatmul.bf16.gmra.mxu0 %v1083
        %v1112 = vpop.f32.mrf.mxu0
        %v1113 = vadd.f32 0.0, %v1112
        %v1114 = vpop.f32.mrf.mxu0
        %v1115 = vadd.f32 0.0, %v1114
        %1116 = vmatmul.bf16.gmra.mxu0 %v1084
        %v1117 = vpop.f32.mrf.mxu0
        %v1118 = vadd.f32 0.0, %v1117
        %v1119 = vpop.f32.mrf.mxu0
        %v1120 = vadd.f32 0.0, %v1119
        %1121 = vmatmul.bf16.gmra.mxu0 %v1085
        %v1122 = vpop.f32.mrf.mxu0
        %v1123 = vadd.f32 0.0, %v1122
        %v1124 = vpop.f32.mrf.mxu0
        %v1125 = vadd.f32 0.0, %v1124
        %1126 = vmatmul.bf16.gmra.mxu0 %v1086
        %v1127 = vpop.f32.mrf.mxu0
        %v1128 = vadd.f32 0.0, %v1127
        %v1129 = vpop.f32.mrf.mxu0
        %v1130 = vadd.f32 0.0, %v1129
        %1131 = vmatmul.bf16.gmra.mxu0 %v1087
        %v1132 = vpop.f32.mrf.mxu0
        %v1133 = vadd.f32 0.0, %v1132
        %v1134 = vpop.f32.mrf.mxu0
        %v1135 = vadd.f32 0.0, %v1134
        %1136 = vmatmul.bf16.gmra.mxu0 %v1088
        %v1137 = vpop.f32.mrf.mxu0
        %v1138 = vadd.f32 0.0, %v1137
        %v1139 = vpop.f32.mrf.mxu0
        %v1140 = vadd.f32 0.0, %v1139
        %1141 = vmatmul.bf16.gmra.mxu0 %v1089
        %v1142 = vpop.f32.mrf.mxu0
        %v1143 = vadd.f32 0.0, %v1142
        %v1144 = vpop.f32.mrf.mxu0
        %v1145 = vadd.f32 0.0, %v1144
        %1146 = vdwg.mxu0
        %v1147 = vmul.f32 %v1108, %v1108
        %v1148 = vmul.f32 %v1110, %v1110
        %v1149 = vmul.f32 %v1113, %v1113
        %v1150 = vmul.f32 %v1115, %v1115
        %v1151 = vmul.f32 %v1118, %v1118
        %v1152 = vmul.f32 %v1120, %v1120
        %v1153 = vmul.f32 %v1123, %v1123
        %v1154 = vmul.f32 %v1125, %v1125
        %v1155 = vmul.f32 %v1128, %v1128
        %v1156 = vmul.f32 %v1130, %v1130
        %v1157 = vmul.f32 %v1133, %v1133
        %v1158 = vmul.f32 %v1135, %v1135
        %v1159 = vmul.f32 %v1138, %v1138
        %v1160 = vmul.f32 %v1140, %v1140
        %v1161 = vmul.f32 %v1143, %v1143
        %v1162 = vmul.f32 %v1145, %v1145
        %1163 = vadd.xlane.f32.xlu0 %v1147
        %v1164 = vpop.xlane.xlu0 %1163
        %1165 = vadd.xlane.f32.xlu0 %v1148
        %v1166 = vpop.xlane.xlu0 %1165
        %1167 = vadd.xlane.f32.xlu0 %v1149
        %v1168 = vpop.xlane.xlu0 %1167
        %1169 = vadd.xlane.f32.xlu0 %v1150
        %v1170 = vpop.xlane.xlu0 %1169
        %1171 = vadd.xlane.f32.xlu0 %v1151
        %v1172 = vpop.xlane.xlu0 %1171
        %1173 = vadd.xlane.f32.xlu0 %v1152
        %v1174 = vpop.xlane.xlu0 %1173
        %1175 = vadd.xlane.f32.xlu0 %v1153
        %v1176 = vpop.xlane.xlu0 %1175
        %1177 = vadd.xlane.f32.xlu0 %v1154
        %v1178 = vpop.xlane.xlu0 %1177
        %1179 = vadd.xlane.f32.xlu0 %v1155
        %v1180 = vpop.xlane.xlu0 %1179
        %1181 = vadd.xlane.f32.xlu0 %v1156
        %v1182 = vpop.xlane.xlu0 %1181
        %1183 = vadd.xlane.f32.xlu0 %v1157
        %v1184 = vpop.xlane.xlu0 %1183
        %1185 = vadd.xlane.f32.xlu0 %v1158
        %v1186 = vpop.xlane.xlu0 %1185
        %1187 = vadd.xlane.f32.xlu0 %v1159
        %v1188 = vpop.xlane.xlu0 %1187
        %1189 = vadd.xlane.f32.xlu0 %v1160
        %v1190 = vpop.xlane.xlu0 %1189
        %1191 = vadd.xlane.f32.xlu0 %v1161
        %v1192 = vpop.xlane.xlu0 %1191
        %1193 = vadd.xlane.f32.xlu0 %v1162
        %v1194 = vpop.xlane.xlu0 %1193
        %v1195 = vrsqrt.pop %v1164
        %v1196 = vmul.f32 %v1195, %v1164
        %v1197 = vmul.f32 %v1196, %v1195
        %v1198 = vmul.f32 0.5, %v1197
        %v1199 = vsub.f32 1.5, %v1198
        %v1200 = vmul.f32 %v1195, %v1199
        %vm1201 = vweird.f32 %v1164
        %vm1202 = vweird.f32 %v1195
        %vm1203 = vmor %vm1201, %vm1202
        %v1204 = vsel %vm1203, %v1195, %v1200
        %v1205 = vrsqrt.pop %v1166
        %v1206 = vmul.f32 %v1205, %v1166
        %v1207 = vmul.f32 %v1206, %v1205
        %v1208 = vmul.f32 0.5, %v1207
        %v1209 = vsub.f32 1.5, %v1208
        %v1210 = vmul.f32 %v1205, %v1209
        %vm1211 = vweird.f32 %v1166
        %vm1212 = vweird.f32 %v1205
        %vm1213 = vmor %vm1211, %vm1212
        %v1214 = vsel %vm1213, %v1205, %v1210
        %v1215 = vrsqrt.pop %v1168
        %v1216 = vmul.f32 %v1215, %v1168
        %v1217 = vmul.f32 %v1216, %v1215
        %v1218 = vmul.f32 0.5, %v1217
        %v1219 = vsub.f32 1.5, %v1218
        %v1220 = vmul.f32 %v1215, %v1219
        %vm1221 = vweird.f32 %v1168
        %vm1222 = vweird.f32 %v1215
        %vm1223 = vmor %vm1221, %vm1222
        %v1224 = vsel %vm1223, %v1215, %v1220
        %v1225 = vrsqrt.pop %v1170
        %v1226 = vmul.f32 %v1225, %v1170
        %v1227 = vmul.f32 %v1226, %v1225
        %v1228 = vmul.f32 0.5, %v1227
        %v1229 = vsub.f32 1.5, %v1228
        %v1230 = vmul.f32 %v1225, %v1229
        %vm1231 = vweird.f32 %v1170
        %vm1232 = vweird.f32 %v1225
        %vm1233 = vmor %vm1231, %vm1232
        %v1234 = vsel %vm1233, %v1225, %v1230
        %v1235 = vrsqrt.pop %v1172
        %v1236 = vmul.f32 %v1235, %v1172
        %v1237 = vmul.f32 %v1236, %v1235
        %v1238 = vmul.f32 0.5, %v1237
        %v1239 = vsub.f32 1.5, %v1238
        %v1240 = vmul.f32 %v1235, %v1239
        %vm1241 = vweird.f32 %v1172
        %vm1242 = vweird.f32 %v1235
        %vm1243 = vmor %vm1241, %vm1242
        %v1244 = vsel %vm1243, %v1235, %v1240
        %v1245 = vrsqrt.pop %v1174
        %v1246 = vmul.f32 %v1245, %v1174
        %v1247 = vmul.f32 %v1246, %v1245
        %v1248 = vmul.f32 0.5, %v1247
        %v1249 = vsub.f32 1.5, %v1248
        %v1250 = vmul.f32 %v1245, %v1249
        %vm1251 = vweird.f32 %v1174
        %vm1252 = vweird.f32 %v1245
        %vm1253 = vmor %vm1251, %vm1252
        %v1254 = vsel %vm1253, %v1245, %v1250
        %v1255 = vrsqrt.pop %v1176
        %v1256 = vmul.f32 %v1255, %v1176
        %v1257 = vmul.f32 %v1256, %v1255
        %v1258 = vmul.f32 0.5, %v1257
        %v1259 = vsub.f32 1.5, %v1258
        %v1260 = vmul.f32 %v1255, %v1259
        %vm1261 = vweird.f32 %v1176
        %vm1262 = vweird.f32 %v1255
        %vm1263 = vmor %vm1261, %vm1262
        %v1264 = vsel %vm1263, %v1255, %v1260
        %v1265 = vrsqrt.pop %v1178
        %v1266 = vmul.f32 %v1265, %v1178
        %v1267 = vmul.f32 %v1266, %v1265
        %v1268 = vmul.f32 0.5, %v1267
        %v1269 = vsub.f32 1.5, %v1268
        %v1270 = vmul.f32 %v1265, %v1269
        %vm1271 = vweird.f32 %v1178
        %vm1272 = vweird.f32 %v1265
        %vm1273 = vmor %vm1271, %vm1272
        %v1274 = vsel %vm1273, %v1265, %v1270
        %v1275 = vrsqrt.pop %v1180
        %v1276 = vmul.f32 %v1275, %v1180
        %v1277 = vmul.f32 %v1276, %v1275
        %v1278 = vmul.f32 0.5, %v1277
        %v1279 = vsub.f32 1.5, %v1278
        %v1280 = vmul.f32 %v1275, %v1279
        %vm1281 = vweird.f32 %v1180
        %vm1282 = vweird.f32 %v1275
        %vm1283 = vmor %vm1281, %vm1282
        %v1284 = vsel %vm1283, %v1275, %v1280
        %v1285 = vrsqrt.pop %v1182
        %v1286 = vmul.f32 %v1285, %v1182
        %v1287 = vmul.f32 %v1286, %v1285
        %v1288 = vmul.f32 0.5, %v1287
        %v1289 = vsub.f32 1.5, %v1288
        %v1290 = vmul.f32 %v1285, %v1289
        %vm1291 = vweird.f32 %v1182
        %vm1292 = vweird.f32 %v1285
        %vm1293 = vmor %vm1291, %vm1292
        %v1294 = vsel %vm1293, %v1285, %v1290
        %v1295 = vrsqrt.pop %v1184
        %v1296 = vmul.f32 %v1295, %v1184
        %v1297 = vmul.f32 %v1296, %v1295
        %v1298 = vmul.f32 0.5, %v1297
        %v1299 = vsub.f32 1.5, %v1298
        %v1300 = vmul.f32 %v1295, %v1299
        %vm1301 = vweird.f32 %v1184
        %vm1302 = vweird.f32 %v1295
        %vm1303 = vmor %vm1301, %vm1302
        %v1304 = vsel %vm1303, %v1295, %v1300
        %v1305 = vrsqrt.pop %v1186
        %v1306 = vmul.f32 %v1305, %v1186
        %v1307 = vmul.f32 %v1306, %v1305
        %v1308 = vmul.f32 0.5, %v1307
        %v1309 = vsub.f32 1.5, %v1308
        %v1310 = vmul.f32 %v1305, %v1309
        %vm1311 = vweird.f32 %v1186
        %vm1312 = vweird.f32 %v1305
        %vm1313 = vmor %vm1311, %vm1312
        %v1314 = vsel %vm1313, %v1305, %v1310
        %v1315 = vrsqrt.pop %v1188
        %v1316 = vmul.f32 %v1315, %v1188
        %v1317 = vmul.f32 %v1316, %v1315
        %v1318 = vmul.f32 0.5, %v1317
        %v1319 = vsub.f32 1.5, %v1318
        %v1320 = vmul.f32 %v1315, %v1319
        %vm1321 = vweird.f32 %v1188
        %vm1322 = vweird.f32 %v1315
        %vm1323 = vmor %vm1321, %vm1322
        %v1324 = vsel %vm1323, %v1315, %v1320
        %v1325 = vrsqrt.pop %v1190
        %v1326 = vmul.f32 %v1325, %v1190
        %v1327 = vmul.f32 %v1326, %v1325
        %v1328 = vmul.f32 0.5, %v1327
        %v1329 = vsub.f32 1.5, %v1328
        %v1330 = vmul.f32 %v1325, %v1329
        %vm1331 = vweird.f32 %v1190
        %vm1332 = vweird.f32 %v1325
        %vm1333 = vmor %vm1331, %vm1332
        %v1334 = vsel %vm1333, %v1325, %v1330
        %v1335 = vrsqrt.pop %v1192
        %v1336 = vmul.f32 %v1335, %v1192
        %v1337 = vmul.f32 %v1336, %v1335
        %v1338 = vmul.f32 0.5, %v1337
        %v1339 = vsub.f32 1.5, %v1338
        %v1340 = vmul.f32 %v1335, %v1339
        %vm1341 = vweird.f32 %v1192
        %vm1342 = vweird.f32 %v1335
        %vm1343 = vmor %vm1341, %vm1342
        %v1344 = vsel %vm1343, %v1335, %v1340
        %v1345 = vrsqrt.pop %v1194
        %v1346 = vmul.f32 %v1345, %v1194
        %v1347 = vmul.f32 %v1346, %v1345
        %v1348 = vmul.f32 0.5, %v1347
        %v1349 = vsub.f32 1.5, %v1348
        %v1350 = vmul.f32 %v1345, %v1349
        %vm1351 = vweird.f32 %v1194
        %vm1352 = vweird.f32 %v1345
        %vm1353 = vmor %vm1351, %vm1352
        %v1354 = vsel %vm1353, %v1345, %v1350
        %v1355 = vmul.f32 %v1108, %v1204
        %v1356 = vmul.f32 %v1110, %v1214
        %v1357 = vmul.f32 %v1113, %v1224
        %v1358 = vmul.f32 %v1115, %v1234
        %v1359 = vmul.f32 %v1118, %v1244
        %v1360 = vmul.f32 %v1120, %v1254
        %v1361 = vmul.f32 %v1123, %v1264
        %v1362 = vmul.f32 %v1125, %v1274
        %v1363 = vmul.f32 %v1128, %v1284
        %v1364 = vmul.f32 %v1130, %v1294
        %v1365 = vmul.f32 %v1133, %v1304
        %v1366 = vmul.f32 %v1135, %v1314
        %v1367 = vmul.f32 %v1138, %v1324
        %v1368 = vmul.f32 %v1140, %v1334
        %v1369 = vmul.f32 %v1143, %v1344
        %v1370 = vmul.f32 %v1145, %v1354
        %v1371 = vadd.f32 %v1017, %v1355
        %v1372 = vadd.f32 %v1018, %v1356
        %v1373 = vadd.f32 %v1019, %v1357
        %v1374 = vadd.f32 %v1020, %v1358
        %v1375 = vadd.f32 %v1021, %v1359
        %v1376 = vadd.f32 %v1022, %v1360
        %v1377 = vadd.f32 %v1023, %v1361
        %v1378 = vadd.f32 %v1024, %v1362
        %v1379 = vadd.f32 %v1025, %v1363
        %v1380 = vadd.f32 %v1026, %v1364
        %v1381 = vadd.f32 %v1027, %v1365
        %v1382 = vadd.f32 %v1028, %v1366
        %v1383 = vadd.f32 %v1029, %v1367
        %v1384 = vadd.f32 %v1030, %v1368
        %v1385 = vadd.f32 %v1031, %v1369
        %v1386 = vadd.f32 %v1032, %v1370
        %s1387 = scalar_lea.vmem %s196, 192 [#allocation2]
        %v1388 = vld [vmem:[%s1387] sm:$0xf]
        %v1389 = vld [vmem:[%s1387 + $0x4] sm:$0xf]
        %v1390 = vld [vmem:[%s1387 + $0x8] sm:$0xf]
        %v1391 = vld [vmem:[%s1387 + $0xc] sm:$0xf]
        %v1392 = vld [vmem:[%s1387 + $0x10] sm:$0xf]
        %v1393 = vld [vmem:[%s1387 + $0x14] sm:$0xf]
        %v1394 = vld [vmem:[%s1387 + $0x18] sm:$0xf]
        %v1395 = vld [vmem:[%s1387 + $0x1c] sm:$0xf]
        %v1396 = vld [vmem:[%s1387 + $0x20] sm:$0xf]
        %v1397 = vld [vmem:[%s1387 + $0x24] sm:$0xf]
        %v1398 = vld [vmem:[%s1387 + $0x28] sm:$0xf]
        %v1399 = vld [vmem:[%s1387 + $0x2c] sm:$0xf]
        %v1400 = vld [vmem:[%s1387 + $0x30] sm:$0xf]
        %v1401 = vld [vmem:[%s1387 + $0x34] sm:$0xf]
        %v1402 = vld [vmem:[%s1387 + $0x38] sm:$0xf]
        %v1403 = vld [vmem:[%s1387 + $0x3c] sm:$0xf]
        %v1420 = vunpack.c.l.b16 %v1388
        %v1421 = vunpack.c.l.b16 %v1389
        %v1422 = vunpack.c.l.b16 %v1390
        %v1423 = vunpack.c.l.b16 %v1391
        %v1424 = vunpack.c.l.b16 %v1392
        %v1425 = vunpack.c.l.b16 %v1393
        %v1426 = vunpack.c.l.b16 %v1394
        %v1427 = vunpack.c.l.b16 %v1395
        %v1428 = vunpack.c.l.b16 %v1396
        %v1429 = vunpack.c.l.b16 %v1397
        %v1430 = vunpack.c.l.b16 %v1398
        %v1431 = vunpack.c.l.b16 %v1399
        %v1432 = vunpack.c.l.b16 %v1400
        %v1433 = vunpack.c.l.b16 %v1401
        %v1434 = vunpack.c.l.b16 %v1402
        %v1435 = vunpack.c.l.b16 %v1403
        %v1436 = vpack.c.b16 %v1421, %v1420
        %v1437 = vpack.c.b16 %v1423, %v1422
        %v1438 = vpack.c.b16 %v1425, %v1424
        %v1439 = vpack.c.b16 %v1427, %v1426
        %v1440 = vpack.c.b16 %v1429, %v1428
        %v1441 = vpack.c.b16 %v1431, %v1430
        %v1442 = vpack.c.b16 %v1433, %v1432
        %v1443 = vpack.c.b16 %v1435, %v1434
        %1452 = vmatpush.bf16.msra.mxu0 %v381
        %1453 = vmatpush.bf16.msra.mxu0 %v380
        %1454 = vmatpush.bf16.msra.mxu0 %v379
        %1455 = vmatpush.bf16.msra.mxu0 %v378
        %1456 = vmatpush.bf16.msra.mxu0 %v377
        %1457 = vmatpush.bf16.msra.mxu0 %v376
        %1458 = vmatpush.bf16.msra.mxu0 %v375
        %1459 = vmatpush.bf16.msra.mxu0 %v374
        %1460 = vmatmul.bf16.gmra.mxu0 %v1436
        %v1461 = vpop.f32.mrf.mxu0
        %v1462 = vadd.f32 0.0, %v1461
        %v1463 = vpop.f32.mrf.mxu0
        %v1464 = vadd.f32 0.0, %v1463
        %1465 = vmatmul.bf16.gmra.mxu0 %v1437
        %v1466 = vpop.f32.mrf.mxu0
        %v1467 = vadd.f32 0.0, %v1466
        %v1468 = vpop.f32.mrf.mxu0
        %v1469 = vadd.f32 0.0, %v1468
        %1470 = vmatmul.bf16.gmra.mxu0 %v1438
        %v1471 = vpop.f32.mrf.mxu0
        %v1472 = vadd.f32 0.0, %v1471
        %v1473 = vpop.f32.mrf.mxu0
        %v1474 = vadd.f32 0.0, %v1473
        %1475 = vmatmul.bf16.gmra.mxu0 %v1439
        %v1476 = vpop.f32.mrf.mxu0
        %v1477 = vadd.f32 0.0, %v1476
        %v1478 = vpop.f32.mrf.mxu0
        %v1479 = vadd.f32 0.0, %v1478
        %1480 = vmatmul.bf16.gmra.mxu0 %v1440
        %v1481 = vpop.f32.mrf.mxu0
        %v1482 = vadd.f32 0.0, %v1481
        %v1483 = vpop.f32.mrf.mxu0
        %v1484 = vadd.f32 0.0, %v1483
        %1485 = vmatmul.bf16.gmra.mxu0 %v1441
        %v1486 = vpop.f32.mrf.mxu0
        %v1487 = vadd.f32 0.0, %v1486
        %v1488 = vpop.f32.mrf.mxu0
        %v1489 = vadd.f32 0.0, %v1488
        %1490 = vmatmul.bf16.gmra.mxu0 %v1442
        %v1491 = vpop.f32.mrf.mxu0
        %v1492 = vadd.f32 0.0, %v1491
        %v1493 = vpop.f32.mrf.mxu0
        %v1494 = vadd.f32 0.0, %v1493
        %1495 = vmatmul.bf16.gmra.mxu0 %v1443
        %v1496 = vpop.f32.mrf.mxu0
        %v1497 = vadd.f32 0.0, %v1496
        %v1498 = vpop.f32.mrf.mxu0
        %v1499 = vadd.f32 0.0, %v1498
        %1500 = vdwg.mxu0
        %v1501 = vmul.f32 %v1462, %v1462
        %v1502 = vmul.f32 %v1464, %v1464
        %v1503 = vmul.f32 %v1467, %v1467
        %v1504 = vmul.f32 %v1469, %v1469
        %v1505 = vmul.f32 %v1472, %v1472
        %v1506 = vmul.f32 %v1474, %v1474
        %v1507 = vmul.f32 %v1477, %v1477
        %v1508 = vmul.f32 %v1479, %v1479
        %v1509 = vmul.f32 %v1482, %v1482
        %v1510 = vmul.f32 %v1484, %v1484
        %v1511 = vmul.f32 %v1487, %v1487
        %v1512 = vmul.f32 %v1489, %v1489
        %v1513 = vmul.f32 %v1492, %v1492
        %v1514 = vmul.f32 %v1494, %v1494
        %v1515 = vmul.f32 %v1497, %v1497
        %v1516 = vmul.f32 %v1499, %v1499
        %1517 = vadd.xlane.f32.xlu0 %v1501
        %v1518 = vpop.xlane.xlu0 %1517
        %1519 = vadd.xlane.f32.xlu0 %v1502
        %v1520 = vpop.xlane.xlu0 %1519
        %1521 = vadd.xlane.f32.xlu0 %v1503
        %v1522 = vpop.xlane.xlu0 %1521
        %1523 = vadd.xlane.f32.xlu0 %v1504
        %v1524 = vpop.xlane.xlu0 %1523
        %1525 = vadd.xlane.f32.xlu0 %v1505
        %v1526 = vpop.xlane.xlu0 %1525
        %1527 = vadd.xlane.f32.xlu0 %v1506
        %v1528 = vpop.xlane.xlu0 %1527
        %1529 = vadd.xlane.f32.xlu0 %v1507
        %v1530 = vpop.xlane.xlu0 %1529
        %1531 = vadd.xlane.f32.xlu0 %v1508
        %v1532 = vpop.xlane.xlu0 %1531
        %1533 = vadd.xlane.f32.xlu0 %v1509
        %v1534 = vpop.xlane.xlu0 %1533
        %1535 = vadd.xlane.f32.xlu0 %v1510
        %v1536 = vpop.xlane.xlu0 %1535
        %1537 = vadd.xlane.f32.xlu0 %v1511
        %v1538 = vpop.xlane.xlu0 %1537
        %1539 = vadd.xlane.f32.xlu0 %v1512
        %v1540 = vpop.xlane.xlu0 %1539
        %1541 = vadd.xlane.f32.xlu0 %v1513
        %v1542 = vpop.xlane.xlu0 %1541
        %1543 = vadd.xlane.f32.xlu0 %v1514
        %v1544 = vpop.xlane.xlu0 %1543
        %1545 = vadd.xlane.f32.xlu0 %v1515
        %v1546 = vpop.xlane.xlu0 %1545
        %1547 = vadd.xlane.f32.xlu0 %v1516
        %v1548 = vpop.xlane.xlu0 %1547
        %v1549 = vrsqrt.pop %v1518
        %v1550 = vmul.f32 %v1549, %v1518
        %v1551 = vmul.f32 %v1550, %v1549
        %v1552 = vmul.f32 0.5, %v1551
        %v1553 = vsub.f32 1.5, %v1552
        %v1554 = vmul.f32 %v1549, %v1553
        %vm1555 = vweird.f32 %v1518
        %vm1556 = vweird.f32 %v1549
        %vm1557 = vmor %vm1555, %vm1556
        %v1558 = vsel %vm1557, %v1549, %v1554
        %v1559 = vrsqrt.pop %v1520
        %v1560 = vmul.f32 %v1559, %v1520
        %v1561 = vmul.f32 %v1560, %v1559
        %v1562 = vmul.f32 0.5, %v1561
        %v1563 = vsub.f32 1.5, %v1562
        %v1564 = vmul.f32 %v1559, %v1563
        %vm1565 = vweird.f32 %v1520
        %vm1566 = vweird.f32 %v1559
        %vm1567 = vmor %vm1565, %vm1566
        %v1568 = vsel %vm1567, %v1559, %v1564
        %v1569 = vrsqrt.pop %v1522
        %v1570 = vmul.f32 %v1569, %v1522
        %v1571 = vmul.f32 %v1570, %v1569
        %v1572 = vmul.f32 0.5, %v1571
        %v1573 = vsub.f32 1.5, %v1572
        %v1574 = vmul.f32 %v1569, %v1573
        %vm1575 = vweird.f32 %v1522
        %vm1576 = vweird.f32 %v1569
        %vm1577 = vmor %vm1575, %vm1576
        %v1578 = vsel %vm1577, %v1569, %v1574
        %v1579 = vrsqrt.pop %v1524
        %v1580 = vmul.f32 %v1579, %v1524
        %v1581 = vmul.f32 %v1580, %v1579
        %v1582 = vmul.f32 0.5, %v1581
        %v1583 = vsub.f32 1.5, %v1582
        %v1584 = vmul.f32 %v1579, %v1583
        %vm1585 = vweird.f32 %v1524
        %vm1586 = vweird.f32 %v1579
        %vm1587 = vmor %vm1585, %vm1586
        %v1588 = vsel %vm1587, %v1579, %v1584
        %v1589 = vrsqrt.pop %v1526
        %v1590 = vmul.f32 %v1589, %v1526
        %v1591 = vmul.f32 %v1590, %v1589
        %v1592 = vmul.f32 0.5, %v1591
        %v1593 = vsub.f32 1.5, %v1592
        %v1594 = vmul.f32 %v1589, %v1593
        %vm1595 = vweird.f32 %v1526
        %vm1596 = vweird.f32 %v1589
        %vm1597 = vmor %vm1595, %vm1596
        %v1598 = vsel %vm1597, %v1589, %v1594
        %v1599 = vrsqrt.pop %v1528
        %v1600 = vmul.f32 %v1599, %v1528
        %v1601 = vmul.f32 %v1600, %v1599
        %v1602 = vmul.f32 0.5, %v1601
        %v1603 = vsub.f32 1.5, %v1602
        %v1604 = vmul.f32 %v1599, %v1603
        %vm1605 = vweird.f32 %v1528
        %vm1606 = vweird.f32 %v1599
        %vm1607 = vmor %vm1605, %vm1606
        %v1608 = vsel %vm1607, %v1599, %v1604
        %v1609 = vrsqrt.pop %v1530
        %v1610 = vmul.f32 %v1609, %v1530
        %v1611 = vmul.f32 %v1610, %v1609
        %v1612 = vmul.f32 0.5, %v1611
        %v1613 = vsub.f32 1.5, %v1612
        %v1614 = vmul.f32 %v1609, %v1613
        %vm1615 = vweird.f32 %v1530
        %vm1616 = vweird.f32 %v1609
        %vm1617 = vmor %vm1615, %vm1616
        %v1618 = vsel %vm1617, %v1609, %v1614
        %v1619 = vrsqrt.pop %v1532
        %v1620 = vmul.f32 %v1619, %v1532
        %v1621 = vmul.f32 %v1620, %v1619
        %v1622 = vmul.f32 0.5, %v1621
        %v1623 = vsub.f32 1.5, %v1622
        %v1624 = vmul.f32 %v1619, %v1623
        %vm1625 = vweird.f32 %v1532
        %vm1626 = vweird.f32 %v1619
        %vm1627 = vmor %vm1625, %vm1626
        %v1628 = vsel %vm1627, %v1619, %v1624
        %v1629 = vrsqrt.pop %v1534
        %v1630 = vmul.f32 %v1629, %v1534
        %v1631 = vmul.f32 %v1630, %v1629
        %v1632 = vmul.f32 0.5, %v1631
        %v1633 = vsub.f32 1.5, %v1632
        %v1634 = vmul.f32 %v1629, %v1633
        %vm1635 = vweird.f32 %v1534
        %vm1636 = vweird.f32 %v1629
        %vm1637 = vmor %vm1635, %vm1636
        %v1638 = vsel %vm1637, %v1629, %v1634
        %v1639 = vrsqrt.pop %v1536
        %v1640 = vmul.f32 %v1639, %v1536
        %v1641 = vmul.f32 %v1640, %v1639
        %v1642 = vmul.f32 0.5, %v1641
        %v1643 = vsub.f32 1.5, %v1642
        %v1644 = vmul.f32 %v1639, %v1643
        %vm1645 = vweird.f32 %v1536
        %vm1646 = vweird.f32 %v1639
        %vm1647 = vmor %vm1645, %vm1646
        %v1648 = vsel %vm1647, %v1639, %v1644
        %v1649 = vrsqrt.pop %v1538
        %v1650 = vmul.f32 %v1649, %v1538
        %v1651 = vmul.f32 %v1650, %v1649
        %v1652 = vmul.f32 0.5, %v1651
        %v1653 = vsub.f32 1.5, %v1652
        %v1654 = vmul.f32 %v1649, %v1653
        %vm1655 = vweird.f32 %v1538
        %vm1656 = vweird.f32 %v1649
        %vm1657 = vmor %vm1655, %vm1656
        %v1658 = vsel %vm1657, %v1649, %v1654
        %v1659 = vrsqrt.pop %v1540
        %v1660 = vmul.f32 %v1659, %v1540
        %v1661 = vmul.f32 %v1660, %v1659
        %v1662 = vmul.f32 0.5, %v1661
        %v1663 = vsub.f32 1.5, %v1662
        %v1664 = vmul.f32 %v1659, %v1663
        %vm1665 = vweird.f32 %v1540
        %vm1666 = vweird.f32 %v1659
        %vm1667 = vmor %vm1665, %vm1666
        %v1668 = vsel %vm1667, %v1659, %v1664
        %v1669 = vrsqrt.pop %v1542
        %v1670 = vmul.f32 %v1669, %v1542
        %v1671 = vmul.f32 %v1670, %v1669
        %v1672 = vmul.f32 0.5, %v1671
        %v1673 = vsub.f32 1.5, %v1672
        %v1674 = vmul.f32 %v1669, %v1673
        %vm1675 = vweird.f32 %v1542
        %vm1676 = vweird.f32 %v1669
        %vm1677 = vmor %vm1675, %vm1676
        %v1678 = vsel %vm1677, %v1669, %v1674
        %v1679 = vrsqrt.pop %v1544
        %v1680 = vmul.f32 %v1679, %v1544
        %v1681 = vmul.f32 %v1680, %v1679
        %v1682 = vmul.f32 0.5, %v1681
        %v1683 = vsub.f32 1.5, %v1682
        %v1684 = vmul.f32 %v1679, %v1683
        %vm1685 = vweird.f32 %v1544
        %vm1686 = vweird.f32 %v1679
        %vm1687 = vmor %vm1685, %vm1686
        %v1688 = vsel %vm1687, %v1679, %v1684
        %v1689 = vrsqrt.pop %v1546
        %v1690 = vmul.f32 %v1689, %v1546
        %v1691 = vmul.f32 %v1690, %v1689
        %v1692 = vmul.f32 0.5, %v1691
        %v1693 = vsub.f32 1.5, %v1692
        %v1694 = vmul.f32 %v1689, %v1693
        %vm1695 = vweird.f32 %v1546
        %vm1696 = vweird.f32 %v1689
        %vm1697 = vmor %vm1695, %vm1696
        %v1698 = vsel %vm1697, %v1689, %v1694
        %v1699 = vrsqrt.pop %v1548
        %v1700 = vmul.f32 %v1699, %v1548
        %v1701 = vmul.f32 %v1700, %v1699
        %v1702 = vmul.f32 0.5, %v1701
        %v1703 = vsub.f32 1.5, %v1702
        %v1704 = vmul.f32 %v1699, %v1703
        %vm1705 = vweird.f32 %v1548
        %vm1706 = vweird.f32 %v1699
        %vm1707 = vmor %vm1705, %vm1706
        %v1708 = vsel %vm1707, %v1699, %v1704
        %v1709 = vmul.f32 %v1462, %v1558
        %v1710 = vmul.f32 %v1464, %v1568
        %v1711 = vmul.f32 %v1467, %v1578
        %v1712 = vmul.f32 %v1469, %v1588
        %v1713 = vmul.f32 %v1472, %v1598
        %v1714 = vmul.f32 %v1474, %v1608
        %v1715 = vmul.f32 %v1477, %v1618
        %v1716 = vmul.f32 %v1479, %v1628
        %v1717 = vmul.f32 %v1482, %v1638
        %v1718 = vmul.f32 %v1484, %v1648
        %v1719 = vmul.f32 %v1487, %v1658
        %v1720 = vmul.f32 %v1489, %v1668
        %v1721 = vmul.f32 %v1492, %v1678
        %v1722 = vmul.f32 %v1494, %v1688
        %v1723 = vmul.f32 %v1497, %v1698
        %v1724 = vmul.f32 %v1499, %v1708
        %v1725 = vadd.f32 %v1371, %v1709
        %v1726 = vadd.f32 %v1372, %v1710
        %v1727 = vadd.f32 %v1373, %v1711
        %v1728 = vadd.f32 %v1374, %v1712
        %v1729 = vadd.f32 %v1375, %v1713
        %v1730 = vadd.f32 %v1376, %v1714
        %v1731 = vadd.f32 %v1377, %v1715
        %v1732 = vadd.f32 %v1378, %v1716
        %v1733 = vadd.f32 %v1379, %v1717
        %v1734 = vadd.f32 %v1380, %v1718
        %v1735 = vadd.f32 %v1381, %v1719
        %v1736 = vadd.f32 %v1382, %v1720
        %v1737 = vadd.f32 %v1383, %v1721
        %v1738 = vadd.f32 %v1384, %v1722
        %v1739 = vadd.f32 %v1385, %v1723
        %v1740 = vadd.f32 %v1386, %v1724
        %s1741 = scalar_lea.vmem %s196, 256 [#allocation2]
        %v1742 = vld [vmem:[%s1741] sm:$0xf]
        %v1743 = vld [vmem:[%s1741 + $0x4] sm:$0xf]
        %v1744 = vld [vmem:[%s1741 + $0x8] sm:$0xf]
        %v1745 = vld [vmem:[%s1741 + $0xc] sm:$0xf]
        %v1746 = vld [vmem:[%s1741 + $0x10] sm:$0xf]
        %v1747 = vld [vmem:[%s1741 + $0x14] sm:$0xf]
        %v1748 = vld [vmem:[%s1741 + $0x18] sm:$0xf]
        %v1749 = vld [vmem:[%s1741 + $0x1c] sm:$0xf]
        %v1750 = vld [vmem:[%s1741 + $0x20] sm:$0xf]
        %v1751 = vld [vmem:[%s1741 + $0x24] sm:$0xf]
        %v1752 = vld [vmem:[%s1741 + $0x28] sm:$0xf]
        %v1753 = vld [vmem:[%s1741 + $0x2c] sm:$0xf]
        %v1754 = vld [vmem:[%s1741 + $0x30] sm:$0xf]
        %v1755 = vld [vmem:[%s1741 + $0x34] sm:$0xf]
        %v1756 = vld [vmem:[%s1741 + $0x38] sm:$0xf]
        %v1757 = vld [vmem:[%s1741 + $0x3c] sm:$0xf]
        %v1774 = vunpack.c.l.b16 %v1742
        %v1775 = vunpack.c.l.b16 %v1743
        %v1776 = vunpack.c.l.b16 %v1744
        %v1777 = vunpack.c.l.b16 %v1745
        %v1778 = vunpack.c.l.b16 %v1746
        %v1779 = vunpack.c.l.b16 %v1747
        %v1780 = vunpack.c.l.b16 %v1748
        %v1781 = vunpack.c.l.b16 %v1749
        %v1782 = vunpack.c.l.b16 %v1750
        %v1783 = vunpack.c.l.b16 %v1751
        %v1784 = vunpack.c.l.b16 %v1752
        %v1785 = vunpack.c.l.b16 %v1753
        %v1786 = vunpack.c.l.b16 %v1754
        %v1787 = vunpack.c.l.b16 %v1755
        %v1788 = vunpack.c.l.b16 %v1756
        %v1789 = vunpack.c.l.b16 %v1757
        %v1790 = vpack.c.b16 %v1775, %v1774
        %v1791 = vpack.c.b16 %v1777, %v1776
        %v1792 = vpack.c.b16 %v1779, %v1778
        %v1793 = vpack.c.b16 %v1781, %v1780
        %v1794 = vpack.c.b16 %v1783, %v1782
        %v1795 = vpack.c.b16 %v1785, %v1784
        %v1796 = vpack.c.b16 %v1787, %v1786
        %v1797 = vpack.c.b16 %v1789, %v1788
        %1806 = vmatpush.bf16.msra.mxu0 %v381
        %1807 = vmatpush.bf16.msra.mxu0 %v380
        %1808 = vmatpush.bf16.msra.mxu0 %v379
        %1809 = vmatpush.bf16.msra.mxu0 %v378
        %1810 = vmatpush.bf16.msra.mxu0 %v377
        %1811 = vmatpush.bf16.msra.mxu0 %v376
        %1812 = vmatpush.bf16.msra.mxu0 %v375
        %1813 = vmatpush.bf16.msra.mxu0 %v374
        %1814 = vmatmul.bf16.gmra.mxu0 %v1790
        %v1815 = vpop.f32.mrf.mxu0
        %v1816 = vadd.f32 0.0, %v1815
        %v1817 = vpop.f32.mrf.mxu0
        %v1818 = vadd.f32 0.0, %v1817
        %1819 = vmatmul.bf16.gmra.mxu0 %v1791
        %v1820 = vpop.f32.mrf.mxu0
        %v1821 = vadd.f32 0.0, %v1820
        %v1822 = vpop.f32.mrf.mxu0
        %v1823 = vadd.f32 0.0, %v1822
        %1824 = vmatmul.bf16.gmra.mxu0 %v1792
        %v1825 = vpop.f32.mrf.mxu0
        %v1826 = vadd.f32 0.0, %v1825
        %v1827 = vpop.f32.mrf.mxu0
        %v1828 = vadd.f32 0.0, %v1827
        %1829 = vmatmul.bf16.gmra.mxu0 %v1793
        %v1830 = vpop.f32.mrf.mxu0
        %v1831 = vadd.f32 0.0, %v1830
        %v1832 = vpop.f32.mrf.mxu0
        %v1833 = vadd.f32 0.0, %v1832
        %1834 = vmatmul.bf16.gmra.mxu0 %v1794
        %v1835 = vpop.f32.mrf.mxu0
        %v1836 = vadd.f32 0.0, %v1835
        %v1837 = vpop.f32.mrf.mxu0
        %v1838 = vadd.f32 0.0, %v1837
        %1839 = vmatmul.bf16.gmra.mxu0 %v1795
        %v1840 = vpop.f32.mrf.mxu0
        %v1841 = vadd.f32 0.0, %v1840
        %v1842 = vpop.f32.mrf.mxu0
        %v1843 = vadd.f32 0.0, %v1842
        %1844 = vmatmul.bf16.gmra.mxu0 %v1796
        %v1845 = vpop.f32.mrf.mxu0
        %v1846 = vadd.f32 0.0, %v1845
        %v1847 = vpop.f32.mrf.mxu0
        %v1848 = vadd.f32 0.0, %v1847
        %1849 = vmatmul.bf16.gmra.mxu0 %v1797
        %v1850 = vpop.f32.mrf.mxu0
        %v1851 = vadd.f32 0.0, %v1850
        %v1852 = vpop.f32.mrf.mxu0
        %v1853 = vadd.f32 0.0, %v1852
        %1854 = vdwg.mxu0
        %v1855 = vmul.f32 %v1816, %v1816
        %v1856 = vmul.f32 %v1818, %v1818
        %v1857 = vmul.f32 %v1821, %v1821
        %v1858 = vmul.f32 %v1823, %v1823
        %v1859 = vmul.f32 %v1826, %v1826
        %v1860 = vmul.f32 %v1828, %v1828
        %v1861 = vmul.f32 %v1831, %v1831
        %v1862 = vmul.f32 %v1833, %v1833
        %v1863 = vmul.f32 %v1836, %v1836
        %v1864 = vmul.f32 %v1838, %v1838
        %v1865 = vmul.f32 %v1841, %v1841
        %v1866 = vmul.f32 %v1843, %v1843
        %v1867 = vmul.f32 %v1846, %v1846
        %v1868 = vmul.f32 %v1848, %v1848
        %v1869 = vmul.f32 %v1851, %v1851
        %v1870 = vmul.f32 %v1853, %v1853
        %1871 = vadd.xlane.f32.xlu0 %v1855
        %v1872 = vpop.xlane.xlu0 %1871
        %1873 = vadd.xlane.f32.xlu0 %v1856
        %v1874 = vpop.xlane.xlu0 %1873
        %1875 = vadd.xlane.f32.xlu0 %v1857
        %v1876 = vpop.xlane.xlu0 %1875
        %1877 = vadd.xlane.f32.xlu0 %v1858
        %v1878 = vpop.xlane.xlu0 %1877
        %1879 = vadd.xlane.f32.xlu0 %v1859
        %v1880 = vpop.xlane.xlu0 %1879
        %1881 = vadd.xlane.f32.xlu0 %v1860
        %v1882 = vpop.xlane.xlu0 %1881
        %1883 = vadd.xlane.f32.xlu0 %v1861
        %v1884 = vpop.xlane.xlu0 %1883
        %1885 = vadd.xlane.f32.xlu0 %v1862
        %v1886 = vpop.xlane.xlu0 %1885
        %1887 = vadd.xlane.f32.xlu0 %v1863
        %v1888 = vpop.xlane.xlu0 %1887
        %1889 = vadd.xlane.f32.xlu0 %v1864
        %v1890 = vpop.xlane.xlu0 %1889
        %1891 = vadd.xlane.f32.xlu0 %v1865
        %v1892 = vpop.xlane.xlu0 %1891
        %1893 = vadd.xlane.f32.xlu0 %v1866
        %v1894 = vpop.xlane.xlu0 %1893
        %1895 = vadd.xlane.f32.xlu0 %v1867
        %v1896 = vpop.xlane.xlu0 %1895
        %1897 = vadd.xlane.f32.xlu0 %v1868
        %v1898 = vpop.xlane.xlu0 %1897
        %1899 = vadd.xlane.f32.xlu0 %v1869
        %v1900 = vpop.xlane.xlu0 %1899
        %1901 = vadd.xlane.f32.xlu0 %v1870
        %v1902 = vpop.xlane.xlu0 %1901
        %v1903 = vrsqrt.pop %v1872
        %v1904 = vmul.f32 %v1903, %v1872
        %v1905 = vmul.f32 %v1904, %v1903
        %v1906 = vmul.f32 0.5, %v1905
        %v1907 = vsub.f32 1.5, %v1906
        %v1908 = vmul.f32 %v1903, %v1907
        %vm1909 = vweird.f32 %v1872
        %vm1910 = vweird.f32 %v1903
        %vm1911 = vmor %vm1909, %vm1910
        %v1912 = vsel %vm1911, %v1903, %v1908
        %v1913 = vrsqrt.pop %v1874
        %v1914 = vmul.f32 %v1913, %v1874
        %v1915 = vmul.f32 %v1914, %v1913
        %v1916 = vmul.f32 0.5, %v1915
        %v1917 = vsub.f32 1.5, %v1916
        %v1918 = vmul.f32 %v1913, %v1917
        %vm1919 = vweird.f32 %v1874
        %vm1920 = vweird.f32 %v1913
        %vm1921 = vmor %vm1919, %vm1920
        %v1922 = vsel %vm1921, %v1913, %v1918
        %v1923 = vrsqrt.pop %v1876
        %v1924 = vmul.f32 %v1923, %v1876
        %v1925 = vmul.f32 %v1924, %v1923
        %v1926 = vmul.f32 0.5, %v1925
        %v1927 = vsub.f32 1.5, %v1926
        %v1928 = vmul.f32 %v1923, %v1927
        %vm1929 = vweird.f32 %v1876
        %vm1930 = vweird.f32 %v1923
        %vm1931 = vmor %vm1929, %vm1930
        %v1932 = vsel %vm1931, %v1923, %v1928
        %v1933 = vrsqrt.pop %v1878
        %v1934 = vmul.f32 %v1933, %v1878
        %v1935 = vmul.f32 %v1934, %v1933
        %v1936 = vmul.f32 0.5, %v1935
        %v1937 = vsub.f32 1.5, %v1936
        %v1938 = vmul.f32 %v1933, %v1937
        %vm1939 = vweird.f32 %v1878
        %vm1940 = vweird.f32 %v1933
        %vm1941 = vmor %vm1939, %vm1940
        %v1942 = vsel %vm1941, %v1933, %v1938
        %v1943 = vrsqrt.pop %v1880
        %v1944 = vmul.f32 %v1943, %v1880
        %v1945 = vmul.f32 %v1944, %v1943
        %v1946 = vmul.f32 0.5, %v1945
        %v1947 = vsub.f32 1.5, %v1946
        %v1948 = vmul.f32 %v1943, %v1947
        %vm1949 = vweird.f32 %v1880
        %vm1950 = vweird.f32 %v1943
        %vm1951 = vmor %vm1949, %vm1950
        %v1952 = vsel %vm1951, %v1943, %v1948
        %v1953 = vrsqrt.pop %v1882
        %v1954 = vmul.f32 %v1953, %v1882
        %v1955 = vmul.f32 %v1954, %v1953
        %v1956 = vmul.f32 0.5, %v1955
        %v1957 = vsub.f32 1.5, %v1956
        %v1958 = vmul.f32 %v1953, %v1957
        %vm1959 = vweird.f32 %v1882
        %vm1960 = vweird.f32 %v1953
        %vm1961 = vmor %vm1959, %vm1960
        %v1962 = vsel %vm1961, %v1953, %v1958
        %v1963 = vrsqrt.pop %v1884
        %v1964 = vmul.f32 %v1963, %v1884
        %v1965 = vmul.f32 %v1964, %v1963
        %v1966 = vmul.f32 0.5, %v1965
        %v1967 = vsub.f32 1.5, %v1966
        %v1968 = vmul.f32 %v1963, %v1967
        %vm1969 = vweird.f32 %v1884
        %vm1970 = vweird.f32 %v1963
        %vm1971 = vmor %vm1969, %vm1970
        %v1972 = vsel %vm1971, %v1963, %v1968
        %v1973 = vrsqrt.pop %v1886
        %v1974 = vmul.f32 %v1973, %v1886
        %v1975 = vmul.f32 %v1974, %v1973
        %v1976 = vmul.f32 0.5, %v1975
        %v1977 = vsub.f32 1.5, %v1976
        %v1978 = vmul.f32 %v1973, %v1977
        %vm1979 = vweird.f32 %v1886
        %vm1980 = vweird.f32 %v1973
        %vm1981 = vmor %vm1979, %vm1980
        %v1982 = vsel %vm1981, %v1973, %v1978
        %v1983 = vrsqrt.pop %v1888
        %v1984 = vmul.f32 %v1983, %v1888
        %v1985 = vmul.f32 %v1984, %v1983
        %v1986 = vmul.f32 0.5, %v1985
        %v1987 = vsub.f32 1.5, %v1986
        %v1988 = vmul.f32 %v1983, %v1987
        %vm1989 = vweird.f32 %v1888
        %vm1990 = vweird.f32 %v1983
        %vm1991 = vmor %vm1989, %vm1990
        %v1992 = vsel %vm1991, %v1983, %v1988
        %v1993 = vrsqrt.pop %v1890
        %v1994 = vmul.f32 %v1993, %v1890
        %v1995 = vmul.f32 %v1994, %v1993
        %v1996 = vmul.f32 0.5, %v1995
        %v1997 = vsub.f32 1.5, %v1996
        %v1998 = vmul.f32 %v1993, %v1997
        %vm1999 = vweird.f32 %v1890
        %vm2000 = vweird.f32 %v1993
        %vm2001 = vmor %vm1999, %vm2000
        %v2002 = vsel %vm2001, %v1993, %v1998
        %v2003 = vrsqrt.pop %v1892
        %v2004 = vmul.f32 %v2003, %v1892
        %v2005 = vmul.f32 %v2004, %v2003
        %v2006 = vmul.f32 0.5, %v2005
        %v2007 = vsub.f32 1.5, %v2006
        %v2008 = vmul.f32 %v2003, %v2007
        %vm2009 = vweird.f32 %v1892
        %vm2010 = vweird.f32 %v2003
        %vm2011 = vmor %vm2009, %vm2010
        %v2012 = vsel %vm2011, %v2003, %v2008
        %v2013 = vrsqrt.pop %v1894
        %v2014 = vmul.f32 %v2013, %v1894
        %v2015 = vmul.f32 %v2014, %v2013
        %v2016 = vmul.f32 0.5, %v2015
        %v2017 = vsub.f32 1.5, %v2016
        %v2018 = vmul.f32 %v2013, %v2017
        %vm2019 = vweird.f32 %v1894
        %vm2020 = vweird.f32 %v2013
        %vm2021 = vmor %vm2019, %vm2020
        %v2022 = vsel %vm2021, %v2013, %v2018
        %v2023 = vrsqrt.pop %v1896
        %v2024 = vmul.f32 %v2023, %v1896
        %v2025 = vmul.f32 %v2024, %v2023
        %v2026 = vmul.f32 0.5, %v2025
        %v2027 = vsub.f32 1.5, %v2026
        %v2028 = vmul.f32 %v2023, %v2027
        %vm2029 = vweird.f32 %v1896
        %vm2030 = vweird.f32 %v2023
        %vm2031 = vmor %vm2029, %vm2030
        %v2032 = vsel %vm2031, %v2023, %v2028
        %v2033 = vrsqrt.pop %v1898
        %v2034 = vmul.f32 %v2033, %v1898
        %v2035 = vmul.f32 %v2034, %v2033
        %v2036 = vmul.f32 0.5, %v2035
        %v2037 = vsub.f32 1.5, %v2036
        %v2038 = vmul.f32 %v2033, %v2037
        %vm2039 = vweird.f32 %v1898
        %vm2040 = vweird.f32 %v2033
        %vm2041 = vmor %vm2039, %vm2040
        %v2042 = vsel %vm2041, %v2033, %v2038
        %v2043 = vrsqrt.pop %v1900
        %v2044 = vmul.f32 %v2043, %v1900
        %v2045 = vmul.f32 %v2044, %v2043
        %v2046 = vmul.f32 0.5, %v2045
        %v2047 = vsub.f32 1.5, %v2046
        %v2048 = vmul.f32 %v2043, %v2047
        %vm2049 = vweird.f32 %v1900
        %vm2050 = vweird.f32 %v2043
        %vm2051 = vmor %vm2049, %vm2050
        %v2052 = vsel %vm2051, %v2043, %v2048
        %v2053 = vrsqrt.pop %v1902
        %v2054 = vmul.f32 %v2053, %v1902
        %v2055 = vmul.f32 %v2054, %v2053
        %v2056 = vmul.f32 0.5, %v2055
        %v2057 = vsub.f32 1.5, %v2056
        %v2058 = vmul.f32 %v2053, %v2057
        %vm2059 = vweird.f32 %v1902
        %vm2060 = vweird.f32 %v2053
        %vm2061 = vmor %vm2059, %vm2060
        %v2062 = vsel %vm2061, %v2053, %v2058
        %v2063 = vmul.f32 %v1816, %v1912
        %v2064 = vmul.f32 %v1818, %v1922
        %v2065 = vmul.f32 %v1821, %v1932
        %v2066 = vmul.f32 %v1823, %v1942
        %v2067 = vmul.f32 %v1826, %v1952
        %v2068 = vmul.f32 %v1828, %v1962
        %v2069 = vmul.f32 %v1831, %v1972
        %v2070 = vmul.f32 %v1833, %v1982
        %v2071 = vmul.f32 %v1836, %v1992
        %v2072 = vmul.f32 %v1838, %v2002
        %v2073 = vmul.f32 %v1841, %v2012
        %v2074 = vmul.f32 %v1843, %v2022
        %v2075 = vmul.f32 %v1846, %v2032
        %v2076 = vmul.f32 %v1848, %v2042
        %v2077 = vmul.f32 %v1851, %v2052
        %v2078 = vmul.f32 %v1853, %v2062
        %v2079 = vadd.f32 %v1725, %v2063
        %v2080 = vadd.f32 %v1726, %v2064
        %v2081 = vadd.f32 %v1727, %v2065
        %v2082 = vadd.f32 %v1728, %v2066
        %v2083 = vadd.f32 %v1729, %v2067
        %v2084 = vadd.f32 %v1730, %v2068
        %v2085 = vadd.f32 %v1731, %v2069
        %v2086 = vadd.f32 %v1732, %v2070
        %v2087 = vadd.f32 %v1733, %v2071
        %v2088 = vadd.f32 %v1734, %v2072
        %v2089 = vadd.f32 %v1735, %v2073
        %v2090 = vadd.f32 %v1736, %v2074
        %v2091 = vadd.f32 %v1737, %v2075
        %v2092 = vadd.f32 %v1738, %v2076
        %v2093 = vadd.f32 %v1739, %v2077
        %v2094 = vadd.f32 %v1740, %v2078
        %s2095 = scalar_lea.vmem %s196, 320 [#allocation2]
        %v2096 = vld [vmem:[%s2095] sm:$0xf]
        %v2097 = vld [vmem:[%s2095 + $0x4] sm:$0xf]
        %v2098 = vld [vmem:[%s2095 + $0x8] sm:$0xf]
        %v2099 = vld [vmem:[%s2095 + $0xc] sm:$0xf]
        %v2100 = vld [vmem:[%s2095 + $0x10] sm:$0xf]
        %v2101 = vld [vmem:[%s2095 + $0x14] sm:$0xf]
        %v2102 = vld [vmem:[%s2095 + $0x18] sm:$0xf]
        %v2103 = vld [vmem:[%s2095 + $0x1c] sm:$0xf]
        %v2104 = vld [vmem:[%s2095 + $0x20] sm:$0xf]
        %v2105 = vld [vmem:[%s2095 + $0x24] sm:$0xf]
        %v2106 = vld [vmem:[%s2095 + $0x28] sm:$0xf]
        %v2107 = vld [vmem:[%s2095 + $0x2c] sm:$0xf]
        %v2108 = vld [vmem:[%s2095 + $0x30] sm:$0xf]
        %v2109 = vld [vmem:[%s2095 + $0x34] sm:$0xf]
        %v2110 = vld [vmem:[%s2095 + $0x38] sm:$0xf]
        %v2111 = vld [vmem:[%s2095 + $0x3c] sm:$0xf]
        %v2128 = vunpack.c.l.b16 %v2096
        %v2129 = vunpack.c.l.b16 %v2097
        %v2130 = vunpack.c.l.b16 %v2098
        %v2131 = vunpack.c.l.b16 %v2099
        %v2132 = vunpack.c.l.b16 %v2100
        %v2133 = vunpack.c.l.b16 %v2101
        %v2134 = vunpack.c.l.b16 %v2102
        %v2135 = vunpack.c.l.b16 %v2103
        %v2136 = vunpack.c.l.b16 %v2104
        %v2137 = vunpack.c.l.b16 %v2105
        %v2138 = vunpack.c.l.b16 %v2106
        %v2139 = vunpack.c.l.b16 %v2107
        %v2140 = vunpack.c.l.b16 %v2108
        %v2141 = vunpack.c.l.b16 %v2109
        %v2142 = vunpack.c.l.b16 %v2110
        %v2143 = vunpack.c.l.b16 %v2111
        %v2144 = vpack.c.b16 %v2129, %v2128
        %v2145 = vpack.c.b16 %v2131, %v2130
        %v2146 = vpack.c.b16 %v2133, %v2132
        %v2147 = vpack.c.b16 %v2135, %v2134
        %v2148 = vpack.c.b16 %v2137, %v2136
        %v2149 = vpack.c.b16 %v2139, %v2138
        %v2150 = vpack.c.b16 %v2141, %v2140
        %v2151 = vpack.c.b16 %v2143, %v2142
        %2160 = vmatpush.bf16.msra.mxu0 %v381
        %2161 = vmatpush.bf16.msra.mxu0 %v380
        %2162 = vmatpush.bf16.msra.mxu0 %v379
        %2163 = vmatpush.bf16.msra.mxu0 %v378
        %2164 = vmatpush.bf16.msra.mxu0 %v377
        %2165 = vmatpush.bf16.msra.mxu0 %v376
        %2166 = vmatpush.bf16.msra.mxu0 %v375
        %2167 = vmatpush.bf16.msra.mxu0 %v374
        %2168 = vmatmul.bf16.gmra.mxu0 %v2144
        %v2169 = vpop.f32.mrf.mxu0
        %v2170 = vadd.f32 0.0, %v2169
        %v2171 = vpop.f32.mrf.mxu0
        %v2172 = vadd.f32 0.0, %v2171
        %2173 = vmatmul.bf16.gmra.mxu0 %v2145
        %v2174 = vpop.f32.mrf.mxu0
        %v2175 = vadd.f32 0.0, %v2174
        %v2176 = vpop.f32.mrf.mxu0
        %v2177 = vadd.f32 0.0, %v2176
        %2178 = vmatmul.bf16.gmra.mxu0 %v2146
        %v2179 = vpop.f32.mrf.mxu0
        %v2180 = vadd.f32 0.0, %v2179
        %v2181 = vpop.f32.mrf.mxu0
        %v2182 = vadd.f32 0.0, %v2181
        %2183 = vmatmul.bf16.gmra.mxu0 %v2147
        %v2184 = vpop.f32.mrf.mxu0
        %v2185 = vadd.f32 0.0, %v2184
        %v2186 = vpop.f32.mrf.mxu0
        %v2187 = vadd.f32 0.0, %v2186
        %2188 = vmatmul.bf16.gmra.mxu0 %v2148
        %v2189 = vpop.f32.mrf.mxu0
        %v2190 = vadd.f32 0.0, %v2189
        %v2191 = vpop.f32.mrf.mxu0
        %v2192 = vadd.f32 0.0, %v2191
        %2193 = vmatmul.bf16.gmra.mxu0 %v2149
        %v2194 = vpop.f32.mrf.mxu0
        %v2195 = vadd.f32 0.0, %v2194
        %v2196 = vpop.f32.mrf.mxu0
        %v2197 = vadd.f32 0.0, %v2196
        %2198 = vmatmul.bf16.gmra.mxu0 %v2150
        %v2199 = vpop.f32.mrf.mxu0
        %v2200 = vadd.f32 0.0, %v2199
        %v2201 = vpop.f32.mrf.mxu0
        %v2202 = vadd.f32 0.0, %v2201
        %2203 = vmatmul.bf16.gmra.mxu0 %v2151
        %v2204 = vpop.f32.mrf.mxu0
        %v2205 = vadd.f32 0.0, %v2204
        %v2206 = vpop.f32.mrf.mxu0
        %v2207 = vadd.f32 0.0, %v2206
        %2208 = vdwg.mxu0
        %v2209 = vmul.f32 %v2170, %v2170
        %v2210 = vmul.f32 %v2172, %v2172
        %v2211 = vmul.f32 %v2175, %v2175
        %v2212 = vmul.f32 %v2177, %v2177
        %v2213 = vmul.f32 %v2180, %v2180
        %v2214 = vmul.f32 %v2182, %v2182
        %v2215 = vmul.f32 %v2185, %v2185
        %v2216 = vmul.f32 %v2187, %v2187
        %v2217 = vmul.f32 %v2190, %v2190
        %v2218 = vmul.f32 %v2192, %v2192
        %v2219 = vmul.f32 %v2195, %v2195
        %v2220 = vmul.f32 %v2197, %v2197
        %v2221 = vmul.f32 %v2200, %v2200
        %v2222 = vmul.f32 %v2202, %v2202
        %v2223 = vmul.f32 %v2205, %v2205
        %v2224 = vmul.f32 %v2207, %v2207
        %2225 = vadd.xlane.f32.xlu0 %v2209
        %v2226 = vpop.xlane.xlu0 %2225
        %2227 = vadd.xlane.f32.xlu0 %v2210
        %v2228 = vpop.xlane.xlu0 %2227
        %2229 = vadd.xlane.f32.xlu0 %v2211
        %v2230 = vpop.xlane.xlu0 %2229
        %2231 = vadd.xlane.f32.xlu0 %v2212
        %v2232 = vpop.xlane.xlu0 %2231
        %2233 = vadd.xlane.f32.xlu0 %v2213
        %v2234 = vpop.xlane.xlu0 %2233
        %2235 = vadd.xlane.f32.xlu0 %v2214
        %v2236 = vpop.xlane.xlu0 %2235
        %2237 = vadd.xlane.f32.xlu0 %v2215
        %v2238 = vpop.xlane.xlu0 %2237
        %2239 = vadd.xlane.f32.xlu0 %v2216
        %v2240 = vpop.xlane.xlu0 %2239
        %2241 = vadd.xlane.f32.xlu0 %v2217
        %v2242 = vpop.xlane.xlu0 %2241
        %2243 = vadd.xlane.f32.xlu0 %v2218
        %v2244 = vpop.xlane.xlu0 %2243
        %2245 = vadd.xlane.f32.xlu0 %v2219
        %v2246 = vpop.xlane.xlu0 %2245
        %2247 = vadd.xlane.f32.xlu0 %v2220
        %v2248 = vpop.xlane.xlu0 %2247
        %2249 = vadd.xlane.f32.xlu0 %v2221
        %v2250 = vpop.xlane.xlu0 %2249
        %2251 = vadd.xlane.f32.xlu0 %v2222
        %v2252 = vpop.xlane.xlu0 %2251
        %2253 = vadd.xlane.f32.xlu0 %v2223
        %v2254 = vpop.xlane.xlu0 %2253
        %2255 = vadd.xlane.f32.xlu0 %v2224
        %v2256 = vpop.xlane.xlu0 %2255
        %v2257 = vrsqrt.pop %v2226
        %v2258 = vmul.f32 %v2257, %v2226
        %v2259 = vmul.f32 %v2258, %v2257
        %v2260 = vmul.f32 0.5, %v2259
        %v2261 = vsub.f32 1.5, %v2260
        %v2262 = vmul.f32 %v2257, %v2261
        %vm2263 = vweird.f32 %v2226
        %vm2264 = vweird.f32 %v2257
        %vm2265 = vmor %vm2263, %vm2264
        %v2266 = vsel %vm2265, %v2257, %v2262
        %v2267 = vrsqrt.pop %v2228
        %v2268 = vmul.f32 %v2267, %v2228
        %v2269 = vmul.f32 %v2268, %v2267
        %v2270 = vmul.f32 0.5, %v2269
        %v2271 = vsub.f32 1.5, %v2270
        %v2272 = vmul.f32 %v2267, %v2271
        %vm2273 = vweird.f32 %v2228
        %vm2274 = vweird.f32 %v2267
        %vm2275 = vmor %vm2273, %vm2274
        %v2276 = vsel %vm2275, %v2267, %v2272
        %v2277 = vrsqrt.pop %v2230
        %v2278 = vmul.f32 %v2277, %v2230
        %v2279 = vmul.f32 %v2278, %v2277
        %v2280 = vmul.f32 0.5, %v2279
        %v2281 = vsub.f32 1.5, %v2280
        %v2282 = vmul.f32 %v2277, %v2281
        %vm2283 = vweird.f32 %v2230
        %vm2284 = vweird.f32 %v2277
        %vm2285 = vmor %vm2283, %vm2284
        %v2286 = vsel %vm2285, %v2277, %v2282
        %v2287 = vrsqrt.pop %v2232
        %v2288 = vmul.f32 %v2287, %v2232
        %v2289 = vmul.f32 %v2288, %v2287
        %v2290 = vmul.f32 0.5, %v2289
        %v2291 = vsub.f32 1.5, %v2290
        %v2292 = vmul.f32 %v2287, %v2291
        %vm2293 = vweird.f32 %v2232
        %vm2294 = vweird.f32 %v2287
        %vm2295 = vmor %vm2293, %vm2294
        %v2296 = vsel %vm2295, %v2287, %v2292
        %v2297 = vrsqrt.pop %v2234
        %v2298 = vmul.f32 %v2297, %v2234
        %v2299 = vmul.f32 %v2298, %v2297
        %v2300 = vmul.f32 0.5, %v2299
        %v2301 = vsub.f32 1.5, %v2300
        %v2302 = vmul.f32 %v2297, %v2301
        %vm2303 = vweird.f32 %v2234
        %vm2304 = vweird.f32 %v2297
        %vm2305 = vmor %vm2303, %vm2304
        %v2306 = vsel %vm2305, %v2297, %v2302
        %v2307 = vrsqrt.pop %v2236
        %v2308 = vmul.f32 %v2307, %v2236
        %v2309 = vmul.f32 %v2308, %v2307
        %v2310 = vmul.f32 0.5, %v2309
        %v2311 = vsub.f32 1.5, %v2310
        %v2312 = vmul.f32 %v2307, %v2311
        %vm2313 = vweird.f32 %v2236
        %vm2314 = vweird.f32 %v2307
        %vm2315 = vmor %vm2313, %vm2314
        %v2316 = vsel %vm2315, %v2307, %v2312
        %v2317 = vrsqrt.pop %v2238
        %v2318 = vmul.f32 %v2317, %v2238
        %v2319 = vmul.f32 %v2318, %v2317
        %v2320 = vmul.f32 0.5, %v2319
        %v2321 = vsub.f32 1.5, %v2320
        %v2322 = vmul.f32 %v2317, %v2321
        %vm2323 = vweird.f32 %v2238
        %vm2324 = vweird.f32 %v2317
        %vm2325 = vmor %vm2323, %vm2324
        %v2326 = vsel %vm2325, %v2317, %v2322
        %v2327 = vrsqrt.pop %v2240
        %v2328 = vmul.f32 %v2327, %v2240
        %v2329 = vmul.f32 %v2328, %v2327
        %v2330 = vmul.f32 0.5, %v2329
        %v2331 = vsub.f32 1.5, %v2330
        %v2332 = vmul.f32 %v2327, %v2331
        %vm2333 = vweird.f32 %v2240
        %vm2334 = vweird.f32 %v2327
        %vm2335 = vmor %vm2333, %vm2334
        %v2336 = vsel %vm2335, %v2327, %v2332
        %v2337 = vrsqrt.pop %v2242
        %v2338 = vmul.f32 %v2337, %v2242
        %v2339 = vmul.f32 %v2338, %v2337
        %v2340 = vmul.f32 0.5, %v2339
        %v2341 = vsub.f32 1.5, %v2340
        %v2342 = vmul.f32 %v2337, %v2341
        %vm2343 = vweird.f32 %v2242
        %vm2344 = vweird.f32 %v2337
        %vm2345 = vmor %vm2343, %vm2344
        %v2346 = vsel %vm2345, %v2337, %v2342
        %v2347 = vrsqrt.pop %v2244
        %v2348 = vmul.f32 %v2347, %v2244
        %v2349 = vmul.f32 %v2348, %v2347
        %v2350 = vmul.f32 0.5, %v2349
        %v2351 = vsub.f32 1.5, %v2350
        %v2352 = vmul.f32 %v2347, %v2351
        %vm2353 = vweird.f32 %v2244
        %vm2354 = vweird.f32 %v2347
        %vm2355 = vmor %vm2353, %vm2354
        %v2356 = vsel %vm2355, %v2347, %v2352
        %v2357 = vrsqrt.pop %v2246
        %v2358 = vmul.f32 %v2357, %v2246
        %v2359 = vmul.f32 %v2358, %v2357
        %v2360 = vmul.f32 0.5, %v2359
        %v2361 = vsub.f32 1.5, %v2360
        %v2362 = vmul.f32 %v2357, %v2361
        %vm2363 = vweird.f32 %v2246
        %vm2364 = vweird.f32 %v2357
        %vm2365 = vmor %vm2363, %vm2364
        %v2366 = vsel %vm2365, %v2357, %v2362
        %v2367 = vrsqrt.pop %v2248
        %v2368 = vmul.f32 %v2367, %v2248
        %v2369 = vmul.f32 %v2368, %v2367
        %v2370 = vmul.f32 0.5, %v2369
        %v2371 = vsub.f32 1.5, %v2370
        %v2372 = vmul.f32 %v2367, %v2371
        %vm2373 = vweird.f32 %v2248
        %vm2374 = vweird.f32 %v2367
        %vm2375 = vmor %vm2373, %vm2374
        %v2376 = vsel %vm2375, %v2367, %v2372
        %v2377 = vrsqrt.pop %v2250
        %v2378 = vmul.f32 %v2377, %v2250
        %v2379 = vmul.f32 %v2378, %v2377
        %v2380 = vmul.f32 0.5, %v2379
        %v2381 = vsub.f32 1.5, %v2380
        %v2382 = vmul.f32 %v2377, %v2381
        %vm2383 = vweird.f32 %v2250
        %vm2384 = vweird.f32 %v2377
        %vm2385 = vmor %vm2383, %vm2384
        %v2386 = vsel %vm2385, %v2377, %v2382
        %v2387 = vrsqrt.pop %v2252
        %v2388 = vmul.f32 %v2387, %v2252
        %v2389 = vmul.f32 %v2388, %v2387
        %v2390 = vmul.f32 0.5, %v2389
        %v2391 = vsub.f32 1.5, %v2390
        %v2392 = vmul.f32 %v2387, %v2391
        %vm2393 = vweird.f32 %v2252
        %vm2394 = vweird.f32 %v2387
        %vm2395 = vmor %vm2393, %vm2394
        %v2396 = vsel %vm2395, %v2387, %v2392
        %v2397 = vrsqrt.pop %v2254
        %v2398 = vmul.f32 %v2397, %v2254
        %v2399 = vmul.f32 %v2398, %v2397
        %v2400 = vmul.f32 0.5, %v2399
        %v2401 = vsub.f32 1.5, %v2400
        %v2402 = vmul.f32 %v2397, %v2401
        %vm2403 = vweird.f32 %v2254
        %vm2404 = vweird.f32 %v2397
        %vm2405 = vmor %vm2403, %vm2404
        %v2406 = vsel %vm2405, %v2397, %v2402
        %v2407 = vrsqrt.pop %v2256
        %v2408 = vmul.f32 %v2407, %v2256
        %v2409 = vmul.f32 %v2408, %v2407
        %v2410 = vmul.f32 0.5, %v2409
        %v2411 = vsub.f32 1.5, %v2410
        %v2412 = vmul.f32 %v2407, %v2411
        %vm2413 = vweird.f32 %v2256
        %vm2414 = vweird.f32 %v2407
        %vm2415 = vmor %vm2413, %vm2414
        %v2416 = vsel %vm2415, %v2407, %v2412
        %v2417 = vmul.f32 %v2170, %v2266
        %v2418 = vmul.f32 %v2172, %v2276
        %v2419 = vmul.f32 %v2175, %v2286
        %v2420 = vmul.f32 %v2177, %v2296
        %v2421 = vmul.f32 %v2180, %v2306
        %v2422 = vmul.f32 %v2182, %v2316
        %v2423 = vmul.f32 %v2185, %v2326
        %v2424 = vmul.f32 %v2187, %v2336
        %v2425 = vmul.f32 %v2190, %v2346
        %v2426 = vmul.f32 %v2192, %v2356
        %v2427 = vmul.f32 %v2195, %v2366
        %v2428 = vmul.f32 %v2197, %v2376
        %v2429 = vmul.f32 %v2200, %v2386
        %v2430 = vmul.f32 %v2202, %v2396
        %v2431 = vmul.f32 %v2205, %v2406
        %v2432 = vmul.f32 %v2207, %v2416
        %v2433 = vadd.f32 %v2079, %v2417
        %v2434 = vadd.f32 %v2080, %v2418
        %v2435 = vadd.f32 %v2081, %v2419
        %v2436 = vadd.f32 %v2082, %v2420
        %v2437 = vadd.f32 %v2083, %v2421
        %v2438 = vadd.f32 %v2084, %v2422
        %v2439 = vadd.f32 %v2085, %v2423
        %v2440 = vadd.f32 %v2086, %v2424
        %v2441 = vadd.f32 %v2087, %v2425
        %v2442 = vadd.f32 %v2088, %v2426
        %v2443 = vadd.f32 %v2089, %v2427
        %v2444 = vadd.f32 %v2090, %v2428
        %v2445 = vadd.f32 %v2091, %v2429
        %v2446 = vadd.f32 %v2092, %v2430
        %v2447 = vadd.f32 %v2093, %v2431
        %v2448 = vadd.f32 %v2094, %v2432
        %s2449 = scalar_lea.vmem %s196, 384 [#allocation2]
        %v2450 = vld [vmem:[%s2449] sm:$0xf]
        %v2451 = vld [vmem:[%s2449 + $0x4] sm:$0xf]
        %v2452 = vld [vmem:[%s2449 + $0x8] sm:$0xf]
        %v2453 = vld [vmem:[%s2449 + $0xc] sm:$0xf]
        %v2454 = vld [vmem:[%s2449 + $0x10] sm:$0xf]
        %v2455 = vld [vmem:[%s2449 + $0x14] sm:$0xf]
        %v2456 = vld [vmem:[%s2449 + $0x18] sm:$0xf]
        %v2457 = vld [vmem:[%s2449 + $0x1c] sm:$0xf]
        %v2458 = vld [vmem:[%s2449 + $0x20] sm:$0xf]
        %v2459 = vld [vmem:[%s2449 + $0x24] sm:$0xf]
        %v2460 = vld [vmem:[%s2449 + $0x28] sm:$0xf]
        %v2461 = vld [vmem:[%s2449 + $0x2c] sm:$0xf]
        %v2462 = vld [vmem:[%s2449 + $0x30] sm:$0xf]
        %v2463 = vld [vmem:[%s2449 + $0x34] sm:$0xf]
        %v2464 = vld [vmem:[%s2449 + $0x38] sm:$0xf]
        %v2465 = vld [vmem:[%s2449 + $0x3c] sm:$0xf]
        %v2482 = vunpack.c.l.b16 %v2450
        %v2483 = vunpack.c.l.b16 %v2451
        %v2484 = vunpack.c.l.b16 %v2452
        %v2485 = vunpack.c.l.b16 %v2453
        %v2486 = vunpack.c.l.b16 %v2454
        %v2487 = vunpack.c.l.b16 %v2455
        %v2488 = vunpack.c.l.b16 %v2456
        %v2489 = vunpack.c.l.b16 %v2457
        %v2490 = vunpack.c.l.b16 %v2458
        %v2491 = vunpack.c.l.b16 %v2459
        %v2492 = vunpack.c.l.b16 %v2460
        %v2493 = vunpack.c.l.b16 %v2461
        %v2494 = vunpack.c.l.b16 %v2462
        %v2495 = vunpack.c.l.b16 %v2463
        %v2496 = vunpack.c.l.b16 %v2464
        %v2497 = vunpack.c.l.b16 %v2465
        %v2498 = vpack.c.b16 %v2483, %v2482
        %v2499 = vpack.c.b16 %v2485, %v2484
        %v2500 = vpack.c.b16 %v2487, %v2486
        %v2501 = vpack.c.b16 %v2489, %v2488
        %v2502 = vpack.c.b16 %v2491, %v2490
        %v2503 = vpack.c.b16 %v2493, %v2492
        %v2504 = vpack.c.b16 %v2495, %v2494
        %v2505 = vpack.c.b16 %v2497, %v2496
        %2514 = vmatpush.bf16.msra.mxu0 %v381
        %2515 = vmatpush.bf16.msra.mxu0 %v380
        %2516 = vmatpush.bf16.msra.mxu0 %v379
        %2517 = vmatpush.bf16.msra.mxu0 %v378
        %2518 = vmatpush.bf16.msra.mxu0 %v377
        %2519 = vmatpush.bf16.msra.mxu0 %v376
        %2520 = vmatpush.bf16.msra.mxu0 %v375
        %2521 = vmatpush.bf16.msra.mxu0 %v374
        %2522 = vmatmul.bf16.gmra.mxu0 %v2498
        %v2523 = vpop.f32.mrf.mxu0
        %v2524 = vadd.f32 0.0, %v2523
        %v2525 = vpop.f32.mrf.mxu0
        %v2526 = vadd.f32 0.0, %v2525
        %2527 = vmatmul.bf16.gmra.mxu0 %v2499
        %v2528 = vpop.f32.mrf.mxu0
        %v2529 = vadd.f32 0.0, %v2528
        %v2530 = vpop.f32.mrf.mxu0
        %v2531 = vadd.f32 0.0, %v2530
        %2532 = vmatmul.bf16.gmra.mxu0 %v2500
        %v2533 = vpop.f32.mrf.mxu0
        %v2534 = vadd.f32 0.0, %v2533
        %v2535 = vpop.f32.mrf.mxu0
        %v2536 = vadd.f32 0.0, %v2535
        %2537 = vmatmul.bf16.gmra.mxu0 %v2501
        %v2538 = vpop.f32.mrf.mxu0
        %v2539 = vadd.f32 0.0, %v2538
        %v2540 = vpop.f32.mrf.mxu0
        %v2541 = vadd.f32 0.0, %v2540
        %2542 = vmatmul.bf16.gmra.mxu0 %v2502
        %v2543 = vpop.f32.mrf.mxu0
        %v2544 = vadd.f32 0.0, %v2543
        %v2545 = vpop.f32.mrf.mxu0
        %v2546 = vadd.f32 0.0, %v2545
        %2547 = vmatmul.bf16.gmra.mxu0 %v2503
        %v2548 = vpop.f32.mrf.mxu0
        %v2549 = vadd.f32 0.0, %v2548
        %v2550 = vpop.f32.mrf.mxu0
        %v2551 = vadd.f32 0.0, %v2550
        %2552 = vmatmul.bf16.gmra.mxu0 %v2504
        %v2553 = vpop.f32.mrf.mxu0
        %v2554 = vadd.f32 0.0, %v2553
        %v2555 = vpop.f32.mrf.mxu0
        %v2556 = vadd.f32 0.0, %v2555
        %2557 = vmatmul.bf16.gmra.mxu0 %v2505
        %v2558 = vpop.f32.mrf.mxu0
        %v2559 = vadd.f32 0.0, %v2558
        %v2560 = vpop.f32.mrf.mxu0
        %v2561 = vadd.f32 0.0, %v2560
        %2562 = vdwg.mxu0
        %v2563 = vmul.f32 %v2524, %v2524
        %v2564 = vmul.f32 %v2526, %v2526
        %v2565 = vmul.f32 %v2529, %v2529
        %v2566 = vmul.f32 %v2531, %v2531
        %v2567 = vmul.f32 %v2534, %v2534
        %v2568 = vmul.f32 %v2536, %v2536
        %v2569 = vmul.f32 %v2539, %v2539
        %v2570 = vmul.f32 %v2541, %v2541
        %v2571 = vmul.f32 %v2544, %v2544
        %v2572 = vmul.f32 %v2546, %v2546
        %v2573 = vmul.f32 %v2549, %v2549
        %v2574 = vmul.f32 %v2551, %v2551
        %v2575 = vmul.f32 %v2554, %v2554
        %v2576 = vmul.f32 %v2556, %v2556
        %v2577 = vmul.f32 %v2559, %v2559
        %v2578 = vmul.f32 %v2561, %v2561
        %2579 = vadd.xlane.f32.xlu0 %v2563
        %v2580 = vpop.xlane.xlu0 %2579
        %2581 = vadd.xlane.f32.xlu0 %v2564
        %v2582 = vpop.xlane.xlu0 %2581
        %2583 = vadd.xlane.f32.xlu0 %v2565
        %v2584 = vpop.xlane.xlu0 %2583
        %2585 = vadd.xlane.f32.xlu0 %v2566
        %v2586 = vpop.xlane.xlu0 %2585
        %2587 = vadd.xlane.f32.xlu0 %v2567
        %v2588 = vpop.xlane.xlu0 %2587
        %2589 = vadd.xlane.f32.xlu0 %v2568
        %v2590 = vpop.xlane.xlu0 %2589
        %2591 = vadd.xlane.f32.xlu0 %v2569
        %v2592 = vpop.xlane.xlu0 %2591
        %2593 = vadd.xlane.f32.xlu0 %v2570
        %v2594 = vpop.xlane.xlu0 %2593
        %2595 = vadd.xlane.f32.xlu0 %v2571
        %v2596 = vpop.xlane.xlu0 %2595
        %2597 = vadd.xlane.f32.xlu0 %v2572
        %v2598 = vpop.xlane.xlu0 %2597
        %2599 = vadd.xlane.f32.xlu0 %v2573
        %v2600 = vpop.xlane.xlu0 %2599
        %2601 = vadd.xlane.f32.xlu0 %v2574
        %v2602 = vpop.xlane.xlu0 %2601
        %2603 = vadd.xlane.f32.xlu0 %v2575
        %v2604 = vpop.xlane.xlu0 %2603
        %2605 = vadd.xlane.f32.xlu0 %v2576
        %v2606 = vpop.xlane.xlu0 %2605
        %2607 = vadd.xlane.f32.xlu0 %v2577
        %v2608 = vpop.xlane.xlu0 %2607
        %2609 = vadd.xlane.f32.xlu0 %v2578
        %v2610 = vpop.xlane.xlu0 %2609
        %v2611 = vrsqrt.pop %v2580
        %v2612 = vmul.f32 %v2611, %v2580
        %v2613 = vmul.f32 %v2612, %v2611
        %v2614 = vmul.f32 0.5, %v2613
        %v2615 = vsub.f32 1.5, %v2614
        %v2616 = vmul.f32 %v2611, %v2615
        %vm2617 = vweird.f32 %v2580
        %vm2618 = vweird.f32 %v2611
        %vm2619 = vmor %vm2617, %vm2618
        %v2620 = vsel %vm2619, %v2611, %v2616
        %v2621 = vrsqrt.pop %v2582
        %v2622 = vmul.f32 %v2621, %v2582
        %v2623 = vmul.f32 %v2622, %v2621
        %v2624 = vmul.f32 0.5, %v2623
        %v2625 = vsub.f32 1.5, %v2624
        %v2626 = vmul.f32 %v2621, %v2625
        %vm2627 = vweird.f32 %v2582
        %vm2628 = vweird.f32 %v2621
        %vm2629 = vmor %vm2627, %vm2628
        %v2630 = vsel %vm2629, %v2621, %v2626
        %v2631 = vrsqrt.pop %v2584
        %v2632 = vmul.f32 %v2631, %v2584
        %v2633 = vmul.f32 %v2632, %v2631
        %v2634 = vmul.f32 0.5, %v2633
        %v2635 = vsub.f32 1.5, %v2634
        %v2636 = vmul.f32 %v2631, %v2635
        %vm2637 = vweird.f32 %v2584
        %vm2638 = vweird.f32 %v2631
        %vm2639 = vmor %vm2637, %vm2638
        %v2640 = vsel %vm2639, %v2631, %v2636
        %v2641 = vrsqrt.pop %v2586
        %v2642 = vmul.f32 %v2641, %v2586
        %v2643 = vmul.f32 %v2642, %v2641
        %v2644 = vmul.f32 0.5, %v2643
        %v2645 = vsub.f32 1.5, %v2644
        %v2646 = vmul.f32 %v2641, %v2645
        %vm2647 = vweird.f32 %v2586
        %vm2648 = vweird.f32 %v2641
        %vm2649 = vmor %vm2647, %vm2648
        %v2650 = vsel %vm2649, %v2641, %v2646
        %v2651 = vrsqrt.pop %v2588
        %v2652 = vmul.f32 %v2651, %v2588
        %v2653 = vmul.f32 %v2652, %v2651
        %v2654 = vmul.f32 0.5, %v2653
        %v2655 = vsub.f32 1.5, %v2654
        %v2656 = vmul.f32 %v2651, %v2655
        %vm2657 = vweird.f32 %v2588
        %vm2658 = vweird.f32 %v2651
        %vm2659 = vmor %vm2657, %vm2658
        %v2660 = vsel %vm2659, %v2651, %v2656
        %v2661 = vrsqrt.pop %v2590
        %v2662 = vmul.f32 %v2661, %v2590
        %v2663 = vmul.f32 %v2662, %v2661
        %v2664 = vmul.f32 0.5, %v2663
        %v2665 = vsub.f32 1.5, %v2664
        %v2666 = vmul.f32 %v2661, %v2665
        %vm2667 = vweird.f32 %v2590
        %vm2668 = vweird.f32 %v2661
        %vm2669 = vmor %vm2667, %vm2668
        %v2670 = vsel %vm2669, %v2661, %v2666
        %v2671 = vrsqrt.pop %v2592
        %v2672 = vmul.f32 %v2671, %v2592
        %v2673 = vmul.f32 %v2672, %v2671
        %v2674 = vmul.f32 0.5, %v2673
        %v2675 = vsub.f32 1.5, %v2674
        %v2676 = vmul.f32 %v2671, %v2675
        %vm2677 = vweird.f32 %v2592
        %vm2678 = vweird.f32 %v2671
        %vm2679 = vmor %vm2677, %vm2678
        %v2680 = vsel %vm2679, %v2671, %v2676
        %v2681 = vrsqrt.pop %v2594
        %v2682 = vmul.f32 %v2681, %v2594
        %v2683 = vmul.f32 %v2682, %v2681
        %v2684 = vmul.f32 0.5, %v2683
        %v2685 = vsub.f32 1.5, %v2684
        %v2686 = vmul.f32 %v2681, %v2685
        %vm2687 = vweird.f32 %v2594
        %vm2688 = vweird.f32 %v2681
        %vm2689 = vmor %vm2687, %vm2688
        %v2690 = vsel %vm2689, %v2681, %v2686
        %v2691 = vrsqrt.pop %v2596
        %v2692 = vmul.f32 %v2691, %v2596
        %v2693 = vmul.f32 %v2692, %v2691
        %v2694 = vmul.f32 0.5, %v2693
        %v2695 = vsub.f32 1.5, %v2694
        %v2696 = vmul.f32 %v2691, %v2695
        %vm2697 = vweird.f32 %v2596
        %vm2698 = vweird.f32 %v2691
        %vm2699 = vmor %vm2697, %vm2698
        %v2700 = vsel %vm2699, %v2691, %v2696
        %v2701 = vrsqrt.pop %v2598
        %v2702 = vmul.f32 %v2701, %v2598
        %v2703 = vmul.f32 %v2702, %v2701
        %v2704 = vmul.f32 0.5, %v2703
        %v2705 = vsub.f32 1.5, %v2704
        %v2706 = vmul.f32 %v2701, %v2705
        %vm2707 = vweird.f32 %v2598
        %vm2708 = vweird.f32 %v2701
        %vm2709 = vmor %vm2707, %vm2708
        %v2710 = vsel %vm2709, %v2701, %v2706
        %v2711 = vrsqrt.pop %v2600
        %v2712 = vmul.f32 %v2711, %v2600
        %v2713 = vmul.f32 %v2712, %v2711
        %v2714 = vmul.f32 0.5, %v2713
        %v2715 = vsub.f32 1.5, %v2714
        %v2716 = vmul.f32 %v2711, %v2715
        %vm2717 = vweird.f32 %v2600
        %vm2718 = vweird.f32 %v2711
        %vm2719 = vmor %vm2717, %vm2718
        %v2720 = vsel %vm2719, %v2711, %v2716
        %v2721 = vrsqrt.pop %v2602
        %v2722 = vmul.f32 %v2721, %v2602
        %v2723 = vmul.f32 %v2722, %v2721
        %v2724 = vmul.f32 0.5, %v2723
        %v2725 = vsub.f32 1.5, %v2724
        %v2726 = vmul.f32 %v2721, %v2725
        %vm2727 = vweird.f32 %v2602
        %vm2728 = vweird.f32 %v2721
        %vm2729 = vmor %vm2727, %vm2728
        %v2730 = vsel %vm2729, %v2721, %v2726
        %v2731 = vrsqrt.pop %v2604
        %v2732 = vmul.f32 %v2731, %v2604
        %v2733 = vmul.f32 %v2732, %v2731
        %v2734 = vmul.f32 0.5, %v2733
        %v2735 = vsub.f32 1.5, %v2734
        %v2736 = vmul.f32 %v2731, %v2735
        %vm2737 = vweird.f32 %v2604
        %vm2738 = vweird.f32 %v2731
        %vm2739 = vmor %vm2737, %vm2738
        %v2740 = vsel %vm2739, %v2731, %v2736
        %v2741 = vrsqrt.pop %v2606
        %v2742 = vmul.f32 %v2741, %v2606
        %v2743 = vmul.f32 %v2742, %v2741
        %v2744 = vmul.f32 0.5, %v2743
        %v2745 = vsub.f32 1.5, %v2744
        %v2746 = vmul.f32 %v2741, %v2745
        %vm2747 = vweird.f32 %v2606
        %vm2748 = vweird.f32 %v2741
        %vm2749 = vmor %vm2747, %vm2748
        %v2750 = vsel %vm2749, %v2741, %v2746
        %v2751 = vrsqrt.pop %v2608
        %v2752 = vmul.f32 %v2751, %v2608
        %v2753 = vmul.f32 %v2752, %v2751
        %v2754 = vmul.f32 0.5, %v2753
        %v2755 = vsub.f32 1.5, %v2754
        %v2756 = vmul.f32 %v2751, %v2755
        %vm2757 = vweird.f32 %v2608
        %vm2758 = vweird.f32 %v2751
        %vm2759 = vmor %vm2757, %vm2758
        %v2760 = vsel %vm2759, %v2751, %v2756
        %v2761 = vrsqrt.pop %v2610
        %v2762 = vmul.f32 %v2761, %v2610
        %v2763 = vmul.f32 %v2762, %v2761
        %v2764 = vmul.f32 0.5, %v2763
        %v2765 = vsub.f32 1.5, %v2764
        %v2766 = vmul.f32 %v2761, %v2765
        %vm2767 = vweird.f32 %v2610
        %vm2768 = vweird.f32 %v2761
        %vm2769 = vmor %vm2767, %vm2768
        %v2770 = vsel %vm2769, %v2761, %v2766
        %v2771 = vmul.f32 %v2524, %v2620
        %v2772 = vmul.f32 %v2526, %v2630
        %v2773 = vmul.f32 %v2529, %v2640
        %v2774 = vmul.f32 %v2531, %v2650
        %v2775 = vmul.f32 %v2534, %v2660
        %v2776 = vmul.f32 %v2536, %v2670
        %v2777 = vmul.f32 %v2539, %v2680
        %v2778 = vmul.f32 %v2541, %v2690
        %v2779 = vmul.f32 %v2544, %v2700
        %v2780 = vmul.f32 %v2546, %v2710
        %v2781 = vmul.f32 %v2549, %v2720
        %v2782 = vmul.f32 %v2551, %v2730
        %v2783 = vmul.f32 %v2554, %v2740
        %v2784 = vmul.f32 %v2556, %v2750
        %v2785 = vmul.f32 %v2559, %v2760
        %v2786 = vmul.f32 %v2561, %v2770
        %v2787 = vadd.f32 %v2433, %v2771
        %v2788 = vadd.f32 %v2434, %v2772
        %v2789 = vadd.f32 %v2435, %v2773
        %v2790 = vadd.f32 %v2436, %v2774
        %v2791 = vadd.f32 %v2437, %v2775
        %v2792 = vadd.f32 %v2438, %v2776
        %v2793 = vadd.f32 %v2439, %v2777
        %v2794 = vadd.f32 %v2440, %v2778
        %v2795 = vadd.f32 %v2441, %v2779
        %v2796 = vadd.f32 %v2442, %v2780
        %v2797 = vadd.f32 %v2443, %v2781
        %v2798 = vadd.f32 %v2444, %v2782
        %v2799 = vadd.f32 %v2445, %v2783
        %v2800 = vadd.f32 %v2446, %v2784
        %v2801 = vadd.f32 %v2447, %v2785
        %v2802 = vadd.f32 %v2448, %v2786
        %s2803 = scalar_lea.vmem %s196, 448 [#allocation2]
        %v2804 = vld [vmem:[%s2803] sm:$0xf]
        %v2805 = vld [vmem:[%s2803 + $0x4] sm:$0xf]
        %v2806 = vld [vmem:[%s2803 + $0x8] sm:$0xf]
        %v2807 = vld [vmem:[%s2803 + $0xc] sm:$0xf]
        %v2808 = vld [vmem:[%s2803 + $0x10] sm:$0xf]
        %v2809 = vld [vmem:[%s2803 + $0x14] sm:$0xf]
        %v2810 = vld [vmem:[%s2803 + $0x18] sm:$0xf]
        %v2811 = vld [vmem:[%s2803 + $0x1c] sm:$0xf]
        %v2812 = vld [vmem:[%s2803 + $0x20] sm:$0xf]
        %v2813 = vld [vmem:[%s2803 + $0x24] sm:$0xf]
        %v2814 = vld [vmem:[%s2803 + $0x28] sm:$0xf]
        %v2815 = vld [vmem:[%s2803 + $0x2c] sm:$0xf]
        %v2816 = vld [vmem:[%s2803 + $0x30] sm:$0xf]
        %v2817 = vld [vmem:[%s2803 + $0x34] sm:$0xf]
        %v2818 = vld [vmem:[%s2803 + $0x38] sm:$0xf]
        %v2819 = vld [vmem:[%s2803 + $0x3c] sm:$0xf]
        %v2836 = vunpack.c.l.b16 %v2804
        %v2837 = vunpack.c.l.b16 %v2805
        %v2838 = vunpack.c.l.b16 %v2806
        %v2839 = vunpack.c.l.b16 %v2807
        %v2840 = vunpack.c.l.b16 %v2808
        %v2841 = vunpack.c.l.b16 %v2809
        %v2842 = vunpack.c.l.b16 %v2810
        %v2843 = vunpack.c.l.b16 %v2811
        %v2844 = vunpack.c.l.b16 %v2812
        %v2845 = vunpack.c.l.b16 %v2813
        %v2846 = vunpack.c.l.b16 %v2814
        %v2847 = vunpack.c.l.b16 %v2815
        %v2848 = vunpack.c.l.b16 %v2816
        %v2849 = vunpack.c.l.b16 %v2817
        %v2850 = vunpack.c.l.b16 %v2818
        %v2851 = vunpack.c.l.b16 %v2819
        %v2852 = vpack.c.b16 %v2837, %v2836
        %v2853 = vpack.c.b16 %v2839, %v2838
        %v2854 = vpack.c.b16 %v2841, %v2840
        %v2855 = vpack.c.b16 %v2843, %v2842
        %v2856 = vpack.c.b16 %v2845, %v2844
        %v2857 = vpack.c.b16 %v2847, %v2846
        %v2858 = vpack.c.b16 %v2849, %v2848
        %v2859 = vpack.c.b16 %v2851, %v2850
        %2868 = vmatpush.bf16.msra.mxu0 %v381
        %2869 = vmatpush.bf16.msra.mxu0 %v380
        %2870 = vmatpush.bf16.msra.mxu0 %v379
        %2871 = vmatpush.bf16.msra.mxu0 %v378
        %2872 = vmatpush.bf16.msra.mxu0 %v377
        %2873 = vmatpush.bf16.msra.mxu0 %v376
        %2874 = vmatpush.bf16.msra.mxu0 %v375
        %2875 = vmatpush.bf16.msra.mxu0 %v374
        %2876 = vmatmul.bf16.gmra.mxu0 %v2852
        %v2877 = vpop.f32.mrf.mxu0
        %v2878 = vadd.f32 0.0, %v2877
        %v2879 = vpop.f32.mrf.mxu0
        %v2880 = vadd.f32 0.0, %v2879
        %2881 = vmatmul.bf16.gmra.mxu0 %v2853
        %v2882 = vpop.f32.mrf.mxu0
        %v2883 = vadd.f32 0.0, %v2882
        %v2884 = vpop.f32.mrf.mxu0
        %v2885 = vadd.f32 0.0, %v2884
        %2886 = vmatmul.bf16.gmra.mxu0 %v2854
        %v2887 = vpop.f32.mrf.mxu0
        %v2888 = vadd.f32 0.0, %v2887
        %v2889 = vpop.f32.mrf.mxu0
        %v2890 = vadd.f32 0.0, %v2889
        %2891 = vmatmul.bf16.gmra.mxu0 %v2855
        %v2892 = vpop.f32.mrf.mxu0
        %v2893 = vadd.f32 0.0, %v2892
        %v2894 = vpop.f32.mrf.mxu0
        %v2895 = vadd.f32 0.0, %v2894
        %2896 = vmatmul.bf16.gmra.mxu0 %v2856
        %v2897 = vpop.f32.mrf.mxu0
        %v2898 = vadd.f32 0.0, %v2897
        %v2899 = vpop.f32.mrf.mxu0
        %v2900 = vadd.f32 0.0, %v2899
        %2901 = vmatmul.bf16.gmra.mxu0 %v2857
        %v2902 = vpop.f32.mrf.mxu0
        %v2903 = vadd.f32 0.0, %v2902
        %v2904 = vpop.f32.mrf.mxu0
        %v2905 = vadd.f32 0.0, %v2904
        %2906 = vmatmul.bf16.gmra.mxu0 %v2858
        %v2907 = vpop.f32.mrf.mxu0
        %v2908 = vadd.f32 0.0, %v2907
        %v2909 = vpop.f32.mrf.mxu0
        %v2910 = vadd.f32 0.0, %v2909
        %2911 = vmatmul.bf16.gmra.mxu0 %v2859
        %v2912 = vpop.f32.mrf.mxu0
        %v2913 = vadd.f32 0.0, %v2912
        %v2914 = vpop.f32.mrf.mxu0
        %v2915 = vadd.f32 0.0, %v2914
        %2916 = vdwg.mxu0
        %v2917 = vmul.f32 %v2878, %v2878
        %v2918 = vmul.f32 %v2880, %v2880
        %v2919 = vmul.f32 %v2883, %v2883
        %v2920 = vmul.f32 %v2885, %v2885
        %v2921 = vmul.f32 %v2888, %v2888
        %v2922 = vmul.f32 %v2890, %v2890
        %v2923 = vmul.f32 %v2893, %v2893
        %v2924 = vmul.f32 %v2895, %v2895
        %v2925 = vmul.f32 %v2898, %v2898
        %v2926 = vmul.f32 %v2900, %v2900
        %v2927 = vmul.f32 %v2903, %v2903
        %v2928 = vmul.f32 %v2905, %v2905
        %v2929 = vmul.f32 %v2908, %v2908
        %v2930 = vmul.f32 %v2910, %v2910
        %v2931 = vmul.f32 %v2913, %v2913
        %v2932 = vmul.f32 %v2915, %v2915
        %2933 = vadd.xlane.f32.xlu0 %v2917
        %v2934 = vpop.xlane.xlu0 %2933
        %2935 = vadd.xlane.f32.xlu0 %v2918
        %v2936 = vpop.xlane.xlu0 %2935
        %2937 = vadd.xlane.f32.xlu0 %v2919
        %v2938 = vpop.xlane.xlu0 %2937
        %2939 = vadd.xlane.f32.xlu0 %v2920
        %v2940 = vpop.xlane.xlu0 %2939
        %2941 = vadd.xlane.f32.xlu0 %v2921
        %v2942 = vpop.xlane.xlu0 %2941
        %2943 = vadd.xlane.f32.xlu0 %v2922
        %v2944 = vpop.xlane.xlu0 %2943
        %2945 = vadd.xlane.f32.xlu0 %v2923
        %v2946 = vpop.xlane.xlu0 %2945
        %2947 = vadd.xlane.f32.xlu0 %v2924
        %v2948 = vpop.xlane.xlu0 %2947
        %2949 = vadd.xlane.f32.xlu0 %v2925
        %v2950 = vpop.xlane.xlu0 %2949
        %2951 = vadd.xlane.f32.xlu0 %v2926
        %v2952 = vpop.xlane.xlu0 %2951
        %2953 = vadd.xlane.f32.xlu0 %v2927
        %v2954 = vpop.xlane.xlu0 %2953
        %2955 = vadd.xlane.f32.xlu0 %v2928
        %v2956 = vpop.xlane.xlu0 %2955
        %2957 = vadd.xlane.f32.xlu0 %v2929
        %v2958 = vpop.xlane.xlu0 %2957
        %2959 = vadd.xlane.f32.xlu0 %v2930
        %v2960 = vpop.xlane.xlu0 %2959
        %2961 = vadd.xlane.f32.xlu0 %v2931
        %v2962 = vpop.xlane.xlu0 %2961
        %2963 = vadd.xlane.f32.xlu0 %v2932
        %v2964 = vpop.xlane.xlu0 %2963
        %v2965 = vrsqrt.pop %v2934
        %v2966 = vmul.f32 %v2965, %v2934
        %v2967 = vmul.f32 %v2966, %v2965
        %v2968 = vmul.f32 0.5, %v2967
        %v2969 = vsub.f32 1.5, %v2968
        %v2970 = vmul.f32 %v2965, %v2969
        %vm2971 = vweird.f32 %v2934
        %vm2972 = vweird.f32 %v2965
        %vm2973 = vmor %vm2971, %vm2972
        %v2974 = vsel %vm2973, %v2965, %v2970
        %v2975 = vrsqrt.pop %v2936
        %v2976 = vmul.f32 %v2975, %v2936
        %v2977 = vmul.f32 %v2976, %v2975
        %v2978 = vmul.f32 0.5, %v2977
        %v2979 = vsub.f32 1.5, %v2978
        %v2980 = vmul.f32 %v2975, %v2979
        %vm2981 = vweird.f32 %v2936
        %vm2982 = vweird.f32 %v2975
        %vm2983 = vmor %vm2981, %vm2982
        %v2984 = vsel %vm2983, %v2975, %v2980
        %v2985 = vrsqrt.pop %v2938
        %v2986 = vmul.f32 %v2985, %v2938
        %v2987 = vmul.f32 %v2986, %v2985
        %v2988 = vmul.f32 0.5, %v2987
        %v2989 = vsub.f32 1.5, %v2988
        %v2990 = vmul.f32 %v2985, %v2989
        %vm2991 = vweird.f32 %v2938
        %vm2992 = vweird.f32 %v2985
        %vm2993 = vmor %vm2991, %vm2992
        %v2994 = vsel %vm2993, %v2985, %v2990
        %v2995 = vrsqrt.pop %v2940
        %v2996 = vmul.f32 %v2995, %v2940
        %v2997 = vmul.f32 %v2996, %v2995
        %v2998 = vmul.f32 0.5, %v2997
        %v2999 = vsub.f32 1.5, %v2998
        %v3000 = vmul.f32 %v2995, %v2999
        %vm3001 = vweird.f32 %v2940
        %vm3002 = vweird.f32 %v2995
        %vm3003 = vmor %vm3001, %vm3002
        %v3004 = vsel %vm3003, %v2995, %v3000
        %v3005 = vrsqrt.pop %v2942
        %v3006 = vmul.f32 %v3005, %v2942
        %v3007 = vmul.f32 %v3006, %v3005
        %v3008 = vmul.f32 0.5, %v3007
        %v3009 = vsub.f32 1.5, %v3008
        %v3010 = vmul.f32 %v3005, %v3009
        %vm3011 = vweird.f32 %v2942
        %vm3012 = vweird.f32 %v3005
        %vm3013 = vmor %vm3011, %vm3012
        %v3014 = vsel %vm3013, %v3005, %v3010
        %v3015 = vrsqrt.pop %v2944
        %v3016 = vmul.f32 %v3015, %v2944
        %v3017 = vmul.f32 %v3016, %v3015
        %v3018 = vmul.f32 0.5, %v3017
        %v3019 = vsub.f32 1.5, %v3018
        %v3020 = vmul.f32 %v3015, %v3019
        %vm3021 = vweird.f32 %v2944
        %vm3022 = vweird.f32 %v3015
        %vm3023 = vmor %vm3021, %vm3022
        %v3024 = vsel %vm3023, %v3015, %v3020
        %v3025 = vrsqrt.pop %v2946
        %v3026 = vmul.f32 %v3025, %v2946
        %v3027 = vmul.f32 %v3026, %v3025
        %v3028 = vmul.f32 0.5, %v3027
        %v3029 = vsub.f32 1.5, %v3028
        %v3030 = vmul.f32 %v3025, %v3029
        %vm3031 = vweird.f32 %v2946
        %vm3032 = vweird.f32 %v3025
        %vm3033 = vmor %vm3031, %vm3032
        %v3034 = vsel %vm3033, %v3025, %v3030
        %v3035 = vrsqrt.pop %v2948
        %v3036 = vmul.f32 %v3035, %v2948
        %v3037 = vmul.f32 %v3036, %v3035
        %v3038 = vmul.f32 0.5, %v3037
        %v3039 = vsub.f32 1.5, %v3038
        %v3040 = vmul.f32 %v3035, %v3039
        %vm3041 = vweird.f32 %v2948
        %vm3042 = vweird.f32 %v3035
        %vm3043 = vmor %vm3041, %vm3042
        %v3044 = vsel %vm3043, %v3035, %v3040
        %v3045 = vrsqrt.pop %v2950
        %v3046 = vmul.f32 %v3045, %v2950
        %v3047 = vmul.f32 %v3046, %v3045
        %v3048 = vmul.f32 0.5, %v3047
        %v3049 = vsub.f32 1.5, %v3048
        %v3050 = vmul.f32 %v3045, %v3049
        %vm3051 = vweird.f32 %v2950
        %vm3052 = vweird.f32 %v3045
        %vm3053 = vmor %vm3051, %vm3052
        %v3054 = vsel %vm3053, %v3045, %v3050
        %v3055 = vrsqrt.pop %v2952
        %v3056 = vmul.f32 %v3055, %v2952
        %v3057 = vmul.f32 %v3056, %v3055
        %v3058 = vmul.f32 0.5, %v3057
        %v3059 = vsub.f32 1.5, %v3058
        %v3060 = vmul.f32 %v3055, %v3059
        %vm3061 = vweird.f32 %v2952
        %vm3062 = vweird.f32 %v3055
        %vm3063 = vmor %vm3061, %vm3062
        %v3064 = vsel %vm3063, %v3055, %v3060
        %v3065 = vrsqrt.pop %v2954
        %v3066 = vmul.f32 %v3065, %v2954
        %v3067 = vmul.f32 %v3066, %v3065
        %v3068 = vmul.f32 0.5, %v3067
        %v3069 = vsub.f32 1.5, %v3068
        %v3070 = vmul.f32 %v3065, %v3069
        %vm3071 = vweird.f32 %v2954
        %vm3072 = vweird.f32 %v3065
        %vm3073 = vmor %vm3071, %vm3072
        %v3074 = vsel %vm3073, %v3065, %v3070
        %v3075 = vrsqrt.pop %v2956
        %v3076 = vmul.f32 %v3075, %v2956
        %v3077 = vmul.f32 %v3076, %v3075
        %v3078 = vmul.f32 0.5, %v3077
        %v3079 = vsub.f32 1.5, %v3078
        %v3080 = vmul.f32 %v3075, %v3079
        %vm3081 = vweird.f32 %v2956
        %vm3082 = vweird.f32 %v3075
        %vm3083 = vmor %vm3081, %vm3082
        %v3084 = vsel %vm3083, %v3075, %v3080
        %v3085 = vrsqrt.pop %v2958
        %v3086 = vmul.f32 %v3085, %v2958
        %v3087 = vmul.f32 %v3086, %v3085
        %v3088 = vmul.f32 0.5, %v3087
        %v3089 = vsub.f32 1.5, %v3088
        %v3090 = vmul.f32 %v3085, %v3089
        %vm3091 = vweird.f32 %v2958
        %vm3092 = vweird.f32 %v3085
        %vm3093 = vmor %vm3091, %vm3092
        %v3094 = vsel %vm3093, %v3085, %v3090
        %v3095 = vrsqrt.pop %v2960
        %v3096 = vmul.f32 %v3095, %v2960
        %v3097 = vmul.f32 %v3096, %v3095
        %v3098 = vmul.f32 0.5, %v3097
        %v3099 = vsub.f32 1.5, %v3098
        %v3100 = vmul.f32 %v3095, %v3099
        %vm3101 = vweird.f32 %v2960
        %vm3102 = vweird.f32 %v3095
        %vm3103 = vmor %vm3101, %vm3102
        %v3104 = vsel %vm3103, %v3095, %v3100
        %v3105 = vrsqrt.pop %v2962
        %v3106 = vmul.f32 %v3105, %v2962
        %v3107 = vmul.f32 %v3106, %v3105
        %v3108 = vmul.f32 0.5, %v3107
        %v3109 = vsub.f32 1.5, %v3108
        %v3110 = vmul.f32 %v3105, %v3109
        %vm3111 = vweird.f32 %v2962
        %vm3112 = vweird.f32 %v3105
        %vm3113 = vmor %vm3111, %vm3112
        %v3114 = vsel %vm3113, %v3105, %v3110
        %v3115 = vrsqrt.pop %v2964
        %v3116 = vmul.f32 %v3115, %v2964
        %v3117 = vmul.f32 %v3116, %v3115
        %v3118 = vmul.f32 0.5, %v3117
        %v3119 = vsub.f32 1.5, %v3118
        %v3120 = vmul.f32 %v3115, %v3119
        %vm3121 = vweird.f32 %v2964
        %vm3122 = vweird.f32 %v3115
        %vm3123 = vmor %vm3121, %vm3122
        %v3124 = vsel %vm3123, %v3115, %v3120
        %v3125 = vmul.f32 %v2878, %v2974
        %v3126 = vmul.f32 %v2880, %v2984
        %v3127 = vmul.f32 %v2883, %v2994
        %v3128 = vmul.f32 %v2885, %v3004
        %v3129 = vmul.f32 %v2888, %v3014
        %v3130 = vmul.f32 %v2890, %v3024
        %v3131 = vmul.f32 %v2893, %v3034
        %v3132 = vmul.f32 %v2895, %v3044
        %v3133 = vmul.f32 %v2898, %v3054
        %v3134 = vmul.f32 %v2900, %v3064
        %v3135 = vmul.f32 %v2903, %v3074
        %v3136 = vmul.f32 %v2905, %v3084
        %v3137 = vmul.f32 %v2908, %v3094
        %v3138 = vmul.f32 %v2910, %v3104
        %v3139 = vmul.f32 %v2913, %v3114
        %v3140 = vmul.f32 %v2915, %v3124
        %v3141 = vadd.f32 %v2787, %v3125
        %v3142 = vadd.f32 %v2788, %v3126
        %v3143 = vadd.f32 %v2789, %v3127
        %v3144 = vadd.f32 %v2790, %v3128
        %v3145 = vadd.f32 %v2791, %v3129
        %v3146 = vadd.f32 %v2792, %v3130
        %v3147 = vadd.f32 %v2793, %v3131
        %v3148 = vadd.f32 %v2794, %v3132
        %v3149 = vadd.f32 %v2795, %v3133
        %v3150 = vadd.f32 %v2796, %v3134
        %v3151 = vadd.f32 %v2797, %v3135
        %v3152 = vadd.f32 %v2798, %v3136
        %v3153 = vadd.f32 %v2799, %v3137
        %v3154 = vadd.f32 %v2800, %v3138
        %v3155 = vadd.f32 %v2801, %v3139
        %v3156 = vadd.f32 %v2802, %v3140
        %3157 = vst [vmem:[%s222] sm:$0xff] %v3141
        %3158 = vst [vmem:[%s222 + $0x8] sm:$0xff] %v3142
        %3159 = vst [vmem:[%s222 + $0x10] sm:$0xff] %v3143
        %3160 = vst [vmem:[%s222 + $0x18] sm:$0xff] %v3144
        %3161 = vst [vmem:[%s222 + $0x20] sm:$0xff] %v3145
        %3162 = vst [vmem:[%s222 + $0x28] sm:$0xff] %v3146
        %3163 = vst [vmem:[%s222 + $0x30] sm:$0xff] %v3147
        %3164 = vst [vmem:[%s222 + $0x38] sm:$0xff] %v3148
        %3165 = vst [vmem:[%s222 + $0x40] sm:$0xff] %v3149
        %3166 = vst [vmem:[%s222 + $0x48] sm:$0xff] %v3150
        %3167 = vst [vmem:[%s222 + $0x50] sm:$0xff] %v3151
        %3168 = vst [vmem:[%s222 + $0x58] sm:$0xff] %v3152
        %3169 = vst [vmem:[%s222 + $0x60] sm:$0xff] %v3153
        %3170 = vst [vmem:[%s222 + $0x68] sm:$0xff] %v3154
        %3171 = vst [vmem:[%s222 + $0x70] sm:$0xff] %v3155
        %3172 = vst [vmem:[%s222 + $0x78] sm:$0xff] %v3156
        // Predicated region
        $region41: #{tpu_custom_call.1} parent=27 // pred_check
          %p3173 = pneg %p226
        $region42: #{tpu_custom_call.1} parent=27 // pred_check_branch
          %3175 = sbr.rel (%p3173) target = $region44
        $region43: #{tpu_custom_call.1} parent=27 // pred_region
          %v3176 = vld [vmem:[%s222] sm:$0xff]
          %v3177 = vld [vmem:[%s222 + $0x8] sm:$0xff]
          %v3178 = vld [vmem:[%s222 + $0x10] sm:$0xff]
          %v3179 = vld [vmem:[%s222 + $0x18] sm:$0xff]
          %v3180 = vld [vmem:[%s222 + $0x20] sm:$0xff]
          %v3181 = vld [vmem:[%s222 + $0x28] sm:$0xff]
          %v3182 = vld [vmem:[%s222 + $0x30] sm:$0xff]
          %v3183 = vld [vmem:[%s222 + $0x38] sm:$0xff]
          %v3184 = vld [vmem:[%s222 + $0x40] sm:$0xff]
          %v3185 = vld [vmem:[%s222 + $0x48] sm:$0xff]
          %v3186 = vld [vmem:[%s222 + $0x50] sm:$0xff]
          %v3187 = vld [vmem:[%s222 + $0x58] sm:$0xff]
          %v3188 = vld [vmem:[%s222 + $0x60] sm:$0xff]
          %v3189 = vld [vmem:[%s222 + $0x68] sm:$0xff]
          %v3190 = vld [vmem:[%s222 + $0x70] sm:$0xff]
          %v3191 = vld [vmem:[%s222 + $0x78] sm:$0xff]
          %v3192 = vmul.f32 %v3176, %v3176
          %v3193 = vmul.f32 %v3177, %v3177
          %v3194 = vmul.f32 %v3178, %v3178
          %v3195 = vmul.f32 %v3179, %v3179
          %v3196 = vmul.f32 %v3180, %v3180
          %v3197 = vmul.f32 %v3181, %v3181
          %v3198 = vmul.f32 %v3182, %v3182
          %v3199 = vmul.f32 %v3183, %v3183
          %v3200 = vmul.f32 %v3184, %v3184
          %v3201 = vmul.f32 %v3185, %v3185
          %v3202 = vmul.f32 %v3186, %v3186
          %v3203 = vmul.f32 %v3187, %v3187
          %v3204 = vmul.f32 %v3188, %v3188
          %v3205 = vmul.f32 %v3189, %v3189
          %v3206 = vmul.f32 %v3190, %v3190
          %v3207 = vmul.f32 %v3191, %v3191
          %3208 = vadd.xlane.f32.xlu0 %v3192
          %v3209 = vpop.xlane.xlu0 %3208
          %3210 = vadd.xlane.f32.xlu0 %v3193
          %v3211 = vpop.xlane.xlu0 %3210
          %3212 = vadd.xlane.f32.xlu0 %v3194
          %v3213 = vpop.xlane.xlu0 %3212
          %3214 = vadd.xlane.f32.xlu0 %v3195
          %v3215 = vpop.xlane.xlu0 %3214
          %3216 = vadd.xlane.f32.xlu0 %v3196
          %v3217 = vpop.xlane.xlu0 %3216
          %3218 = vadd.xlane.f32.xlu0 %v3197
          %v3219 = vpop.xlane.xlu0 %3218
          %3220 = vadd.xlane.f32.xlu0 %v3198
          %v3221 = vpop.xlane.xlu0 %3220
          %3222 = vadd.xlane.f32.xlu0 %v3199
          %v3223 = vpop.xlane.xlu0 %3222
          %3224 = vadd.xlane.f32.xlu0 %v3200
          %v3225 = vpop.xlane.xlu0 %3224
          %3226 = vadd.xlane.f32.xlu0 %v3201
          %v3227 = vpop.xlane.xlu0 %3226
          %3228 = vadd.xlane.f32.xlu0 %v3202
          %v3229 = vpop.xlane.xlu0 %3228
          %3230 = vadd.xlane.f32.xlu0 %v3203
          %v3231 = vpop.xlane.xlu0 %3230
          %3232 = vadd.xlane.f32.xlu0 %v3204
          %v3233 = vpop.xlane.xlu0 %3232
          %3234 = vadd.xlane.f32.xlu0 %v3205
          %v3235 = vpop.xlane.xlu0 %3234
          %3236 = vadd.xlane.f32.xlu0 %v3206
          %v3237 = vpop.xlane.xlu0 %3236
          %3238 = vadd.xlane.f32.xlu0 %v3207
          %v3239 = vpop.xlane.xlu0 %3238
          %v3240 = vrsqrt.pop %v3209
          %v3241 = vmul.f32 %v3240, %v3209
          %v3242 = vmul.f32 %v3241, %v3240
          %v3243 = vmul.f32 0.5, %v3242
          %v3244 = vsub.f32 1.5, %v3243
          %v3245 = vmul.f32 %v3240, %v3244
          %vm3246 = vweird.f32 %v3209
          %vm3247 = vweird.f32 %v3240
          %vm3248 = vmor %vm3246, %vm3247
          %v3249 = vsel %vm3248, %v3240, %v3245
          %v3250 = vrsqrt.pop %v3211
          %v3251 = vmul.f32 %v3250, %v3211
          %v3252 = vmul.f32 %v3251, %v3250
          %v3253 = vmul.f32 0.5, %v3252
          %v3254 = vsub.f32 1.5, %v3253
          %v3255 = vmul.f32 %v3250, %v3254
          %vm3256 = vweird.f32 %v3211
          %vm3257 = vweird.f32 %v3250
          %vm3258 = vmor %vm3256, %vm3257
          %v3259 = vsel %vm3258, %v3250, %v3255
          %v3260 = vrsqrt.pop %v3213
          %v3261 = vmul.f32 %v3260, %v3213
          %v3262 = vmul.f32 %v3261, %v3260
          %v3263 = vmul.f32 0.5, %v3262
          %v3264 = vsub.f32 1.5, %v3263
          %v3265 = vmul.f32 %v3260, %v3264
          %vm3266 = vweird.f32 %v3213
          %vm3267 = vweird.f32 %v3260
          %vm3268 = vmor %vm3266, %vm3267
          %v3269 = vsel %vm3268, %v3260, %v3265
          %v3270 = vrsqrt.pop %v3215
          %v3271 = vmul.f32 %v3270, %v3215
          %v3272 = vmul.f32 %v3271, %v3270
          %v3273 = vmul.f32 0.5, %v3272
          %v3274 = vsub.f32 1.5, %v3273
          %v3275 = vmul.f32 %v3270, %v3274
          %vm3276 = vweird.f32 %v3215
          %vm3277 = vweird.f32 %v3270
          %vm3278 = vmor %vm3276, %vm3277
          %v3279 = vsel %vm3278, %v3270, %v3275
          %v3280 = vrsqrt.pop %v3217
          %v3281 = vmul.f32 %v3280, %v3217
          %v3282 = vmul.f32 %v3281, %v3280
          %v3283 = vmul.f32 0.5, %v3282
          %v3284 = vsub.f32 1.5, %v3283
          %v3285 = vmul.f32 %v3280, %v3284
          %vm3286 = vweird.f32 %v3217
          %vm3287 = vweird.f32 %v3280
          %vm3288 = vmor %vm3286, %vm3287
          %v3289 = vsel %vm3288, %v3280, %v3285
          %v3290 = vrsqrt.pop %v3219
          %v3291 = vmul.f32 %v3290, %v3219
          %v3292 = vmul.f32 %v3291, %v3290
          %v3293 = vmul.f32 0.5, %v3292
          %v3294 = vsub.f32 1.5, %v3293
          %v3295 = vmul.f32 %v3290, %v3294
          %vm3296 = vweird.f32 %v3219
          %vm3297 = vweird.f32 %v3290
          %vm3298 = vmor %vm3296, %vm3297
          %v3299 = vsel %vm3298, %v3290, %v3295
          %v3300 = vrsqrt.pop %v3221
          %v3301 = vmul.f32 %v3300, %v3221
          %v3302 = vmul.f32 %v3301, %v3300
          %v3303 = vmul.f32 0.5, %v3302
          %v3304 = vsub.f32 1.5, %v3303
          %v3305 = vmul.f32 %v3300, %v3304
          %vm3306 = vweird.f32 %v3221
          %vm3307 = vweird.f32 %v3300
          %vm3308 = vmor %vm3306, %vm3307
          %v3309 = vsel %vm3308, %v3300, %v3305
          %v3310 = vrsqrt.pop %v3223
          %v3311 = vmul.f32 %v3310, %v3223
          %v3312 = vmul.f32 %v3311, %v3310
          %v3313 = vmul.f32 0.5, %v3312
          %v3314 = vsub.f32 1.5, %v3313
          %v3315 = vmul.f32 %v3310, %v3314
          %vm3316 = vweird.f32 %v3223
          %vm3317 = vweird.f32 %v3310
          %vm3318 = vmor %vm3316, %vm3317
          %v3319 = vsel %vm3318, %v3310, %v3315
          %v3320 = vrsqrt.pop %v3225
          %v3321 = vmul.f32 %v3320, %v3225
          %v3322 = vmul.f32 %v3321, %v3320
          %v3323 = vmul.f32 0.5, %v3322
          %v3324 = vsub.f32 1.5, %v3323
          %v3325 = vmul.f32 %v3320, %v3324
          %vm3326 = vweird.f32 %v3225
          %vm3327 = vweird.f32 %v3320
          %vm3328 = vmor %vm3326, %vm3327
          %v3329 = vsel %vm3328, %v3320, %v3325
          %v3330 = vrsqrt.pop %v3227
          %v3331 = vmul.f32 %v3330, %v3227
          %v3332 = vmul.f32 %v3331, %v3330
          %v3333 = vmul.f32 0.5, %v3332
          %v3334 = vsub.f32 1.5, %v3333
          %v3335 = vmul.f32 %v3330, %v3334
          %vm3336 = vweird.f32 %v3227
          %vm3337 = vweird.f32 %v3330
          %vm3338 = vmor %vm3336, %vm3337
          %v3339 = vsel %vm3338, %v3330, %v3335
          %v3340 = vrsqrt.pop %v3229
          %v3341 = vmul.f32 %v3340, %v3229
          %v3342 = vmul.f32 %v3341, %v3340
          %v3343 = vmul.f32 0.5, %v3342
          %v3344 = vsub.f32 1.5, %v3343
          %v3345 = vmul.f32 %v3340, %v3344
          %vm3346 = vweird.f32 %v3229
          %vm3347 = vweird.f32 %v3340
          %vm3348 = vmor %vm3346, %vm3347
          %v3349 = vsel %vm3348, %v3340, %v3345
          %v3350 = vrsqrt.pop %v3231
          %v3351 = vmul.f32 %v3350, %v3231
          %v3352 = vmul.f32 %v3351, %v3350
          %v3353 = vmul.f32 0.5, %v3352
          %v3354 = vsub.f32 1.5, %v3353
          %v3355 = vmul.f32 %v3350, %v3354
          %vm3356 = vweird.f32 %v3231
          %vm3357 = vweird.f32 %v3350
          %vm3358 = vmor %vm3356, %vm3357
          %v3359 = vsel %vm3358, %v3350, %v3355
          %v3360 = vrsqrt.pop %v3233
          %v3361 = vmul.f32 %v3360, %v3233
          %v3362 = vmul.f32 %v3361, %v3360
          %v3363 = vmul.f32 0.5, %v3362
          %v3364 = vsub.f32 1.5, %v3363
          %v3365 = vmul.f32 %v3360, %v3364
          %vm3366 = vweird.f32 %v3233
          %vm3367 = vweird.f32 %v3360
          %vm3368 = vmor %vm3366, %vm3367
          %v3369 = vsel %vm3368, %v3360, %v3365
          %v3370 = vrsqrt.pop %v3235
          %v3371 = vmul.f32 %v3370, %v3235
          %v3372 = vmul.f32 %v3371, %v3370
          %v3373 = vmul.f32 0.5, %v3372
          %v3374 = vsub.f32 1.5, %v3373
          %v3375 = vmul.f32 %v3370, %v3374
          %vm3376 = vweird.f32 %v3235
          %vm3377 = vweird.f32 %v3370
          %vm3378 = vmor %vm3376, %vm3377
          %v3379 = vsel %vm3378, %v3370, %v3375
          %v3380 = vrsqrt.pop %v3237
          %v3381 = vmul.f32 %v3380, %v3237
          %v3382 = vmul.f32 %v3381, %v3380
          %v3383 = vmul.f32 0.5, %v3382
          %v3384 = vsub.f32 1.5, %v3383
          %v3385 = vmul.f32 %v3380, %v3384
          %vm3386 = vweird.f32 %v3237
          %vm3387 = vweird.f32 %v3380
          %vm3388 = vmor %vm3386, %vm3387
          %v3389 = vsel %vm3388, %v3380, %v3385
          %v3390 = vrsqrt.pop %v3239
          %v3391 = vmul.f32 %v3390, %v3239
          %v3392 = vmul.f32 %v3391, %v3390
          %v3393 = vmul.f32 0.5, %v3392
          %v3394 = vsub.f32 1.5, %v3393
          %v3395 = vmul.f32 %v3390, %v3394
          %vm3396 = vweird.f32 %v3239
          %vm3397 = vweird.f32 %v3390
          %vm3398 = vmor %vm3396, %vm3397
          %v3399 = vsel %vm3398, %v3390, %v3395
          %v3400 = vmul.f32 %v3176, %v3249
          %v3401 = vmul.f32 %v3177, %v3259
          %v3402 = vmul.f32 %v3178, %v3269
          %v3403 = vmul.f32 %v3179, %v3279
          %v3404 = vmul.f32 %v3180, %v3289
          %v3405 = vmul.f32 %v3181, %v3299
          %v3406 = vmul.f32 %v3182, %v3309
          %v3407 = vmul.f32 %v3183, %v3319
          %v3408 = vmul.f32 %v3184, %v3329
          %v3409 = vmul.f32 %v3185, %v3339
          %v3410 = vmul.f32 %v3186, %v3349
          %v3411 = vmul.f32 %v3187, %v3359
          %v3412 = vmul.f32 %v3188, %v3369
          %v3413 = vmul.f32 %v3189, %v3379
          %v3414 = vmul.f32 %v3190, %v3389
          %v3415 = vmul.f32 %v3191, %v3399
          %3416 = vst [vmem:[%s222] sm:$0xff] %v3400
          %3417 = vst [vmem:[%s222 + $0x8] sm:$0xff] %v3401
          %3418 = vst [vmem:[%s222 + $0x10] sm:$0xff] %v3402
          %3419 = vst [vmem:[%s222 + $0x18] sm:$0xff] %v3403
          %3420 = vst [vmem:[%s222 + $0x20] sm:$0xff] %v3404
          %3421 = vst [vmem:[%s222 + $0x28] sm:$0xff] %v3405
          %3422 = vst [vmem:[%s222 + $0x30] sm:$0xff] %v3406
          %3423 = vst [vmem:[%s222 + $0x38] sm:$0xff] %v3407
          %3424 = vst [vmem:[%s222 + $0x40] sm:$0xff] %v3408
          %3425 = vst [vmem:[%s222 + $0x48] sm:$0xff] %v3409
          %3426 = vst [vmem:[%s222 + $0x50] sm:$0xff] %v3410
          %3427 = vst [vmem:[%s222 + $0x58] sm:$0xff] %v3411
          %3428 = vst [vmem:[%s222 + $0x60] sm:$0xff] %v3412
          %3429 = vst [vmem:[%s222 + $0x68] sm:$0xff] %v3413
          %3430 = vst [vmem:[%s222 + $0x70] sm:$0xff] %v3414
          %3431 = vst [vmem:[%s222 + $0x78] sm:$0xff] %v3415
        $region44: #{tpu_custom_call.1} parent=27 // pred_fallthru
          _
        %s3432 = sand.u32 %s89, 1
        %s3433 = scalar_lea.sflag [#allocation4], %s3432
        %s3434 = sand.u32 %s89, 1
        %s3435 = smul.addr %s3434, 128
        %s3436 = scalar_lea.vmem [#allocation7], %s3435
        // Predicated region
        $region45: #{tpu_custom_call.1} parent=27 // pred_check
          %p3437 = pneg %p99
        $region46: #{tpu_custom_call.1} parent=27 // pred_check_branch
          %3439 = sbr.rel (%p3437) target = $region48
        $region47: #{tpu_custom_call.1} parent=27 // pred_region
          %s3440 = smul.u32 16, %s24
          %3442 = vsyncadd %s3433, 0
          %s3443 = smul.addr %s3440, 8
          %s3444 = scalar_lea.hbm %s2, %s3443
          %s3445 = sshll.u32 %s3436, 4
          %s3446 = int_to_ptr.vmem [resolvable:$true] %s3445
          %s3447 = sshll.u32 %s3444, 4
          %s3448 = int_to_ptr.hbm [resolvable:$true] %s3447
          %3453 = dma.vmem_to_hbm [thread:$0]  %s3446, 2048, %s3448, %s3433, 128, 128, 8
        $region48: #{tpu_custom_call.1} parent=27 // pred_fallthru
          _
      $region28: #{tpu_custom_call.1} parent=5 // pred_fallthru
        _
      %p3454 = scmp.le.s32.totalorder 2, %s15
      // Predicated region
      $region49: #{tpu_custom_call.1} parent=5 // pred_check
        %p3455 = pneg %p3454
      $region50: #{tpu_custom_call.1} parent=5 // pred_check_branch
        %3457 = sbr.rel (%p3455) target = $region52
      $region51: #{tpu_custom_call.1} parent=5 // pred_region
        %s3458 = ssub.s32 %s15, 2
        // Predicated region
        $region53: #{tpu_custom_call.1} parent=51 // pred_check
          %p3459 = pneg %p105
        $region54: #{tpu_custom_call.1} parent=51 // pred_check_branch
          %3461 = sbr.rel (%p3459) target = $region56
        $region55: #{tpu_custom_call.1} parent=51 // pred_region
          %s3462 = sand.u32 %s90, 1
          %s3463 = scalar_lea.sflag [#allocation4], %s3462
          %s3464 = sand.u32 %s90, 1
          %s3465 = smul.addr %s3464, 128
          %s3466 = scalar_lea.vmem [#allocation7], %s3465
          %3468 = dma.done %s3463, 2048
        $region56: #{tpu_custom_call.1} parent=51 // pred_fallthru
          _
      $region52: #{tpu_custom_call.1} parent=5 // pred_fallthru
        _
    $region6: #{tpu_custom_call.1} parent=1 // loop_footer
      %s19 = sadd.s32 1, %s15
    $region7: #{tpu_custom_call.1} parent=1 // loop_footer_branch
      %14 = sbr.rel target = $region3
    $region8: #{tpu_custom_call.1} parent=1 // loop_exit
      _
    %3469 = vsyncpa [#allocation3], 1
    %s3470 = scalar_lea.sflag [#allocation3], 1
    %3471 = vsyncpa %s3470, 1
    %3472 = vsyncpa [#allocation6], 1
    %3473 = vsyncpa [#allocation4], 1
    %s3474 = scalar_lea.sflag [#allocation4], 1
    %3475 = vsyncpa %s3474, 1

// kernel: tpu_custom_call.1
$region0: #{tpu_custom_call.1}
  #allocation0 [shape = 'u32[]', space=smem, size = 0x4, offset = 0x4, fixed_abs, tag = 'smem constant byte address 0x4 - core index']
  #allocation1 [shape = 'u32[72,128]{1,0:T(1,128)}', space=vmem, size = 0x9000, scoped, tag = 'internal scratch']
  #allocation8 [shape = 's32[]', space=sflag, size = 0x4, offset = 0, fixed_abs, tag = 'sflag constant byte address 0x0 - dummy sync flag']
  %s0 = inlined_call_operand.hbm [shape: bf16[8,256,128], index: 0, kind: input, shape index: {}]
  %s1 = inlined_call_operand.hbm [shape: bf16[128,128], index: 1, kind: input, shape index: {}]
  %s2 = inlined_call_operand.hbm [shape: f32[256,128], index: 2, kind: output, shape index: {}]
  %s3 = sld [smem:[#allocation0]]
  $region57: #{tpu_custom_call.1} parent=0
    _
  %s5 = ssub.s32 1, %s3
  %s6 = scalar_select 0, %s5, %s3
  $region1: #{tpu_custom_call.1} parent=0
    #allocation2 [shape = 'u8[524288]{0}', space=vmem, size = 0x80000, scoped, tag = 'input window, operand 0']
    #allocation3 [shape = 's32[2]{0}', space=sflag, size = 0x8, scoped, tag = 'scoped memory for tpu_custom_call.1']
    #allocation4 [shape = 's32[2]{0}', space=sflag, size = 0x8, scoped, tag = 'scoped memory for tpu_custom_call.1']
    #allocation5 [shape = 'u8[32768]{0}', space=vmem, size = 0x8000, scoped, tag = 'input window, operand 1, single buffered']
    #allocation6 [shape = 's32[1]{0}', space=sflag, size = 0x4, scoped, tag = 'scoped memory for tpu_custom_call.1']
    #allocation7 [shape = 'u8[131072]{0}', space=vmem, size = 0x20000, scoped, tag = 'output window, operand 0']
    %7 = vsyncpa [#allocation3], 0
    %s8 = scalar_lea.sflag [#allocation3], 1
    %9 = vsyncpa %s8, 0
    %10 = vsyncpa [#allocation6], 0
    %11 = vsyncpa [#allocation4], 0
    %s12 = scalar_lea.sflag [#allocation4], 1
    %13 = vsyncpa %s12, 0
    loop: start=0, step=1, limit=4
    $region2: #{tpu_custom_call.1} parent=1 // loop_pre_header
      _
    $region3: #{tpu_custom_call.1} parent=1 // loop_header
      %s15 = sphi 0, %s19
      %p16 = scmp.ge.s32.totalorder %s15, 4
      %s22 = sphi 0, %s34
      %s23 = sphi 0, %s30
      %s24 = sphi 0, %s22
      %s25 = sphi 0, %s23
      %s26 = sphi 0, %s24
      %s27 = sphi 0, %s25
      %s39 = sphi 0, %s41
      %s42 = sphi 0, %s39
      %s43 = sphi 0, %s42
      %s59 = sphi 0, %s43
      %s63 = sphi 0, %s63
      %s65 = sphi 0, %s63
      %s66 = sphi 0, %s65
      %s80 = sphi 0, %s66
      %s86 = sphi 0, %s88
      %s89 = sphi 0, %s86
      %s90 = sphi 0, %s89
      %s106 = sphi 0, %s90
    $region4: #{tpu_custom_call.1} parent=1 // loop_header_branch
      %18 = sbr.rel (%p16) target = $region8
    $region5: #{tpu_custom_call.1} parent=1 // loop_body
      %s20 = ssub.s32 %s15, 1
      %s21 = ssub.s32 %s15, 2
      %s28 = sadd.s32 1, %s23
      %p29 = scmp.ge.s32.totalorder %s28, 1
      %s30 = scalar_select %p29, 0, %s28
      %s31 = sadd.s32 1, %s22
      %s32 = scalar_select %p29, %s31, %s22
      %p33 = scmp.ge.s32.totalorder %s32, 2
      %s34 = scalar_select %p33, 0, %s32
      %s35 = ssub.s32 %s23, %s30
      %s36 = ssub.s32 %s22, %s34
      %s37 = sor.u32 %s35, %s36
      %p38 = scmp.eq.s32.totalorder %s37, 0
      %s40 = sadd.s32 %s39, 1
      %s41 = scalar_select %p38, %s39, %s40
      %p44 = pneg %p38
      %p45 = scmp.eq.s32.totalorder %s15, 1
      %p46 = por %p44, %p45
      %p47 = scmp.ne.s32.totalorder %s39, %s42
      %p48 = scmp.eq.s32.totalorder %s15, 0
      %p49 = por %p47, %p48
      %p50 = scmp.ne.s32.totalorder %s39, %s42
      %p51 = scmp.eq.s32.totalorder %s20, 1
      %p52 = por %p50, %p51
      %p53 = scmp.ne.s32.totalorder %s42, %s43
      %p54 = scmp.eq.s32.totalorder %s20, 0
      %p55 = por %p53, %p54
      %p56 = scmp.ne.s32.totalorder %s42, %s43
      %p57 = scmp.eq.s32.totalorder %s21, 1
      %p58 = por %p56, %p57
      %p60 = scmp.ne.s32.totalorder %s43, %s59
      %p61 = scmp.eq.s32.totalorder %s21, 0
      %p62 = por %p60, %p61
      %s64 = sadd.s32 %s63, 1
      %p67 = scmp.eq.s32.totalorder %s15, 1
      %p68 = scmp.ne.s32.totalorder %s63, %s65
      %p69 = scmp.eq.s32.totalorder %s15, 0
      %p70 = por %p68, %p69
      %p71 = scmp.ne.s32.totalorder %s63, %s65
      %p72 = scmp.eq.s32.totalorder %s20, 1
      %p73 = por %p71, %p72
      %p74 = scmp.ne.s32.totalorder %s65, %s66
      %p75 = scmp.eq.s32.totalorder %s20, 0
      %p76 = por %p74, %p75
      %p77 = scmp.ne.s32.totalorder %s65, %s66
      %p78 = scmp.eq.s32.totalorder %s21, 1
      %p79 = por %p77, %p78
      %p81 = scmp.ne.s32.totalorder %s66, %s80
      %p82 = scmp.eq.s32.totalorder %s21, 0
      %p83 = por %p81, %p82
      %s84 = ssub.s32 %s22, %s34
      %p85 = scmp.eq.s32.totalorder %s84, 0
      %s87 = sadd.s32 %s86, 1
      %s88 = scalar_select %p85, %s86, %s87
      %p91 = pneg %p85
      %p92 = scmp.eq.s32.totalorder %s15, 1
      %p93 = por %p91, %p92
      %p94 = scmp.ne.s32.totalorder %s86, %s89
      %p95 = scmp.eq.s32.totalorder %s15, 0
      %p96 = por %p94, %p95
      %p97 = scmp.ne.s32.totalorder %s86, %s89
      %p98 = scmp.eq.s32.totalorder %s20, 1
      %p99 = por %p97, %p98
      %p100 = scmp.ne.s32.totalorder %s89, %s90
      %p101 = scmp.eq.s32.totalorder %s20, 0
      %p102 = por %p100, %p101
      %p103 = scmp.ne.s32.totalorder %s89, %s90
      %p104 = scmp.eq.s32.totalorder %s21, 1
      %p105 = por %p103, %p104
      %p107 = scmp.ne.s32.totalorder %s90, %s106
      %p108 = scmp.eq.s32.totalorder %s21, 0
      %p109 = por %p107, %p108
      %p110 = scmp.le.s32.totalorder 1, %s15
      %p111 = scmp.lt.s32.totalorder %s15, 3
      %p112 = pnand %p110, %p111
      %p113 = pneg %p112
      // Predicated region
      $region9: #{tpu_custom_call.1} parent=5 // pred_check
        _
      $region10: #{tpu_custom_call.1} parent=5 // pred_check_branch
        %115 = sbr.rel (%p112) target = $region12
      $region11: #{tpu_custom_call.1} parent=5 // pred_region
        %s116 = ssub.s32 %s15, 1
        // Predicated region
        $region13: #{tpu_custom_call.1} parent=11 // pred_check
          %p117 = pneg %p76
        $region14: #{tpu_custom_call.1} parent=11 // pred_check_branch
          %119 = sbr.rel (%p117) target = $region16
        $region15: #{tpu_custom_call.1} parent=11 // pred_region
          %121 = vsyncadd [#allocation6], 0
          %s122 = sshll.u32 %s1, 4
          %s123 = int_to_ptr.hbm [resolvable:$true] %s122
          %s124 = sshll.u32 [#allocation5], 4
          %s125 = int_to_ptr.vmem [resolvable:$true] %s124
          %130 = dma.hbm_to_vmem [thread:$0]  %s123, 1024, %s125, [#allocation6], 64, 64, 4
        $region16: #{tpu_custom_call.1} parent=11 // pred_fallthru
          _
      $region12: #{tpu_custom_call.1} parent=5 // pred_fallthru
        _
      %p131 = scmp.lt.s32.totalorder %s15, 2
      // Predicated region
      $region17: #{tpu_custom_call.1} parent=5 // pred_check
        %p132 = pneg %p131
      $region18: #{tpu_custom_call.1} parent=5 // pred_check_branch
        %134 = sbr.rel (%p132) target = $region20
      $region19: #{tpu_custom_call.1} parent=5 // pred_region
        // Predicated region
        $region21: #{tpu_custom_call.1} parent=19 // pred_check
          %p135 = pneg %p49
        $region22: #{tpu_custom_call.1} parent=19 // pred_check_branch
          %137 = sbr.rel (%p135) target = $region24
        $region23: #{tpu_custom_call.1} parent=19 // pred_region
          #allocation9 [shape = 'u32[6]{0}', space=smem, size = 0x18, scoped, tag = 'DMA stride descriptor']
          %s138 = sand.u32 %s39, 1
          %s139 = scalar_lea.sflag [#allocation3], %s138
          %s140 = sand.u32 %s39, 1
          %s141 = smul.addr %s140, 512
          %s142 = scalar_lea.vmem [#allocation2], %s141
          %s143 = smul.u32 8, %s23
          %s144 = smul.u32 16, %s22
          %146 = vsyncadd %s139, 0
          %s147 = smul.addr %s143, 32
          %s148 = sadd.s32 %s144, %s147
          %s149 = smul.addr %s148, 4
          %s150 = scalar_lea.hbm %s0, %s149
          %s152 = sshll.u32 1, 14
          %s153 = sxor.u32 4294967295, %s152
          %s155 = sld [smem:[#allocation0]]
          %s156 = sadd.s32 2, %s155
          %s158 = sshll.u32 7, 26
          %s159 = sxor.u32 4294967295, %s158
          %s160 = sand.u32 0, %s159
          %s161 = sshll.u32 %s156, 26
          %s162 = sor.u32 %s160, %s161
          %s163 = sshll.u32 %s150, 4
          %s164 = int_to_ptr.hbm [resolvable:$true] %s163
          %s165 = sshll.u32 %s142, 4
          %s166 = int_to_ptr.vmem [resolvable:$true] %s165
          %172 = sst [smem:[#allocation9]] 2048
          %s173 = scalar_lea.smem [#allocation9], 1
          %174 = sst [smem:[%s173]] 1024
          %s175 = scalar_lea.smem [#allocation9], 2
          %176 = sst [smem:[%s175]] 16
          %s177 = scalar_lea.smem [#allocation9], 3
          %178 = sst [smem:[%s177]] 64
          %s179 = scalar_lea.smem [#allocation9], 4
          %180 = sst [smem:[%s179]] 64
          %s181 = scalar_lea.smem [#allocation9], 5
          %182 = sst [smem:[%s181]] 4
          %184 = dma.general %s164, 8192, %s166, %s139, [#allocation8], [#allocation9], %s162, 0
        $region24: #{tpu_custom_call.1} parent=19 // pred_fallthru
          _
      $region20: #{tpu_custom_call.1} parent=5 // pred_fallthru
        _
      %p185 = scmp.le.s32.totalorder 1, %s15
      %p186 = scmp.lt.s32.totalorder %s15, 3
      %p187 = pnand %p185, %p186
      %p188 = pneg %p187
      // Predicated region
      $region25: #{tpu_custom_call.1} parent=5 // pred_check
        _
      $region26: #{tpu_custom_call.1} parent=5 // pred_check_branch
        %190 = sbr.rel (%p187) target = $region28
      $region27: #{tpu_custom_call.1} parent=5 // pred_region
        %s191 = ssub.s32 %s15, 1
        %s192 = sand.u32 %s42, 1
        %s193 = scalar_lea.sflag [#allocation3], %s192
        %s194 = sand.u32 %s42, 1
        %s195 = smul.addr %s194, 512
        %s196 = scalar_lea.vmem [#allocation2], %s195
        // Predicated region
        $region29: #{tpu_custom_call.1} parent=27 // pred_check
          %p197 = pneg %p55
        $region30: #{tpu_custom_call.1} parent=27 // pred_check_branch
          %199 = sbr.rel (%p197) target = $region32
        $region31: #{tpu_custom_call.1} parent=27 // pred_region
          %201 = dma.done %s193, 8192
        $region32: #{tpu_custom_call.1} parent=27 // pred_fallthru
          _
        // Predicated region
        $region33: #{tpu_custom_call.1} parent=27 // pred_check
          %p202 = pneg %p76
        $region34: #{tpu_custom_call.1} parent=27 // pred_check_branch
          %204 = sbr.rel (%p202) target = $region36
        $region35: #{tpu_custom_call.1} parent=27 // pred_region
          %206 = dma.done [#allocation6], 1024
        $region36: #{tpu_custom_call.1} parent=27 // pred_fallthru
          _
        %s207 = sand.u32 %s42, 1
        %s208 = scalar_lea.sflag [#allocation3], %s207
        %s209 = sand.u32 %s42, 1
        %s210 = smul.addr %s209, 512
        %s211 = scalar_lea.vmem [#allocation2], %s210
        %p212 = pneg %p55
        %p213 = pneg %p52
        %p214 = pneg %p76
        %p215 = pneg %p73
        %p216 = pneg %p102
        %p217 = pneg %p99
        %s218 = sand.u32 %s89, 1
        %s219 = scalar_lea.sflag [#allocation4], %s218
        %s220 = sand.u32 %s89, 1
        %s221 = smul.addr %s220, 128
        %s222 = scalar_lea.vmem [#allocation7], %s221
        %s223 = smul.u32 8, %s25
        %s224 = smul.u32 16, %s24
        %s225 = smul.u32 16, %s24
        %p226 = scmp.eq.s32.totalorder %s25, 0
        // Predicated region
        $region37: #{tpu_custom_call.1} parent=27 // pred_check
          %p227 = pneg %p226
        $region38: #{tpu_custom_call.1} parent=27 // pred_check_branch
          %229 = sbr.rel (%p227) target = $region40
        $region39: #{tpu_custom_call.1} parent=27 // pred_region
          %230 = vst [vmem:[%s222] sm:$0xff] 0.0
          %231 = vst [vmem:[%s222 + $0x8] sm:$0xff] 0.0
          %232 = vst [vmem:[%s222 + $0x10] sm:$0xff] 0.0
          %233 = vst [vmem:[%s222 + $0x18] sm:$0xff] 0.0
          %234 = vst [vmem:[%s222 + $0x20] sm:$0xff] 0.0
          %235 = vst [vmem:[%s222 + $0x28] sm:$0xff] 0.0
          %236 = vst [vmem:[%s222 + $0x30] sm:$0xff] 0.0
          %237 = vst [vmem:[%s222 + $0x38] sm:$0xff] 0.0
          %238 = vst [vmem:[%s222 + $0x40] sm:$0xff] 0.0
          %239 = vst [vmem:[%s222 + $0x48] sm:$0xff] 0.0
          %240 = vst [vmem:[%s222 + $0x50] sm:$0xff] 0.0
          %241 = vst [vmem:[%s222 + $0x58] sm:$0xff] 0.0
          %242 = vst [vmem:[%s222 + $0x60] sm:$0xff] 0.0
          %243 = vst [vmem:[%s222 + $0x68] sm:$0xff] 0.0
          %244 = vst [vmem:[%s222 + $0x70] sm:$0xff] 0.0
          %245 = vst [vmem:[%s222 + $0x78] sm:$0xff] 0.0
        $region40: #{tpu_custom_call.1} parent=27 // pred_fallthru
          _
        %v246 = vld [vmem:[#allocation5] sm:$0xf]
        %v247 = vld [vmem:[#allocation5 + $0x4] sm:$0xf]
        %v248 = vld [vmem:[#allocation5 + $0x8] sm:$0xf]
        %v249 = vld [vmem:[#allocation5 + $0xc] sm:$0xf]
        %v250 = vld [vmem:[#allocation5 + $0x10] sm:$0xf]
        %v251 = vld [vmem:[#allocation5 + $0x14] sm:$0xf]
        %v252 = vld [vmem:[#allocation5 + $0x18] sm:$0xf]
        %v253 = vld [vmem:[#allocation5 + $0x1c] sm:$0xf]
        %v254 = vld [vmem:[#allocation5 + $0x20] sm:$0xf]
        %v255 = vld [vmem:[#allocation5 + $0x24] sm:$0xf]
        %v256 = vld [vmem:[#allocation5 + $0x28] sm:$0xf]
        %v257 = vld [vmem:[#allocation5 + $0x2c] sm:$0xf]
        %v258 = vld [vmem:[#allocation5 + $0x30] sm:$0xf]
        %v259 = vld [vmem:[#allocation5 + $0x34] sm:$0xf]
        %v260 = vld [vmem:[#allocation5 + $0x38] sm:$0xf]
        %v261 = vld [vmem:[#allocation5 + $0x3c] sm:$0xf]
        %v262 = vld [vmem:[%s222] sm:$0xff]
        %v263 = vld [vmem:[%s222 + $0x8] sm:$0xff]
        %v264 = vld [vmem:[%s222 + $0x10] sm:$0xff]
        %v265 = vld [vmem:[%s222 + $0x18] sm:$0xff]
        %v266 = vld [vmem:[%s222 + $0x20] sm:$0xff]
        %v267 = vld [vmem:[%s222 + $0x28] sm:$0xff]
        %v268 = vld [vmem:[%s222 + $0x30] sm:$0xff]
        %v269 = vld [vmem:[%s222 + $0x38] sm:$0xff]
        %v270 = vld [vmem:[%s222 + $0x40] sm:$0xff]
        %v271 = vld [vmem:[%s222 + $0x48] sm:$0xff]
        %v272 = vld [vmem:[%s222 + $0x50] sm:$0xff]
        %v273 = vld [vmem:[%s222 + $0x58] sm:$0xff]
        %v274 = vld [vmem:[%s222 + $0x60] sm:$0xff]
        %v275 = vld [vmem:[%s222 + $0x68] sm:$0xff]
        %v276 = vld [vmem:[%s222 + $0x70] sm:$0xff]
        %v277 = vld [vmem:[%s222 + $0x78] sm:$0xff]
        %v278 = vld [vmem:[%s196] sm:$0xf]
        %v279 = vld [vmem:[%s196 + $0x4] sm:$0xf]
        %v280 = vld [vmem:[%s196 + $0x8] sm:$0xf]
        %v281 = vld [vmem:[%s196 + $0xc] sm:$0xf]
        %v282 = vld [vmem:[%s196 + $0x10] sm:$0xf]
        %v283 = vld [vmem:[%s196 + $0x14] sm:$0xf]
        %v284 = vld [vmem:[%s196 + $0x18] sm:$0xf]
        %v285 = vld [vmem:[%s196 + $0x1c] sm:$0xf]
        %v286 = vld [vmem:[%s196 + $0x20] sm:$0xf]
        %v287 = vld [vmem:[%s196 + $0x24] sm:$0xf]
        %v288 = vld [vmem:[%s196 + $0x28] sm:$0xf]
        %v289 = vld [vmem:[%s196 + $0x2c] sm:$0xf]
        %v290 = vld [vmem:[%s196 + $0x30] sm:$0xf]
        %v291 = vld [vmem:[%s196 + $0x34] sm:$0xf]
        %v292 = vld [vmem:[%s196 + $0x38] sm:$0xf]
        %v293 = vld [vmem:[%s196 + $0x3c] sm:$0xf]
        %v310 = vunpack.c.l.b16 %v278
        %v311 = vunpack.c.l.b16 %v279
        %v312 = vunpack.c.l.b16 %v280
        %v313 = vunpack.c.l.b16 %v281
        %v314 = vunpack.c.l.b16 %v282
        %v315 = vunpack.c.l.b16 %v283
        %v316 = vunpack.c.l.b16 %v284
        %v317 = vunpack.c.l.b16 %v285
        %v318 = vunpack.c.l.b16 %v286
        %v319 = vunpack.c.l.b16 %v287
        %v320 = vunpack.c.l.b16 %v288
        %v321 = vunpack.c.l.b16 %v289
        %v322 = vunpack.c.l.b16 %v290
        %v323 = vunpack.c.l.b16 %v291
        %v324 = vunpack.c.l.b16 %v292
        %v325 = vunpack.c.l.b16 %v293
        %v326 = vpack.c.b16 %v311, %v310
        %v327 = vpack.c.b16 %v313, %v312
        %v328 = vpack.c.b16 %v315, %v314
        %v329 = vpack.c.b16 %v317, %v316
        %v330 = vpack.c.b16 %v319, %v318
        %v331 = vpack.c.b16 %v321, %v320
        %v332 = vpack.c.b16 %v323, %v322
        %v333 = vpack.c.b16 %v325, %v324
        %v358 = vunpack.c.l.b16 %v246
        %v359 = vunpack.c.l.b16 %v247
        %v360 = vunpack.c.l.b16 %v248
        %v361 = vunpack.c.l.b16 %v249
        %v362 = vunpack.c.l.b16 %v250
        %v363 = vunpack.c.l.b16 %v251
        %v364 = vunpack.c.l.b16 %v252
        %v365 = vunpack.c.l.b16 %v253
        %v366 = vunpack.c.l.b16 %v254
        %v367 = vunpack.c.l.b16 %v255
        %v368 = vunpack.c.l.b16 %v256
        %v369 = vunpack.c.l.b16 %v257
        %v370 = vunpack.c.l.b16 %v258
        %v371 = vunpack.c.l.b16 %v259
        %v372 = vunpack.c.l.b16 %v260
        %v373 = vunpack.c.l.b16 %v261
        %v374 = vpack.c.b16 %v359, %v358
        %v375 = vpack.c.b16 %v361, %v360
        %v376 = vpack.c.b16 %v363, %v362
        %v377 = vpack.c.b16 %v365, %v364
        %v378 = vpack.c.b16 %v367, %v366
        %v379 = vpack.c.b16 %v369, %v368
        %v380 = vpack.c.b16 %v371, %v370
        %v381 = vpack.c.b16 %v373, %v372
        %390 = vmatpush.bf16.msra.mxu0 %v381
        %391 = vmatpush.bf16.msra.mxu0 %v380
        %392 = vmatpush.bf16.msra.mxu0 %v379
        %393 = vmatpush.bf16.msra.mxu0 %v378
        %394 = vmatpush.bf16.msra.mxu0 %v377
        %395 = vmatpush.bf16.msra.mxu0 %v376
        %396 = vmatpush.bf16.msra.mxu0 %v375
        %397 = vmatpush.bf16.msra.mxu0 %v374
        %398 = vmatmul.bf16.gmra.mxu0 %v326
        %v399 = vpop.f32.mrf.mxu0
        %v400 = vadd.f32 0.0, %v399
        %v401 = vpop.f32.mrf.mxu0
        %v402 = vadd.f32 0.0, %v401
        %403 = vmatmul.bf16.gmra.mxu0 %v327
        %v404 = vpop.f32.mrf.mxu0
        %v405 = vadd.f32 0.0, %v404
        %v406 = vpop.f32.mrf.mxu0
        %v407 = vadd.f32 0.0, %v406
        %408 = vmatmul.bf16.gmra.mxu0 %v328
        %v409 = vpop.f32.mrf.mxu0
        %v410 = vadd.f32 0.0, %v409
        %v411 = vpop.f32.mrf.mxu0
        %v412 = vadd.f32 0.0, %v411
        %413 = vmatmul.bf16.gmra.mxu0 %v329
        %v414 = vpop.f32.mrf.mxu0
        %v415 = vadd.f32 0.0, %v414
        %v416 = vpop.f32.mrf.mxu0
        %v417 = vadd.f32 0.0, %v416
        %418 = vmatmul.bf16.gmra.mxu0 %v330
        %v419 = vpop.f32.mrf.mxu0
        %v420 = vadd.f32 0.0, %v419
        %v421 = vpop.f32.mrf.mxu0
        %v422 = vadd.f32 0.0, %v421
        %423 = vmatmul.bf16.gmra.mxu0 %v331
        %v424 = vpop.f32.mrf.mxu0
        %v425 = vadd.f32 0.0, %v424
        %v426 = vpop.f32.mrf.mxu0
        %v427 = vadd.f32 0.0, %v426
        %428 = vmatmul.bf16.gmra.mxu0 %v332
        %v429 = vpop.f32.mrf.mxu0
        %v430 = vadd.f32 0.0, %v429
        %v431 = vpop.f32.mrf.mxu0
        %v432 = vadd.f32 0.0, %v431
        %433 = vmatmul.bf16.gmra.mxu0 %v333
        %v434 = vpop.f32.mrf.mxu0
        %v435 = vadd.f32 0.0, %v434
        %v436 = vpop.f32.mrf.mxu0
        %v437 = vadd.f32 0.0, %v436
        %438 = vdwg.mxu0
        %v439 = vmul.f32 %v400, %v400
        %v440 = vmul.f32 %v402, %v402
        %v441 = vmul.f32 %v405, %v405
        %v442 = vmul.f32 %v407, %v407
        %v443 = vmul.f32 %v410, %v410
        %v444 = vmul.f32 %v412, %v412
        %v445 = vmul.f32 %v415, %v415
        %v446 = vmul.f32 %v417, %v417
        %v447 = vmul.f32 %v420, %v420
        %v448 = vmul.f32 %v422, %v422
        %v449 = vmul.f32 %v425, %v425
        %v450 = vmul.f32 %v427, %v427
        %v451 = vmul.f32 %v430, %v430
        %v452 = vmul.f32 %v432, %v432
        %v453 = vmul.f32 %v435, %v435
        %v454 = vmul.f32 %v437, %v437
        %455 = vadd.xlane.f32.xlu0 %v439
        %v456 = vpop.xlane.xlu0 %455
        %457 = vadd.xlane.f32.xlu0 %v440
        %v458 = vpop.xlane.xlu0 %457
        %459 = vadd.xlane.f32.xlu0 %v441
        %v460 = vpop.xlane.xlu0 %459
        %461 = vadd.xlane.f32.xlu0 %v442
        %v462 = vpop.xlane.xlu0 %461
        %463 = vadd.xlane.f32.xlu0 %v443
        %v464 = vpop.xlane.xlu0 %463
        %465 = vadd.xlane.f32.xlu0 %v444
        %v466 = vpop.xlane.xlu0 %465
        %467 = vadd.xlane.f32.xlu0 %v445
        %v468 = vpop.xlane.xlu0 %467
        %469 = vadd.xlane.f32.xlu0 %v446
        %v470 = vpop.xlane.xlu0 %469
        %471 = vadd.xlane.f32.xlu0 %v447
        %v472 = vpop.xlane.xlu0 %471
        %473 = vadd.xlane.f32.xlu0 %v448
        %v474 = vpop.xlane.xlu0 %473
        %475 = vadd.xlane.f32.xlu0 %v449
        %v476 = vpop.xlane.xlu0 %475
        %477 = vadd.xlane.f32.xlu0 %v450
        %v478 = vpop.xlane.xlu0 %477
        %479 = vadd.xlane.f32.xlu0 %v451
        %v480 = vpop.xlane.xlu0 %479
        %481 = vadd.xlane.f32.xlu0 %v452
        %v482 = vpop.xlane.xlu0 %481
        %483 = vadd.xlane.f32.xlu0 %v453
        %v484 = vpop.xlane.xlu0 %483
        %485 = vadd.xlane.f32.xlu0 %v454
        %v486 = vpop.xlane.xlu0 %485
        %v487 = vrsqrt.pop %v456
        %v488 = vmul.f32 %v487, %v456
        %v489 = vmul.f32 %v488, %v487
        %v490 = vmul.f32 0.5, %v489
        %v491 = vsub.f32 1.5, %v490
        %v492 = vmul.f32 %v487, %v491
        %vm493 = vweird.f32 %v456
        %vm494 = vweird.f32 %v487
        %vm495 = vmor %vm493, %vm494
        %v496 = vsel %vm495, %v487, %v492
        %v497 = vrsqrt.pop %v458
        %v498 = vmul.f32 %v497, %v458
        %v499 = vmul.f32 %v498, %v497
        %v500 = vmul.f32 0.5, %v499
        %v501 = vsub.f32 1.5, %v500
        %v502 = vmul.f32 %v497, %v501
        %vm503 = vweird.f32 %v458
        %vm504 = vweird.f32 %v497
        %vm505 = vmor %vm503, %vm504
        %v506 = vsel %vm505, %v497, %v502
        %v507 = vrsqrt.pop %v460
        %v508 = vmul.f32 %v507, %v460
        %v509 = vmul.f32 %v508, %v507
        %v510 = vmul.f32 0.5, %v509
        %v511 = vsub.f32 1.5, %v510
        %v512 = vmul.f32 %v507, %v511
        %vm513 = vweird.f32 %v460
        %vm514 = vweird.f32 %v507
        %vm515 = vmor %vm513, %vm514
        %v516 = vsel %vm515, %v507, %v512
        %v517 = vrsqrt.pop %v462
        %v518 = vmul.f32 %v517, %v462
        %v519 = vmul.f32 %v518, %v517
        %v520 = vmul.f32 0.5, %v519
        %v521 = vsub.f32 1.5, %v520
        %v522 = vmul.f32 %v517, %v521
        %vm523 = vweird.f32 %v462
        %vm524 = vweird.f32 %v517
        %vm525 = vmor %vm523, %vm524
        %v526 = vsel %vm525, %v517, %v522
        %v527 = vrsqrt.pop %v464
        %v528 = vmul.f32 %v527, %v464
        %v529 = vmul.f32 %v528, %v527
        %v530 = vmul.f32 0.5, %v529
        %v531 = vsub.f32 1.5, %v530
        %v532 = vmul.f32 %v527, %v531
        %vm533 = vweird.f32 %v464
        %vm534 = vweird.f32 %v527
        %vm535 = vmor %vm533, %vm534
        %v536 = vsel %vm535, %v527, %v532
        %v537 = vrsqrt.pop %v466
        %v538 = vmul.f32 %v537, %v466
        %v539 = vmul.f32 %v538, %v537
        %v540 = vmul.f32 0.5, %v539
        %v541 = vsub.f32 1.5, %v540
        %v542 = vmul.f32 %v537, %v541
        %vm543 = vweird.f32 %v466
        %vm544 = vweird.f32 %v537
        %vm545 = vmor %vm543, %vm544
        %v546 = vsel %vm545, %v537, %v542
        %v547 = vrsqrt.pop %v468
        %v548 = vmul.f32 %v547, %v468
        %v549 = vmul.f32 %v548, %v547
        %v550 = vmul.f32 0.5, %v549
        %v551 = vsub.f32 1.5, %v550
        %v552 = vmul.f32 %v547, %v551
        %vm553 = vweird.f32 %v468
        %vm554 = vweird.f32 %v547
        %vm555 = vmor %vm553, %vm554
        %v556 = vsel %vm555, %v547, %v552
        %v557 = vrsqrt.pop %v470
        %v558 = vmul.f32 %v557, %v470
        %v559 = vmul.f32 %v558, %v557
        %v560 = vmul.f32 0.5, %v559
        %v561 = vsub.f32 1.5, %v560
        %v562 = vmul.f32 %v557, %v561
        %vm563 = vweird.f32 %v470
        %vm564 = vweird.f32 %v557
        %vm565 = vmor %vm563, %vm564
        %v566 = vsel %vm565, %v557, %v562
        %v567 = vrsqrt.pop %v472
        %v568 = vmul.f32 %v567, %v472
        %v569 = vmul.f32 %v568, %v567
        %v570 = vmul.f32 0.5, %v569
        %v571 = vsub.f32 1.5, %v570
        %v572 = vmul.f32 %v567, %v571
        %vm573 = vweird.f32 %v472
        %vm574 = vweird.f32 %v567
        %vm575 = vmor %vm573, %vm574
        %v576 = vsel %vm575, %v567, %v572
        %v577 = vrsqrt.pop %v474
        %v578 = vmul.f32 %v577, %v474
        %v579 = vmul.f32 %v578, %v577
        %v580 = vmul.f32 0.5, %v579
        %v581 = vsub.f32 1.5, %v580
        %v582 = vmul.f32 %v577, %v581
        %vm583 = vweird.f32 %v474
        %vm584 = vweird.f32 %v577
        %vm585 = vmor %vm583, %vm584
        %v586 = vsel %vm585, %v577, %v582
        %v587 = vrsqrt.pop %v476
        %v588 = vmul.f32 %v587, %v476
        %v589 = vmul.f32 %v588, %v587
        %v590 = vmul.f32 0.5, %v589
        %v591 = vsub.f32 1.5, %v590
        %v592 = vmul.f32 %v587, %v591
        %vm593 = vweird.f32 %v476
        %vm594 = vweird.f32 %v587
        %vm595 = vmor %vm593, %vm594
        %v596 = vsel %vm595, %v587, %v592
        %v597 = vrsqrt.pop %v478
        %v598 = vmul.f32 %v597, %v478
        %v599 = vmul.f32 %v598, %v597
        %v600 = vmul.f32 0.5, %v599
        %v601 = vsub.f32 1.5, %v600
        %v602 = vmul.f32 %v597, %v601
        %vm603 = vweird.f32 %v478
        %vm604 = vweird.f32 %v597
        %vm605 = vmor %vm603, %vm604
        %v606 = vsel %vm605, %v597, %v602
        %v607 = vrsqrt.pop %v480
        %v608 = vmul.f32 %v607, %v480
        %v609 = vmul.f32 %v608, %v607
        %v610 = vmul.f32 0.5, %v609
        %v611 = vsub.f32 1.5, %v610
        %v612 = vmul.f32 %v607, %v611
        %vm613 = vweird.f32 %v480
        %vm614 = vweird.f32 %v607
        %vm615 = vmor %vm613, %vm614
        %v616 = vsel %vm615, %v607, %v612
        %v617 = vrsqrt.pop %v482
        %v618 = vmul.f32 %v617, %v482
        %v619 = vmul.f32 %v618, %v617
        %v620 = vmul.f32 0.5, %v619
        %v621 = vsub.f32 1.5, %v620
        %v622 = vmul.f32 %v617, %v621
        %vm623 = vweird.f32 %v482
        %vm624 = vweird.f32 %v617
        %vm625 = vmor %vm623, %vm624
        %v626 = vsel %vm625, %v617, %v622
        %v627 = vrsqrt.pop %v484
        %v628 = vmul.f32 %v627, %v484
        %v629 = vmul.f32 %v628, %v627
        %v630 = vmul.f32 0.5, %v629
        %v631 = vsub.f32 1.5, %v630
        %v632 = vmul.f32 %v627, %v631
        %vm633 = vweird.f32 %v484
        %vm634 = vweird.f32 %v627
        %vm635 = vmor %vm633, %vm634
        %v636 = vsel %vm635, %v627, %v632
        %v637 = vrsqrt.pop %v486
        %v638 = vmul.f32 %v637, %v486
        %v639 = vmul.f32 %v638, %v637
        %v640 = vmul.f32 0.5, %v639
        %v641 = vsub.f32 1.5, %v640
        %v642 = vmul.f32 %v637, %v641
        %vm643 = vweird.f32 %v486
        %vm644 = vweird.f32 %v637
        %vm645 = vmor %vm643, %vm644
        %v646 = vsel %vm645, %v637, %v642
        %v647 = vmul.f32 %v400, %v496
        %v648 = vmul.f32 %v402, %v506
        %v649 = vmul.f32 %v405, %v516
        %v650 = vmul.f32 %v407, %v526
        %v651 = vmul.f32 %v410, %v536
        %v652 = vmul.f32 %v412, %v546
        %v653 = vmul.f32 %v415, %v556
        %v654 = vmul.f32 %v417, %v566
        %v655 = vmul.f32 %v420, %v576
        %v656 = vmul.f32 %v422, %v586
        %v657 = vmul.f32 %v425, %v596
        %v658 = vmul.f32 %v427, %v606
        %v659 = vmul.f32 %v430, %v616
        %v660 = vmul.f32 %v432, %v626
        %v661 = vmul.f32 %v435, %v636
        %v662 = vmul.f32 %v437, %v646
        %v663 = vadd.f32 %v262, %v647
        %v664 = vadd.f32 %v263, %v648
        %v665 = vadd.f32 %v264, %v649
        %v666 = vadd.f32 %v265, %v650
        %v667 = vadd.f32 %v266, %v651
        %v668 = vadd.f32 %v267, %v652
        %v669 = vadd.f32 %v268, %v653
        %v670 = vadd.f32 %v269, %v654
        %v671 = vadd.f32 %v270, %v655
        %v672 = vadd.f32 %v271, %v656
        %v673 = vadd.f32 %v272, %v657
        %v674 = vadd.f32 %v273, %v658
        %v675 = vadd.f32 %v274, %v659
        %v676 = vadd.f32 %v275, %v660
        %v677 = vadd.f32 %v276, %v661
        %v678 = vadd.f32 %v277, %v662
        %s679 = scalar_lea.vmem %s196, 64 [#allocation2]
        %v680 = vld [vmem:[%s679] sm:$0xf]
        %v681 = vld [vmem:[%s679 + $0x4] sm:$0xf]
        %v682 = vld [vmem:[%s679 + $0x8] sm:$0xf]
        %v683 = vld [vmem:[%s679 + $0xc] sm:$0xf]
        %v684 = vld [vmem:[%s679 + $0x10] sm:$0xf]
        %v685 = vld [vmem:[%s679 + $0x14] sm:$0xf]
        %v686 = vld [vmem:[%s679 + $0x18] sm:$0xf]
        %v687 = vld [vmem:[%s679 + $0x1c] sm:$0xf]
        %v688 = vld [vmem:[%s679 + $0x20] sm:$0xf]
        %v689 = vld [vmem:[%s679 + $0x24] sm:$0xf]
        %v690 = vld [vmem:[%s679 + $0x28] sm:$0xf]
        %v691 = vld [vmem:[%s679 + $0x2c] sm:$0xf]
        %v692 = vld [vmem:[%s679 + $0x30] sm:$0xf]
        %v693 = vld [vmem:[%s679 + $0x34] sm:$0xf]
        %v694 = vld [vmem:[%s679 + $0x38] sm:$0xf]
        %v695 = vld [vmem:[%s679 + $0x3c] sm:$0xf]
        %v712 = vunpack.c.l.b16 %v680
        %v713 = vunpack.c.l.b16 %v681
        %v714 = vunpack.c.l.b16 %v682
        %v715 = vunpack.c.l.b16 %v683
        %v716 = vunpack.c.l.b16 %v684
        %v717 = vunpack.c.l.b16 %v685
        %v718 = vunpack.c.l.b16 %v686
        %v719 = vunpack.c.l.b16 %v687
        %v720 = vunpack.c.l.b16 %v688
        %v721 = vunpack.c.l.b16 %v689
        %v722 = vunpack.c.l.b16 %v690
        %v723 = vunpack.c.l.b16 %v691
        %v724 = vunpack.c.l.b16 %v692
        %v725 = vunpack.c.l.b16 %v693
        %v726 = vunpack.c.l.b16 %v694
        %v727 = vunpack.c.l.b16 %v695
        %v728 = vpack.c.b16 %v713, %v712
        %v729 = vpack.c.b16 %v715, %v714
        %v730 = vpack.c.b16 %v717, %v716
        %v731 = vpack.c.b16 %v719, %v718
        %v732 = vpack.c.b16 %v721, %v720
        %v733 = vpack.c.b16 %v723, %v722
        %v734 = vpack.c.b16 %v725, %v724
        %v735 = vpack.c.b16 %v727, %v726
        %744 = vmatpush.bf16.msra.mxu0 %v381
        %745 = vmatpush.bf16.msra.mxu0 %v380
        %746 = vmatpush.bf16.msra.mxu0 %v379
        %747 = vmatpush.bf16.msra.mxu0 %v378
        %748 = vmatpush.bf16.msra.mxu0 %v377
        %749 = vmatpush.bf16.msra.mxu0 %v376
        %750 = vmatpush.bf16.msra.mxu0 %v375
        %751 = vmatpush.bf16.msra.mxu0 %v374
        %752 = vmatmul.bf16.gmra.mxu0 %v728
        %v753 = vpop.f32.mrf.mxu0
        %v754 = vadd.f32 0.0, %v753
        %v755 = vpop.f32.mrf.mxu0
        %v756 = vadd.f32 0.0, %v755
        %757 = vmatmul.bf16.gmra.mxu0 %v729
        %v758 = vpop.f32.mrf.mxu0
        %v759 = vadd.f32 0.0, %v758
        %v760 = vpop.f32.mrf.mxu0
        %v761 = vadd.f32 0.0, %v760
        %762 = vmatmul.bf16.gmra.mxu0 %v730
        %v763 = vpop.f32.mrf.mxu0
        %v764 = vadd.f32 0.0, %v763
        %v765 = vpop.f32.mrf.mxu0
        %v766 = vadd.f32 0.0, %v765
        %767 = vmatmul.bf16.gmra.mxu0 %v731
        %v768 = vpop.f32.mrf.mxu0
        %v769 = vadd.f32 0.0, %v768
        %v770 = vpop.f32.mrf.mxu0
        %v771 = vadd.f32 0.0, %v770
        %772 = vmatmul.bf16.gmra.mxu0 %v732
        %v773 = vpop.f32.mrf.mxu0
        %v774 = vadd.f32 0.0, %v773
        %v775 = vpop.f32.mrf.mxu0
        %v776 = vadd.f32 0.0, %v775
        %777 = vmatmul.bf16.gmra.mxu0 %v733
        %v778 = vpop.f32.mrf.mxu0
        %v779 = vadd.f32 0.0, %v778
        %v780 = vpop.f32.mrf.mxu0
        %v781 = vadd.f32 0.0, %v780
        %782 = vmatmul.bf16.gmra.mxu0 %v734
        %v783 = vpop.f32.mrf.mxu0
        %v784 = vadd.f32 0.0, %v783
        %v785 = vpop.f32.mrf.mxu0
        %v786 = vadd.f32 0.0, %v785
        %787 = vmatmul.bf16.gmra.mxu0 %v735
        %v788 = vpop.f32.mrf.mxu0
        %v789 = vadd.f32 0.0, %v788
        %v790 = vpop.f32.mrf.mxu0
        %v791 = vadd.f32 0.0, %v790
        %792 = vdwg.mxu0
        %v793 = vmul.f32 %v754, %v754
        %v794 = vmul.f32 %v756, %v756
        %v795 = vmul.f32 %v759, %v759
        %v796 = vmul.f32 %v761, %v761
        %v797 = vmul.f32 %v764, %v764
        %v798 = vmul.f32 %v766, %v766
        %v799 = vmul.f32 %v769, %v769
        %v800 = vmul.f32 %v771, %v771
        %v801 = vmul.f32 %v774, %v774
        %v802 = vmul.f32 %v776, %v776
        %v803 = vmul.f32 %v779, %v779
        %v804 = vmul.f32 %v781, %v781
        %v805 = vmul.f32 %v784, %v784
        %v806 = vmul.f32 %v786, %v786
        %v807 = vmul.f32 %v789, %v789
        %v808 = vmul.f32 %v791, %v791
        %809 = vadd.xlane.f32.xlu0 %v793
        %v810 = vpop.xlane.xlu0 %809
        %811 = vadd.xlane.f32.xlu0 %v794
        %v812 = vpop.xlane.xlu0 %811
        %813 = vadd.xlane.f32.xlu0 %v795
        %v814 = vpop.xlane.xlu0 %813
        %815 = vadd.xlane.f32.xlu0 %v796
        %v816 = vpop.xlane.xlu0 %815
        %817 = vadd.xlane.f32.xlu0 %v797
        %v818 = vpop.xlane.xlu0 %817
        %819 = vadd.xlane.f32.xlu0 %v798
        %v820 = vpop.xlane.xlu0 %819
        %821 = vadd.xlane.f32.xlu0 %v799
        %v822 = vpop.xlane.xlu0 %821
        %823 = vadd.xlane.f32.xlu0 %v800
        %v824 = vpop.xlane.xlu0 %823
        %825 = vadd.xlane.f32.xlu0 %v801
        %v826 = vpop.xlane.xlu0 %825
        %827 = vadd.xlane.f32.xlu0 %v802
        %v828 = vpop.xlane.xlu0 %827
        %829 = vadd.xlane.f32.xlu0 %v803
        %v830 = vpop.xlane.xlu0 %829
        %831 = vadd.xlane.f32.xlu0 %v804
        %v832 = vpop.xlane.xlu0 %831
        %833 = vadd.xlane.f32.xlu0 %v805
        %v834 = vpop.xlane.xlu0 %833
        %835 = vadd.xlane.f32.xlu0 %v806
        %v836 = vpop.xlane.xlu0 %835
        %837 = vadd.xlane.f32.xlu0 %v807
        %v838 = vpop.xlane.xlu0 %837
        %839 = vadd.xlane.f32.xlu0 %v808
        %v840 = vpop.xlane.xlu0 %839
        %v841 = vrsqrt.pop %v810
        %v842 = vmul.f32 %v841, %v810
        %v843 = vmul.f32 %v842, %v841
        %v844 = vmul.f32 0.5, %v843
        %v845 = vsub.f32 1.5, %v844
        %v846 = vmul.f32 %v841, %v845
        %vm847 = vweird.f32 %v810
        %vm848 = vweird.f32 %v841
        %vm849 = vmor %vm847, %vm848
        %v850 = vsel %vm849, %v841, %v846
        %v851 = vrsqrt.pop %v812
        %v852 = vmul.f32 %v851, %v812
        %v853 = vmul.f32 %v852, %v851
        %v854 = vmul.f32 0.5, %v853
        %v855 = vsub.f32 1.5, %v854
        %v856 = vmul.f32 %v851, %v855
        %vm857 = vweird.f32 %v812
        %vm858 = vweird.f32 %v851
        %vm859 = vmor %vm857, %vm858
        %v860 = vsel %vm859, %v851, %v856
        %v861 = vrsqrt.pop %v814
        %v862 = vmul.f32 %v861, %v814
        %v863 = vmul.f32 %v862, %v861
        %v864 = vmul.f32 0.5, %v863
        %v865 = vsub.f32 1.5, %v864
        %v866 = vmul.f32 %v861, %v865
        %vm867 = vweird.f32 %v814
        %vm868 = vweird.f32 %v861
        %vm869 = vmor %vm867, %vm868
        %v870 = vsel %vm869, %v861, %v866
        %v871 = vrsqrt.pop %v816
        %v872 = vmul.f32 %v871, %v816
        %v873 = vmul.f32 %v872, %v871
        %v874 = vmul.f32 0.5, %v873
        %v875 = vsub.f32 1.5, %v874
        %v876 = vmul.f32 %v871, %v875
        %vm877 = vweird.f32 %v816
        %vm878 = vweird.f32 %v871
        %vm879 = vmor %vm877, %vm878
        %v880 = vsel %vm879, %v871, %v876
        %v881 = vrsqrt.pop %v818
        %v882 = vmul.f32 %v881, %v818
        %v883 = vmul.f32 %v882, %v881
        %v884 = vmul.f32 0.5, %v883
        %v885 = vsub.f32 1.5, %v884
        %v886 = vmul.f32 %v881, %v885
        %vm887 = vweird.f32 %v818
        %vm888 = vweird.f32 %v881
        %vm889 = vmor %vm887, %vm888
        %v890 = vsel %vm889, %v881, %v886
        %v891 = vrsqrt.pop %v820
        %v892 = vmul.f32 %v891, %v820
        %v893 = vmul.f32 %v892, %v891
        %v894 = vmul.f32 0.5, %v893
        %v895 = vsub.f32 1.5, %v894
        %v896 = vmul.f32 %v891, %v895
        %vm897 = vweird.f32 %v820
        %vm898 = vweird.f32 %v891
        %vm899 = vmor %vm897, %vm898
        %v900 = vsel %vm899, %v891, %v896
        %v901 = vrsqrt.pop %v822
        %v902 = vmul.f32 %v901, %v822
        %v903 = vmul.f32 %v902, %v901
        %v904 = vmul.f32 0.5, %v903
        %v905 = vsub.f32 1.5, %v904
        %v906 = vmul.f32 %v901, %v905
        %vm907 = vweird.f32 %v822
        %vm908 = vweird.f32 %v901
        %vm909 = vmor %vm907, %vm908
        %v910 = vsel %vm909, %v901, %v906
        %v911 = vrsqrt.pop %v824
        %v912 = vmul.f32 %v911, %v824
        %v913 = vmul.f32 %v912, %v911
        %v914 = vmul.f32 0.5, %v913
        %v915 = vsub.f32 1.5, %v914
        %v916 = vmul.f32 %v911, %v915
        %vm917 = vweird.f32 %v824
        %vm918 = vweird.f32 %v911
        %vm919 = vmor %vm917, %vm918
        %v920 = vsel %vm919, %v911, %v916
        %v921 = vrsqrt.pop %v826
        %v922 = vmul.f32 %v921, %v826
        %v923 = vmul.f32 %v922, %v921
        %v924 = vmul.f32 0.5, %v923
        %v925 = vsub.f32 1.5, %v924
        %v926 = vmul.f32 %v921, %v925
        %vm927 = vweird.f32 %v826
        %vm928 = vweird.f32 %v921
        %vm929 = vmor %vm927, %vm928
        %v930 = vsel %vm929, %v921, %v926
        %v931 = vrsqrt.pop %v828
        %v932 = vmul.f32 %v931, %v828
        %v933 = vmul.f32 %v932, %v931
        %v934 = vmul.f32 0.5, %v933
        %v935 = vsub.f32 1.5, %v934
        %v936 = vmul.f32 %v931, %v935
        %vm937 = vweird.f32 %v828
        %vm938 = vweird.f32 %v931
        %vm939 = vmor %vm937, %vm938
        %v940 = vsel %vm939, %v931, %v936
        %v941 = vrsqrt.pop %v830
        %v942 = vmul.f32 %v941, %v830
        %v943 = vmul.f32 %v942, %v941
        %v944 = vmul.f32 0.5, %v943
        %v945 = vsub.f32 1.5, %v944
        %v946 = vmul.f32 %v941, %v945
        %vm947 = vweird.f32 %v830
        %vm948 = vweird.f32 %v941
        %vm949 = vmor %vm947, %vm948
        %v950 = vsel %vm949, %v941, %v946
        %v951 = vrsqrt.pop %v832
        %v952 = vmul.f32 %v951, %v832
        %v953 = vmul.f32 %v952, %v951
        %v954 = vmul.f32 0.5, %v953
        %v955 = vsub.f32 1.5, %v954
        %v956 = vmul.f32 %v951, %v955
        %vm957 = vweird.f32 %v832
        %vm958 = vweird.f32 %v951
        %vm959 = vmor %vm957, %vm958
        %v960 = vsel %vm959, %v951, %v956
        %v961 = vrsqrt.pop %v834
        %v962 = vmul.f32 %v961, %v834
        %v963 = vmul.f32 %v962, %v961
        %v964 = vmul.f32 0.5, %v963
        %v965 = vsub.f32 1.5, %v964
        %v966 = vmul.f32 %v961, %v965
        %vm967 = vweird.f32 %v834
        %vm968 = vweird.f32 %v961
        %vm969 = vmor %vm967, %vm968
        %v970 = vsel %vm969, %v961, %v966
        %v971 = vrsqrt.pop %v836
        %v972 = vmul.f32 %v971, %v836
        %v973 = vmul.f32 %v972, %v971
        %v974 = vmul.f32 0.5, %v973
        %v975 = vsub.f32 1.5, %v974
        %v976 = vmul.f32 %v971, %v975
        %vm977 = vweird.f32 %v836
        %vm978 = vweird.f32 %v971
        %vm979 = vmor %vm977, %vm978
        %v980 = vsel %vm979, %v971, %v976
        %v981 = vrsqrt.pop %v838
        %v982 = vmul.f32 %v981, %v838
        %v983 = vmul.f32 %v982, %v981
        %v984 = vmul.f32 0.5, %v983
        %v985 = vsub.f32 1.5, %v984
        %v986 = vmul.f32 %v981, %v985
        %vm987 = vweird.f32 %v838
        %vm988 = vweird.f32 %v981
        %vm989 = vmor %vm987, %vm988
        %v990 = vsel %vm989, %v981, %v986
        %v991 = vrsqrt.pop %v840
        %v992 = vmul.f32 %v991, %v840
        %v993 = vmul.f32 %v992, %v991
        %v994 = vmul.f32 0.5, %v993
        %v995 = vsub.f32 1.5, %v994
        %v996 = vmul.f32 %v991, %v995
        %vm997 = vweird.f32 %v840
        %vm998 = vweird.f32 %v991
        %vm999 = vmor %vm997, %vm998
        %v1000 = vsel %vm999, %v991, %v996
        %v1001 = vmul.f32 %v754, %v850
        %v1002 = vmul.f32 %v756, %v860
        %v1003 = vmul.f32 %v759, %v870
        %v1004 = vmul.f32 %v761, %v880
        %v1005 = vmul.f32 %v764, %v890
        %v1006 = vmul.f32 %v766, %v900
        %v1007 = vmul.f32 %v769, %v910
        %v1008 = vmul.f32 %v771, %v920
        %v1009 = vmul.f32 %v774, %v930
        %v1010 = vmul.f32 %v776, %v940
        %v1011 = vmul.f32 %v779, %v950
        %v1012 = vmul.f32 %v781, %v960
        %v1013 = vmul.f32 %v784, %v970
        %v1014 = vmul.f32 %v786, %v980
        %v1015 = vmul.f32 %v789, %v990
        %v1016 = vmul.f32 %v791, %v1000
        %v1017 = vadd.f32 %v663, %v1001
        %v1018 = vadd.f32 %v664, %v1002
        %v1019 = vadd.f32 %v665, %v1003
        %v1020 = vadd.f32 %v666, %v1004
        %v1021 = vadd.f32 %v667, %v1005
        %v1022 = vadd.f32 %v668, %v1006
        %v1023 = vadd.f32 %v669, %v1007
        %v1024 = vadd.f32 %v670, %v1008
        %v1025 = vadd.f32 %v671, %v1009
        %v1026 = vadd.f32 %v672, %v1010
        %v1027 = vadd.f32 %v673, %v1011
        %v1028 = vadd.f32 %v674, %v1012
        %v1029 = vadd.f32 %v675, %v1013
        %v1030 = vadd.f32 %v676, %v1014
        %v1031 = vadd.f32 %v677, %v1015
        %v1032 = vadd.f32 %v678, %v1016
        %s1033 = scalar_lea.vmem %s196, 128 [#allocation2]
        %v1034 = vld [vmem:[%s1033] sm:$0xf]
        %v1035 = vld [vmem:[%s1033 + $0x4] sm:$0xf]
        %v1036 = vld [vmem:[%s1033 + $0x8] sm:$0xf]
        %v1037 = vld [vmem:[%s1033 + $0xc] sm:$0xf]
        %v1038 = vld [vmem:[%s1033 + $0x10] sm:$0xf]
        %v1039 = vld [vmem:[%s1033 + $0x14] sm:$0xf]
        %v1040 = vld [vmem:[%s1033 + $0x18] sm:$0xf]
        %v1041 = vld [vmem:[%s1033 + $0x1c] sm:$0xf]
        %v1042 = vld [vmem:[%s1033 + $0x20] sm:$0xf]
        %v1043 = vld [vmem:[%s1033 + $0x24] sm:$0xf]
        %v1044 = vld [vmem:[%s1033 + $0x28] sm:$0xf]
        %v1045 = vld [vmem:[%s1033 + $0x2c] sm:$0xf]
        %v1046 = vld [vmem:[%s1033 + $0x30] sm:$0xf]
        %v1047 = vld [vmem:[%s1033 + $0x34] sm:$0xf]
        %v1048 = vld [vmem:[%s1033 + $0x38] sm:$0xf]
        %v1049 = vld [vmem:[%s1033 + $0x3c] sm:$0xf]
        %v1066 = vunpack.c.l.b16 %v1034
        %v1067 = vunpack.c.l.b16 %v1035
        %v1068 = vunpack.c.l.b16 %v1036
        %v1069 = vunpack.c.l.b16 %v1037
        %v1070 = vunpack.c.l.b16 %v1038
        %v1071 = vunpack.c.l.b16 %v1039
        %v1072 = vunpack.c.l.b16 %v1040
        %v1073 = vunpack.c.l.b16 %v1041
        %v1074 = vunpack.c.l.b16 %v1042
        %v1075 = vunpack.c.l.b16 %v1043
        %v1076 = vunpack.c.l.b16 %v1044
        %v1077 = vunpack.c.l.b16 %v1045
        %v1078 = vunpack.c.l.b16 %v1046
        %v1079 = vunpack.c.l.b16 %v1047
        %v1080 = vunpack.c.l.b16 %v1048
        %v1081 = vunpack.c.l.b16 %v1049
        %v1082 = vpack.c.b16 %v1067, %v1066
        %v1083 = vpack.c.b16 %v1069, %v1068
        %v1084 = vpack.c.b16 %v1071, %v1070
        %v1085 = vpack.c.b16 %v1073, %v1072
        %v1086 = vpack.c.b16 %v1075, %v1074
        %v1087 = vpack.c.b16 %v1077, %v1076
        %v1088 = vpack.c.b16 %v1079, %v1078
        %v1089 = vpack.c.b16 %v1081, %v1080
        %1098 = vmatpush.bf16.msra.mxu0 %v381
        %1099 = vmatpush.bf16.msra.mxu0 %v380
        %1100 = vmatpush.bf16.msra.mxu0 %v379
        %1101 = vmatpush.bf16.msra.mxu0 %v378
        %1102 = vmatpush.bf16.msra.mxu0 %v377
        %1103 = vmatpush.bf16.msra.mxu0 %v376
        %1104 = vmatpush.bf16.msra.mxu0 %v375
        %1105 = vmatpush.bf16.msra.mxu0 %v374
        %1106 = vmatmul.bf16.gmra.mxu0 %v1082
        %v1107 = vpop.f32.mrf.mxu0
        %v1108 = vadd.f32 0.0, %v1107
        %v1109 = vpop.f32.mrf.mxu0
        %v1110 = vadd.f32 0.0, %v1109
        %1111 = vmatmul.bf16.gmra.mxu0 %v1083
        %v1112 = vpop.f32.mrf.mxu0
        %v1113 = vadd.f32 0.0, %v1112
        %v1114 = vpop.f32.mrf.mxu0
        %v1115 = vadd.f32 0.0, %v1114
        %1116 = vmatmul.bf16.gmra.mxu0 %v1084
        %v1117 = vpop.f32.mrf.mxu0
        %v1118 = vadd.f32 0.0, %v1117
        %v1119 = vpop.f32.mrf.mxu0
        %v1120 = vadd.f32 0.0, %v1119
        %1121 = vmatmul.bf16.gmra.mxu0 %v1085
        %v1122 = vpop.f32.mrf.mxu0
        %v1123 = vadd.f32 0.0, %v1122
        %v1124 = vpop.f32.mrf.mxu0
        %v1125 = vadd.f32 0.0, %v1124
        %1126 = vmatmul.bf16.gmra.mxu0 %v1086
        %v1127 = vpop.f32.mrf.mxu0
        %v1128 = vadd.f32 0.0, %v1127
        %v1129 = vpop.f32.mrf.mxu0
        %v1130 = vadd.f32 0.0, %v1129
        %1131 = vmatmul.bf16.gmra.mxu0 %v1087
        %v1132 = vpop.f32.mrf.mxu0
        %v1133 = vadd.f32 0.0, %v1132
        %v1134 = vpop.f32.mrf.mxu0
        %v1135 = vadd.f32 0.0, %v1134
        %1136 = vmatmul.bf16.gmra.mxu0 %v1088
        %v1137 = vpop.f32.mrf.mxu0
        %v1138 = vadd.f32 0.0, %v1137
        %v1139 = vpop.f32.mrf.mxu0
        %v1140 = vadd.f32 0.0, %v1139
        %1141 = vmatmul.bf16.gmra.mxu0 %v1089
        %v1142 = vpop.f32.mrf.mxu0
        %v1143 = vadd.f32 0.0, %v1142
        %v1144 = vpop.f32.mrf.mxu0
        %v1145 = vadd.f32 0.0, %v1144
        %1146 = vdwg.mxu0
        %v1147 = vmul.f32 %v1108, %v1108
        %v1148 = vmul.f32 %v1110, %v1110
        %v1149 = vmul.f32 %v1113, %v1113
        %v1150 = vmul.f32 %v1115, %v1115
        %v1151 = vmul.f32 %v1118, %v1118
        %v1152 = vmul.f32 %v1120, %v1120
        %v1153 = vmul.f32 %v1123, %v1123
        %v1154 = vmul.f32 %v1125, %v1125
        %v1155 = vmul.f32 %v1128, %v1128
        %v1156 = vmul.f32 %v1130, %v1130
        %v1157 = vmul.f32 %v1133, %v1133
        %v1158 = vmul.f32 %v1135, %v1135
        %v1159 = vmul.f32 %v1138, %v1138
        %v1160 = vmul.f32 %v1140, %v1140
        %v1161 = vmul.f32 %v1143, %v1143
        %v1162 = vmul.f32 %v1145, %v1145
        %1163 = vadd.xlane.f32.xlu0 %v1147
        %v1164 = vpop.xlane.xlu0 %1163
        %1165 = vadd.xlane.f32.xlu0 %v1148
        %v1166 = vpop.xlane.xlu0 %1165
        %1167 = vadd.xlane.f32.xlu0 %v1149
        %v1168 = vpop.xlane.xlu0 %1167
        %1169 = vadd.xlane.f32.xlu0 %v1150
        %v1170 = vpop.xlane.xlu0 %1169
        %1171 = vadd.xlane.f32.xlu0 %v1151
        %v1172 = vpop.xlane.xlu0 %1171
        %1173 = vadd.xlane.f32.xlu0 %v1152
        %v1174 = vpop.xlane.xlu0 %1173
        %1175 = vadd.xlane.f32.xlu0 %v1153
        %v1176 = vpop.xlane.xlu0 %1175
        %1177 = vadd.xlane.f32.xlu0 %v1154
        %v1178 = vpop.xlane.xlu0 %1177
        %1179 = vadd.xlane.f32.xlu0 %v1155
        %v1180 = vpop.xlane.xlu0 %1179
        %1181 = vadd.xlane.f32.xlu0 %v1156
        %v1182 = vpop.xlane.xlu0 %1181
        %1183 = vadd.xlane.f32.xlu0 %v1157
        %v1184 = vpop.xlane.xlu0 %1183
        %1185 = vadd.xlane.f32.xlu0 %v1158
        %v1186 = vpop.xlane.xlu0 %1185
        %1187 = vadd.xlane.f32.xlu0 %v1159
        %v1188 = vpop.xlane.xlu0 %1187
        %1189 = vadd.xlane.f32.xlu0 %v1160
        %v1190 = vpop.xlane.xlu0 %1189
        %1191 = vadd.xlane.f32.xlu0 %v1161
        %v1192 = vpop.xlane.xlu0 %1191
        %1193 = vadd.xlane.f32.xlu0 %v1162
        %v1194 = vpop.xlane.xlu0 %1193
        %v1195 = vrsqrt.pop %v1164
        %v1196 = vmul.f32 %v1195, %v1164
        %v1197 = vmul.f32 %v1196, %v1195
        %v1198 = vmul.f32 0.5, %v1197
        %v1199 = vsub.f32 1.5, %v1198
        %v1200 = vmul.f32 %v1195, %v1199
        %vm1201 = vweird.f32 %v1164
        %vm1202 = vweird.f32 %v1195
        %vm1203 = vmor %vm1201, %vm1202
        %v1204 = vsel %vm1203, %v1195, %v1200
        %v1205 = vrsqrt.pop %v1166
        %v1206 = vmul.f32 %v1205, %v1166
        %v1207 = vmul.f32 %v1206, %v1205
        %v1208 = vmul.f32 0.5, %v1207
        %v1209 = vsub.f32 1.5, %v1208
        %v1210 = vmul.f32 %v1205, %v1209
        %vm1211 = vweird.f32 %v1166
        %vm1212 = vweird.f32 %v1205
        %vm1213 = vmor %vm1211, %vm1212
        %v1214 = vsel %vm1213, %v1205, %v1210
        %v1215 = vrsqrt.pop %v1168
        %v1216 = vmul.f32 %v1215, %v1168
        %v1217 = vmul.f32 %v1216, %v1215
        %v1218 = vmul.f32 0.5, %v1217
        %v1219 = vsub.f32 1.5, %v1218
        %v1220 = vmul.f32 %v1215, %v1219
        %vm1221 = vweird.f32 %v1168
        %vm1222 = vweird.f32 %v1215
        %vm1223 = vmor %vm1221, %vm1222
        %v1224 = vsel %vm1223, %v1215, %v1220
        %v1225 = vrsqrt.pop %v1170
        %v1226 = vmul.f32 %v1225, %v1170
        %v1227 = vmul.f32 %v1226, %v1225
        %v1228 = vmul.f32 0.5, %v1227
        %v1229 = vsub.f32 1.5, %v1228
        %v1230 = vmul.f32 %v1225, %v1229
        %vm1231 = vweird.f32 %v1170
        %vm1232 = vweird.f32 %v1225
        %vm1233 = vmor %vm1231, %vm1232
        %v1234 = vsel %vm1233, %v1225, %v1230
        %v1235 = vrsqrt.pop %v1172
        %v1236 = vmul.f32 %v1235, %v1172
        %v1237 = vmul.f32 %v1236, %v1235
        %v1238 = vmul.f32 0.5, %v1237
        %v1239 = vsub.f32 1.5, %v1238
        %v1240 = vmul.f32 %v1235, %v1239
        %vm1241 = vweird.f32 %v1172
        %vm1242 = vweird.f32 %v1235
        %vm1243 = vmor %vm1241, %vm1242
        %v1244 = vsel %vm1243, %v1235, %v1240
        %v1245 = vrsqrt.pop %v1174
        %v1246 = vmul.f32 %v1245, %v1174
        %v1247 = vmul.f32 %v1246, %v1245
        %v1248 = vmul.f32 0.5, %v1247
        %v1249 = vsub.f32 1.5, %v1248
        %v1250 = vmul.f32 %v1245, %v1249
        %vm1251 = vweird.f32 %v1174
        %vm1252 = vweird.f32 %v1245
        %vm1253 = vmor %vm1251, %vm1252
        %v1254 = vsel %vm1253, %v1245, %v1250
        %v1255 = vrsqrt.pop %v1176
        %v1256 = vmul.f32 %v1255, %v1176
        %v1257 = vmul.f32 %v1256, %v1255
        %v1258 = vmul.f32 0.5, %v1257
        %v1259 = vsub.f32 1.5, %v1258
        %v1260 = vmul.f32 %v1255, %v1259
        %vm1261 = vweird.f32 %v1176
        %vm1262 = vweird.f32 %v1255
        %vm1263 = vmor %vm1261, %vm1262
        %v1264 = vsel %vm1263, %v1255, %v1260
        %v1265 = vrsqrt.pop %v1178
        %v1266 = vmul.f32 %v1265, %v1178
        %v1267 = vmul.f32 %v1266, %v1265
        %v1268 = vmul.f32 0.5, %v1267
        %v1269 = vsub.f32 1.5, %v1268
        %v1270 = vmul.f32 %v1265, %v1269
        %vm1271 = vweird.f32 %v1178
        %vm1272 = vweird.f32 %v1265
        %vm1273 = vmor %vm1271, %vm1272
        %v1274 = vsel %vm1273, %v1265, %v1270
        %v1275 = vrsqrt.pop %v1180
        %v1276 = vmul.f32 %v1275, %v1180
        %v1277 = vmul.f32 %v1276, %v1275
        %v1278 = vmul.f32 0.5, %v1277
        %v1279 = vsub.f32 1.5, %v1278
        %v1280 = vmul.f32 %v1275, %v1279
        %vm1281 = vweird.f32 %v1180
        %vm1282 = vweird.f32 %v1275
        %vm1283 = vmor %vm1281, %vm1282
        %v1284 = vsel %vm1283, %v1275, %v1280
        %v1285 = vrsqrt.pop %v1182
        %v1286 = vmul.f32 %v1285, %v1182
        %v1287 = vmul.f32 %v1286, %v1285
        %v1288 = vmul.f32 0.5, %v1287
        %v1289 = vsub.f32 1.5, %v1288
        %v1290 = vmul.f32 %v1285, %v1289
        %vm1291 = vweird.f32 %v1182
        %vm1292 = vweird.f32 %v1285
        %vm1293 = vmor %vm1291, %vm1292
        %v1294 = vsel %vm1293, %v1285, %v1290
        %v1295 = vrsqrt.pop %v1184
        %v1296 = vmul.f32 %v1295, %v1184
        %v1297 = vmul.f32 %v1296, %v1295
        %v1298 = vmul.f32 0.5, %v1297
        %v1299 = vsub.f32 1.5, %v1298
        %v1300 = vmul.f32 %v1295, %v1299
        %vm1301 = vweird.f32 %v1184
        %vm1302 = vweird.f32 %v1295
        %vm1303 = vmor %vm1301, %vm1302
        %v1304 = vsel %vm1303, %v1295, %v1300
        %v1305 = vrsqrt.pop %v1186
        %v1306 = vmul.f32 %v1305, %v1186
        %v1307 = vmul.f32 %v1306, %v1305
        %v1308 = vmul.f32 0.5, %v1307
        %v1309 = vsub.f32 1.5, %v1308
        %v1310 = vmul.f32 %v1305, %v1309
        %vm1311 = vweird.f32 %v1186
        %vm1312 = vweird.f32 %v1305
        %vm1313 = vmor %vm1311, %vm1312
        %v1314 = vsel %vm1313, %v1305, %v1310
        %v1315 = vrsqrt.pop %v1188
        %v1316 = vmul.f32 %v1315, %v1188
        %v1317 = vmul.f32 %v1316, %v1315
        %v1318 = vmul.f32 0.5, %v1317
        %v1319 = vsub.f32 1.5, %v1318
        %v1320 = vmul.f32 %v1315, %v1319
        %vm1321 = vweird.f32 %v1188
        %vm1322 = vweird.f32 %v1315
        %vm1323 = vmor %vm1321, %vm1322
        %v1324 = vsel %vm1323, %v1315, %v1320
        %v1325 = vrsqrt.pop %v1190
        %v1326 = vmul.f32 %v1325, %v1190
        %v1327 = vmul.f32 %v1326, %v1325
        %v1328 = vmul.f32 0.5, %v1327
        %v1329 = vsub.f32 1.5, %v1328
        %v1330 = vmul.f32 %v1325, %v1329
        %vm1331 = vweird.f32 %v1190
        %vm1332 = vweird.f32 %v1325
        %vm1333 = vmor %vm1331, %vm1332
        %v1334 = vsel %vm1333, %v1325, %v1330
        %v1335 = vrsqrt.pop %v1192
        %v1336 = vmul.f32 %v1335, %v1192
        %v1337 = vmul.f32 %v1336, %v1335
        %v1338 = vmul.f32 0.5, %v1337
        %v1339 = vsub.f32 1.5, %v1338
        %v1340 = vmul.f32 %v1335, %v1339
        %vm1341 = vweird.f32 %v1192
        %vm1342 = vweird.f32 %v1335
        %vm1343 = vmor %vm1341, %vm1342
        %v1344 = vsel %vm1343, %v1335, %v1340
        %v1345 = vrsqrt.pop %v1194
        %v1346 = vmul.f32 %v1345, %v1194
        %v1347 = vmul.f32 %v1346, %v1345
        %v1348 = vmul.f32 0.5, %v1347
        %v1349 = vsub.f32 1.5, %v1348
        %v1350 = vmul.f32 %v1345, %v1349
        %vm1351 = vweird.f32 %v1194
        %vm1352 = vweird.f32 %v1345
        %vm1353 = vmor %vm1351, %vm1352
        %v1354 = vsel %vm1353, %v1345, %v1350
        %v1355 = vmul.f32 %v1108, %v1204
        %v1356 = vmul.f32 %v1110, %v1214
        %v1357 = vmul.f32 %v1113, %v1224
        %v1358 = vmul.f32 %v1115, %v1234
        %v1359 = vmul.f32 %v1118, %v1244
        %v1360 = vmul.f32 %v1120, %v1254
        %v1361 = vmul.f32 %v1123, %v1264
        %v1362 = vmul.f32 %v1125, %v1274
        %v1363 = vmul.f32 %v1128, %v1284
        %v1364 = vmul.f32 %v1130, %v1294
        %v1365 = vmul.f32 %v1133, %v1304
        %v1366 = vmul.f32 %v1135, %v1314
        %v1367 = vmul.f32 %v1138, %v1324
        %v1368 = vmul.f32 %v1140, %v1334
        %v1369 = vmul.f32 %v1143, %v1344
        %v1370 = vmul.f32 %v1145, %v1354
        %v1371 = vadd.f32 %v1017, %v1355
        %v1372 = vadd.f32 %v1018, %v1356
        %v1373 = vadd.f32 %v1019, %v1357
        %v1374 = vadd.f32 %v1020, %v1358
        %v1375 = vadd.f32 %v1021, %v1359
        %v1376 = vadd.f32 %v1022, %v1360
        %v1377 = vadd.f32 %v1023, %v1361
        %v1378 = vadd.f32 %v1024, %v1362
        %v1379 = vadd.f32 %v1025, %v1363
        %v1380 = vadd.f32 %v1026, %v1364
        %v1381 = vadd.f32 %v1027, %v1365
        %v1382 = vadd.f32 %v1028, %v1366
        %v1383 = vadd.f32 %v1029, %v1367
        %v1384 = vadd.f32 %v1030, %v1368
        %v1385 = vadd.f32 %v1031, %v1369
        %v1386 = vadd.f32 %v1032, %v1370
        %s1387 = scalar_lea.vmem %s196, 192 [#allocation2]
        %v1388 = vld [vmem:[%s1387] sm:$0xf]
        %v1389 = vld [vmem:[%s1387 + $0x4] sm:$0xf]
        %v1390 = vld [vmem:[%s1387 + $0x8] sm:$0xf]
        %v1391 = vld [vmem:[%s1387 + $0xc] sm:$0xf]
        %v1392 = vld [vmem:[%s1387 + $0x10] sm:$0xf]
        %v1393 = vld [vmem:[%s1387 + $0x14] sm:$0xf]
        %v1394 = vld [vmem:[%s1387 + $0x18] sm:$0xf]
        %v1395 = vld [vmem:[%s1387 + $0x1c] sm:$0xf]
        %v1396 = vld [vmem:[%s1387 + $0x20] sm:$0xf]
        %v1397 = vld [vmem:[%s1387 + $0x24] sm:$0xf]
        %v1398 = vld [vmem:[%s1387 + $0x28] sm:$0xf]
        %v1399 = vld [vmem:[%s1387 + $0x2c] sm:$0xf]
        %v1400 = vld [vmem:[%s1387 + $0x30] sm:$0xf]
        %v1401 = vld [vmem:[%s1387 + $0x34] sm:$0xf]
        %v1402 = vld [vmem:[%s1387 + $0x38] sm:$0xf]
        %v1403 = vld [vmem:[%s1387 + $0x3c] sm:$0xf]
        %v1420 = vunpack.c.l.b16 %v1388
        %v1421 = vunpack.c.l.b16 %v1389
        %v1422 = vunpack.c.l.b16 %v1390
        %v1423 = vunpack.c.l.b16 %v1391
        %v1424 = vunpack.c.l.b16 %v1392
        %v1425 = vunpack.c.l.b16 %v1393
        %v1426 = vunpack.c.l.b16 %v1394
        %v1427 = vunpack.c.l.b16 %v1395
        %v1428 = vunpack.c.l.b16 %v1396
        %v1429 = vunpack.c.l.b16 %v1397
        %v1430 = vunpack.c.l.b16 %v1398
        %v1431 = vunpack.c.l.b16 %v1399
        %v1432 = vunpack.c.l.b16 %v1400
        %v1433 = vunpack.c.l.b16 %v1401
        %v1434 = vunpack.c.l.b16 %v1402
        %v1435 = vunpack.c.l.b16 %v1403
        %v1436 = vpack.c.b16 %v1421, %v1420
        %v1437 = vpack.c.b16 %v1423, %v1422
        %v1438 = vpack.c.b16 %v1425, %v1424
        %v1439 = vpack.c.b16 %v1427, %v1426
        %v1440 = vpack.c.b16 %v1429, %v1428
        %v1441 = vpack.c.b16 %v1431, %v1430
        %v1442 = vpack.c.b16 %v1433, %v1432
        %v1443 = vpack.c.b16 %v1435, %v1434
        %1452 = vmatpush.bf16.msra.mxu0 %v381
        %1453 = vmatpush.bf16.msra.mxu0 %v380
        %1454 = vmatpush.bf16.msra.mxu0 %v379
        %1455 = vmatpush.bf16.msra.mxu0 %v378
        %1456 = vmatpush.bf16.msra.mxu0 %v377
        %1457 = vmatpush.bf16.msra.mxu0 %v376
        %1458 = vmatpush.bf16.msra.mxu0 %v375
        %1459 = vmatpush.bf16.msra.mxu0 %v374
        %1460 = vmatmul.bf16.gmra.mxu0 %v1436
        %v1461 = vpop.f32.mrf.mxu0
        %v1462 = vadd.f32 0.0, %v1461
        %v1463 = vpop.f32.mrf.mxu0
        %v1464 = vadd.f32 0.0, %v1463
        %1465 = vmatmul.bf16.gmra.mxu0 %v1437
        %v1466 = vpop.f32.mrf.mxu0
        %v1467 = vadd.f32 0.0, %v1466
        %v1468 = vpop.f32.mrf.mxu0
        %v1469 = vadd.f32 0.0, %v1468
        %1470 = vmatmul.bf16.gmra.mxu0 %v1438
        %v1471 = vpop.f32.mrf.mxu0
        %v1472 = vadd.f32 0.0, %v1471
        %v1473 = vpop.f32.mrf.mxu0
        %v1474 = vadd.f32 0.0, %v1473
        %1475 = vmatmul.bf16.gmra.mxu0 %v1439
        %v1476 = vpop.f32.mrf.mxu0
        %v1477 = vadd.f32 0.0, %v1476
        %v1478 = vpop.f32.mrf.mxu0
        %v1479 = vadd.f32 0.0, %v1478
        %1480 = vmatmul.bf16.gmra.mxu0 %v1440
        %v1481 = vpop.f32.mrf.mxu0
        %v1482 = vadd.f32 0.0, %v1481
        %v1483 = vpop.f32.mrf.mxu0
        %v1484 = vadd.f32 0.0, %v1483
        %1485 = vmatmul.bf16.gmra.mxu0 %v1441
        %v1486 = vpop.f32.mrf.mxu0
        %v1487 = vadd.f32 0.0, %v1486
        %v1488 = vpop.f32.mrf.mxu0
        %v1489 = vadd.f32 0.0, %v1488
        %1490 = vmatmul.bf16.gmra.mxu0 %v1442
        %v1491 = vpop.f32.mrf.mxu0
        %v1492 = vadd.f32 0.0, %v1491
        %v1493 = vpop.f32.mrf.mxu0
        %v1494 = vadd.f32 0.0, %v1493
        %1495 = vmatmul.bf16.gmra.mxu0 %v1443
        %v1496 = vpop.f32.mrf.mxu0
        %v1497 = vadd.f32 0.0, %v1496
        %v1498 = vpop.f32.mrf.mxu0
        %v1499 = vadd.f32 0.0, %v1498
        %1500 = vdwg.mxu0
        %v1501 = vmul.f32 %v1462, %v1462
        %v1502 = vmul.f32 %v1464, %v1464
        %v1503 = vmul.f32 %v1467, %v1467
        %v1504 = vmul.f32 %v1469, %v1469
        %v1505 = vmul.f32 %v1472, %v1472
        %v1506 = vmul.f32 %v1474, %v1474
        %v1507 = vmul.f32 %v1477, %v1477
        %v1508 = vmul.f32 %v1479, %v1479
        %v1509 = vmul.f32 %v1482, %v1482
        %v1510 = vmul.f32 %v1484, %v1484
        %v1511 = vmul.f32 %v1487, %v1487
        %v1512 = vmul.f32 %v1489, %v1489
        %v1513 = vmul.f32 %v1492, %v1492
        %v1514 = vmul.f32 %v1494, %v1494
        %v1515 = vmul.f32 %v1497, %v1497
        %v1516 = vmul.f32 %v1499, %v1499
        %1517 = vadd.xlane.f32.xlu0 %v1501
        %v1518 = vpop.xlane.xlu0 %1517
        %1519 = vadd.xlane.f32.xlu0 %v1502
        %v1520 = vpop.xlane.xlu0 %1519
        %1521 = vadd.xlane.f32.xlu0 %v1503
        %v1522 = vpop.xlane.xlu0 %1521
        %1523 = vadd.xlane.f32.xlu0 %v1504
        %v1524 = vpop.xlane.xlu0 %1523
        %1525 = vadd.xlane.f32.xlu0 %v1505
        %v1526 = vpop.xlane.xlu0 %1525
        %1527 = vadd.xlane.f32.xlu0 %v1506
        %v1528 = vpop.xlane.xlu0 %1527
        %1529 = vadd.xlane.f32.xlu0 %v1507
        %v1530 = vpop.xlane.xlu0 %1529
        %1531 = vadd.xlane.f32.xlu0 %v1508
        %v1532 = vpop.xlane.xlu0 %1531
        %1533 = vadd.xlane.f32.xlu0 %v1509
        %v1534 = vpop.xlane.xlu0 %1533
        %1535 = vadd.xlane.f32.xlu0 %v1510
        %v1536 = vpop.xlane.xlu0 %1535
        %1537 = vadd.xlane.f32.xlu0 %v1511
        %v1538 = vpop.xlane.xlu0 %1537
        %1539 = vadd.xlane.f32.xlu0 %v1512
        %v1540 = vpop.xlane.xlu0 %1539
        %1541 = vadd.xlane.f32.xlu0 %v1513
        %v1542 = vpop.xlane.xlu0 %1541
        %1543 = vadd.xlane.f32.xlu0 %v1514
        %v1544 = vpop.xlane.xlu0 %1543
        %1545 = vadd.xlane.f32.xlu0 %v1515
        %v1546 = vpop.xlane.xlu0 %1545
        %1547 = vadd.xlane.f32.xlu0 %v1516
        %v1548 = vpop.xlane.xlu0 %1547
        %v1549 = vrsqrt.pop %v1518
        %v1550 = vmul.f32 %v1549, %v1518
        %v1551 = vmul.f32 %v1550, %v1549
        %v1552 = vmul.f32 0.5, %v1551
        %v1553 = vsub.f32 1.5, %v1552
        %v1554 = vmul.f32 %v1549, %v1553
        %vm1555 = vweird.f32 %v1518
        %vm1556 = vweird.f32 %v1549
        %vm1557 = vmor %vm1555, %vm1556
        %v1558 = vsel %vm1557, %v1549, %v1554
        %v1559 = vrsqrt.pop %v1520
        %v1560 = vmul.f32 %v1559, %v1520
        %v1561 = vmul.f32 %v1560, %v1559
        %v1562 = vmul.f32 0.5, %v1561
        %v1563 = vsub.f32 1.5, %v1562
        %v1564 = vmul.f32 %v1559, %v1563
        %vm1565 = vweird.f32 %v1520
        %vm1566 = vweird.f32 %v1559
        %vm1567 = vmor %vm1565, %vm1566
        %v1568 = vsel %vm1567, %v1559, %v1564
        %v1569 = vrsqrt.pop %v1522
        %v1570 = vmul.f32 %v1569, %v1522
        %v1571 = vmul.f32 %v1570, %v1569
        %v1572 = vmul.f32 0.5, %v1571
        %v1573 = vsub.f32 1.5, %v1572
        %v1574 = vmul.f32 %v1569, %v1573
        %vm1575 = vweird.f32 %v1522
        %vm1576 = vweird.f32 %v1569
        %vm1577 = vmor %vm1575, %vm1576
        %v1578 = vsel %vm1577, %v1569, %v1574
        %v1579 = vrsqrt.pop %v1524
        %v1580 = vmul.f32 %v1579, %v1524
        %v1581 = vmul.f32 %v1580, %v1579
        %v1582 = vmul.f32 0.5, %v1581
        %v1583 = vsub.f32 1.5, %v1582
        %v1584 = vmul.f32 %v1579, %v1583
        %vm1585 = vweird.f32 %v1524
        %vm1586 = vweird.f32 %v1579
        %vm1587 = vmor %vm1585, %vm1586
        %v1588 = vsel %vm1587, %v1579, %v1584
        %v1589 = vrsqrt.pop %v1526
        %v1590 = vmul.f32 %v1589, %v1526
        %v1591 = vmul.f32 %v1590, %v1589
        %v1592 = vmul.f32 0.5, %v1591
        %v1593 = vsub.f32 1.5, %v1592
        %v1594 = vmul.f32 %v1589, %v1593
        %vm1595 = vweird.f32 %v1526
        %vm1596 = vweird.f32 %v1589
        %vm1597 = vmor %vm1595, %vm1596
        %v1598 = vsel %vm1597, %v1589, %v1594
        %v1599 = vrsqrt.pop %v1528
        %v1600 = vmul.f32 %v1599, %v1528
        %v1601 = vmul.f32 %v1600, %v1599
        %v1602 = vmul.f32 0.5, %v1601
        %v1603 = vsub.f32 1.5, %v1602
        %v1604 = vmul.f32 %v1599, %v1603
        %vm1605 = vweird.f32 %v1528
        %vm1606 = vweird.f32 %v1599
        %vm1607 = vmor %vm1605, %vm1606
        %v1608 = vsel %vm1607, %v1599, %v1604
        %v1609 = vrsqrt.pop %v1530
        %v1610 = vmul.f32 %v1609, %v1530
        %v1611 = vmul.f32 %v1610, %v1609
        %v1612 = vmul.f32 0.5, %v1611
        %v1613 = vsub.f32 1.5, %v1612
        %v1614 = vmul.f32 %v1609, %v1613
        %vm1615 = vweird.f32 %v1530
        %vm1616 = vweird.f32 %v1609
        %vm1617 = vmor %vm1615, %vm1616
        %v1618 = vsel %vm1617, %v1609, %v1614
        %v1619 = vrsqrt.pop %v1532
        %v1620 = vmul.f32 %v1619, %v1532
        %v1621 = vmul.f32 %v1620, %v1619
        %v1622 = vmul.f32 0.5, %v1621
        %v1623 = vsub.f32 1.5, %v1622
        %v1624 = vmul.f32 %v1619, %v1623
        %vm1625 = vweird.f32 %v1532
        %vm1626 = vweird.f32 %v1619
        %vm1627 = vmor %vm1625, %vm1626
        %v1628 = vsel %vm1627, %v1619, %v1624
        %v1629 = vrsqrt.pop %v1534
        %v1630 = vmul.f32 %v1629, %v1534
        %v1631 = vmul.f32 %v1630, %v1629
        %v1632 = vmul.f32 0.5, %v1631
        %v1633 = vsub.f32 1.5, %v1632
        %v1634 = vmul.f32 %v1629, %v1633
        %vm1635 = vweird.f32 %v1534
        %vm1636 = vweird.f32 %v1629
        %vm1637 = vmor %vm1635, %vm1636
        %v1638 = vsel %vm1637, %v1629, %v1634
        %v1639 = vrsqrt.pop %v1536
        %v1640 = vmul.f32 %v1639, %v1536
        %v1641 = vmul.f32 %v1640, %v1639
        %v1642 = vmul.f32 0.5, %v1641
        %v1643 = vsub.f32 1.5, %v1642
        %v1644 = vmul.f32 %v1639, %v1643
        %vm1645 = vweird.f32 %v1536
        %vm1646 = vweird.f32 %v1639
        %vm1647 = vmor %vm1645, %vm1646
        %v1648 = vsel %vm1647, %v1639, %v1644
        %v1649 = vrsqrt.pop %v1538
        %v1650 = vmul.f32 %v1649, %v1538
        %v1651 = vmul.f32 %v1650, %v1649
        %v1652 = vmul.f32 0.5, %v1651
        %v1653 = vsub.f32 1.5, %v1652
        %v1654 = vmul.f32 %v1649, %v1653
        %vm1655 = vweird.f32 %v1538
        %vm1656 = vweird.f32 %v1649
        %vm1657 = vmor %vm1655, %vm1656
        %v1658 = vsel %vm1657, %v1649, %v1654
        %v1659 = vrsqrt.pop %v1540
        %v1660 = vmul.f32 %v1659, %v1540
        %v1661 = vmul.f32 %v1660, %v1659
        %v1662 = vmul.f32 0.5, %v1661
        %v1663 = vsub.f32 1.5, %v1662
        %v1664 = vmul.f32 %v1659, %v1663
        %vm1665 = vweird.f32 %v1540
        %vm1666 = vweird.f32 %v1659
        %vm1667 = vmor %vm1665, %vm1666
        %v1668 = vsel %vm1667, %v1659, %v1664
        %v1669 = vrsqrt.pop %v1542
        %v1670 = vmul.f32 %v1669, %v1542
        %v1671 = vmul.f32 %v1670, %v1669
        %v1672 = vmul.f32 0.5, %v1671
        %v1673 = vsub.f32 1.5, %v1672
        %v1674 = vmul.f32 %v1669, %v1673
        %vm1675 = vweird.f32 %v1542
        %vm1676 = vweird.f32 %v1669
        %vm1677 = vmor %vm1675, %vm1676
        %v1678 = vsel %vm1677, %v1669, %v1674
        %v1679 = vrsqrt.pop %v1544
        %v1680 = vmul.f32 %v1679, %v1544
        %v1681 = vmul.f32 %v1680, %v1679
        %v1682 = vmul.f32 0.5, %v1681
        %v1683 = vsub.f32 1.5, %v1682
        %v1684 = vmul.f32 %v1679, %v1683
        %vm1685 = vweird.f32 %v1544
        %vm1686 = vweird.f32 %v1679
        %vm1687 = vmor %vm1685, %vm1686
        %v1688 = vsel %vm1687, %v1679, %v1684
        %v1689 = vrsqrt.pop %v1546
        %v1690 = vmul.f32 %v1689, %v1546
        %v1691 = vmul.f32 %v1690, %v1689
        %v1692 = vmul.f32 0.5, %v1691
        %v1693 = vsub.f32 1.5, %v1692
        %v1694 = vmul.f32 %v1689, %v1693
        %vm1695 = vweird.f32 %v1546
        %vm1696 = vweird.f32 %v1689
        %vm1697 = vmor %vm1695, %vm1696
        %v1698 = vsel %vm1697, %v1689, %v1694
        %v1699 = vrsqrt.pop %v1548
        %v1700 = vmul.f32 %v1699, %v1548
        %v1701 = vmul.f32 %v1700, %v1699
        %v1702 = vmul.f32 0.5, %v1701
        %v1703 = vsub.f32 1.5, %v1702
        %v1704 = vmul.f32 %v1699, %v1703
        %vm1705 = vweird.f32 %v1548
        %vm1706 = vweird.f32 %v1699
        %vm1707 = vmor %vm1705, %vm1706
        %v1708 = vsel %vm1707, %v1699, %v1704
        %v1709 = vmul.f32 %v1462, %v1558
        %v1710 = vmul.f32 %v1464, %v1568
        %v1711 = vmul.f32 %v1467, %v1578
        %v1712 = vmul.f32 %v1469, %v1588
        %v1713 = vmul.f32 %v1472, %v1598
        %v1714 = vmul.f32 %v1474, %v1608
        %v1715 = vmul.f32 %v1477, %v1618
        %v1716 = vmul.f32 %v1479, %v1628
        %v1717 = vmul.f32 %v1482, %v1638
        %v1718 = vmul.f32 %v1484, %v1648
        %v1719 = vmul.f32 %v1487, %v1658
        %v1720 = vmul.f32 %v1489, %v1668
        %v1721 = vmul.f32 %v1492, %v1678
        %v1722 = vmul.f32 %v1494, %v1688
        %v1723 = vmul.f32 %v1497, %v1698
        %v1724 = vmul.f32 %v1499, %v1708
        %v1725 = vadd.f32 %v1371, %v1709
        %v1726 = vadd.f32 %v1372, %v1710
        %v1727 = vadd.f32 %v1373, %v1711
        %v1728 = vadd.f32 %v1374, %v1712
        %v1729 = vadd.f32 %v1375, %v1713
        %v1730 = vadd.f32 %v1376, %v1714
        %v1731 = vadd.f32 %v1377, %v1715
        %v1732 = vadd.f32 %v1378, %v1716
        %v1733 = vadd.f32 %v1379, %v1717
        %v1734 = vadd.f32 %v1380, %v1718
        %v1735 = vadd.f32 %v1381, %v1719
        %v1736 = vadd.f32 %v1382, %v1720
        %v1737 = vadd.f32 %v1383, %v1721
        %v1738 = vadd.f32 %v1384, %v1722
        %v1739 = vadd.f32 %v1385, %v1723
        %v1740 = vadd.f32 %v1386, %v1724
        %s1741 = scalar_lea.vmem %s196, 256 [#allocation2]
        %v1742 = vld [vmem:[%s1741] sm:$0xf]
        %v1743 = vld [vmem:[%s1741 + $0x4] sm:$0xf]
        %v1744 = vld [vmem:[%s1741 + $0x8] sm:$0xf]
        %v1745 = vld [vmem:[%s1741 + $0xc] sm:$0xf]
        %v1746 = vld [vmem:[%s1741 + $0x10] sm:$0xf]
        %v1747 = vld [vmem:[%s1741 + $0x14] sm:$0xf]
        %v1748 = vld [vmem:[%s1741 + $0x18] sm:$0xf]
        %v1749 = vld [vmem:[%s1741 + $0x1c] sm:$0xf]
        %v1750 = vld [vmem:[%s1741 + $0x20] sm:$0xf]
        %v1751 = vld [vmem:[%s1741 + $0x24] sm:$0xf]
        %v1752 = vld [vmem:[%s1741 + $0x28] sm:$0xf]
        %v1753 = vld [vmem:[%s1741 + $0x2c] sm:$0xf]
        %v1754 = vld [vmem:[%s1741 + $0x30] sm:$0xf]
        %v1755 = vld [vmem:[%s1741 + $0x34] sm:$0xf]
        %v1756 = vld [vmem:[%s1741 + $0x38] sm:$0xf]
        %v1757 = vld [vmem:[%s1741 + $0x3c] sm:$0xf]
        %v1774 = vunpack.c.l.b16 %v1742
        %v1775 = vunpack.c.l.b16 %v1743
        %v1776 = vunpack.c.l.b16 %v1744
        %v1777 = vunpack.c.l.b16 %v1745
        %v1778 = vunpack.c.l.b16 %v1746
        %v1779 = vunpack.c.l.b16 %v1747
        %v1780 = vunpack.c.l.b16 %v1748
        %v1781 = vunpack.c.l.b16 %v1749
        %v1782 = vunpack.c.l.b16 %v1750
        %v1783 = vunpack.c.l.b16 %v1751
        %v1784 = vunpack.c.l.b16 %v1752
        %v1785 = vunpack.c.l.b16 %v1753
        %v1786 = vunpack.c.l.b16 %v1754
        %v1787 = vunpack.c.l.b16 %v1755
        %v1788 = vunpack.c.l.b16 %v1756
        %v1789 = vunpack.c.l.b16 %v1757
        %v1790 = vpack.c.b16 %v1775, %v1774
        %v1791 = vpack.c.b16 %v1777, %v1776
        %v1792 = vpack.c.b16 %v1779, %v1778
        %v1793 = vpack.c.b16 %v1781, %v1780
        %v1794 = vpack.c.b16 %v1783, %v1782
        %v1795 = vpack.c.b16 %v1785, %v1784
        %v1796 = vpack.c.b16 %v1787, %v1786
        %v1797 = vpack.c.b16 %v1789, %v1788
        %1806 = vmatpush.bf16.msra.mxu0 %v381
        %1807 = vmatpush.bf16.msra.mxu0 %v380
        %1808 = vmatpush.bf16.msra.mxu0 %v379
        %1809 = vmatpush.bf16.msra.mxu0 %v378
        %1810 = vmatpush.bf16.msra.mxu0 %v377
        %1811 = vmatpush.bf16.msra.mxu0 %v376
        %1812 = vmatpush.bf16.msra.mxu0 %v375
        %1813 = vmatpush.bf16.msra.mxu0 %v374
        %1814 = vmatmul.bf16.gmra.mxu0 %v1790
        %v1815 = vpop.f32.mrf.mxu0
        %v1816 = vadd.f32 0.0, %v1815
        %v1817 = vpop.f32.mrf.mxu0
        %v1818 = vadd.f32 0.0, %v1817
        %1819 = vmatmul.bf16.gmra.mxu0 %v1791
        %v1820 = vpop.f32.mrf.mxu0
        %v1821 = vadd.f32 0.0, %v1820
        %v1822 = vpop.f32.mrf.mxu0
        %v1823 = vadd.f32 0.0, %v1822
        %1824 = vmatmul.bf16.gmra.mxu0 %v1792
        %v1825 = vpop.f32.mrf.mxu0
        %v1826 = vadd.f32 0.0, %v1825
        %v1827 = vpop.f32.mrf.mxu0
        %v1828 = vadd.f32 0.0, %v1827
        %1829 = vmatmul.bf16.gmra.mxu0 %v1793
        %v1830 = vpop.f32.mrf.mxu0
        %v1831 = vadd.f32 0.0, %v1830
        %v1832 = vpop.f32.mrf.mxu0
        %v1833 = vadd.f32 0.0, %v1832
        %1834 = vmatmul.bf16.gmra.mxu0 %v1794
        %v1835 = vpop.f32.mrf.mxu0
        %v1836 = vadd.f32 0.0, %v1835
        %v1837 = vpop.f32.mrf.mxu0
        %v1838 = vadd.f32 0.0, %v1837
        %1839 = vmatmul.bf16.gmra.mxu0 %v1795
        %v1840 = vpop.f32.mrf.mxu0
        %v1841 = vadd.f32 0.0, %v1840
        %v1842 = vpop.f32.mrf.mxu0
        %v1843 = vadd.f32 0.0, %v1842
        %1844 = vmatmul.bf16.gmra.mxu0 %v1796
        %v1845 = vpop.f32.mrf.mxu0
        %v1846 = vadd.f32 0.0, %v1845
        %v1847 = vpop.f32.mrf.mxu0
        %v1848 = vadd.f32 0.0, %v1847
        %1849 = vmatmul.bf16.gmra.mxu0 %v1797
        %v1850 = vpop.f32.mrf.mxu0
        %v1851 = vadd.f32 0.0, %v1850
        %v1852 = vpop.f32.mrf.mxu0
        %v1853 = vadd.f32 0.0, %v1852
        %1854 = vdwg.mxu0
        %v1855 = vmul.f32 %v1816, %v1816
        %v1856 = vmul.f32 %v1818, %v1818
        %v1857 = vmul.f32 %v1821, %v1821
        %v1858 = vmul.f32 %v1823, %v1823
        %v1859 = vmul.f32 %v1826, %v1826
        %v1860 = vmul.f32 %v1828, %v1828
        %v1861 = vmul.f32 %v1831, %v1831
        %v1862 = vmul.f32 %v1833, %v1833
        %v1863 = vmul.f32 %v1836, %v1836
        %v1864 = vmul.f32 %v1838, %v1838
        %v1865 = vmul.f32 %v1841, %v1841
        %v1866 = vmul.f32 %v1843, %v1843
        %v1867 = vmul.f32 %v1846, %v1846
        %v1868 = vmul.f32 %v1848, %v1848
        %v1869 = vmul.f32 %v1851, %v1851
        %v1870 = vmul.f32 %v1853, %v1853
        %1871 = vadd.xlane.f32.xlu0 %v1855
        %v1872 = vpop.xlane.xlu0 %1871
        %1873 = vadd.xlane.f32.xlu0 %v1856
        %v1874 = vpop.xlane.xlu0 %1873
        %1875 = vadd.xlane.f32.xlu0 %v1857
        %v1876 = vpop.xlane.xlu0 %1875
        %1877 = vadd.xlane.f32.xlu0 %v1858
        %v1878 = vpop.xlane.xlu0 %1877
        %1879 = vadd.xlane.f32.xlu0 %v1859
        %v1880 = vpop.xlane.xlu0 %1879
        %1881 = vadd.xlane.f32.xlu0 %v1860
        %v1882 = vpop.xlane.xlu0 %1881
        %1883 = vadd.xlane.f32.xlu0 %v1861
        %v1884 = vpop.xlane.xlu0 %1883
        %1885 = vadd.xlane.f32.xlu0 %v1862
        %v1886 = vpop.xlane.xlu0 %1885
        %1887 = vadd.xlane.f32.xlu0 %v1863
        %v1888 = vpop.xlane.xlu0 %1887
        %1889 = vadd.xlane.f32.xlu0 %v1864
        %v1890 = vpop.xlane.xlu0 %1889
        %1891 = vadd.xlane.f32.xlu0 %v1865
        %v1892 = vpop.xlane.xlu0 %1891
        %1893 = vadd.xlane.f32.xlu0 %v1866
        %v1894 = vpop.xlane.xlu0 %1893
        %1895 = vadd.xlane.f32.xlu0 %v1867
        %v1896 = vpop.xlane.xlu0 %1895
        %1897 = vadd.xlane.f32.xlu0 %v1868
        %v1898 = vpop.xlane.xlu0 %1897
        %1899 = vadd.xlane.f32.xlu0 %v1869
        %v1900 = vpop.xlane.xlu0 %1899
        %1901 = vadd.xlane.f32.xlu0 %v1870
        %v1902 = vpop.xlane.xlu0 %1901
        %v1903 = vrsqrt.pop %v1872
        %v1904 = vmul.f32 %v1903, %v1872
        %v1905 = vmul.f32 %v1904, %v1903
        %v1906 = vmul.f32 0.5, %v1905
        %v1907 = vsub.f32 1.5, %v1906
        %v1908 = vmul.f32 %v1903, %v1907
        %vm1909 = vweird.f32 %v1872
        %vm1910 = vweird.f32 %v1903
        %vm1911 = vmor %vm1909, %vm1910
        %v1912 = vsel %vm1911, %v1903, %v1908
        %v1913 = vrsqrt.pop %v1874
        %v1914 = vmul.f32 %v1913, %v1874
        %v1915 = vmul.f32 %v1914, %v1913
        %v1916 = vmul.f32 0.5, %v1915
        %v1917 = vsub.f32 1.5, %v1916
        %v1918 = vmul.f32 %v1913, %v1917
        %vm1919 = vweird.f32 %v1874
        %vm1920 = vweird.f32 %v1913
        %vm1921 = vmor %vm1919, %vm1920
        %v1922 = vsel %vm1921, %v1913, %v1918
        %v1923 = vrsqrt.pop %v1876
        %v1924 = vmul.f32 %v1923, %v1876
        %v1925 = vmul.f32 %v1924, %v1923
        %v1926 = vmul.f32 0.5, %v1925
        %v1927 = vsub.f32 1.5, %v1926
        %v1928 = vmul.f32 %v1923, %v1927
        %vm1929 = vweird.f32 %v1876
        %vm1930 = vweird.f32 %v1923
        %vm1931 = vmor %vm1929, %vm1930
        %v1932 = vsel %vm1931, %v1923, %v1928
        %v1933 = vrsqrt.pop %v1878
        %v1934 = vmul.f32 %v1933, %v1878
        %v1935 = vmul.f32 %v1934, %v1933
        %v1936 = vmul.f32 0.5, %v1935
        %v1937 = vsub.f32 1.5, %v1936
        %v1938 = vmul.f32 %v1933, %v1937
        %vm1939 = vweird.f32 %v1878
        %vm1940 = vweird.f32 %v1933
        %vm1941 = vmor %vm1939, %vm1940
        %v1942 = vsel %vm1941, %v1933, %v1938
        %v1943 = vrsqrt.pop %v1880
        %v1944 = vmul.f32 %v1943, %v1880
        %v1945 = vmul.f32 %v1944, %v1943
        %v1946 = vmul.f32 0.5, %v1945
        %v1947 = vsub.f32 1.5, %v1946
        %v1948 = vmul.f32 %v1943, %v1947
        %vm1949 = vweird.f32 %v1880
        %vm1950 = vweird.f32 %v1943
        %vm1951 = vmor %vm1949, %vm1950
        %v1952 = vsel %vm1951, %v1943, %v1948
        %v1953 = vrsqrt.pop %v1882
        %v1954 = vmul.f32 %v1953, %v1882
        %v1955 = vmul.f32 %v1954, %v1953
        %v1956 = vmul.f32 0.5, %v1955
        %v1957 = vsub.f32 1.5, %v1956
        %v1958 = vmul.f32 %v1953, %v1957
        %vm1959 = vweird.f32 %v1882
        %vm1960 = vweird.f32 %v1953
        %vm1961 = vmor %vm1959, %vm1960
        %v1962 = vsel %vm1961, %v1953, %v1958
        %v1963 = vrsqrt.pop %v1884
        %v1964 = vmul.f32 %v1963, %v1884
        %v1965 = vmul.f32 %v1964, %v1963
        %v1966 = vmul.f32 0.5, %v1965
        %v1967 = vsub.f32 1.5, %v1966
        %v1968 = vmul.f32 %v1963, %v1967
        %vm1969 = vweird.f32 %v1884
        %vm1970 = vweird.f32 %v1963
        %vm1971 = vmor %vm1969, %vm1970
        %v1972 = vsel %vm1971, %v1963, %v1968
        %v1973 = vrsqrt.pop %v1886
        %v1974 = vmul.f32 %v1973, %v1886
        %v1975 = vmul.f32 %v1974, %v1973
        %v1976 = vmul.f32 0.5, %v1975
        %v1977 = vsub.f32 1.5, %v1976
        %v1978 = vmul.f32 %v1973, %v1977
        %vm1979 = vweird.f32 %v1886
        %vm1980 = vweird.f32 %v1973
        %vm1981 = vmor %vm1979, %vm1980
        %v1982 = vsel %vm1981, %v1973, %v1978
        %v1983 = vrsqrt.pop %v1888
        %v1984 = vmul.f32 %v1983, %v1888
        %v1985 = vmul.f32 %v1984, %v1983
        %v1986 = vmul.f32 0.5, %v1985
        %v1987 = vsub.f32 1.5, %v1986
        %v1988 = vmul.f32 %v1983, %v1987
        %vm1989 = vweird.f32 %v1888
        %vm1990 = vweird.f32 %v1983
        %vm1991 = vmor %vm1989, %vm1990
        %v1992 = vsel %vm1991, %v1983, %v1988
        %v1993 = vrsqrt.pop %v1890
        %v1994 = vmul.f32 %v1993, %v1890
        %v1995 = vmul.f32 %v1994, %v1993
        %v1996 = vmul.f32 0.5, %v1995
        %v1997 = vsub.f32 1.5, %v1996
        %v1998 = vmul.f32 %v1993, %v1997
        %vm1999 = vweird.f32 %v1890
        %vm2000 = vweird.f32 %v1993
        %vm2001 = vmor %vm1999, %vm2000
        %v2002 = vsel %vm2001, %v1993, %v1998
        %v2003 = vrsqrt.pop %v1892
        %v2004 = vmul.f32 %v2003, %v1892
        %v2005 = vmul.f32 %v2004, %v2003
        %v2006 = vmul.f32 0.5, %v2005
        %v2007 = vsub.f32 1.5, %v2006
        %v2008 = vmul.f32 %v2003, %v2007
        %vm2009 = vweird.f32 %v1892
        %vm2010 = vweird.f32 %v2003
        %vm2011 = vmor %vm2009, %vm2010
        %v2012 = vsel %vm2011, %v2003, %v2008
        %v2013 = vrsqrt.pop %v1894
        %v2014 = vmul.f32 %v2013, %v1894
        %v2015 = vmul.f32 %v2014, %v2013
        %v2016 = vmul.f32 0.5, %v2015
        %v2017 = vsub.f32 1.5, %v2016
        %v2018 = vmul.f32 %v2013, %v2017
        %vm2019 = vweird.f32 %v1894
        %vm2020 = vweird.f32 %v2013
        %vm2021 = vmor %vm2019, %vm2020
        %v2022 = vsel %vm2021, %v2013, %v2018
        %v2023 = vrsqrt.pop %v1896
        %v2024 = vmul.f32 %v2023, %v1896
        %v2025 = vmul.f32 %v2024, %v2023
        %v2026 = vmul.f32 0.5, %v2025
        %v2027 = vsub.f32 1.5, %v2026
        %v2028 = vmul.f32 %v2023, %v2027
        %vm2029 = vweird.f32 %v1896
        %vm2030 = vweird.f32 %v2023
        %vm2031 = vmor %vm2029, %vm2030
        %v2032 = vsel %vm2031, %v2023, %v2028
        %v2033 = vrsqrt.pop %v1898
        %v2034 = vmul.f32 %v2033, %v1898
        %v2035 = vmul.f32 %v2034, %v2033
        %v2036 = vmul.f32 0.5, %v2035
        %v2037 = vsub.f32 1.5, %v2036
        %v2038 = vmul.f32 %v2033, %v2037
        %vm2039 = vweird.f32 %v1898
        %vm2040 = vweird.f32 %v2033
        %vm2041 = vmor %vm2039, %vm2040
        %v2042 = vsel %vm2041, %v2033, %v2038
        %v2043 = vrsqrt.pop %v1900
        %v2044 = vmul.f32 %v2043, %v1900
        %v2045 = vmul.f32 %v2044, %v2043
        %v2046 = vmul.f32 0.5, %v2045
        %v2047 = vsub.f32 1.5, %v2046
        %v2048 = vmul.f32 %v2043, %v2047
        %vm2049 = vweird.f32 %v1900
        %vm2050 = vweird.f32 %v2043
        %vm2051 = vmor %vm2049, %vm2050
        %v2052 = vsel %vm2051, %v2043, %v2048
        %v2053 = vrsqrt.pop %v1902
        %v2054 = vmul.f32 %v2053, %v1902
        %v2055 = vmul.f32 %v2054, %v2053
        %v2056 = vmul.f32 0.5, %v2055
        %v2057 = vsub.f32 1.5, %v2056
        %v2058 = vmul.f32 %v2053, %v2057
        %vm2059 = vweird.f32 %v1902
        %vm2060 = vweird.f32 %v2053
        %vm2061 = vmor %vm2059, %vm2060
        %v2062 = vsel %vm2061, %v2053, %v2058
        %v2063 = vmul.f32 %v1816, %v1912
        %v2064 = vmul.f32 %v1818, %v1922
        %v2065 = vmul.f32 %v1821, %v1932
        %v2066 = vmul.f32 %v1823, %v1942
        %v2067 = vmul.f32 %v1826, %v1952
        %v2068 = vmul.f32 %v1828, %v1962
        %v2069 = vmul.f32 %v1831, %v1972
        %v2070 = vmul.f32 %v1833, %v1982
        %v2071 = vmul.f32 %v1836, %v1992
        %v2072 = vmul.f32 %v1838, %v2002
        %v2073 = vmul.f32 %v1841, %v2012
        %v2074 = vmul.f32 %v1843, %v2022
        %v2075 = vmul.f32 %v1846, %v2032
        %v2076 = vmul.f32 %v1848, %v2042
        %v2077 = vmul.f32 %v1851, %v2052
        %v2078 = vmul.f32 %v1853, %v2062
        %v2079 = vadd.f32 %v1725, %v2063
        %v2080 = vadd.f32 %v1726, %v2064
        %v2081 = vadd.f32 %v1727, %v2065
        %v2082 = vadd.f32 %v1728, %v2066
        %v2083 = vadd.f32 %v1729, %v2067
        %v2084 = vadd.f32 %v1730, %v2068
        %v2085 = vadd.f32 %v1731, %v2069
        %v2086 = vadd.f32 %v1732, %v2070
        %v2087 = vadd.f32 %v1733, %v2071
        %v2088 = vadd.f32 %v1734, %v2072
        %v2089 = vadd.f32 %v1735, %v2073
        %v2090 = vadd.f32 %v1736, %v2074
        %v2091 = vadd.f32 %v1737, %v2075
        %v2092 = vadd.f32 %v1738, %v2076
        %v2093 = vadd.f32 %v1739, %v2077
        %v2094 = vadd.f32 %v1740, %v2078
        %s2095 = scalar_lea.vmem %s196, 320 [#allocation2]
        %v2096 = vld [vmem:[%s2095] sm:$0xf]
        %v2097 = vld [vmem:[%s2095 + $0x4] sm:$0xf]
        %v2098 = vld [vmem:[%s2095 + $0x8] sm:$0xf]
        %v2099 = vld [vmem:[%s2095 + $0xc] sm:$0xf]
        %v2100 = vld [vmem:[%s2095 + $0x10] sm:$0xf]
        %v2101 = vld [vmem:[%s2095 + $0x14] sm:$0xf]
        %v2102 = vld [vmem:[%s2095 + $0x18] sm:$0xf]
        %v2103 = vld [vmem:[%s2095 + $0x1c] sm:$0xf]
        %v2104 = vld [vmem:[%s2095 + $0x20] sm:$0xf]
        %v2105 = vld [vmem:[%s2095 + $0x24] sm:$0xf]
        %v2106 = vld [vmem:[%s2095 + $0x28] sm:$0xf]
        %v2107 = vld [vmem:[%s2095 + $0x2c] sm:$0xf]
        %v2108 = vld [vmem:[%s2095 + $0x30] sm:$0xf]
        %v2109 = vld [vmem:[%s2095 + $0x34] sm:$0xf]
        %v2110 = vld [vmem:[%s2095 + $0x38] sm:$0xf]
        %v2111 = vld [vmem:[%s2095 + $0x3c] sm:$0xf]
        %v2128 = vunpack.c.l.b16 %v2096
        %v2129 = vunpack.c.l.b16 %v2097
        %v2130 = vunpack.c.l.b16 %v2098
        %v2131 = vunpack.c.l.b16 %v2099
        %v2132 = vunpack.c.l.b16 %v2100
        %v2133 = vunpack.c.l.b16 %v2101
        %v2134 = vunpack.c.l.b16 %v2102
        %v2135 = vunpack.c.l.b16 %v2103
        %v2136 = vunpack.c.l.b16 %v2104
        %v2137 = vunpack.c.l.b16 %v2105
        %v2138 = vunpack.c.l.b16 %v2106
        %v2139 = vunpack.c.l.b16 %v2107
        %v2140 = vunpack.c.l.b16 %v2108
        %v2141 = vunpack.c.l.b16 %v2109
        %v2142 = vunpack.c.l.b16 %v2110
        %v2143 = vunpack.c.l.b16 %v2111
        %v2144 = vpack.c.b16 %v2129, %v2128
        %v2145 = vpack.c.b16 %v2131, %v2130
        %v2146 = vpack.c.b16 %v2133, %v2132
        %v2147 = vpack.c.b16 %v2135, %v2134
        %v2148 = vpack.c.b16 %v2137, %v2136
        %v2149 = vpack.c.b16 %v2139, %v2138
        %v2150 = vpack.c.b16 %v2141, %v2140
        %v2151 = vpack.c.b16 %v2143, %v2142
        %2160 = vmatpush.bf16.msra.mxu0 %v381
        %2161 = vmatpush.bf16.msra.mxu0 %v380
        %2162 = vmatpush.bf16.msra.mxu0 %v379
        %2163 = vmatpush.bf16.msra.mxu0 %v378
        %2164 = vmatpush.bf16.msra.mxu0 %v377
        %2165 = vmatpush.bf16.msra.mxu0 %v376
        %2166 = vmatpush.bf16.msra.mxu0 %v375
        %2167 = vmatpush.bf16.msra.mxu0 %v374
        %2168 = vmatmul.bf16.gmra.mxu0 %v2144
        %v2169 = vpop.f32.mrf.mxu0
        %v2170 = vadd.f32 0.0, %v2169
        %v2171 = vpop.f32.mrf.mxu0
        %v2172 = vadd.f32 0.0, %v2171
        %2173 = vmatmul.bf16.gmra.mxu0 %v2145
        %v2174 = vpop.f32.mrf.mxu0
        %v2175 = vadd.f32 0.0, %v2174
        %v2176 = vpop.f32.mrf.mxu0
        %v2177 = vadd.f32 0.0, %v2176
        %2178 = vmatmul.bf16.gmra.mxu0 %v2146
        %v2179 = vpop.f32.mrf.mxu0
        %v2180 = vadd.f32 0.0, %v2179
        %v2181 = vpop.f32.mrf.mxu0
        %v2182 = vadd.f32 0.0, %v2181
        %2183 = vmatmul.bf16.gmra.mxu0 %v2147
        %v2184 = vpop.f32.mrf.mxu0
        %v2185 = vadd.f32 0.0, %v2184
        %v2186 = vpop.f32.mrf.mxu0
        %v2187 = vadd.f32 0.0, %v2186
        %2188 = vmatmul.bf16.gmra.mxu0 %v2148
        %v2189 = vpop.f32.mrf.mxu0
        %v2190 = vadd.f32 0.0, %v2189
        %v2191 = vpop.f32.mrf.mxu0
        %v2192 = vadd.f32 0.0, %v2191
        %2193 = vmatmul.bf16.gmra.mxu0 %v2149
        %v2194 = vpop.f32.mrf.mxu0
        %v2195 = vadd.f32 0.0, %v2194
        %v2196 = vpop.f32.mrf.mxu0
        %v2197 = vadd.f32 0.0, %v2196
        %2198 = vmatmul.bf16.gmra.mxu0 %v2150
        %v2199 = vpop.f32.mrf.mxu0
        %v2200 = vadd.f32 0.0, %v2199
        %v2201 = vpop.f32.mrf.mxu0
        %v2202 = vadd.f32 0.0, %v2201
        %2203 = vmatmul.bf16.gmra.mxu0 %v2151
        %v2204 = vpop.f32.mrf.mxu0
        %v2205 = vadd.f32 0.0, %v2204
        %v2206 = vpop.f32.mrf.mxu0
        %v2207 = vadd.f32 0.0, %v2206
        %2208 = vdwg.mxu0
        %v2209 = vmul.f32 %v2170, %v2170
        %v2210 = vmul.f32 %v2172, %v2172
        %v2211 = vmul.f32 %v2175, %v2175
        %v2212 = vmul.f32 %v2177, %v2177
        %v2213 = vmul.f32 %v2180, %v2180
        %v2214 = vmul.f32 %v2182, %v2182
        %v2215 = vmul.f32 %v2185, %v2185
        %v2216 = vmul.f32 %v2187, %v2187
        %v2217 = vmul.f32 %v2190, %v2190
        %v2218 = vmul.f32 %v2192, %v2192
        %v2219 = vmul.f32 %v2195, %v2195
        %v2220 = vmul.f32 %v2197, %v2197
        %v2221 = vmul.f32 %v2200, %v2200
        %v2222 = vmul.f32 %v2202, %v2202
        %v2223 = vmul.f32 %v2205, %v2205
        %v2224 = vmul.f32 %v2207, %v2207
        %2225 = vadd.xlane.f32.xlu0 %v2209
        %v2226 = vpop.xlane.xlu0 %2225
        %2227 = vadd.xlane.f32.xlu0 %v2210
        %v2228 = vpop.xlane.xlu0 %2227
        %2229 = vadd.xlane.f32.xlu0 %v2211
        %v2230 = vpop.xlane.xlu0 %2229
        %2231 = vadd.xlane.f32.xlu0 %v2212
        %v2232 = vpop.xlane.xlu0 %2231
        %2233 = vadd.xlane.f32.xlu0 %v2213
        %v2234 = vpop.xlane.xlu0 %2233
        %2235 = vadd.xlane.f32.xlu0 %v2214
        %v2236 = vpop.xlane.xlu0 %2235
        %2237 = vadd.xlane.f32.xlu0 %v2215
        %v2238 = vpop.xlane.xlu0 %2237
        %2239 = vadd.xlane.f32.xlu0 %v2216
        %v2240 = vpop.xlane.xlu0 %2239
        %2241 = vadd.xlane.f32.xlu0 %v2217
        %v2242 = vpop.xlane.xlu0 %2241
        %2243 = vadd.xlane.f32.xlu0 %v2218
        %v2244 = vpop.xlane.xlu0 %2243
        %2245 = vadd.xlane.f32.xlu0 %v2219
        %v2246 = vpop.xlane.xlu0 %2245
        %2247 = vadd.xlane.f32.xlu0 %v2220
        %v2248 = vpop.xlane.xlu0 %2247
        %2249 = vadd.xlane.f32.xlu0 %v2221
        %v2250 = vpop.xlane.xlu0 %2249
        %2251 = vadd.xlane.f32.xlu0 %v2222
        %v2252 = vpop.xlane.xlu0 %2251
        %2253 = vadd.xlane.f32.xlu0 %v2223
        %v2254 = vpop.xlane.xlu0 %2253
        %2255 = vadd.xlane.f32.xlu0 %v2224
        %v2256 = vpop.xlane.xlu0 %2255
        %v2257 = vrsqrt.pop %v2226
        %v2258 = vmul.f32 %v2257, %v2226
        %v2259 = vmul.f32 %v2258, %v2257
        %v2260 = vmul.f32 0.5, %v2259
        %v2261 = vsub.f32 1.5, %v2260
        %v2262 = vmul.f32 %v2257, %v2261
        %vm2263 = vweird.f32 %v2226
        %vm2264 = vweird.f32 %v2257
        %vm2265 = vmor %vm2263, %vm2264
        %v2266 = vsel %vm2265, %v2257, %v2262
        %v2267 = vrsqrt.pop %v2228
        %v2268 = vmul.f32 %v2267, %v2228
        %v2269 = vmul.f32 %v2268, %v2267
        %v2270 = vmul.f32 0.5, %v2269
        %v2271 = vsub.f32 1.5, %v2270
        %v2272 = vmul.f32 %v2267, %v2271
        %vm2273 = vweird.f32 %v2228
        %vm2274 = vweird.f32 %v2267
        %vm2275 = vmor %vm2273, %vm2274
        %v2276 = vsel %vm2275, %v2267, %v2272
        %v2277 = vrsqrt.pop %v2230
        %v2278 = vmul.f32 %v2277, %v2230
        %v2279 = vmul.f32 %v2278, %v2277
        %v2280 = vmul.f32 0.5, %v2279
        %v2281 = vsub.f32 1.5, %v2280
        %v2282 = vmul.f32 %v2277, %v2281
        %vm2283 = vweird.f32 %v2230
        %vm2284 = vweird.f32 %v2277
        %vm2285 = vmor %vm2283, %vm2284
        %v2286 = vsel %vm2285, %v2277, %v2282
        %v2287 = vrsqrt.pop %v2232
        %v2288 = vmul.f32 %v2287, %v2232
        %v2289 = vmul.f32 %v2288, %v2287
        %v2290 = vmul.f32 0.5, %v2289
        %v2291 = vsub.f32 1.5, %v2290
        %v2292 = vmul.f32 %v2287, %v2291
        %vm2293 = vweird.f32 %v2232
        %vm2294 = vweird.f32 %v2287
        %vm2295 = vmor %vm2293, %vm2294
        %v2296 = vsel %vm2295, %v2287, %v2292
        %v2297 = vrsqrt.pop %v2234
        %v2298 = vmul.f32 %v2297, %v2234
        %v2299 = vmul.f32 %v2298, %v2297
        %v2300 = vmul.f32 0.5, %v2299
        %v2301 = vsub.f32 1.5, %v2300
        %v2302 = vmul.f32 %v2297, %v2301
        %vm2303 = vweird.f32 %v2234
        %vm2304 = vweird.f32 %v2297
        %vm2305 = vmor %vm2303, %vm2304
        %v2306 = vsel %vm2305, %v2297, %v2302
        %v2307 = vrsqrt.pop %v2236
        %v2308 = vmul.f32 %v2307, %v2236
        %v2309 = vmul.f32 %v2308, %v2307
        %v2310 = vmul.f32 0.5, %v2309
        %v2311 = vsub.f32 1.5, %v2310
        %v2312 = vmul.f32 %v2307, %v2311
        %vm2313 = vweird.f32 %v2236
        %vm2314 = vweird.f32 %v2307
        %vm2315 = vmor %vm2313, %vm2314
        %v2316 = vsel %vm2315, %v2307, %v2312
        %v2317 = vrsqrt.pop %v2238
        %v2318 = vmul.f32 %v2317, %v2238
        %v2319 = vmul.f32 %v2318, %v2317
        %v2320 = vmul.f32 0.5, %v2319
        %v2321 = vsub.f32 1.5, %v2320
        %v2322 = vmul.f32 %v2317, %v2321
        %vm2323 = vweird.f32 %v2238
        %vm2324 = vweird.f32 %v2317
        %vm2325 = vmor %vm2323, %vm2324
        %v2326 = vsel %vm2325, %v2317, %v2322
        %v2327 = vrsqrt.pop %v2240
        %v2328 = vmul.f32 %v2327, %v2240
        %v2329 = vmul.f32 %v2328, %v2327
        %v2330 = vmul.f32 0.5, %v2329
        %v2331 = vsub.f32 1.5, %v2330
        %v2332 = vmul.f32 %v2327, %v2331
        %vm2333 = vweird.f32 %v2240
        %vm2334 = vweird.f32 %v2327
        %vm2335 = vmor %vm2333, %vm2334
        %v2336 = vsel %vm2335, %v2327, %v2332
        %v2337 = vrsqrt.pop %v2242
        %v2338 = vmul.f32 %v2337, %v2242
        %v2339 = vmul.f32 %v2338, %v2337
        %v2340 = vmul.f32 0.5, %v2339
        %v2341 = vsub.f32 1.5, %v2340
        %v2342 = vmul.f32 %v2337, %v2341
        %vm2343 = vweird.f32 %v2242
        %vm2344 = vweird.f32 %v2337
        %vm2345 = vmor %vm2343, %vm2344
        %v2346 = vsel %vm2345, %v2337, %v2342
        %v2347 = vrsqrt.pop %v2244
        %v2348 = vmul.f32 %v2347, %v2244
        %v2349 = vmul.f32 %v2348, %v2347
        %v2350 = vmul.f32 0.5, %v2349
        %v2351 = vsub.f32 1.5, %v2350
        %v2352 = vmul.f32 %v2347, %v2351
        %vm2353 = vweird.f32 %v2244
        %vm2354 = vweird.f32 %v2347
        %vm2355 = vmor %vm2353, %vm2354
        %v2356 = vsel %vm2355, %v2347, %v2352
        %v2357 = vrsqrt.pop %v2246
        %v2358 = vmul.f32 %v2357, %v2246
        %v2359 = vmul.f32 %v2358, %v2357
        %v2360 = vmul.f32 0.5, %v2359
        %v2361 = vsub.f32 1.5, %v2360
        %v2362 = vmul.f32 %v2357, %v2361
        %vm2363 = vweird.f32 %v2246
        %vm2364 = vweird.f32 %v2357
        %vm2365 = vmor %vm2363, %vm2364
        %v2366 = vsel %vm2365, %v2357, %v2362
        %v2367 = vrsqrt.pop %v2248
        %v2368 = vmul.f32 %v2367, %v2248
        %v2369 = vmul.f32 %v2368, %v2367
        %v2370 = vmul.f32 0.5, %v2369
        %v2371 = vsub.f32 1.5, %v2370
        %v2372 = vmul.f32 %v2367, %v2371
        %vm2373 = vweird.f32 %v2248
        %vm2374 = vweird.f32 %v2367
        %vm2375 = vmor %vm2373, %vm2374
        %v2376 = vsel %vm2375, %v2367, %v2372
        %v2377 = vrsqrt.pop %v2250
        %v2378 = vmul.f32 %v2377, %v2250
        %v2379 = vmul.f32 %v2378, %v2377
        %v2380 = vmul.f32 0.5, %v2379
        %v2381 = vsub.f32 1.5, %v2380
        %v2382 = vmul.f32 %v2377, %v2381
        %vm2383 = vweird.f32 %v2250
        %vm2384 = vweird.f32 %v2377
        %vm2385 = vmor %vm2383, %vm2384
        %v2386 = vsel %vm2385, %v2377, %v2382
        %v2387 = vrsqrt.pop %v2252
        %v2388 = vmul.f32 %v2387, %v2252
        %v2389 = vmul.f32 %v2388, %v2387
        %v2390 = vmul.f32 0.5, %v2389
        %v2391 = vsub.f32 1.5, %v2390
        %v2392 = vmul.f32 %v2387, %v2391
        %vm2393 = vweird.f32 %v2252
        %vm2394 = vweird.f32 %v2387
        %vm2395 = vmor %vm2393, %vm2394
        %v2396 = vsel %vm2395, %v2387, %v2392
        %v2397 = vrsqrt.pop %v2254
        %v2398 = vmul.f32 %v2397, %v2254
        %v2399 = vmul.f32 %v2398, %v2397
        %v2400 = vmul.f32 0.5, %v2399
        %v2401 = vsub.f32 1.5, %v2400
        %v2402 = vmul.f32 %v2397, %v2401
        %vm2403 = vweird.f32 %v2254
        %vm2404 = vweird.f32 %v2397
        %vm2405 = vmor %vm2403, %vm2404
        %v2406 = vsel %vm2405, %v2397, %v2402
        %v2407 = vrsqrt.pop %v2256
        %v2408 = vmul.f32 %v2407, %v2256
        %v2409 = vmul.f32 %v2408, %v2407
        %v2410 = vmul.f32 0.5, %v2409
        %v2411 = vsub.f32 1.5, %v2410
        %v2412 = vmul.f32 %v2407, %v2411
        %vm2413 = vweird.f32 %v2256
        %vm2414 = vweird.f32 %v2407
        %vm2415 = vmor %vm2413, %vm2414
        %v2416 = vsel %vm2415, %v2407, %v2412
        %v2417 = vmul.f32 %v2170, %v2266
        %v2418 = vmul.f32 %v2172, %v2276
        %v2419 = vmul.f32 %v2175, %v2286
        %v2420 = vmul.f32 %v2177, %v2296
        %v2421 = vmul.f32 %v2180, %v2306
        %v2422 = vmul.f32 %v2182, %v2316
        %v2423 = vmul.f32 %v2185, %v2326
        %v2424 = vmul.f32 %v2187, %v2336
        %v2425 = vmul.f32 %v2190, %v2346
        %v2426 = vmul.f32 %v2192, %v2356
        %v2427 = vmul.f32 %v2195, %v2366
        %v2428 = vmul.f32 %v2197, %v2376
        %v2429 = vmul.f32 %v2200, %v2386
        %v2430 = vmul.f32 %v2202, %v2396
        %v2431 = vmul.f32 %v2205, %v2406
        %v2432 = vmul.f32 %v2207, %v2416
        %v2433 = vadd.f32 %v2079, %v2417
        %v2434 = vadd.f32 %v2080, %v2418
        %v2435 = vadd.f32 %v2081, %v2419
        %v2436 = vadd.f32 %v2082, %v2420
        %v2437 = vadd.f32 %v2083, %v2421
        %v2438 = vadd.f32 %v2084, %v2422
        %v2439 = vadd.f32 %v2085, %v2423
        %v2440 = vadd.f32 %v2086, %v2424
        %v2441 = vadd.f32 %v2087, %v2425
        %v2442 = vadd.f32 %v2088, %v2426
        %v2443 = vadd.f32 %v2089, %v2427
        %v2444 = vadd.f32 %v2090, %v2428
        %v2445 = vadd.f32 %v2091, %v2429
        %v2446 = vadd.f32 %v2092, %v2430
        %v2447 = vadd.f32 %v2093, %v2431
        %v2448 = vadd.f32 %v2094, %v2432
        %s2449 = scalar_lea.vmem %s196, 384 [#allocation2]
        %v2450 = vld [vmem:[%s2449] sm:$0xf]
        %v2451 = vld [vmem:[%s2449 + $0x4] sm:$0xf]
        %v2452 = vld [vmem:[%s2449 + $0x8] sm:$0xf]
        %v2453 = vld [vmem:[%s2449 + $0xc] sm:$0xf]
        %v2454 = vld [vmem:[%s2449 + $0x10] sm:$0xf]
        %v2455 = vld [vmem:[%s2449 + $0x14] sm:$0xf]
        %v2456 = vld [vmem:[%s2449 + $0x18] sm:$0xf]
        %v2457 = vld [vmem:[%s2449 + $0x1c] sm:$0xf]
        %v2458 = vld [vmem:[%s2449 + $0x20] sm:$0xf]
        %v2459 = vld [vmem:[%s2449 + $0x24] sm:$0xf]
        %v2460 = vld [vmem:[%s2449 + $0x28] sm:$0xf]
        %v2461 = vld [vmem:[%s2449 + $0x2c] sm:$0xf]
        %v2462 = vld [vmem:[%s2449 + $0x30] sm:$0xf]
        %v2463 = vld [vmem:[%s2449 + $0x34] sm:$0xf]
        %v2464 = vld [vmem:[%s2449 + $0x38] sm:$0xf]
        %v2465 = vld [vmem:[%s2449 + $0x3c] sm:$0xf]
        %v2482 = vunpack.c.l.b16 %v2450
        %v2483 = vunpack.c.l.b16 %v2451
        %v2484 = vunpack.c.l.b16 %v2452
        %v2485 = vunpack.c.l.b16 %v2453
        %v2486 = vunpack.c.l.b16 %v2454
        %v2487 = vunpack.c.l.b16 %v2455
        %v2488 = vunpack.c.l.b16 %v2456
        %v2489 = vunpack.c.l.b16 %v2457
        %v2490 = vunpack.c.l.b16 %v2458
        %v2491 = vunpack.c.l.b16 %v2459
        %v2492 = vunpack.c.l.b16 %v2460
        %v2493 = vunpack.c.l.b16 %v2461
        %v2494 = vunpack.c.l.b16 %v2462
        %v2495 = vunpack.c.l.b16 %v2463
        %v2496 = vunpack.c.l.b16 %v2464
        %v2497 = vunpack.c.l.b16 %v2465
        %v2498 = vpack.c.b16 %v2483, %v2482
        %v2499 = vpack.c.b16 %v2485, %v2484
        %v2500 = vpack.c.b16 %v2487, %v2486
        %v2501 = vpack.c.b16 %v2489, %v2488
        %v2502 = vpack.c.b16 %v2491, %v2490
        %v2503 = vpack.c.b16 %v2493, %v2492
        %v2504 = vpack.c.b16 %v2495, %v2494
        %v2505 = vpack.c.b16 %v2497, %v2496
        %2514 = vmatpush.bf16.msra.mxu0 %v381
        %2515 = vmatpush.bf16.msra.mxu0 %v380
        %2516 = vmatpush.bf16.msra.mxu0 %v379
        %2517 = vmatpush.bf16.msra.mxu0 %v378
        %2518 = vmatpush.bf16.msra.mxu0 %v377
        %2519 = vmatpush.bf16.msra.mxu0 %v376
        %2520 = vmatpush.bf16.msra.mxu0 %v375
        %2521 = vmatpush.bf16.msra.mxu0 %v374
        %2522 = vmatmul.bf16.gmra.mxu0 %v2498
        %v2523 = vpop.f32.mrf.mxu0
        %v2524 = vadd.f32 0.0, %v2523
        %v2525 = vpop.f32.mrf.mxu0
        %v2526 = vadd.f32 0.0, %v2525
        %2527 = vmatmul.bf16.gmra.mxu0 %v2499
        %v2528 = vpop.f32.mrf.mxu0
        %v2529 = vadd.f32 0.0, %v2528
        %v2530 = vpop.f32.mrf.mxu0
        %v2531 = vadd.f32 0.0, %v2530
        %2532 = vmatmul.bf16.gmra.mxu0 %v2500
        %v2533 = vpop.f32.mrf.mxu0
        %v2534 = vadd.f32 0.0, %v2533
        %v2535 = vpop.f32.mrf.mxu0
        %v2536 = vadd.f32 0.0, %v2535
        %2537 = vmatmul.bf16.gmra.mxu0 %v2501
        %v2538 = vpop.f32.mrf.mxu0
        %v2539 = vadd.f32 0.0, %v2538
        %v2540 = vpop.f32.mrf.mxu0
        %v2541 = vadd.f32 0.0, %v2540
        %2542 = vmatmul.bf16.gmra.mxu0 %v2502
        %v2543 = vpop.f32.mrf.mxu0
        %v2544 = vadd.f32 0.0, %v2543
        %v2545 = vpop.f32.mrf.mxu0
        %v2546 = vadd.f32 0.0, %v2545
        %2547 = vmatmul.bf16.gmra.mxu0 %v2503
        %v2548 = vpop.f32.mrf.mxu0
        %v2549 = vadd.f32 0.0, %v2548
        %v2550 = vpop.f32.mrf.mxu0
        %v2551 = vadd.f32 0.0, %v2550
        %2552 = vmatmul.bf16.gmra.mxu0 %v2504
        %v2553 = vpop.f32.mrf.mxu0
        %v2554 = vadd.f32 0.0, %v2553
        %v2555 = vpop.f32.mrf.mxu0
        %v2556 = vadd.f32 0.0, %v2555
        %2557 = vmatmul.bf16.gmra.mxu0 %v2505
        %v2558 = vpop.f32.mrf.mxu0
        %v2559 = vadd.f32 0.0, %v2558
        %v2560 = vpop.f32.mrf.mxu0
        %v2561 = vadd.f32 0.0, %v2560
        %2562 = vdwg.mxu0
        %v2563 = vmul.f32 %v2524, %v2524
        %v2564 = vmul.f32 %v2526, %v2526
        %v2565 = vmul.f32 %v2529, %v2529
        %v2566 = vmul.f32 %v2531, %v2531
        %v2567 = vmul.f32 %v2534, %v2534
        %v2568 = vmul.f32 %v2536, %v2536
        %v2569 = vmul.f32 %v2539, %v2539
        %v2570 = vmul.f32 %v2541, %v2541
        %v2571 = vmul.f32 %v2544, %v2544
        %v2572 = vmul.f32 %v2546, %v2546
        %v2573 = vmul.f32 %v2549, %v2549
        %v2574 = vmul.f32 %v2551, %v2551
        %v2575 = vmul.f32 %v2554, %v2554
        %v2576 = vmul.f32 %v2556, %v2556
        %v2577 = vmul.f32 %v2559, %v2559
        %v2578 = vmul.f32 %v2561, %v2561
        %2579 = vadd.xlane.f32.xlu0 %v2563
        %v2580 = vpop.xlane.xlu0 %2579
        %2581 = vadd.xlane.f32.xlu0 %v2564
        %v2582 = vpop.xlane.xlu0 %2581
        %2583 = vadd.xlane.f32.xlu0 %v2565
        %v2584 = vpop.xlane.xlu0 %2583
        %2585 = vadd.xlane.f32.xlu0 %v2566
        %v2586 = vpop.xlane.xlu0 %2585
        %2587 = vadd.xlane.f32.xlu0 %v2567
        %v2588 = vpop.xlane.xlu0 %2587
        %2589 = vadd.xlane.f32.xlu0 %v2568
        %v2590 = vpop.xlane.xlu0 %2589
        %2591 = vadd.xlane.f32.xlu0 %v2569
        %v2592 = vpop.xlane.xlu0 %2591
        %2593 = vadd.xlane.f32.xlu0 %v2570
        %v2594 = vpop.xlane.xlu0 %2593
        %2595 = vadd.xlane.f32.xlu0 %v2571
        %v2596 = vpop.xlane.xlu0 %2595
        %2597 = vadd.xlane.f32.xlu0 %v2572
        %v2598 = vpop.xlane.xlu0 %2597
        %2599 = vadd.xlane.f32.xlu0 %v2573
        %v2600 = vpop.xlane.xlu0 %2599
        %2601 = vadd.xlane.f32.xlu0 %v2574
        %v2602 = vpop.xlane.xlu0 %2601
        %2603 = vadd.xlane.f32.xlu0 %v2575
        %v2604 = vpop.xlane.xlu0 %2603
        %2605 = vadd.xlane.f32.xlu0 %v2576
        %v2606 = vpop.xlane.xlu0 %2605
        %2607 = vadd.xlane.f32.xlu0 %v2577
        %v2608 = vpop.xlane.xlu0 %2607
        %2609 = vadd.xlane.f32.xlu0 %v2578
        %v2610 = vpop.xlane.xlu0 %2609
        %v2611 = vrsqrt.pop %v2580
        %v2612 = vmul.f32 %v2611, %v2580
        %v2613 = vmul.f32 %v2612, %v2611
        %v2614 = vmul.f32 0.5, %v2613
        %v2615 = vsub.f32 1.5, %v2614
        %v2616 = vmul.f32 %v2611, %v2615
        %vm2617 = vweird.f32 %v2580
        %vm2618 = vweird.f32 %v2611
        %vm2619 = vmor %vm2617, %vm2618
        %v2620 = vsel %vm2619, %v2611, %v2616
        %v2621 = vrsqrt.pop %v2582
        %v2622 = vmul.f32 %v2621, %v2582
        %v2623 = vmul.f32 %v2622, %v2621
        %v2624 = vmul.f32 0.5, %v2623
        %v2625 = vsub.f32 1.5, %v2624
        %v2626 = vmul.f32 %v2621, %v2625
        %vm2627 = vweird.f32 %v2582
        %vm2628 = vweird.f32 %v2621
        %vm2629 = vmor %vm2627, %vm2628
        %v2630 = vsel %vm2629, %v2621, %v2626
        %v2631 = vrsqrt.pop %v2584
        %v2632 = vmul.f32 %v2631, %v2584
        %v2633 = vmul.f32 %v2632, %v2631
        %v2634 = vmul.f32 0.5, %v2633
        %v2635 = vsub.f32 1.5, %v2634
        %v2636 = vmul.f32 %v2631, %v2635
        %vm2637 = vweird.f32 %v2584
        %vm2638 = vweird.f32 %v2631
        %vm2639 = vmor %vm2637, %vm2638
        %v2640 = vsel %vm2639, %v2631, %v2636
        %v2641 = vrsqrt.pop %v2586
        %v2642 = vmul.f32 %v2641, %v2586
        %v2643 = vmul.f32 %v2642, %v2641
        %v2644 = vmul.f32 0.5, %v2643
        %v2645 = vsub.f32 1.5, %v2644
        %v2646 = vmul.f32 %v2641, %v2645
        %vm2647 = vweird.f32 %v2586
        %vm2648 = vweird.f32 %v2641
        %vm2649 = vmor %vm2647, %vm2648
        %v2650 = vsel %vm2649, %v2641, %v2646
        %v2651 = vrsqrt.pop %v2588
        %v2652 = vmul.f32 %v2651, %v2588
        %v2653 = vmul.f32 %v2652, %v2651
        %v2654 = vmul.f32 0.5, %v2653
        %v2655 = vsub.f32 1.5, %v2654
        %v2656 = vmul.f32 %v2651, %v2655
        %vm2657 = vweird.f32 %v2588
        %vm2658 = vweird.f32 %v2651
        %vm2659 = vmor %vm2657, %vm2658
        %v2660 = vsel %vm2659, %v2651, %v2656
        %v2661 = vrsqrt.pop %v2590
        %v2662 = vmul.f32 %v2661, %v2590
        %v2663 = vmul.f32 %v2662, %v2661
        %v2664 = vmul.f32 0.5, %v2663
        %v2665 = vsub.f32 1.5, %v2664
        %v2666 = vmul.f32 %v2661, %v2665
        %vm2667 = vweird.f32 %v2590
        %vm2668 = vweird.f32 %v2661
        %vm2669 = vmor %vm2667, %vm2668
        %v2670 = vsel %vm2669, %v2661, %v2666
        %v2671 = vrsqrt.pop %v2592
        %v2672 = vmul.f32 %v2671, %v2592
        %v2673 = vmul.f32 %v2672, %v2671
        %v2674 = vmul.f32 0.5, %v2673
        %v2675 = vsub.f32 1.5, %v2674
        %v2676 = vmul.f32 %v2671, %v2675
        %vm2677 = vweird.f32 %v2592
        %vm2678 = vweird.f32 %v2671
        %vm2679 = vmor %vm2677, %vm2678
        %v2680 = vsel %vm2679, %v2671, %v2676
        %v2681 = vrsqrt.pop %v2594
        %v2682 = vmul.f32 %v2681, %v2594
        %v2683 = vmul.f32 %v2682, %v2681
        %v2684 = vmul.f32 0.5, %v2683
        %v2685 = vsub.f32 1.5, %v2684
        %v2686 = vmul.f32 %v2681, %v2685
        %vm2687 = vweird.f32 %v2594
        %vm2688 = vweird.f32 %v2681
        %vm2689 = vmor %vm2687, %vm2688
        %v2690 = vsel %vm2689, %v2681, %v2686
        %v2691 = vrsqrt.pop %v2596
        %v2692 = vmul.f32 %v2691, %v2596
        %v2693 = vmul.f32 %v2692, %v2691
        %v2694 = vmul.f32 0.5, %v2693
        %v2695 = vsub.f32 1.5, %v2694
        %v2696 = vmul.f32 %v2691, %v2695
        %vm2697 = vweird.f32 %v2596
        %vm2698 = vweird.f32 %v2691
        %vm2699 = vmor %vm2697, %vm2698
        %v2700 = vsel %vm2699, %v2691, %v2696
        %v2701 = vrsqrt.pop %v2598
        %v2702 = vmul.f32 %v2701, %v2598
        %v2703 = vmul.f32 %v2702, %v2701
        %v2704 = vmul.f32 0.5, %v2703
        %v2705 = vsub.f32 1.5, %v2704
        %v2706 = vmul.f32 %v2701, %v2705
        %vm2707 = vweird.f32 %v2598
        %vm2708 = vweird.f32 %v2701
        %vm2709 = vmor %vm2707, %vm2708
        %v2710 = vsel %vm2709, %v2701, %v2706
        %v2711 = vrsqrt.pop %v2600
        %v2712 = vmul.f32 %v2711, %v2600
        %v2713 = vmul.f32 %v2712, %v2711
        %v2714 = vmul.f32 0.5, %v2713
        %v2715 = vsub.f32 1.5, %v2714
        %v2716 = vmul.f32 %v2711, %v2715
        %vm2717 = vweird.f32 %v2600
        %vm2718 = vweird.f32 %v2711
        %vm2719 = vmor %vm2717, %vm2718
        %v2720 = vsel %vm2719, %v2711, %v2716
        %v2721 = vrsqrt.pop %v2602
        %v2722 = vmul.f32 %v2721, %v2602
        %v2723 = vmul.f32 %v2722, %v2721
        %v2724 = vmul.f32 0.5, %v2723
        %v2725 = vsub.f32 1.5, %v2724
        %v2726 = vmul.f32 %v2721, %v2725
        %vm2727 = vweird.f32 %v2602
        %vm2728 = vweird.f32 %v2721
        %vm2729 = vmor %vm2727, %vm2728
        %v2730 = vsel %vm2729, %v2721, %v2726
        %v2731 = vrsqrt.pop %v2604
        %v2732 = vmul.f32 %v2731, %v2604
        %v2733 = vmul.f32 %v2732, %v2731
        %v2734 = vmul.f32 0.5, %v2733
        %v2735 = vsub.f32 1.5, %v2734
        %v2736 = vmul.f32 %v2731, %v2735
        %vm2737 = vweird.f32 %v2604
        %vm2738 = vweird.f32 %v2731
        %vm2739 = vmor %vm2737, %vm2738
        %v2740 = vsel %vm2739, %v2731, %v2736
        %v2741 = vrsqrt.pop %v2606
        %v2742 = vmul.f32 %v2741, %v2606
        %v2743 = vmul.f32 %v2742, %v2741
        %v2744 = vmul.f32 0.5, %v2743
        %v2745 = vsub.f32 1.5, %v2744
        %v2746 = vmul.f32 %v2741, %v2745
        %vm2747 = vweird.f32 %v2606
        %vm2748 = vweird.f32 %v2741
        %vm2749 = vmor %vm2747, %vm2748
        %v2750 = vsel %vm2749, %v2741, %v2746
        %v2751 = vrsqrt.pop %v2608
        %v2752 = vmul.f32 %v2751, %v2608
        %v2753 = vmul.f32 %v2752, %v2751
        %v2754 = vmul.f32 0.5, %v2753
        %v2755 = vsub.f32 1.5, %v2754
        %v2756 = vmul.f32 %v2751, %v2755
        %vm2757 = vweird.f32 %v2608
        %vm2758 = vweird.f32 %v2751
        %vm2759 = vmor %vm2757, %vm2758
        %v2760 = vsel %vm2759, %v2751, %v2756
        %v2761 = vrsqrt.pop %v2610
        %v2762 = vmul.f32 %v2761, %v2610
        %v2763 = vmul.f32 %v2762, %v2761
        %v2764 = vmul.f32 0.5, %v2763
        %v2765 = vsub.f32 1.5, %v2764
        %v2766 = vmul.f32 %v2761, %v2765
        %vm2767 = vweird.f32 %v2610
        %vm2768 = vweird.f32 %v2761
        %vm2769 = vmor %vm2767, %vm2768
        %v2770 = vsel %vm2769, %v2761, %v2766
        %v2771 = vmul.f32 %v2524, %v2620
        %v2772 = vmul.f32 %v2526, %v2630
        %v2773 = vmul.f32 %v2529, %v2640
        %v2774 = vmul.f32 %v2531, %v2650
        %v2775 = vmul.f32 %v2534, %v2660
        %v2776 = vmul.f32 %v2536, %v2670
        %v2777 = vmul.f32 %v2539, %v2680
        %v2778 = vmul.f32 %v2541, %v2690
        %v2779 = vmul.f32 %v2544, %v2700
        %v2780 = vmul.f32 %v2546, %v2710
        %v2781 = vmul.f32 %v2549, %v2720
        %v2782 = vmul.f32 %v2551, %v2730
        %v2783 = vmul.f32 %v2554, %v2740
        %v2784 = vmul.f32 %v2556, %v2750
        %v2785 = vmul.f32 %v2559, %v2760
        %v2786 = vmul.f32 %v2561, %v2770
        %v2787 = vadd.f32 %v2433, %v2771
        %v2788 = vadd.f32 %v2434, %v2772
        %v2789 = vadd.f32 %v2435, %v2773
        %v2790 = vadd.f32 %v2436, %v2774
        %v2791 = vadd.f32 %v2437, %v2775
        %v2792 = vadd.f32 %v2438, %v2776
        %v2793 = vadd.f32 %v2439, %v2777
        %v2794 = vadd.f32 %v2440, %v2778
        %v2795 = vadd.f32 %v2441, %v2779
        %v2796 = vadd.f32 %v2442, %v2780
        %v2797 = vadd.f32 %v2443, %v2781
        %v2798 = vadd.f32 %v2444, %v2782
        %v2799 = vadd.f32 %v2445, %v2783
        %v2800 = vadd.f32 %v2446, %v2784
        %v2801 = vadd.f32 %v2447, %v2785
        %v2802 = vadd.f32 %v2448, %v2786
        %s2803 = scalar_lea.vmem %s196, 448 [#allocation2]
        %v2804 = vld [vmem:[%s2803] sm:$0xf]
        %v2805 = vld [vmem:[%s2803 + $0x4] sm:$0xf]
        %v2806 = vld [vmem:[%s2803 + $0x8] sm:$0xf]
        %v2807 = vld [vmem:[%s2803 + $0xc] sm:$0xf]
        %v2808 = vld [vmem:[%s2803 + $0x10] sm:$0xf]
        %v2809 = vld [vmem:[%s2803 + $0x14] sm:$0xf]
        %v2810 = vld [vmem:[%s2803 + $0x18] sm:$0xf]
        %v2811 = vld [vmem:[%s2803 + $0x1c] sm:$0xf]
        %v2812 = vld [vmem:[%s2803 + $0x20] sm:$0xf]
        %v2813 = vld [vmem:[%s2803 + $0x24] sm:$0xf]
        %v2814 = vld [vmem:[%s2803 + $0x28] sm:$0xf]
        %v2815 = vld [vmem:[%s2803 + $0x2c] sm:$0xf]
        %v2816 = vld [vmem:[%s2803 + $0x30] sm:$0xf]
        %v2817 = vld [vmem:[%s2803 + $0x34] sm:$0xf]
        %v2818 = vld [vmem:[%s2803 + $0x38] sm:$0xf]
        %v2819 = vld [vmem:[%s2803 + $0x3c] sm:$0xf]
        %v2836 = vunpack.c.l.b16 %v2804
        %v2837 = vunpack.c.l.b16 %v2805
        %v2838 = vunpack.c.l.b16 %v2806
        %v2839 = vunpack.c.l.b16 %v2807
        %v2840 = vunpack.c.l.b16 %v2808
        %v2841 = vunpack.c.l.b16 %v2809
        %v2842 = vunpack.c.l.b16 %v2810
        %v2843 = vunpack.c.l.b16 %v2811
        %v2844 = vunpack.c.l.b16 %v2812
        %v2845 = vunpack.c.l.b16 %v2813
        %v2846 = vunpack.c.l.b16 %v2814
        %v2847 = vunpack.c.l.b16 %v2815
        %v2848 = vunpack.c.l.b16 %v2816
        %v2849 = vunpack.c.l.b16 %v2817
        %v2850 = vunpack.c.l.b16 %v2818
        %v2851 = vunpack.c.l.b16 %v2819
        %v2852 = vpack.c.b16 %v2837, %v2836
        %v2853 = vpack.c.b16 %v2839, %v2838
        %v2854 = vpack.c.b16 %v2841, %v2840
        %v2855 = vpack.c.b16 %v2843, %v2842
        %v2856 = vpack.c.b16 %v2845, %v2844
        %v2857 = vpack.c.b16 %v2847, %v2846
        %v2858 = vpack.c.b16 %v2849, %v2848
        %v2859 = vpack.c.b16 %v2851, %v2850
        %2868 = vmatpush.bf16.msra.mxu0 %v381
        %2869 = vmatpush.bf16.msra.mxu0 %v380
        %2870 = vmatpush.bf16.msra.mxu0 %v379
        %2871 = vmatpush.bf16.msra.mxu0 %v378
        %2872 = vmatpush.bf16.msra.mxu0 %v377
        %2873 = vmatpush.bf16.msra.mxu0 %v376
        %2874 = vmatpush.bf16.msra.mxu0 %v375
        %2875 = vmatpush.bf16.msra.mxu0 %v374
        %2876 = vmatmul.bf16.gmra.mxu0 %v2852
        %v2877 = vpop.f32.mrf.mxu0
        %v2878 = vadd.f32 0.0, %v2877
        %v2879 = vpop.f32.mrf.mxu0
        %v2880 = vadd.f32 0.0, %v2879
        %2881 = vmatmul.bf16.gmra.mxu0 %v2853
        %v2882 = vpop.f32.mrf.mxu0
        %v2883 = vadd.f32 0.0, %v2882
        %v2884 = vpop.f32.mrf.mxu0
        %v2885 = vadd.f32 0.0, %v2884
        %2886 = vmatmul.bf16.gmra.mxu0 %v2854
        %v2887 = vpop.f32.mrf.mxu0
        %v2888 = vadd.f32 0.0, %v2887
        %v2889 = vpop.f32.mrf.mxu0
        %v2890 = vadd.f32 0.0, %v2889
        %2891 = vmatmul.bf16.gmra.mxu0 %v2855
        %v2892 = vpop.f32.mrf.mxu0
        %v2893 = vadd.f32 0.0, %v2892
        %v2894 = vpop.f32.mrf.mxu0
        %v2895 = vadd.f32 0.0, %v2894
        %2896 = vmatmul.bf16.gmra.mxu0 %v2856
        %v2897 = vpop.f32.mrf.mxu0
        %v2898 = vadd.f32 0.0, %v2897
        %v2899 = vpop.f32.mrf.mxu0
        %v2900 = vadd.f32 0.0, %v2899
        %2901 = vmatmul.bf16.gmra.mxu0 %v2857
        %v2902 = vpop.f32.mrf.mxu0
        %v2903 = vadd.f32 0.0, %v2902
        %v2904 = vpop.f32.mrf.mxu0
        %v2905 = vadd.f32 0.0, %v2904
        %2906 = vmatmul.bf16.gmra.mxu0 %v2858
        %v2907 = vpop.f32.mrf.mxu0
        %v2908 = vadd.f32 0.0, %v2907
        %v2909 = vpop.f32.mrf.mxu0
        %v2910 = vadd.f32 0.0, %v2909
        %2911 = vmatmul.bf16.gmra.mxu0 %v2859
        %v2912 = vpop.f32.mrf.mxu0
        %v2913 = vadd.f32 0.0, %v2912
        %v2914 = vpop.f32.mrf.mxu0
        %v2915 = vadd.f32 0.0, %v2914
        %2916 = vdwg.mxu0
        %v2917 = vmul.f32 %v2878, %v2878
        %v2918 = vmul.f32 %v2880, %v2880
        %v2919 = vmul.f32 %v2883, %v2883
        %v2920 = vmul.f32 %v2885, %v2885
        %v2921 = vmul.f32 %v2888, %v2888
        %v2922 = vmul.f32 %v2890, %v2890
        %v2923 = vmul.f32 %v2893, %v2893
        %v2924 = vmul.f32 %v2895, %v2895
        %v2925 = vmul.f32 %v2898, %v2898
        %v2926 = vmul.f32 %v2900, %v2900
        %v2927 = vmul.f32 %v2903, %v2903
        %v2928 = vmul.f32 %v2905, %v2905
        %v2929 = vmul.f32 %v2908, %v2908
        %v2930 = vmul.f32 %v2910, %v2910
        %v2931 = vmul.f32 %v2913, %v2913
        %v2932 = vmul.f32 %v2915, %v2915
        %2933 = vadd.xlane.f32.xlu0 %v2917
        %v2934 = vpop.xlane.xlu0 %2933
        %2935 = vadd.xlane.f32.xlu0 %v2918
        %v2936 = vpop.xlane.xlu0 %2935
        %2937 = vadd.xlane.f32.xlu0 %v2919
        %v2938 = vpop.xlane.xlu0 %2937
        %2939 = vadd.xlane.f32.xlu0 %v2920
        %v2940 = vpop.xlane.xlu0 %2939
        %2941 = vadd.xlane.f32.xlu0 %v2921
        %v2942 = vpop.xlane.xlu0 %2941
        %2943 = vadd.xlane.f32.xlu0 %v2922
        %v2944 = vpop.xlane.xlu0 %2943
        %2945 = vadd.xlane.f32.xlu0 %v2923
        %v2946 = vpop.xlane.xlu0 %2945
        %2947 = vadd.xlane.f32.xlu0 %v2924
        %v2948 = vpop.xlane.xlu0 %2947
        %2949 = vadd.xlane.f32.xlu0 %v2925
        %v2950 = vpop.xlane.xlu0 %2949
        %2951 = vadd.xlane.f32.xlu0 %v2926
        %v2952 = vpop.xlane.xlu0 %2951
        %2953 = vadd.xlane.f32.xlu0 %v2927
        %v2954 = vpop.xlane.xlu0 %2953
        %2955 = vadd.xlane.f32.xlu0 %v2928
        %v2956 = vpop.xlane.xlu0 %2955
        %2957 = vadd.xlane.f32.xlu0 %v2929
        %v2958 = vpop.xlane.xlu0 %2957
        %2959 = vadd.xlane.f32.xlu0 %v2930
        %v2960 = vpop.xlane.xlu0 %2959
        %2961 = vadd.xlane.f32.xlu0 %v2931
        %v2962 = vpop.xlane.xlu0 %2961
        %2963 = vadd.xlane.f32.xlu0 %v2932
        %v2964 = vpop.xlane.xlu0 %2963
        %v2965 = vrsqrt.pop %v2934
        %v2966 = vmul.f32 %v2965, %v2934
        %v2967 = vmul.f32 %v2966, %v2965
        %v2968 = vmul.f32 0.5, %v2967
        %v2969 = vsub.f32 1.5, %v2968
        %v2970 = vmul.f32 %v2965, %v2969
        %vm2971 = vweird.f32 %v2934
        %vm2972 = vweird.f32 %v2965
        %vm2973 = vmor %vm2971, %vm2972
        %v2974 = vsel %vm2973, %v2965, %v2970
        %v2975 = vrsqrt.pop %v2936
        %v2976 = vmul.f32 %v2975, %v2936
        %v2977 = vmul.f32 %v2976, %v2975
        %v2978 = vmul.f32 0.5, %v2977
        %v2979 = vsub.f32 1.5, %v2978
        %v2980 = vmul.f32 %v2975, %v2979
        %vm2981 = vweird.f32 %v2936
        %vm2982 = vweird.f32 %v2975
        %vm2983 = vmor %vm2981, %vm2982
        %v2984 = vsel %vm2983, %v2975, %v2980
        %v2985 = vrsqrt.pop %v2938
        %v2986 = vmul.f32 %v2985, %v2938
        %v2987 = vmul.f32 %v2986, %v2985
        %v2988 = vmul.f32 0.5, %v2987
        %v2989 = vsub.f32 1.5, %v2988
        %v2990 = vmul.f32 %v2985, %v2989
        %vm2991 = vweird.f32 %v2938
        %vm2992 = vweird.f32 %v2985
        %vm2993 = vmor %vm2991, %vm2992
        %v2994 = vsel %vm2993, %v2985, %v2990
        %v2995 = vrsqrt.pop %v2940
        %v2996 = vmul.f32 %v2995, %v2940
        %v2997 = vmul.f32 %v2996, %v2995
        %v2998 = vmul.f32 0.5, %v2997
        %v2999 = vsub.f32 1.5, %v2998
        %v3000 = vmul.f32 %v2995, %v2999
        %vm3001 = vweird.f32 %v2940
        %vm3002 = vweird.f32 %v2995
        %vm3003 = vmor %vm3001, %vm3002
        %v3004 = vsel %vm3003, %v2995, %v3000
        %v3005 = vrsqrt.pop %v2942
        %v3006 = vmul.f32 %v3005, %v2942
        %v3007 = vmul.f32 %v3006, %v3005
        %v3008 = vmul.f32 0.5, %v3007
        %v3009 = vsub.f32 1.5, %v3008
        %v3010 = vmul.f32 %v3005, %v3009
        %vm3011 = vweird.f32 %v2942
        %vm3012 = vweird.f32 %v3005
        %vm3013 = vmor %vm3011, %vm3012
        %v3014 = vsel %vm3013, %v3005, %v3010
        %v3015 = vrsqrt.pop %v2944
        %v3016 = vmul.f32 %v3015, %v2944
        %v3017 = vmul.f32 %v3016, %v3015
        %v3018 = vmul.f32 0.5, %v3017
        %v3019 = vsub.f32 1.5, %v3018
        %v3020 = vmul.f32 %v3015, %v3019
        %vm3021 = vweird.f32 %v2944
        %vm3022 = vweird.f32 %v3015
        %vm3023 = vmor %vm3021, %vm3022
        %v3024 = vsel %vm3023, %v3015, %v3020
        %v3025 = vrsqrt.pop %v2946
        %v3026 = vmul.f32 %v3025, %v2946
        %v3027 = vmul.f32 %v3026, %v3025
        %v3028 = vmul.f32 0.5, %v3027
        %v3029 = vsub.f32 1.5, %v3028
        %v3030 = vmul.f32 %v3025, %v3029
        %vm3031 = vweird.f32 %v2946
        %vm3032 = vweird.f32 %v3025
        %vm3033 = vmor %vm3031, %vm3032
        %v3034 = vsel %vm3033, %v3025, %v3030
        %v3035 = vrsqrt.pop %v2948
        %v3036 = vmul.f32 %v3035, %v2948
        %v3037 = vmul.f32 %v3036, %v3035
        %v3038 = vmul.f32 0.5, %v3037
        %v3039 = vsub.f32 1.5, %v3038
        %v3040 = vmul.f32 %v3035, %v3039
        %vm3041 = vweird.f32 %v2948
        %vm3042 = vweird.f32 %v3035
        %vm3043 = vmor %vm3041, %vm3042
        %v3044 = vsel %vm3043, %v3035, %v3040
        %v3045 = vrsqrt.pop %v2950
        %v3046 = vmul.f32 %v3045, %v2950
        %v3047 = vmul.f32 %v3046, %v3045
        %v3048 = vmul.f32 0.5, %v3047
        %v3049 = vsub.f32 1.5, %v3048
        %v3050 = vmul.f32 %v3045, %v3049
        %vm3051 = vweird.f32 %v2950
        %vm3052 = vweird.f32 %v3045
        %vm3053 = vmor %vm3051, %vm3052
        %v3054 = vsel %vm3053, %v3045, %v3050
        %v3055 = vrsqrt.pop %v2952
        %v3056 = vmul.f32 %v3055, %v2952
        %v3057 = vmul.f32 %v3056, %v3055
        %v3058 = vmul.f32 0.5, %v3057
        %v3059 = vsub.f32 1.5, %v3058
        %v3060 = vmul.f32 %v3055, %v3059
        %vm3061 = vweird.f32 %v2952
        %vm3062 = vweird.f32 %v3055
        %vm3063 = vmor %vm3061, %vm3062
        %v3064 = vsel %vm3063, %v3055, %v3060
        %v3065 = vrsqrt.pop %v2954
        %v3066 = vmul.f32 %v3065, %v2954
        %v3067 = vmul.f32 %v3066, %v3065
        %v3068 = vmul.f32 0.5, %v3067
        %v3069 = vsub.f32 1.5, %v3068
        %v3070 = vmul.f32 %v3065, %v3069
        %vm3071 = vweird.f32 %v2954
        %vm3072 = vweird.f32 %v3065
        %vm3073 = vmor %vm3071, %vm3072
        %v3074 = vsel %vm3073, %v3065, %v3070
        %v3075 = vrsqrt.pop %v2956
        %v3076 = vmul.f32 %v3075, %v2956
        %v3077 = vmul.f32 %v3076, %v3075
        %v3078 = vmul.f32 0.5, %v3077
        %v3079 = vsub.f32 1.5, %v3078
        %v3080 = vmul.f32 %v3075, %v3079
        %vm3081 = vweird.f32 %v2956
        %vm3082 = vweird.f32 %v3075
        %vm3083 = vmor %vm3081, %vm3082
        %v3084 = vsel %vm3083, %v3075, %v3080
        %v3085 = vrsqrt.pop %v2958
        %v3086 = vmul.f32 %v3085, %v2958
        %v3087 = vmul.f32 %v3086, %v3085
        %v3088 = vmul.f32 0.5, %v3087
        %v3089 = vsub.f32 1.5, %v3088
        %v3090 = vmul.f32 %v3085, %v3089
        %vm3091 = vweird.f32 %v2958
        %vm3092 = vweird.f32 %v3085
        %vm3093 = vmor %vm3091, %vm3092
        %v3094 = vsel %vm3093, %v3085, %v3090
        %v3095 = vrsqrt.pop %v2960
        %v3096 = vmul.f32 %v3095, %v2960
        %v3097 = vmul.f32 %v3096, %v3095
        %v3098 = vmul.f32 0.5, %v3097
        %v3099 = vsub.f32 1.5, %v3098
        %v3100 = vmul.f32 %v3095, %v3099
        %vm3101 = vweird.f32 %v2960
        %vm3102 = vweird.f32 %v3095
        %vm3103 = vmor %vm3101, %vm3102
        %v3104 = vsel %vm3103, %v3095, %v3100
        %v3105 = vrsqrt.pop %v2962
        %v3106 = vmul.f32 %v3105, %v2962
        %v3107 = vmul.f32 %v3106, %v3105
        %v3108 = vmul.f32 0.5, %v3107
        %v3109 = vsub.f32 1.5, %v3108
        %v3110 = vmul.f32 %v3105, %v3109
        %vm3111 = vweird.f32 %v2962
        %vm3112 = vweird.f32 %v3105
        %vm3113 = vmor %vm3111, %vm3112
        %v3114 = vsel %vm3113, %v3105, %v3110
        %v3115 = vrsqrt.pop %v2964
        %v3116 = vmul.f32 %v3115, %v2964
        %v3117 = vmul.f32 %v3116, %v3115
        %v3118 = vmul.f32 0.5, %v3117
        %v3119 = vsub.f32 1.5, %v3118
        %v3120 = vmul.f32 %v3115, %v3119
        %vm3121 = vweird.f32 %v2964
        %vm3122 = vweird.f32 %v3115
        %vm3123 = vmor %vm3121, %vm3122
        %v3124 = vsel %vm3123, %v3115, %v3120
        %v3125 = vmul.f32 %v2878, %v2974
        %v3126 = vmul.f32 %v2880, %v2984
        %v3127 = vmul.f32 %v2883, %v2994
        %v3128 = vmul.f32 %v2885, %v3004
        %v3129 = vmul.f32 %v2888, %v3014
        %v3130 = vmul.f32 %v2890, %v3024
        %v3131 = vmul.f32 %v2893, %v3034
        %v3132 = vmul.f32 %v2895, %v3044
        %v3133 = vmul.f32 %v2898, %v3054
        %v3134 = vmul.f32 %v2900, %v3064
        %v3135 = vmul.f32 %v2903, %v3074
        %v3136 = vmul.f32 %v2905, %v3084
        %v3137 = vmul.f32 %v2908, %v3094
        %v3138 = vmul.f32 %v2910, %v3104
        %v3139 = vmul.f32 %v2913, %v3114
        %v3140 = vmul.f32 %v2915, %v3124
        %v3141 = vadd.f32 %v2787, %v3125
        %v3142 = vadd.f32 %v2788, %v3126
        %v3143 = vadd.f32 %v2789, %v3127
        %v3144 = vadd.f32 %v2790, %v3128
        %v3145 = vadd.f32 %v2791, %v3129
        %v3146 = vadd.f32 %v2792, %v3130
        %v3147 = vadd.f32 %v2793, %v3131
        %v3148 = vadd.f32 %v2794, %v3132
        %v3149 = vadd.f32 %v2795, %v3133
        %v3150 = vadd.f32 %v2796, %v3134
        %v3151 = vadd.f32 %v2797, %v3135
        %v3152 = vadd.f32 %v2798, %v3136
        %v3153 = vadd.f32 %v2799, %v3137
        %v3154 = vadd.f32 %v2800, %v3138
        %v3155 = vadd.f32 %v2801, %v3139
        %v3156 = vadd.f32 %v2802, %v3140
        %3157 = vst [vmem:[%s222] sm:$0xff] %v3141
        %3158 = vst [vmem:[%s222 + $0x8] sm:$0xff] %v3142
        %3159 = vst [vmem:[%s222 + $0x10] sm:$0xff] %v3143
        %3160 = vst [vmem:[%s222 + $0x18] sm:$0xff] %v3144
        %3161 = vst [vmem:[%s222 + $0x20] sm:$0xff] %v3145
        %3162 = vst [vmem:[%s222 + $0x28] sm:$0xff] %v3146
        %3163 = vst [vmem:[%s222 + $0x30] sm:$0xff] %v3147
        %3164 = vst [vmem:[%s222 + $0x38] sm:$0xff] %v3148
        %3165 = vst [vmem:[%s222 + $0x40] sm:$0xff] %v3149
        %3166 = vst [vmem:[%s222 + $0x48] sm:$0xff] %v3150
        %3167 = vst [vmem:[%s222 + $0x50] sm:$0xff] %v3151
        %3168 = vst [vmem:[%s222 + $0x58] sm:$0xff] %v3152
        %3169 = vst [vmem:[%s222 + $0x60] sm:$0xff] %v3153
        %3170 = vst [vmem:[%s222 + $0x68] sm:$0xff] %v3154
        %3171 = vst [vmem:[%s222 + $0x70] sm:$0xff] %v3155
        %3172 = vst [vmem:[%s222 + $0x78] sm:$0xff] %v3156
        // Predicated region
        $region41: #{tpu_custom_call.1} parent=27 // pred_check
          %p3173 = pneg %p226
        $region42: #{tpu_custom_call.1} parent=27 // pred_check_branch
          %3175 = sbr.rel (%p3173) target = $region44
        $region43: #{tpu_custom_call.1} parent=27 // pred_region
          %v3176 = vld [vmem:[%s222] sm:$0xff]
          %v3177 = vld [vmem:[%s222 + $0x8] sm:$0xff]
          %v3178 = vld [vmem:[%s222 + $0x10] sm:$0xff]
          %v3179 = vld [vmem:[%s222 + $0x18] sm:$0xff]
          %v3180 = vld [vmem:[%s222 + $0x20] sm:$0xff]
          %v3181 = vld [vmem:[%s222 + $0x28] sm:$0xff]
          %v3182 = vld [vmem:[%s222 + $0x30] sm:$0xff]
          %v3183 = vld [vmem:[%s222 + $0x38] sm:$0xff]
          %v3184 = vld [vmem:[%s222 + $0x40] sm:$0xff]
          %v3185 = vld [vmem:[%s222 + $0x48] sm:$0xff]
          %v3186 = vld [vmem:[%s222 + $0x50] sm:$0xff]
          %v3187 = vld [vmem:[%s222 + $0x58] sm:$0xff]
          %v3188 = vld [vmem:[%s222 + $0x60] sm:$0xff]
          %v3189 = vld [vmem:[%s222 + $0x68] sm:$0xff]
          %v3190 = vld [vmem:[%s222 + $0x70] sm:$0xff]
          %v3191 = vld [vmem:[%s222 + $0x78] sm:$0xff]
          %v3192 = vmul.f32 %v3176, %v3176
          %v3193 = vmul.f32 %v3177, %v3177
          %v3194 = vmul.f32 %v3178, %v3178
          %v3195 = vmul.f32 %v3179, %v3179
          %v3196 = vmul.f32 %v3180, %v3180
          %v3197 = vmul.f32 %v3181, %v3181
          %v3198 = vmul.f32 %v3182, %v3182
          %v3199 = vmul.f32 %v3183, %v3183
          %v3200 = vmul.f32 %v3184, %v3184
          %v3201 = vmul.f32 %v3185, %v3185
          %v3202 = vmul.f32 %v3186, %v3186
          %v3203 = vmul.f32 %v3187, %v3187
          %v3204 = vmul.f32 %v3188, %v3188
          %v3205 = vmul.f32 %v3189, %v3189
          %v3206 = vmul.f32 %v3190, %v3190
          %v3207 = vmul.f32 %v3191, %v3191
          %3208 = vadd.xlane.f32.xlu0 %v3192
          %v3209 = vpop.xlane.xlu0 %3208
          %3210 = vadd.xlane.f32.xlu0 %v3193
          %v3211 = vpop.xlane.xlu0 %3210
          %3212 = vadd.xlane.f32.xlu0 %v3194
          %v3213 = vpop.xlane.xlu0 %3212
          %3214 = vadd.xlane.f32.xlu0 %v3195
          %v3215 = vpop.xlane.xlu0 %3214
          %3216 = vadd.xlane.f32.xlu0 %v3196
          %v3217 = vpop.xlane.xlu0 %3216
          %3218 = vadd.xlane.f32.xlu0 %v3197
          %v3219 = vpop.xlane.xlu0 %3218
          %3220 = vadd.xlane.f32.xlu0 %v3198
          %v3221 = vpop.xlane.xlu0 %3220
          %3222 = vadd.xlane.f32.xlu0 %v3199
          %v3223 = vpop.xlane.xlu0 %3222
          %3224 = vadd.xlane.f32.xlu0 %v3200
          %v3225 = vpop.xlane.xlu0 %3224
          %3226 = vadd.xlane.f32.xlu0 %v3201
          %v3227 = vpop.xlane.xlu0 %3226
          %3228 = vadd.xlane.f32.xlu0 %v3202
          %v3229 = vpop.xlane.xlu0 %3228
          %3230 = vadd.xlane.f32.xlu0 %v3203
          %v3231 = vpop.xlane.xlu0 %3230
          %3232 = vadd.xlane.f32.xlu0 %v3204
          %v3233 = vpop.xlane.xlu0 %3232
          %3234 = vadd.xlane.f32.xlu0 %v3205
          %v3235 = vpop.xlane.xlu0 %3234
          %3236 = vadd.xlane.f32.xlu0 %v3206
          %v3237 = vpop.xlane.xlu0 %3236
          %3238 = vadd.xlane.f32.xlu0 %v3207
          %v3239 = vpop.xlane.xlu0 %3238
          %v3240 = vrsqrt.pop %v3209
          %v3241 = vmul.f32 %v3240, %v3209
          %v3242 = vmul.f32 %v3241, %v3240
          %v3243 = vmul.f32 0.5, %v3242
          %v3244 = vsub.f32 1.5, %v3243
          %v3245 = vmul.f32 %v3240, %v3244
          %vm3246 = vweird.f32 %v3209
          %vm3247 = vweird.f32 %v3240
          %vm3248 = vmor %vm3246, %vm3247
          %v3249 = vsel %vm3248, %v3240, %v3245
          %v3250 = vrsqrt.pop %v3211
          %v3251 = vmul.f32 %v3250, %v3211
          %v3252 = vmul.f32 %v3251, %v3250
          %v3253 = vmul.f32 0.5, %v3252
          %v3254 = vsub.f32 1.5, %v3253
          %v3255 = vmul.f32 %v3250, %v3254
          %vm3256 = vweird.f32 %v3211
          %vm3257 = vweird.f32 %v3250
          %vm3258 = vmor %vm3256, %vm3257
          %v3259 = vsel %vm3258, %v3250, %v3255
          %v3260 = vrsqrt.pop %v3213
          %v3261 = vmul.f32 %v3260, %v3213
          %v3262 = vmul.f32 %v3261, %v3260
          %v3263 = vmul.f32 0.5, %v3262
          %v3264 = vsub.f32 1.5, %v3263
          %v3265 = vmul.f32 %v3260, %v3264
          %vm3266 = vweird.f32 %v3213
          %vm3267 = vweird.f32 %v3260
          %vm3268 = vmor %vm3266, %vm3267
          %v3269 = vsel %vm3268, %v3260, %v3265
          %v3270 = vrsqrt.pop %v3215
          %v3271 = vmul.f32 %v3270, %v3215
          %v3272 = vmul.f32 %v3271, %v3270
          %v3273 = vmul.f32 0.5, %v3272
          %v3274 = vsub.f32 1.5, %v3273
          %v3275 = vmul.f32 %v3270, %v3274
          %vm3276 = vweird.f32 %v3215
          %vm3277 = vweird.f32 %v3270
          %vm3278 = vmor %vm3276, %vm3277
          %v3279 = vsel %vm3278, %v3270, %v3275
          %v3280 = vrsqrt.pop %v3217
          %v3281 = vmul.f32 %v3280, %v3217
          %v3282 = vmul.f32 %v3281, %v3280
          %v3283 = vmul.f32 0.5, %v3282
          %v3284 = vsub.f32 1.5, %v3283
          %v3285 = vmul.f32 %v3280, %v3284
          %vm3286 = vweird.f32 %v3217
          %vm3287 = vweird.f32 %v3280
          %vm3288 = vmor %vm3286, %vm3287
          %v3289 = vsel %vm3288, %v3280, %v3285
          %v3290 = vrsqrt.pop %v3219
          %v3291 = vmul.f32 %v3290, %v3219
          %v3292 = vmul.f32 %v3291, %v3290
          %v3293 = vmul.f32 0.5, %v3292
          %v3294 = vsub.f32 1.5, %v3293
          %v3295 = vmul.f32 %v3290, %v3294
          %vm3296 = vweird.f32 %v3219
          %vm3297 = vweird.f32 %v3290
          %vm3298 = vmor %vm3296, %vm3297
          %v3299 = vsel %vm3298, %v3290, %v3295
          %v3300 = vrsqrt.pop %v3221
          %v3301 = vmul.f32 %v3300, %v3221
          %v3302 = vmul.f32 %v3301, %v3300
          %v3303 = vmul.f32 0.5, %v3302
          %v3304 = vsub.f32 1.5, %v3303
          %v3305 = vmul.f32 %v3300, %v3304
          %vm3306 = vweird.f32 %v3221
          %vm3307 = vweird.f32 %v3300
          %vm3308 = vmor %vm3306, %vm3307
          %v3309 = vsel %vm3308, %v3300, %v3305
          %v3310 = vrsqrt.pop %v3223
          %v3311 = vmul.f32 %v3310, %v3223
          %v3312 = vmul.f32 %v3311, %v3310
          %v3313 = vmul.f32 0.5, %v3312
          %v3314 = vsub.f32 1.5, %v3313
          %v3315 = vmul.f32 %v3310, %v3314
          %vm3316 = vweird.f32 %v3223
          %vm3317 = vweird.f32 %v3310
          %vm3318 = vmor %vm3316, %vm3317
          %v3319 = vsel %vm3318, %v3310, %v3315
          %v3320 = vrsqrt.pop %v3225
          %v3321 = vmul.f32 %v3320, %v3225
          %v3322 = vmul.f32 %v3321, %v3320
          %v3323 = vmul.f32 0.5, %v3322
          %v3324 = vsub.f32 1.5, %v3323
          %v3325 = vmul.f32 %v3320, %v3324
          %vm3326 = vweird.f32 %v3225
          %vm3327 = vweird.f32 %v3320
          %vm3328 = vmor %vm3326, %vm3327
          %v3329 = vsel %vm3328, %v3320, %v3325
          %v3330 = vrsqrt.pop %v3227
          %v3331 = vmul.f32 %v3330, %v3227
          %v3332 = vmul.f32 %v3331, %v3330
          %v3333 = vmul.f32 0.5, %v3332
          %v3334 = vsub.f32 1.5, %v3333
          %v3335 = vmul.f32 %v3330, %v3334
          %vm3336 = vweird.f32 %v3227
          %vm3337 = vweird.f32 %v3330
          %vm3338 = vmor %vm3336, %vm3337
          %v3339 = vsel %vm3338, %v3330, %v3335
          %v3340 = vrsqrt.pop %v3229
          %v3341 = vmul.f32 %v3340, %v3229
          %v3342 = vmul.f32 %v3341, %v3340
          %v3343 = vmul.f32 0.5, %v3342
          %v3344 = vsub.f32 1.5, %v3343
          %v3345 = vmul.f32 %v3340, %v3344
          %vm3346 = vweird.f32 %v3229
          %vm3347 = vweird.f32 %v3340
          %vm3348 = vmor %vm3346, %vm3347
          %v3349 = vsel %vm3348, %v3340, %v3345
          %v3350 = vrsqrt.pop %v3231
          %v3351 = vmul.f32 %v3350, %v3231
          %v3352 = vmul.f32 %v3351, %v3350
          %v3353 = vmul.f32 0.5, %v3352
          %v3354 = vsub.f32 1.5, %v3353
          %v3355 = vmul.f32 %v3350, %v3354
          %vm3356 = vweird.f32 %v3231
          %vm3357 = vweird.f32 %v3350
          %vm3358 = vmor %vm3356, %vm3357
          %v3359 = vsel %vm3358, %v3350, %v3355
          %v3360 = vrsqrt.pop %v3233
          %v3361 = vmul.f32 %v3360, %v3233
          %v3362 = vmul.f32 %v3361, %v3360
          %v3363 = vmul.f32 0.5, %v3362
          %v3364 = vsub.f32 1.5, %v3363
          %v3365 = vmul.f32 %v3360, %v3364
          %vm3366 = vweird.f32 %v3233
          %vm3367 = vweird.f32 %v3360
          %vm3368 = vmor %vm3366, %vm3367
          %v3369 = vsel %vm3368, %v3360, %v3365
          %v3370 = vrsqrt.pop %v3235
          %v3371 = vmul.f32 %v3370, %v3235
          %v3372 = vmul.f32 %v3371, %v3370
          %v3373 = vmul.f32 0.5, %v3372
          %v3374 = vsub.f32 1.5, %v3373
          %v3375 = vmul.f32 %v3370, %v3374
          %vm3376 = vweird.f32 %v3235
          %vm3377 = vweird.f32 %v3370
          %vm3378 = vmor %vm3376, %vm3377
          %v3379 = vsel %vm3378, %v3370, %v3375
          %v3380 = vrsqrt.pop %v3237
          %v3381 = vmul.f32 %v3380, %v3237
          %v3382 = vmul.f32 %v3381, %v3380
          %v3383 = vmul.f32 0.5, %v3382
          %v3384 = vsub.f32 1.5, %v3383
          %v3385 = vmul.f32 %v3380, %v3384
          %vm3386 = vweird.f32 %v3237
          %vm3387 = vweird.f32 %v3380
          %vm3388 = vmor %vm3386, %vm3387
          %v3389 = vsel %vm3388, %v3380, %v3385
          %v3390 = vrsqrt.pop %v3239
          %v3391 = vmul.f32 %v3390, %v3239
          %v3392 = vmul.f32 %v3391, %v3390
          %v3393 = vmul.f32 0.5, %v3392
          %v3394 = vsub.f32 1.5, %v3393
          %v3395 = vmul.f32 %v3390, %v3394
          %vm3396 = vweird.f32 %v3239
          %vm3397 = vweird.f32 %v3390
          %vm3398 = vmor %vm3396, %vm3397
          %v3399 = vsel %vm3398, %v3390, %v3395
          %v3400 = vmul.f32 %v3176, %v3249
          %v3401 = vmul.f32 %v3177, %v3259
          %v3402 = vmul.f32 %v3178, %v3269
          %v3403 = vmul.f32 %v3179, %v3279
          %v3404 = vmul.f32 %v3180, %v3289
          %v3405 = vmul.f32 %v3181, %v3299
          %v3406 = vmul.f32 %v3182, %v3309
          %v3407 = vmul.f32 %v3183, %v3319
          %v3408 = vmul.f32 %v3184, %v3329
          %v3409 = vmul.f32 %v3185, %v3339
          %v3410 = vmul.f32 %v3186, %v3349
          %v3411 = vmul.f32 %v3187, %v3359
          %v3412 = vmul.f32 %v3188, %v3369
          %v3413 = vmul.f32 %v3189, %v3379
          %v3414 = vmul.f32 %v3190, %v3389
          %v3415 = vmul.f32 %v3191, %v3399
          %3416 = vst [vmem:[%s222] sm:$0xff] %v3400
          %3417 = vst [vmem:[%s222 + $0x8] sm:$0xff] %v3401
          %3418 = vst [vmem:[%s222 + $0x10] sm:$0xff] %v3402
          %3419 = vst [vmem:[%s222 + $0x18] sm:$0xff] %v3403
          %3420 = vst [vmem:[%s222 + $0x20] sm:$0xff] %v3404
          %3421 = vst [vmem:[%s222 + $0x28] sm:$0xff] %v3405
          %3422 = vst [vmem:[%s222 + $0x30] sm:$0xff] %v3406
          %3423 = vst [vmem:[%s222 + $0x38] sm:$0xff] %v3407
          %3424 = vst [vmem:[%s222 + $0x40] sm:$0xff] %v3408
          %3425 = vst [vmem:[%s222 + $0x48] sm:$0xff] %v3409
          %3426 = vst [vmem:[%s222 + $0x50] sm:$0xff] %v3410
          %3427 = vst [vmem:[%s222 + $0x58] sm:$0xff] %v3411
          %3428 = vst [vmem:[%s222 + $0x60] sm:$0xff] %v3412
          %3429 = vst [vmem:[%s222 + $0x68] sm:$0xff] %v3413
          %3430 = vst [vmem:[%s222 + $0x70] sm:$0xff] %v3414
          %3431 = vst [vmem:[%s222 + $0x78] sm:$0xff] %v3415
        $region44: #{tpu_custom_call.1} parent=27 // pred_fallthru
          _
        %s3432 = sand.u32 %s89, 1
        %s3433 = scalar_lea.sflag [#allocation4], %s3432
        %s3434 = sand.u32 %s89, 1
        %s3435 = smul.addr %s3434, 128
        %s3436 = scalar_lea.vmem [#allocation7], %s3435
        // Predicated region
        $region45: #{tpu_custom_call.1} parent=27 // pred_check
          %p3437 = pneg %p99
        $region46: #{tpu_custom_call.1} parent=27 // pred_check_branch
          %3439 = sbr.rel (%p3437) target = $region48
        $region47: #{tpu_custom_call.1} parent=27 // pred_region
          %s3440 = smul.u32 16, %s24
          %3442 = vsyncadd %s3433, 0
          %s3443 = smul.addr %s3440, 8
          %s3444 = scalar_lea.hbm %s2, %s3443
          %s3445 = sshll.u32 %s3436, 4
          %s3446 = int_to_ptr.vmem [resolvable:$true] %s3445
          %s3447 = sshll.u32 %s3444, 4
          %s3448 = int_to_ptr.hbm [resolvable:$true] %s3447
          %3453 = dma.vmem_to_hbm [thread:$0]  %s3446, 2048, %s3448, %s3433, 128, 128, 8
        $region48: #{tpu_custom_call.1} parent=27 // pred_fallthru
          _
      $region28: #{tpu_custom_call.1} parent=5 // pred_fallthru
        _
      %p3454 = scmp.le.s32.totalorder 2, %s15
      // Predicated region
      $region49: #{tpu_custom_call.1} parent=5 // pred_check
        %p3455 = pneg %p3454
      $region50: #{tpu_custom_call.1} parent=5 // pred_check_branch
        %3457 = sbr.rel (%p3455) target = $region52
      $region51: #{tpu_custom_call.1} parent=5 // pred_region
        %s3458 = ssub.s32 %s15, 2
        // Predicated region
        $region53: #{tpu_custom_call.1} parent=51 // pred_check
          %p3459 = pneg %p105
        $region54: #{tpu_custom_call.1} parent=51 // pred_check_branch
          %3461 = sbr.rel (%p3459) target = $region56
        $region55: #{tpu_custom_call.1} parent=51 // pred_region
          %s3462 = sand.u32 %s90, 1
          %s3463 = scalar_lea.sflag [#allocation4], %s3462
          %s3464 = sand.u32 %s90, 1
          %s3465 = smul.addr %s3464, 128
          %s3466 = scalar_lea.vmem [#allocation7], %s3465
          %3468 = dma.done %s3463, 2048
        $region56: #{tpu_custom_call.1} parent=51 // pred_fallthru
          _
      $region52: #{tpu_custom_call.1} parent=5 // pred_fallthru
        _
    $region6: #{tpu_custom_call.1} parent=1 // loop_footer
      %s19 = sadd.s32 1, %s15
    $region7: #{tpu_custom_call.1} parent=1 // loop_footer_branch
      %14 = sbr.rel target = $region3
    $region8: #{tpu_custom_call.1} parent=1 // loop_exit
      _
    %3469 = vsyncpa [#allocation3], 1
    %s3470 = scalar_lea.sflag [#allocation3], 1
    %3471 = vsyncpa %s3470, 1
    %3472 = vsyncpa [#allocation6], 1
    %3473 = vsyncpa [#allocation4], 1
    %s3474 = scalar_lea.sflag [#allocation4], 1
    %3475 = vsyncpa %s3474, 1

</llo_original>
